<compile_context>
chip_gen: v6e
topology: v6e:2x2x1
jax: 0.10.0
libtpu: 0.0.40
codegen_flags: <defaults>
</compile_context>

<pallas_src>
import functools

import jax
import jax.numpy as jnp
from jax.experimental import pallas as pl
from jax.experimental.pallas import tpu as pltpu


def _round_up(x, m):
    return (x + m - 1) // m * m


# ----------------------------------------------------------------------------
# Kernel 1: conv1 -> conv2 -> conv3, one image per grid step, all in VMEM.
# ----------------------------------------------------------------------------
# a1 (conv1 output, 20x20x32) is kept as a (400, 32) matrix whose row index is
#   ry*200 + iy*20 + rx*10 + jx   with (oh1, ow1) = (2*iy + ry, 2*jx + rx),
# so that for every conv2 offset (dy, dx) the required inputs are a contiguous
# 169-row slice (pure shift) of a 180-row band.  conv2 is evaluated on a
# 169-row "frame" (frame row t = oh2*20 + ow2); conv3 (stride 1) reads the
# same frame with shifts dy*20+dx, and its 7x7x64 output is extracted with 7
# contiguous slices.  Everything is 2D matmul + static slice + concat.
def _convs_kernel(p1_ref, w1_ref, b1_ref, w2_ref, b2_ref, w3_ref, b3_ref,
                  feat_ref):
    # ---- conv1: (400, K1) @ (K1, 32), bias + ReLU in f32 ------------------
    p1 = p1_ref[0]                                              # (400, K1) bf16
    a1 = jnp.dot(p1, w1_ref[...], preferred_element_type=jnp.float32)
    a1 = jnp.maximum(a1 + b1_ref[...], 0.0).astype(jnp.bfloat16)      # (400, 32)

    # ---- conv2 (k=4, s=2): 20x20x32 -> 9x9x64 on a 169-row frame ----------
    acc = None
    for dy in range(4):
        qy, ry = dy // 2, dy % 2
        base = ry * 200 + qy * 20
        cols = []
        for dx in range(4):
            qx, rx = dx // 2, dx % 2
            s = base + rx * 10 + qx
            cols.append(a1[s:s + 169, :])                       # (169, 32)
        p2 = jnp.concatenate(cols, axis=1)                      # (169, 128)
        w2d = w2_ref[dy * 128:(dy + 1) * 128, :]                # (128, 64)
        z = jnp.dot(p2, w2d, preferred_element_type=jnp.float32)
        acc = z if acc is None else acc + z
    # frame row t = oh2*20 + ow2 holds conv2 output (oh2, ow2) for ow2 < 9.
    f2 = jnp.maximum(acc + b2_ref[...], 0.0).astype(jnp.bfloat16)     # (169, 64)

    # ---- conv3 (k=3, s=1): read the conv2 frame directly ------------------
    cols = []
    for dy in range(3):
        for dx in range(3):
            s = dy * 20 + dx
            cols.append(f2[s:s + 127, :])                       # (127, 64)
    p3 = jnp.concatenate(cols, axis=1)                          # (127, 576)
    z3 = jnp.dot(p3, w3_ref[...], preferred_element_type=jnp.float32)
    f3 = jnp.maximum(z3 + b3_ref[...], 0.0)                     # (127, 64) f32
    # frame row t = oh3*20 + ow3 holds conv3 output (oh3, ow3) for ow3 < 7.
    rows = [f3[oh * 20: oh * 20 + 7, :] for oh in range(7)]
    feat_ref[0] = jnp.concatenate(rows, axis=0).astype(feat_ref.dtype)  # (49,64)


def conv_stack_pallas(p1, w1, b1, w2, b2, w3, b3):
    """p1: (B, 400, K1) bf16 -> (B, 49, 64) bf16 conv3 activations (h, w, c)."""
    B, M1, K1 = p1.shape
    return pl.pallas_call(
        _convs_kernel,
        out_shape=jax.ShapeDtypeStruct((B, 49, 64), jnp.bfloat16),
        grid=(B,),
        in_specs=[
            pl.BlockSpec((1, M1, K1), lambda b: (b, 0, 0)),   # per-image patches
            pl.BlockSpec((K1, 32), lambda b: (0, 0)),         # weights / biases
            pl.BlockSpec((1, 32), lambda b: (0, 0)),          # stay resident
            pl.BlockSpec((512, 64), lambda b: (0, 0)),
            pl.BlockSpec((1, 64), lambda b: (0, 0)),
            pl.BlockSpec((576, 64), lambda b: (0, 0)),
            pl.BlockSpec((1, 64), lambda b: (0, 0)),
        ],
        out_specs=pl.BlockSpec((1, 49, 64), lambda b: (b, 0, 0)),
        compiler_params=pltpu.CompilerParams(
            dimension_semantics=("parallel",)),               # batch across TCs
    )(p1, w1, b1, w2, b2, w3, b3)


# ----------------------------------------------------------------------------
# Kernel 2: fused FC head  Linear(3136,512) + ReLU + Linear(512,Npad)
# ----------------------------------------------------------------------------
def _fc_head_kernel(x_ref, w4_ref, b4_ref, w5_ref, b5_ref, o_ref):
    h = jnp.dot(x_ref[...], w4_ref[...], preferred_element_type=jnp.float32)
    h = jnp.maximum(h + b4_ref[...], 0.0)                     # bias + ReLU in f32
    q = jnp.dot(h.astype(jnp.bfloat16), w5_ref[...],
                preferred_element_type=jnp.float32)
    o_ref[...] = (q + b5_ref[...]).astype(o_ref.dtype)


def fc_head_pallas(x, w4, b4_row, w5, b5_row, *, block_m=256):
    """x:(M,K) bf16, w4:(K,512) bf16, w5:(512,Npad) bf16, biases (1,*) f32."""
    M, K = x.shape
    N1 = w4.shape[1]
    N2 = w5.shape[1]
    # >= 2 grid steps whenever M allows (keeps both v7x cores busy at training
    # batch); at tiny M the head is weight-DMA bound so grid=1 is fine.
    # block_m <= 256 keeps ~10 MB VMEM, inside v5e's default scoped limit.
    bm = min(block_m, _round_up(pl.cdiv(M, 2), 16))
    grid = (pl.cdiv(M, bm),)
    return pl.pallas_call(
        _fc_head_kernel,
        out_shape=jax.ShapeDtypeStruct((M, N2), jnp.float32),
        grid=grid,
        in_specs=[
            pl.BlockSpec((bm, K), lambda i: (i, 0)),          # A tile
            pl.BlockSpec((K, N1), lambda i: (0, 0)),          # resident weights
            pl.BlockSpec((1, N1), lambda i: (0, 0)),
            pl.BlockSpec((N1, N2), lambda i: (0, 0)),
            pl.BlockSpec((1, N2), lambda i: (0, 0)),
        ],
        out_specs=pl.BlockSpec((bm, N2), lambda i: (i, 0)),
        compiler_params=pltpu.CompilerParams(
            dimension_semantics=("parallel",)),
    )(x, w4, b4_row, w5, b5_row)


# ----------------------------------------------------------------------------
# XLA-side conv1 patch builder (pure rearrangement, bf16, no f32 / no NHWC)
# ----------------------------------------------------------------------------
def _build_conv1_patches(x_nchw):
    """(B, C, 84, 84) uint8 -> (B, 400, C*64) bf16 conv1 patch matrix.

    Feature order (c, dy, dx); row order ry*200 + iy*20 + rx*10 + jx with
    conv1 output (oh1, ow1) = (2*iy + ry, 2*jx + rx), so the fused kernel's
    stride-2 conv2 only ever needs contiguous row slices.  uint8 is cast
    straight to bf16 (exact for 0..255); the 1/255 scale lives in w1.
    """
    B, C, H, W = x_nchw.shape
    assert H == 84 and W == 84, "DQN fc layer requires 84x84 inputs"
    xb = x_nchw.astype(jnp.bfloat16)
    feats = []
    for c in range(C):
        for dy in range(8):
            for dx in range(8):
                feats.append(xb[:, c, dy:dy + 80:4, dx:dx + 80:4])  # (B,20,20)
    p = jnp.stack(feats, axis=-1)                     # (B, 20, 20, C*64)
    p = p.reshape(B, 10, 2, 10, 2, C * 64)            # (B, iy, ry, jx, rx, F)
    p = jnp.transpose(p, (0, 2, 1, 4, 3, 5))          # (B, ry, iy, rx, jx, F)
    return p.reshape(B, 400, C * 64)


# ----------------------------------------------------------------------------
# Parameter init (torch layouts) + one-time kernel-ready preparation
# ----------------------------------------------------------------------------
def init_params(key, in_channels=4, n_actions=14):
    """Deterministic PyTorch-layout parameters (uniform +-1/sqrt(fan_in))."""
    ks = jax.random.split(key, 10)

    def uni(k, shape, fan_in):
        bound = 1.0 / jnp.sqrt(jnp.float32(fan_in))
        return jax.random.uniform(k, shape, jnp.float32, -bound, bound)

    p = {}
    p["w1"] = uni(ks[0], (32, in_channels, 8, 8), in_channels * 8 * 8)
    p["b1"] = uni(ks[1], (32,), in_channels * 8 * 8)
    p["w2"] = uni(ks[2], (64, 32, 4, 4), 32 * 4 * 4)
    p["b2"] = uni(ks[3], (64,), 32 * 4 * 4)
    p["w3"] = uni(ks[4], (64, 64, 3, 3), 64 * 3 * 3)
    p["b3"] = uni(ks[5], (64,), 64 * 3 * 3)
    p["w4"] = uni(ks[6], (512, 7 * 7 * 64), 7 * 7 * 64)
    p["b4"] = uni(ks[7], (512,), 7 * 7 * 64)
    p["w5"] = uni(ks[8], (n_actions, 512), 512)
    p["b5"] = uni(ks[9], (n_actions,), 512)
    return p


def prepare_params(raw):
    """One-time conversion of torch-layout weights into kernel-ready layouts."""
    def conv_w(w, order, scale=None):
        if scale is not None:
            w = w * scale
        m = jnp.transpose(w, order).reshape(-1, w.shape[0])
        return m.astype(jnp.bfloat16)

    def row(b, pad_to=None):
        b = b.reshape(1, -1).astype(jnp.float32)
        if pad_to is not None and b.shape[1] < pad_to:
            b = jnp.pad(b, ((0, 0), (0, pad_to - b.shape[1])))
        return b

    p = {}
    # conv1: rows (c, dy, dx); fold the x/255 input scale into the weight.
    p["w1"] = conv_w(raw["w1"], (1, 2, 3, 0), scale=1.0 / 255.0)
    p["b1"] = row(raw["b1"])
    # conv2 / conv3: rows (dy, dx, c) to match the in-kernel patch column order.
    p["w2"] = conv_w(raw["w2"], (2, 3, 1, 0))
    p["b2"] = row(raw["b2"])
    p["w3"] = conv_w(raw["w3"], (2, 3, 1, 0))
    p["b3"] = row(raw["b3"])

    # FC1: torch flattens NCHW (c,h,w); our conv3 output flattens (h,w,c).
    # Permute w4's rows once so the forward needs no activation transpose.
    C, H, W = 64, 7, 7
    w4 = raw["w4"].reshape(512, C, H, W)
    w4 = jnp.transpose(w4, (2, 3, 1, 0)).reshape(H * W * C, 512)
    p["w4"] = w4.astype(jnp.bfloat16)
    p["b4"] = row(raw["b4"])

    # Head: pre-transpose to (512, n_actions), pad N to a 128-lane tile.
    n_actions = raw["w5"].shape[0]
    n_pad = _round_up(n_actions, 128)
    w5 = jnp.pad(raw["w5"].T, ((0, 0), (0, n_pad - n_actions)))
    p["w5"] = w5.astype(jnp.bfloat16)
    p["b5"] = row(raw["b5"], pad_to=n_pad)
    return p, n_actions


# ----------------------------------------------------------------------------
# Forward pass (matches DQN.forward semantics)
# ----------------------------------------------------------------------------
@functools.partial(jax.jit, static_argnames=("n_actions",))
def dqn_forward(params, x_nchw, *, n_actions):
    B = x_nchw.shape[0]
    p1 = _build_conv1_patches(x_nchw)                         # (B, 400, 256) bf16
    feat = conv_stack_pallas(p1, params["w1"], params["b1"],
                             params["w2"], params["b2"],
                             params["w3"], params["b3"])      # (B, 49, 64) bf16
    # (h, w, c) flatten; w4 rows were pre-permuted to match torch's NCHW view.
    xf = feat.reshape(B, 49 * 64)                             # (B, 3136) bf16
    # TODO(synk): folding the FC head into the conv kernel would need an
    # in-kernel (49,64)->(1,3136) sublane->lane reshape; kept as a 2nd call.
    q = fc_head_pallas(xf, params["w4"], params["b4"],
                       params["w5"], params["b5"])            # (B, 128) f32
    return q[:, :n_actions]                                   # (B, n_actions)


# ----------------------------------------------------------------------------
if __name__ == "__main__":
    key = jax.random.PRNGKey(0)
    k_param, k_data = jax.random.split(key)

    raw = init_params(k_param, in_channels=4, n_actions=14)
    params, n_actions = prepare_params(raw)

    # Batch of 2 Atari-style frames: (B, C, H, W) = (2, 4, 84, 84), uint8.
    # (84x84 spatial size is forced by the fc layer: 7*7*64 after the convs.)
    x = jax.random.randint(k_data, (2, 4, 84, 84), 0, 256, dtype=jnp.int32)
    x = x.astype(jnp.uint8)

    out = dqn_forward(params, x, n_actions=n_actions)
    out = jax.block_until_ready(out)
    assert out.shape == (2, 14) and out.dtype == jnp.float32
    assert bool(jnp.all(jnp.isfinite(out)))
    print("KERNEL_OK")
</pallas_src>

<mosaic_0001>
module attributes {stable_mosaic.version = 11 : i64} {
  func.func @_convs_kernel(%arg0: i32, %arg1: memref<1x400x256xbf16, #tpu.memory_space<vmem>>, %arg2: memref<256x32xbf16, #tpu.memory_space<vmem>>, %arg3: memref<1x32xf32, #tpu.memory_space<vmem>>, %arg4: memref<512x64xbf16, #tpu.memory_space<vmem>>, %arg5: memref<1x64xf32, #tpu.memory_space<vmem>>, %arg6: memref<576x64xbf16, #tpu.memory_space<vmem>>, %arg7: memref<1x64xf32, #tpu.memory_space<vmem>>, %arg8: memref<1x49x64xbf16, #tpu.memory_space<vmem>>) attributes {dimension_semantics = [#tpu.dimension_semantics<parallel>], iteration_bounds = array<i64: 2>, scalar_prefetch = 0 : i64, scratch_operands = 0 : i64, tpu.core_type = #tpu.core_type<tc>, window_params = [{transform_indices = @transform_0, window_bounds = array<i64: 1, 400, 256>}, {pipeline_mode = #tpu.pipeline_mode<synchronous>, transform_indices = @transform_1, window_bounds = array<i64: 256, 32>}, {pipeline_mode = #tpu.pipeline_mode<synchronous>, transform_indices = @transform_2, window_bounds = array<i64: 1, 32>}, {pipeline_mode = #tpu.pipeline_mode<synchronous>, transform_indices = @transform_3, window_bounds = array<i64: 512, 64>}, {pipeline_mode = #tpu.pipeline_mode<synchronous>, transform_indices = @transform_4, window_bounds = array<i64: 1, 64>}, {pipeline_mode = #tpu.pipeline_mode<synchronous>, transform_indices = @transform_5, window_bounds = array<i64: 576, 64>}, {pipeline_mode = #tpu.pipeline_mode<synchronous>, transform_indices = @transform_6, window_bounds = array<i64: 1, 64>}, {transform_indices = @transform_7, window_bounds = array<i64: 1, 49, 64>}]} {
    %c0 = arith.constant 0 : index
    %c0_0 = arith.constant 0 : index
    %c0_1 = arith.constant 0 : index
    %0 = vector.load %arg1[%c0, %c0_0, %c0_1] : memref<1x400x256xbf16, #tpu.memory_space<vmem>>, vector<1x400x256xbf16>
    %1 = vector.shape_cast %0 : vector<1x400x256xbf16> to vector<400x256xbf16>
    %c0_2 = arith.constant 0 : index
    %c0_3 = arith.constant 0 : index
    %2 = vector.load %arg2[%c0_2, %c0_3] : memref<256x32xbf16, #tpu.memory_space<vmem>>, vector<256x32xbf16>
    %cst = arith.constant dense<0.000000e+00> : vector<400x32xf32>
    %3 = tpu.matmul %1, %2, %cst {dimension_numbers = #tpu.dot_dimension_numbers<[1], [0], [0], [1], [0, 0, 1, 1], [], []>} : vector<400x256xbf16>, vector<256x32xbf16>, vector<400x32xf32> -> vector<400x32xf32>
    %c0_4 = arith.constant 0 : index
    %c0_5 = arith.constant 0 : index
    %4 = vector.load %arg3[%c0_4, %c0_5] : memref<1x32xf32, #tpu.memory_space<vmem>>, vector<1x32xf32>
    %5 = vector.broadcast %4 : vector<1x32xf32> to vector<400x32xf32>
    %6 = arith.addf %3, %5 : vector<400x32xf32>
    %cst_6 = arith.constant 0.000000e+00 : f32
    %7 = vector.broadcast %cst_6 : f32 to vector<400x32xf32>
    %8 = arith.maximumf %6, %7 : vector<400x32xf32>
    %9 = arith.truncf %8 : vector<400x32xf32> to vector<400x32xbf16>
    %10 = vector.extract_strided_slice %9 {offsets = [0, 0], sizes = [169, 32], strides = [1, 1]} : vector<400x32xbf16> to vector<169x32xbf16>
    %11 = vector.extract_strided_slice %9 {offsets = [10, 0], sizes = [169, 32], strides = [1, 1]} : vector<400x32xbf16> to vector<169x32xbf16>
    %12 = vector.extract_strided_slice %9 {offsets = [1, 0], sizes = [169, 32], strides = [1, 1]} : vector<400x32xbf16> to vector<169x32xbf16>
    %13 = vector.extract_strided_slice %9 {offsets = [11, 0], sizes = [169, 32], strides = [1, 1]} : vector<400x32xbf16> to vector<169x32xbf16>
    %14 = tpu.concatenate %10, %11, %12, %13 in 1 : vector<169x32xbf16>, vector<169x32xbf16>, vector<169x32xbf16>, vector<169x32xbf16> -> vector<169x128xbf16>
    %c0_7 = arith.constant 0 : index
    %c0_8 = arith.constant 0 : index
    %15 = vector.load %arg4[%c0_7, %c0_8] : memref<512x64xbf16, #tpu.memory_space<vmem>>, vector<128x64xbf16>
    %cst_9 = arith.constant dense<0.000000e+00> : vector<169x64xf32>
    %16 = tpu.matmul %14, %15, %cst_9 {dimension_numbers = #tpu.dot_dimension_numbers<[1], [0], [0], [1], [0, 0, 1, 1], [], []>} : vector<169x128xbf16>, vector<128x64xbf16>, vector<169x64xf32> -> vector<169x64xf32>
    %17 = vector.extract_strided_slice %9 {offsets = [200, 0], sizes = [169, 32], strides = [1, 1]} : vector<400x32xbf16> to vector<169x32xbf16>
    %18 = vector.extract_strided_slice %9 {offsets = [210, 0], sizes = [169, 32], strides = [1, 1]} : vector<400x32xbf16> to vector<169x32xbf16>
    %19 = vector.extract_strided_slice %9 {offsets = [201, 0], sizes = [169, 32], strides = [1, 1]} : vector<400x32xbf16> to vector<169x32xbf16>
    %20 = vector.extract_strided_slice %9 {offsets = [211, 0], sizes = [169, 32], strides = [1, 1]} : vector<400x32xbf16> to vector<169x32xbf16>
    %21 = tpu.concatenate %17, %18, %19, %20 in 1 : vector<169x32xbf16>, vector<169x32xbf16>, vector<169x32xbf16>, vector<169x32xbf16> -> vector<169x128xbf16>
    %c128 = arith.constant 128 : index
    %c0_10 = arith.constant 0 : index
    %22 = vector.load %arg4[%c128, %c0_10] : memref<512x64xbf16, #tpu.memory_space<vmem>>, vector<128x64xbf16>
    %cst_11 = arith.constant dense<0.000000e+00> : vector<169x64xf32>
    %23 = tpu.matmul %21, %22, %cst_11 {dimension_numbers = #tpu.dot_dimension_numbers<[1], [0], [0], [1], [0, 0, 1, 1], [], []>} : vector<169x128xbf16>, vector<128x64xbf16>, vector<169x64xf32> -> vector<169x64xf32>
    %24 = arith.addf %16, %23 : vector<169x64xf32>
    %25 = vector.extract_strided_slice %9 {offsets = [20, 0], sizes = [169, 32], strides = [1, 1]} : vector<400x32xbf16> to vector<169x32xbf16>
    %26 = vector.extract_strided_slice %9 {offsets = [30, 0], sizes = [169, 32], strides = [1, 1]} : vector<400x32xbf16> to vector<169x32xbf16>
    %27 = vector.extract_strided_slice %9 {offsets = [21, 0], sizes = [169, 32], strides = [1, 1]} : vector<400x32xbf16> to vector<169x32xbf16>
    %28 = vector.extract_strided_slice %9 {offsets = [31, 0], sizes = [169, 32], strides = [1, 1]} : vector<400x32xbf16> to vector<169x32xbf16>
    %29 = tpu.concatenate %25, %26, %27, %28 in 1 : vector<169x32xbf16>, vector<169x32xbf16>, vector<169x32xbf16>, vector<169x32xbf16> -> vector<169x128xbf16>
    %c256 = arith.constant 256 : index
    %c0_12 = arith.constant 0 : index
    %30 = vector.load %arg4[%c256, %c0_12] : memref<512x64xbf16, #tpu.memory_space<vmem>>, vector<128x64xbf16>
    %cst_13 = arith.constant dense<0.000000e+00> : vector<169x64xf32>
    %31 = tpu.matmul %29, %30, %cst_13 {dimension_numbers = #tpu.dot_dimension_numbers<[1], [0], [0], [1], [0, 0, 1, 1], [], []>} : vector<169x128xbf16>, vector<128x64xbf16>, vector<169x64xf32> -> vector<169x64xf32>
    %32 = arith.addf %24, %31 : vector<169x64xf32>
    %33 = vector.extract_strided_slice %9 {offsets = [220, 0], sizes = [169, 32], strides = [1, 1]} : vector<400x32xbf16> to vector<169x32xbf16>
    %34 = vector.extract_strided_slice %9 {offsets = [230, 0], sizes = [169, 32], strides = [1, 1]} : vector<400x32xbf16> to vector<169x32xbf16>
    %35 = vector.extract_strided_slice %9 {offsets = [221, 0], sizes = [169, 32], strides = [1, 1]} : vector<400x32xbf16> to vector<169x32xbf16>
    %36 = vector.extract_strided_slice %9 {offsets = [231, 0], sizes = [169, 32], strides = [1, 1]} : vector<400x32xbf16> to vector<169x32xbf16>
    %37 = tpu.concatenate %33, %34, %35, %36 in 1 : vector<169x32xbf16>, vector<169x32xbf16>, vector<169x32xbf16>, vector<169x32xbf16> -> vector<169x128xbf16>
    %c384 = arith.constant 384 : index
    %c0_14 = arith.constant 0 : index
    %38 = vector.load %arg4[%c384, %c0_14] : memref<512x64xbf16, #tpu.memory_space<vmem>>, vector<128x64xbf16>
    %cst_15 = arith.constant dense<0.000000e+00> : vector<169x64xf32>
    %39 = tpu.matmul %37, %38, %cst_15 {dimension_numbers = #tpu.dot_dimension_numbers<[1], [0], [0], [1], [0, 0, 1, 1], [], []>} : vector<169x128xbf16>, vector<128x64xbf16>, vector<169x64xf32> -> vector<169x64xf32>
    %40 = arith.addf %32, %39 : vector<169x64xf32>
    %c0_16 = arith.constant 0 : index
    %c0_17 = arith.constant 0 : index
    %41 = vector.load %arg5[%c0_16, %c0_17] : memref<1x64xf32, #tpu.memory_space<vmem>>, vector<1x64xf32>
    %42 = vector.broadcast %41 : vector<1x64xf32> to vector<169x64xf32>
    %43 = arith.addf %40, %42 : vector<169x64xf32>
    %cst_18 = arith.constant 0.000000e+00 : f32
    %44 = vector.broadcast %cst_18 : f32 to vector<169x64xf32>
    %45 = arith.maximumf %43, %44 : vector<169x64xf32>
    %46 = arith.truncf %45 : vector<169x64xf32> to vector<169x64xbf16>
    %47 = vector.extract_strided_slice %46 {offsets = [0, 0], sizes = [127, 64], strides = [1, 1]} : vector<169x64xbf16> to vector<127x64xbf16>
    %48 = vector.extract_strided_slice %46 {offsets = [1, 0], sizes = [127, 64], strides = [1, 1]} : vector<169x64xbf16> to vector<127x64xbf16>
    %49 = vector.extract_strided_slice %46 {offsets = [2, 0], sizes = [127, 64], strides = [1, 1]} : vector<169x64xbf16> to vector<127x64xbf16>
    %50 = vector.extract_strided_slice %46 {offsets = [20, 0], sizes = [127, 64], strides = [1, 1]} : vector<169x64xbf16> to vector<127x64xbf16>
    %51 = vector.extract_strided_slice %46 {offsets = [21, 0], sizes = [127, 64], strides = [1, 1]} : vector<169x64xbf16> to vector<127x64xbf16>
    %52 = vector.extract_strided_slice %46 {offsets = [22, 0], sizes = [127, 64], strides = [1, 1]} : vector<169x64xbf16> to vector<127x64xbf16>
    %53 = vector.extract_strided_slice %46 {offsets = [40, 0], sizes = [127, 64], strides = [1, 1]} : vector<169x64xbf16> to vector<127x64xbf16>
    %54 = vector.extract_strided_slice %46 {offsets = [41, 0], sizes = [127, 64], strides = [1, 1]} : vector<169x64xbf16> to vector<127x64xbf16>
    %55 = vector.extract_strided_slice %46 {offsets = [42, 0], sizes = [127, 64], strides = [1, 1]} : vector<169x64xbf16> to vector<127x64xbf16>
    %56 = tpu.concatenate %47, %48, %49, %50, %51, %52, %53, %54, %55 in 1 : vector<127x64xbf16>, vector<127x64xbf16>, vector<127x64xbf16>, vector<127x64xbf16>, vector<127x64xbf16>, vector<127x64xbf16>, vector<127x64xbf16>, vector<127x64xbf16>, vector<127x64xbf16> -> vector<127x576xbf16>
    %c0_19 = arith.constant 0 : index
    %c0_20 = arith.constant 0 : index
    %57 = vector.load %arg6[%c0_19, %c0_20] : memref<576x64xbf16, #tpu.memory_space<vmem>>, vector<576x64xbf16>
    %cst_21 = arith.constant dense<0.000000e+00> : vector<127x64xf32>
    %58 = tpu.matmul %56, %57, %cst_21 {dimension_numbers = #tpu.dot_dimension_numbers<[1], [0], [0], [1], [0, 0, 1, 1], [], []>} : vector<127x576xbf16>, vector<576x64xbf16>, vector<127x64xf32> -> vector<127x64xf32>
    %c0_22 = arith.constant 0 : index
    %c0_23 = arith.constant 0 : index
    %59 = vector.load %arg7[%c0_22, %c0_23] : memref<1x64xf32, #tpu.memory_space<vmem>>, vector<1x64xf32>
    %60 = vector.broadcast %59 : vector<1x64xf32> to vector<127x64xf32>
    %61 = arith.addf %58, %60 : vector<127x64xf32>
    %cst_24 = arith.constant 0.000000e+00 : f32
    %62 = vector.broadcast %cst_24 : f32 to vector<127x64xf32>
    %63 = arith.maximumf %61, %62 : vector<127x64xf32>
    %64 = vector.extract_strided_slice %63 {offsets = [0, 0], sizes = [7, 64], strides = [1, 1]} : vector<127x64xf32> to vector<7x64xf32>
    %65 = vector.extract_strided_slice %63 {offsets = [20, 0], sizes = [7, 64], strides = [1, 1]} : vector<127x64xf32> to vector<7x64xf32>
    %66 = vector.extract_strided_slice %63 {offsets = [40, 0], sizes = [7, 64], strides = [1, 1]} : vector<127x64xf32> to vector<7x64xf32>
    %67 = vector.extract_strided_slice %63 {offsets = [60, 0], sizes = [7, 64], strides = [1, 1]} : vector<127x64xf32> to vector<7x64xf32>
    %68 = vector.extract_strided_slice %63 {offsets = [80, 0], sizes = [7, 64], strides = [1, 1]} : vector<127x64xf32> to vector<7x64xf32>
    %69 = vector.extract_strided_slice %63 {offsets = [100, 0], sizes = [7, 64], strides = [1, 1]} : vector<127x64xf32> to vector<7x64xf32>
    %70 = vector.extract_strided_slice %63 {offsets = [120, 0], sizes = [7, 64], strides = [1, 1]} : vector<127x64xf32> to vector<7x64xf32>
    %71 = tpu.concatenate %64, %65, %66, %67, %68, %69, %70 in 0 : vector<7x64xf32>, vector<7x64xf32>, vector<7x64xf32>, vector<7x64xf32>, vector<7x64xf32>, vector<7x64xf32>, vector<7x64xf32> -> vector<49x64xf32>
    %72 = arith.truncf %71 : vector<49x64xf32> to vector<49x64xbf16>
    %c0_25 = arith.constant 0 : index
    %c0_26 = arith.constant 0 : index
    %c0_27 = arith.constant 0 : index
    %73 = vector.load %arg8[%c0_25, %c0_26, %c0_27] : memref<1x49x64xbf16, #tpu.memory_space<vmem>>, vector<1x49x64xbf16>
    %74 = vector.shape_cast %73 : vector<1x49x64xbf16> to vector<49x64xbf16>
    %75 = vector.shape_cast %72 : vector<49x64xbf16> to vector<1x49x64xbf16>
    tpu.vector_store %arg8[%c0_25, %c0_26, %c0_27], %75 {strides = array<i32>} : memref<1x49x64xbf16, #tpu.memory_space<vmem>>, vector<1x49x64xbf16>,
    return
  }
  func.func @transform_0(%arg0: i32) -> (i32, i32, i32) {
    %c0_i32 = arith.constant 0 : i32
    %c0_i32_0 = arith.constant 0 : i32
    %c0_i32_1 = arith.constant 0 : i32
    return %arg0, %c0_i32, %c0_i32_0 : i32, i32, i32
  }
  func.func @transform_1(%arg0: i32) -> (i32, i32) {
    %c0_i32 = arith.constant 0 : i32
    %c0_i32_0 = arith.constant 0 : i32
    %c0_i32_1 = arith.constant 0 : i32
    return %c0_i32, %c0_i32_0 : i32, i32
  }
  func.func @transform_2(%arg0: i32) -> (i32, i32) {
    %c0_i32 = arith.constant 0 : i32
    %c0_i32_0 = arith.constant 0 : i32
    %c0_i32_1 = arith.constant 0 : i32
    return %c0_i32, %c0_i32_0 : i32, i32
  }
  func.func @transform_3(%arg0: i32) -> (i32, i32) {
    %c0_i32 = arith.constant 0 : i32
    %c0_i32_0 = arith.constant 0 : i32
    %c0_i32_1 = arith.constant 0 : i32
    return %c0_i32, %c0_i32_0 : i32, i32
  }
  func.func @transform_4(%arg0: i32) -> (i32, i32) {
    %c0_i32 = arith.constant 0 : i32
    %c0_i32_0 = arith.constant 0 : i32
    %c0_i32_1 = arith.constant 0 : i32
    return %c0_i32, %c0_i32_0 : i32, i32
  }
  func.func @transform_5(%arg0: i32) -> (i32, i32) {
    %c0_i32 = arith.constant 0 : i32
    %c0_i32_0 = arith.constant 0 : i32
    %c0_i32_1 = arith.constant 0 : i32
    return %c0_i32, %c0_i32_0 : i32, i32
  }
  func.func @transform_6(%arg0: i32) -> (i32, i32) {
    %c0_i32 = arith.constant 0 : i32
    %c0_i32_0 = arith.constant 0 : i32
    %c0_i32_1 = arith.constant 0 : i32
    return %c0_i32, %c0_i32_0 : i32, i32
  }
  func.func @transform_7(%arg0: i32) -> (i32, i32, i32) {
    %c0_i32 = arith.constant 0 : i32
    %c0_i32_0 = arith.constant 0 : i32
    %c0_i32_1 = arith.constant 0 : i32
    return %arg0, %c0_i32, %c0_i32_0 : i32, i32, i32
  }
}

module attributes {stable_mosaic.version = 11 : i64} {
  func.func @_fc_head_kernel(%arg0: i32, %arg1: memref<16x3136xbf16, #tpu.memory_space<vmem>>, %arg2: memref<3136x512xbf16, #tpu.memory_space<vmem>>, %arg3: memref<1x512xf32, #tpu.memory_space<vmem>>, %arg4: memref<512x128xbf16, #tpu.memory_space<vmem>>, %arg5: memref<1x128xf32, #tpu.memory_space<vmem>>, %arg6: memref<16x128xf32, #tpu.memory_space<vmem>>) attributes {dimension_semantics = [#tpu.dimension_semantics<parallel>], iteration_bounds = array<i64: 1>, scalar_prefetch = 0 : i64, scratch_operands = 0 : i64, tpu.core_type = #tpu.core_type<tc>, window_params = [{transform_indices = @transform_0, window_bounds = array<i64: 16, 3136>}, {pipeline_mode = #tpu.pipeline_mode<synchronous>, transform_indices = @transform_1, window_bounds = array<i64: 3136, 512>}, {pipeline_mode = #tpu.pipeline_mode<synchronous>, transform_indices = @transform_2, window_bounds = array<i64: 1, 512>}, {pipeline_mode = #tpu.pipeline_mode<synchronous>, transform_indices = @transform_3, window_bounds = array<i64: 512, 128>}, {pipeline_mode = #tpu.pipeline_mode<synchronous>, transform_indices = @transform_4, window_bounds = array<i64: 1, 128>}, {transform_indices = @transform_5, window_bounds = array<i64: 16, 128>}]} {
    %c0 = arith.constant 0 : index
    %c0_0 = arith.constant 0 : index
    %0 = vector.load %arg1[%c0, %c0_0] : memref<16x3136xbf16, #tpu.memory_space<vmem>>, vector<16x3136xbf16>
    %c0_1 = arith.constant 0 : index
    %c0_2 = arith.constant 0 : index
    %1 = vector.load %arg2[%c0_1, %c0_2] : memref<3136x512xbf16, #tpu.memory_space<vmem>>, vector<3136x512xbf16>
    %cst = arith.constant dense<0.000000e+00> : vector<16x512xf32>
    %2 = tpu.matmul %0, %1, %cst {dimension_numbers = #tpu.dot_dimension_numbers<[1], [0], [0], [1], [0, 0, 1, 1], [], []>} : vector<16x3136xbf16>, vector<3136x512xbf16>, vector<16x512xf32> -> vector<16x512xf32>
    %c0_3 = arith.constant 0 : index
    %c0_4 = arith.constant 0 : index
    %3 = vector.load %arg3[%c0_3, %c0_4] : memref<1x512xf32, #tpu.memory_space<vmem>>, vector<1x512xf32>
    %4 = vector.broadcast %3 : vector<1x512xf32> to vector<16x512xf32>
    %5 = arith.addf %2, %4 : vector<16x512xf32>
    %cst_5 = arith.constant 0.000000e+00 : f32
    %6 = vector.broadcast %cst_5 : f32 to vector<16x512xf32>
    %7 = arith.maximumf %5, %6 : vector<16x512xf32>
    %8 = arith.truncf %7 : vector<16x512xf32> to vector<16x512xbf16>
    %c0_6 = arith.constant 0 : index
    %c0_7 = arith.constant 0 : index
    %9 = vector.load %arg4[%c0_6, %c0_7] : memref<512x128xbf16, #tpu.memory_space<vmem>>, vector<512x128xbf16>
    %cst_8 = arith.constant dense<0.000000e+00> : vector<16x128xf32>
    %10 = tpu.matmul %8, %9, %cst_8 {dimension_numbers = #tpu.dot_dimension_numbers<[1], [0], [0], [1], [0, 0, 1, 1], [], []>} : vector<16x512xbf16>, vector<512x128xbf16>, vector<16x128xf32> -> vector<16x128xf32>
    %c0_9 = arith.constant 0 : index
    %c0_10 = arith.constant 0 : index
    %11 = vector.load %arg5[%c0_9, %c0_10] : memref<1x128xf32, #tpu.memory_space<vmem>>, vector<1x128xf32>
    %12 = vector.broadcast %11 : vector<1x128xf32> to vector<16x128xf32>
    %13 = arith.addf %10, %12 : vector<16x128xf32>
    %c0_11 = arith.constant 0 : index
    %c0_12 = arith.constant 0 : index
    %14 = vector.load %arg6[%c0_11, %c0_12] : memref<16x128xf32, #tpu.memory_space<vmem>>, vector<16x128xf32>
    tpu.vector_store %arg6[%c0_11, %c0_12], %13 {strides = array<i32>} : memref<16x128xf32, #tpu.memory_space<vmem>>, vector<16x128xf32>,
    return
  }
  func.func @transform_0(%arg0: i32) -> (i32, i32) {
    %c0_i32 = arith.constant 0 : i32
    %c0_i32_0 = arith.constant 0 : i32
    return %arg0, %c0_i32 : i32, i32
  }
  func.func @transform_1(%arg0: i32) -> (i32, i32) {
    %c0_i32 = arith.constant 0 : i32
    %c0_i32_0 = arith.constant 0 : i32
    %c0_i32_1 = arith.constant 0 : i32
    return %c0_i32, %c0_i32_0 : i32, i32
  }
  func.func @transform_2(%arg0: i32) -> (i32, i32) {
    %c0_i32 = arith.constant 0 : i32
    %c0_i32_0 = arith.constant 0 : i32
    %c0_i32_1 = arith.constant 0 : i32
    return %c0_i32, %c0_i32_0 : i32, i32
  }
  func.func @transform_3(%arg0: i32) -> (i32, i32) {
    %c0_i32 = arith.constant 0 : i32
    %c0_i32_0 = arith.constant 0 : i32
    %c0_i32_1 = arith.constant 0 : i32
    return %c0_i32, %c0_i32_0 : i32, i32
  }
  func.func @transform_4(%arg0: i32) -> (i32, i32) {
    %c0_i32 = arith.constant 0 : i32
    %c0_i32_0 = arith.constant 0 : i32
    %c0_i32_1 = arith.constant 0 : i32
    return %c0_i32, %c0_i32_0 : i32, i32
  }
  func.func @transform_5(%arg0: i32) -> (i32, i32) {
    %c0_i32 = arith.constant 0 : i32
    %c0_i32_0 = arith.constant 0 : i32
    return %arg0, %c0_i32 : i32, i32
  }
}

</mosaic_0001>

<llo_original>
// kernel: dqn_forward.2
$region0: #{dqn_forward.2}
  #allocation0 [shape = 'u32[]', space=smem, size = 0x4, offset = 0x4, fixed_abs, tag = 'smem constant byte address 0x4 - core index']
  #allocation1 [shape = 'u32[144,128]{1,0:T(1,128)}', space=vmem, size = 0x12000, scoped, tag = 'internal scratch']
  %s0 = inlined_call_operand.vmem [shape: bf16[2,400,256], index: 0, kind: input, shape index: {}]
  %s1 = inlined_call_operand.vmem [shape: bf16[256,32], index: 1, kind: input, shape index: {}]
  %s2 = inlined_call_operand.vmem [shape: f32[1,32], index: 2, kind: input, shape index: {}]
  %s3 = inlined_call_operand.vmem [shape: bf16[512,64], index: 3, kind: input, shape index: {}]
  %s4 = inlined_call_operand.vmem [shape: f32[1,64], index: 4, kind: input, shape index: {}]
  %s5 = inlined_call_operand.vmem [shape: bf16[576,64], index: 5, kind: input, shape index: {}]
  %s6 = inlined_call_operand.vmem [shape: f32[1,64], index: 6, kind: input, shape index: {}]
  %s7 = inlined_call_operand.vmem [shape: bf16[2,49,64], index: 7, kind: output, shape index: {}]
  %s8 = sld [smem:[#allocation0]]
  $region61: #{dqn_forward.2} parent=0
    _
  %s10 = ssub.s32 1, %s8
  %s11 = scalar_select 0, %s10, %s8
  loop: start=0, step=1, limit=4
  $region2: #{dqn_forward.2} parent=0 // loop_pre_header
    _
  $region3: #{dqn_forward.2} parent=0 // loop_header
    %s13 = sphi 0, %s17
    %p14 = scmp.ge.s32.totalorder %s13, 4
    %s23 = sphi 0, %s25
    %s26 = sphi 0, %s23
    %s27 = sphi 0, %s26
    %s43 = sphi 0, %s27
    %s47 = sphi 0, %s47
    %s49 = sphi 0, %s47
    %s50 = sphi 0, %s49
    %s64 = sphi 0, %s50
    %s68 = sphi 0, %s68
    %s70 = sphi 0, %s68
    %s71 = sphi 0, %s70
    %s85 = sphi 0, %s71
    %s89 = sphi 0, %s89
    %s91 = sphi 0, %s89
    %s92 = sphi 0, %s91
    %s106 = sphi 0, %s92
    %s110 = sphi 0, %s110
    %s112 = sphi 0, %s110
    %s113 = sphi 0, %s112
    %s127 = sphi 0, %s113
    %s131 = sphi 0, %s131
    %s133 = sphi 0, %s131
    %s134 = sphi 0, %s133
    %s148 = sphi 0, %s134
    %s152 = sphi 0, %s152
    %s154 = sphi 0, %s152
    %s155 = sphi 0, %s154
    %s169 = sphi 0, %s155
    %s175 = sphi 0, %s177
    %s178 = sphi 0, %s175
    %s179 = sphi 0, %s178
    %s195 = sphi 0, %s179
  $region4: #{dqn_forward.2} parent=0 // loop_header_branch
    %16 = sbr.rel (%p14) target = $region8
  $region5: #{dqn_forward.2} parent=0 // loop_body
    %s18 = ssub.s32 %s13, 1
    %s19 = ssub.s32 %s13, 2
    %s20 = sadd.s32 %s13, 1
    %s21 = ssub.s32 %s13, %s20
    %p22 = scmp.eq.s32.totalorder %s21, 0
    %s24 = sadd.s32 %s23, 1
    %s25 = scalar_select %p22, %s23, %s24
    %p28 = pneg %p22
    %p29 = scmp.eq.s32.totalorder %s13, 1
    %p30 = por %p28, %p29
    %p31 = scmp.ne.s32.totalorder %s23, %s26
    %p32 = scmp.eq.s32.totalorder %s13, 0
    %p33 = por %p31, %p32
    %p34 = scmp.ne.s32.totalorder %s23, %s26
    %p35 = scmp.eq.s32.totalorder %s18, 1
    %p36 = por %p34, %p35
    %p37 = scmp.ne.s32.totalorder %s26, %s27
    %p38 = scmp.eq.s32.totalorder %s18, 0
    %p39 = por %p37, %p38
    %p40 = scmp.ne.s32.totalorder %s26, %s27
    %p41 = scmp.eq.s32.totalorder %s19, 1
    %p42 = por %p40, %p41
    %p44 = scmp.ne.s32.totalorder %s27, %s43
    %p45 = scmp.eq.s32.totalorder %s19, 0
    %p46 = por %p44, %p45
    %s48 = sadd.s32 %s47, 1
    %p51 = scmp.eq.s32.totalorder %s13, 1
    %p52 = scmp.ne.s32.totalorder %s47, %s49
    %p53 = scmp.eq.s32.totalorder %s13, 0
    %p54 = por %p52, %p53
    %p55 = scmp.ne.s32.totalorder %s47, %s49
    %p56 = scmp.eq.s32.totalorder %s18, 1
    %p57 = por %p55, %p56
    %p58 = scmp.ne.s32.totalorder %s49, %s50
    %p59 = scmp.eq.s32.totalorder %s18, 0
    %p60 = por %p58, %p59
    %p61 = scmp.ne.s32.totalorder %s49, %s50
    %p62 = scmp.eq.s32.totalorder %s19, 1
    %p63 = por %p61, %p62
    %p65 = scmp.ne.s32.totalorder %s50, %s64
    %p66 = scmp.eq.s32.totalorder %s19, 0
    %p67 = por %p65, %p66
    %s69 = sadd.s32 %s68, 1
    %p72 = scmp.eq.s32.totalorder %s13, 1
    %p73 = scmp.ne.s32.totalorder %s68, %s70
    %p74 = scmp.eq.s32.totalorder %s13, 0
    %p75 = por %p73, %p74
    %p76 = scmp.ne.s32.totalorder %s68, %s70
    %p77 = scmp.eq.s32.totalorder %s18, 1
    %p78 = por %p76, %p77
    %p79 = scmp.ne.s32.totalorder %s70, %s71
    %p80 = scmp.eq.s32.totalorder %s18, 0
    %p81 = por %p79, %p80
    %p82 = scmp.ne.s32.totalorder %s70, %s71
    %p83 = scmp.eq.s32.totalorder %s19, 1
    %p84 = por %p82, %p83
    %p86 = scmp.ne.s32.totalorder %s71, %s85
    %p87 = scmp.eq.s32.totalorder %s19, 0
    %p88 = por %p86, %p87
    %s90 = sadd.s32 %s89, 1
    %p93 = scmp.eq.s32.totalorder %s13, 1
    %p94 = scmp.ne.s32.totalorder %s89, %s91
    %p95 = scmp.eq.s32.totalorder %s13, 0
    %p96 = por %p94, %p95
    %p97 = scmp.ne.s32.totalorder %s89, %s91
    %p98 = scmp.eq.s32.totalorder %s18, 1
    %p99 = por %p97, %p98
    %p100 = scmp.ne.s32.totalorder %s91, %s92
    %p101 = scmp.eq.s32.totalorder %s18, 0
    %p102 = por %p100, %p101
    %p103 = scmp.ne.s32.totalorder %s91, %s92
    %p104 = scmp.eq.s32.totalorder %s19, 1
    %p105 = por %p103, %p104
    %p107 = scmp.ne.s32.totalorder %s92, %s106
    %p108 = scmp.eq.s32.totalorder %s19, 0
    %p109 = por %p107, %p108
    %s111 = sadd.s32 %s110, 1
    %p114 = scmp.eq.s32.totalorder %s13, 1
    %p115 = scmp.ne.s32.totalorder %s110, %s112
    %p116 = scmp.eq.s32.totalorder %s13, 0
    %p117 = por %p115, %p116
    %p118 = scmp.ne.s32.totalorder %s110, %s112
    %p119 = scmp.eq.s32.totalorder %s18, 1
    %p120 = por %p118, %p119
    %p121 = scmp.ne.s32.totalorder %s112, %s113
    %p122 = scmp.eq.s32.totalorder %s18, 0
    %p123 = por %p121, %p122
    %p124 = scmp.ne.s32.totalorder %s112, %s113
    %p125 = scmp.eq.s32.totalorder %s19, 1
    %p126 = por %p124, %p125
    %p128 = scmp.ne.s32.totalorder %s113, %s127
    %p129 = scmp.eq.s32.totalorder %s19, 0
    %p130 = por %p128, %p129
    %s132 = sadd.s32 %s131, 1
    %p135 = scmp.eq.s32.totalorder %s13, 1
    %p136 = scmp.ne.s32.totalorder %s131, %s133
    %p137 = scmp.eq.s32.totalorder %s13, 0
    %p138 = por %p136, %p137
    %p139 = scmp.ne.s32.totalorder %s131, %s133
    %p140 = scmp.eq.s32.totalorder %s18, 1
    %p141 = por %p139, %p140
    %p142 = scmp.ne.s32.totalorder %s133, %s134
    %p143 = scmp.eq.s32.totalorder %s18, 0
    %p144 = por %p142, %p143
    %p145 = scmp.ne.s32.totalorder %s133, %s134
    %p146 = scmp.eq.s32.totalorder %s19, 1
    %p147 = por %p145, %p146
    %p149 = scmp.ne.s32.totalorder %s134, %s148
    %p150 = scmp.eq.s32.totalorder %s19, 0
    %p151 = por %p149, %p150
    %s153 = sadd.s32 %s152, 1
    %p156 = scmp.eq.s32.totalorder %s13, 1
    %p157 = scmp.ne.s32.totalorder %s152, %s154
    %p158 = scmp.eq.s32.totalorder %s13, 0
    %p159 = por %p157, %p158
    %p160 = scmp.ne.s32.totalorder %s152, %s154
    %p161 = scmp.eq.s32.totalorder %s18, 1
    %p162 = por %p160, %p161
    %p163 = scmp.ne.s32.totalorder %s154, %s155
    %p164 = scmp.eq.s32.totalorder %s18, 0
    %p165 = por %p163, %p164
    %p166 = scmp.ne.s32.totalorder %s154, %s155
    %p167 = scmp.eq.s32.totalorder %s19, 1
    %p168 = por %p166, %p167
    %p170 = scmp.ne.s32.totalorder %s155, %s169
    %p171 = scmp.eq.s32.totalorder %s19, 0
    %p172 = por %p170, %p171
    %s173 = ssub.s32 %s13, %s20
    %p174 = scmp.eq.s32.totalorder %s173, 0
    %s176 = sadd.s32 %s175, 1
    %s177 = scalar_select %p174, %s175, %s176
    %p180 = pneg %p174
    %p181 = scmp.eq.s32.totalorder %s13, 1
    %p182 = por %p180, %p181
    %p183 = scmp.ne.s32.totalorder %s175, %s178
    %p184 = scmp.eq.s32.totalorder %s13, 0
    %p185 = por %p183, %p184
    %p186 = scmp.ne.s32.totalorder %s175, %s178
    %p187 = scmp.eq.s32.totalorder %s18, 1
    %p188 = por %p186, %p187
    %p189 = scmp.ne.s32.totalorder %s178, %s179
    %p190 = scmp.eq.s32.totalorder %s18, 0
    %p191 = por %p189, %p190
    %p192 = scmp.ne.s32.totalorder %s178, %s179
    %p193 = scmp.eq.s32.totalorder %s19, 1
    %p194 = por %p192, %p193
    %p196 = scmp.ne.s32.totalorder %s179, %s195
    %p197 = scmp.eq.s32.totalorder %s19, 0
    %p198 = por %p196, %p197
    %p199 = scmp.le.s32.totalorder 1, %s13
    %p200 = scmp.lt.s32.totalorder %s13, 3
    %p201 = pnand %p199, %p200
    %p202 = pneg %p201
    // Predicated region
    $region9: #{dqn_forward.2} parent=5 // pred_check
      _
    $region10: #{dqn_forward.2} parent=5 // pred_check_branch
      %204 = sbr.rel (%p201) target = $region12
    $region11: #{dqn_forward.2} parent=5 // pred_region
      %s205 = ssub.s32 %s13, 1
      // Predicated region
      $region13: #{dqn_forward.2} parent=11 // pred_check
        %p206 = pneg %p60
      $region14: #{dqn_forward.2} parent=11 // pred_check_branch
        %208 = sbr.rel (%p206) target = $region16
      $region15: #{dqn_forward.2} parent=11 // pred_region
        _
      $region16: #{dqn_forward.2} parent=11 // pred_fallthru
        _
      // Predicated region
      $region17: #{dqn_forward.2} parent=11 // pred_check
        %p209 = pneg %p81
      $region18: #{dqn_forward.2} parent=11 // pred_check_branch
        %211 = sbr.rel (%p209) target = $region20
      $region19: #{dqn_forward.2} parent=11 // pred_region
        _
      $region20: #{dqn_forward.2} parent=11 // pred_fallthru
        _
      // Predicated region
      $region21: #{dqn_forward.2} parent=11 // pred_check
        %p212 = pneg %p102
      $region22: #{dqn_forward.2} parent=11 // pred_check_branch
        %214 = sbr.rel (%p212) target = $region24
      $region23: #{dqn_forward.2} parent=11 // pred_region
        _
      $region24: #{dqn_forward.2} parent=11 // pred_fallthru
        _
      // Predicated region
      $region25: #{dqn_forward.2} parent=11 // pred_check
        %p215 = pneg %p123
      $region26: #{dqn_forward.2} parent=11 // pred_check_branch
        %217 = sbr.rel (%p215) target = $region28
      $region27: #{dqn_forward.2} parent=11 // pred_region
        _
      $region28: #{dqn_forward.2} parent=11 // pred_fallthru
        _
      // Predicated region
      $region29: #{dqn_forward.2} parent=11 // pred_check
        %p218 = pneg %p144
      $region30: #{dqn_forward.2} parent=11 // pred_check_branch
        %220 = sbr.rel (%p218) target = $region32
      $region31: #{dqn_forward.2} parent=11 // pred_region
        _
      $region32: #{dqn_forward.2} parent=11 // pred_fallthru
        _
      // Predicated region
      $region33: #{dqn_forward.2} parent=11 // pred_check
        %p221 = pneg %p165
      $region34: #{dqn_forward.2} parent=11 // pred_check_branch
        %223 = sbr.rel (%p221) target = $region36
      $region35: #{dqn_forward.2} parent=11 // pred_region
        _
      $region36: #{dqn_forward.2} parent=11 // pred_fallthru
        _
    $region12: #{dqn_forward.2} parent=5 // pred_fallthru
      _
    %p224 = scmp.lt.s32.totalorder %s13, 2
    // Predicated region
    $region37: #{dqn_forward.2} parent=5 // pred_check
      %p225 = pneg %p224
    $region38: #{dqn_forward.2} parent=5 // pred_check_branch
      %227 = sbr.rel (%p225) target = $region40
    $region39: #{dqn_forward.2} parent=5 // pred_region
      // Predicated region
      $region41: #{dqn_forward.2} parent=39 // pred_check
        %p228 = pneg %p33
      $region42: #{dqn_forward.2} parent=39 // pred_check_branch
        %230 = sbr.rel (%p228) target = $region44
      $region43: #{dqn_forward.2} parent=39 // pred_region
        %p231 = scmp.lt.s32.totalorder %s13, 1
        %s232 = scalar_select %p231, %s13, 1
        %s233 = smul.addr %s232, 100
        %s234 = smul.addr %s233, 4
        %s235 = scalar_lea.vmem %s0, %s234
      $region44: #{dqn_forward.2} parent=39 // pred_fallthru
        _
    $region40: #{dqn_forward.2} parent=5 // pred_fallthru
      _
    %p236 = scmp.le.s32.totalorder 1, %s13
    %p237 = scmp.lt.s32.totalorder %s13, 3
    %p238 = pnand %p236, %p237
    %p239 = pneg %p238
    // Predicated region
    $region45: #{dqn_forward.2} parent=5 // pred_check
      _
    $region46: #{dqn_forward.2} parent=5 // pred_check_branch
      %241 = sbr.rel (%p238) target = $region48
    $region47: #{dqn_forward.2} parent=5 // pred_region
      %s242 = ssub.s32 %s13, 1
      %p243 = scmp.lt.s32.totalorder %s18, 1
      %s244 = scalar_select %p243, %s18, 1
      %s245 = smul.addr %s244, 100
      %s246 = smul.addr %s245, 4
      %s247 = scalar_lea.vmem %s0, %s246
      %p248 = pneg %p39
      %p249 = pneg %p36
      %p250 = pneg %p60
      %p251 = pneg %p57
      %p252 = pneg %p81
      %p253 = pneg %p78
      %p254 = pneg %p102
      %p255 = pneg %p99
      %p256 = pneg %p123
      %p257 = pneg %p120
      %p258 = pneg %p144
      %p259 = pneg %p141
      %p260 = pneg %p165
      %p261 = pneg %p162
      %p262 = pneg %p191
      %p263 = pneg %p188
      %p264 = scmp.lt.s32.totalorder %s18, 1
      %s265 = scalar_select %p264, %s18, 1
      %s266 = smul.addr %s265, 7
      %s267 = smul.addr %s266, 4
      %s268 = scalar_lea.vmem %s7, %s267
      %p269 = scmp.lt.s32.totalorder %s18, 1
      %s270 = scalar_select %p269, %s18, 1
      %s271 = smul.addr %s270, 100
      %s272 = smul.addr %s271, 4
      %s273 = scalar_lea.vmem %s0, %s272
      %p274 = scmp.lt.s32.totalorder %s18, 1
      %s275 = scalar_select %p274, %s18, 1
      %s276 = smul.addr %s275, 7
      %s277 = smul.addr %s276, 4
      %s278 = scalar_lea.vmem %s7, %s277
      %v280 = vld [vmem:[%s273] sm:$0xff]
      %v281 = vld [vmem:[%s273 + $0x8] sm:$0xff]
      %v282 = vld [vmem:[%s273 + $0x10] sm:$0xff]
      %v283 = vld [vmem:[%s273 + $0x18] sm:$0xff]
      %v284 = vld [vmem:[%s273 + $0x20] sm:$0xff]
      %v285 = vld [vmem:[%s273 + $0x28] sm:$0xff]
      %v286 = vld [vmem:[%s273 + $0x30] sm:$0xff]
      %v287 = vld [vmem:[%s273 + $0x38] sm:$0xff]
      %v288 = vld [vmem:[%s273 + $0x40] sm:$0xff]
      %v289 = vld [vmem:[%s273 + $0x48] sm:$0xff]
      %v290 = vld [vmem:[%s273 + $0x50] sm:$0xff]
      %v291 = vld [vmem:[%s273 + $0x58] sm:$0xff]
      %v292 = vld [vmem:[%s273 + $0x60] sm:$0xff]
      %v293 = vld [vmem:[%s273 + $0x68] sm:$0xff]
      %v294 = vld [vmem:[%s273 + $0x70] sm:$0xff]
      %v295 = vld [vmem:[%s273 + $0x78] sm:$0xff]
      %v296 = vld [vmem:[%s273 + $0x80] sm:$0xff]
      %v297 = vld [vmem:[%s273 + $0x88] sm:$0xff]
      %v298 = vld [vmem:[%s273 + $0x90] sm:$0xff]
      %v299 = vld [vmem:[%s273 + $0x98] sm:$0xff]
      %v300 = vld [vmem:[%s273 + $0xa0] sm:$0xff]
      %v301 = vld [vmem:[%s273 + $0xa8] sm:$0xff]
      %v302 = vld [vmem:[%s273 + $0xb0] sm:$0xff]
      %v303 = vld [vmem:[%s273 + $0xb8] sm:$0xff]
      %v304 = vld [vmem:[%s273 + $0xc0] sm:$0xff]
      %v305 = vld [vmem:[%s273 + $0xc8] sm:$0xff]
      %v306 = vld [vmem:[%s273 + $0xd0] sm:$0xff]
      %v307 = vld [vmem:[%s273 + $0xd8] sm:$0xff]
      %v308 = vld [vmem:[%s273 + $0xe0] sm:$0xff]
      %v309 = vld [vmem:[%s273 + $0xe8] sm:$0xff]
      %v310 = vld [vmem:[%s273 + $0xf0] sm:$0xff]
      %v311 = vld [vmem:[%s273 + $0xf8] sm:$0xff]
      %v312 = vld [vmem:[%s273 + $0x100] sm:$0xff]
      %v313 = vld [vmem:[%s273 + $0x108] sm:$0xff]
      %v314 = vld [vmem:[%s273 + $0x110] sm:$0xff]
      %v315 = vld [vmem:[%s273 + $0x118] sm:$0xff]
      %v316 = vld [vmem:[%s273 + $0x120] sm:$0xff]
      %v317 = vld [vmem:[%s273 + $0x128] sm:$0xff]
      %v318 = vld [vmem:[%s273 + $0x130] sm:$0xff]
      %v319 = vld [vmem:[%s273 + $0x138] sm:$0xff]
      %v320 = vld [vmem:[%s273 + $0x140] sm:$0xff]
      %v321 = vld [vmem:[%s273 + $0x148] sm:$0xff]
      %v322 = vld [vmem:[%s273 + $0x150] sm:$0xff]
      %v323 = vld [vmem:[%s273 + $0x158] sm:$0xff]
      %v324 = vld [vmem:[%s273 + $0x160] sm:$0xff]
      %v325 = vld [vmem:[%s273 + $0x168] sm:$0xff]
      %v326 = vld [vmem:[%s273 + $0x170] sm:$0xff]
      %v327 = vld [vmem:[%s273 + $0x178] sm:$0xff]
      %v328 = vld [vmem:[%s273 + $0x180] sm:$0xff]
      %v329 = vld [vmem:[%s273 + $0x188] sm:$0xff]
      %v330 = vld [vmem:[%s1] sm:$0xf]
      %v331 = vld [vmem:[%s1 + $0x4] sm:$0xf]
      %v332 = vld [vmem:[%s1 + $0x8] sm:$0xf]
      %v333 = vld [vmem:[%s1 + $0xc] sm:$0xf]
      %v334 = vld [vmem:[%s1 + $0x10] sm:$0xf]
      %v335 = vld [vmem:[%s1 + $0x14] sm:$0xf]
      %v336 = vld [vmem:[%s1 + $0x18] sm:$0xf]
      %v337 = vld [vmem:[%s1 + $0x1c] sm:$0xf]
      %v338 = vld [vmem:[%s1 + $0x20] sm:$0xf]
      %v339 = vld [vmem:[%s1 + $0x24] sm:$0xf]
      %v340 = vld [vmem:[%s1 + $0x28] sm:$0xf]
      %v341 = vld [vmem:[%s1 + $0x2c] sm:$0xf]
      %v342 = vld [vmem:[%s1 + $0x30] sm:$0xf]
      %v343 = vld [vmem:[%s1 + $0x34] sm:$0xf]
      %v344 = vld [vmem:[%s1 + $0x38] sm:$0xf]
      %v345 = vld [vmem:[%s1 + $0x3c] sm:$0xf]
      %v346 = vld [vmem:[%s1 + $0x40] sm:$0xf]
      %v347 = vld [vmem:[%s1 + $0x44] sm:$0xf]
      %v348 = vld [vmem:[%s1 + $0x48] sm:$0xf]
      %v349 = vld [vmem:[%s1 + $0x4c] sm:$0xf]
      %v350 = vld [vmem:[%s1 + $0x50] sm:$0xf]
      %v351 = vld [vmem:[%s1 + $0x54] sm:$0xf]
      %v352 = vld [vmem:[%s1 + $0x58] sm:$0xf]
      %v353 = vld [vmem:[%s1 + $0x5c] sm:$0xf]
      %v354 = vld [vmem:[%s1 + $0x60] sm:$0xf]
      %v355 = vld [vmem:[%s1 + $0x64] sm:$0xf]
      %v356 = vld [vmem:[%s1 + $0x68] sm:$0xf]
      %v357 = vld [vmem:[%s1 + $0x6c] sm:$0xf]
      %v358 = vld [vmem:[%s1 + $0x70] sm:$0xf]
      %v359 = vld [vmem:[%s1 + $0x74] sm:$0xf]
      %v360 = vld [vmem:[%s1 + $0x78] sm:$0xf]
      %v361 = vld [vmem:[%s1 + $0x7c] sm:$0xf]
      %v362 = vld [vmem:[%s2] sm:$0x1]
      %v364 = vlaneseq
      %v365 = vshrl.u32 %v364, 7
      %v366 = vsub.s32 0, %v365
      %v367 = vrot.slane %v362, %v366
      %v419 = vunpack.c.l.b16 %v280
      %v420 = vunpack.c.h.b16 %v280
      %v421 = vunpack.c.l.b16 %v281
      %v422 = vunpack.c.h.b16 %v281
      %v423 = vunpack.c.l.b16 %v282
      %v424 = vunpack.c.h.b16 %v282
      %v425 = vunpack.c.l.b16 %v283
      %v426 = vunpack.c.h.b16 %v283
      %v427 = vunpack.c.l.b16 %v284
      %v428 = vunpack.c.h.b16 %v284
      %v429 = vunpack.c.l.b16 %v285
      %v430 = vunpack.c.h.b16 %v285
      %v431 = vunpack.c.l.b16 %v286
      %v432 = vunpack.c.h.b16 %v286
      %v433 = vunpack.c.l.b16 %v287
      %v434 = vunpack.c.h.b16 %v287
      %v435 = vunpack.c.l.b16 %v288
      %v436 = vunpack.c.h.b16 %v288
      %v437 = vunpack.c.l.b16 %v289
      %v438 = vunpack.c.h.b16 %v289
      %v439 = vunpack.c.l.b16 %v290
      %v440 = vunpack.c.h.b16 %v290
      %v441 = vunpack.c.l.b16 %v291
      %v442 = vunpack.c.h.b16 %v291
      %v443 = vunpack.c.l.b16 %v292
      %v444 = vunpack.c.h.b16 %v292
      %v445 = vunpack.c.l.b16 %v293
      %v446 = vunpack.c.h.b16 %v293
      %v447 = vunpack.c.l.b16 %v294
      %v448 = vunpack.c.h.b16 %v294
      %v449 = vunpack.c.l.b16 %v295
      %v450 = vunpack.c.h.b16 %v295
      %v451 = vunpack.c.l.b16 %v296
      %v452 = vunpack.c.h.b16 %v296
      %v453 = vunpack.c.l.b16 %v297
      %v454 = vunpack.c.h.b16 %v297
      %v455 = vunpack.c.l.b16 %v298
      %v456 = vunpack.c.h.b16 %v298
      %v457 = vunpack.c.l.b16 %v299
      %v458 = vunpack.c.h.b16 %v299
      %v459 = vunpack.c.l.b16 %v300
      %v460 = vunpack.c.h.b16 %v300
      %v461 = vunpack.c.l.b16 %v301
      %v462 = vunpack.c.h.b16 %v301
      %v463 = vunpack.c.l.b16 %v302
      %v464 = vunpack.c.h.b16 %v302
      %v465 = vunpack.c.l.b16 %v303
      %v466 = vunpack.c.h.b16 %v303
      %v467 = vunpack.c.l.b16 %v304
      %v468 = vunpack.c.h.b16 %v304
      %v469 = vunpack.c.l.b16 %v305
      %v470 = vunpack.c.h.b16 %v305
      %v471 = vunpack.c.l.b16 %v306
      %v472 = vunpack.c.h.b16 %v306
      %v473 = vunpack.c.l.b16 %v307
      %v474 = vunpack.c.h.b16 %v307
      %v475 = vunpack.c.l.b16 %v308
      %v476 = vunpack.c.h.b16 %v308
      %v477 = vunpack.c.l.b16 %v309
      %v478 = vunpack.c.h.b16 %v309
      %v479 = vunpack.c.l.b16 %v310
      %v480 = vunpack.c.h.b16 %v310
      %v481 = vunpack.c.l.b16 %v311
      %v482 = vunpack.c.h.b16 %v311
      %v483 = vunpack.c.l.b16 %v312
      %v484 = vunpack.c.h.b16 %v312
      %v485 = vunpack.c.l.b16 %v313
      %v486 = vunpack.c.h.b16 %v313
      %v487 = vunpack.c.l.b16 %v314
      %v488 = vunpack.c.h.b16 %v314
      %v489 = vunpack.c.l.b16 %v315
      %v490 = vunpack.c.h.b16 %v315
      %v491 = vunpack.c.l.b16 %v316
      %v492 = vunpack.c.h.b16 %v316
      %v493 = vunpack.c.l.b16 %v317
      %v494 = vunpack.c.h.b16 %v317
      %v495 = vunpack.c.l.b16 %v318
      %v496 = vunpack.c.h.b16 %v318
      %v497 = vunpack.c.l.b16 %v319
      %v498 = vunpack.c.h.b16 %v319
      %v499 = vunpack.c.l.b16 %v320
      %v500 = vunpack.c.h.b16 %v320
      %v501 = vunpack.c.l.b16 %v321
      %v502 = vunpack.c.h.b16 %v321
      %v503 = vunpack.c.l.b16 %v322
      %v504 = vunpack.c.h.b16 %v322
      %v505 = vunpack.c.l.b16 %v323
      %v506 = vunpack.c.h.b16 %v323
      %v507 = vunpack.c.l.b16 %v324
      %v508 = vunpack.c.h.b16 %v324
      %v509 = vunpack.c.l.b16 %v325
      %v510 = vunpack.c.h.b16 %v325
      %v511 = vunpack.c.l.b16 %v326
      %v512 = vunpack.c.h.b16 %v326
      %v513 = vunpack.c.l.b16 %v327
      %v514 = vunpack.c.h.b16 %v327
      %v515 = vunpack.c.l.b16 %v328
      %v516 = vunpack.c.h.b16 %v328
      %v517 = vunpack.c.l.b16 %v329
      %v518 = vunpack.c.h.b16 %v329
      %v519 = vpack.c.b16 %v421, %v419
      %v520 = vpack.c.b16 %v422, %v420
      %v521 = vpack.c.b16 %v425, %v423
      %v522 = vpack.c.b16 %v426, %v424
      %v523 = vpack.c.b16 %v429, %v427
      %v524 = vpack.c.b16 %v430, %v428
      %v525 = vpack.c.b16 %v433, %v431
      %v526 = vpack.c.b16 %v434, %v432
      %v527 = vpack.c.b16 %v437, %v435
      %v528 = vpack.c.b16 %v438, %v436
      %v529 = vpack.c.b16 %v441, %v439
      %v530 = vpack.c.b16 %v442, %v440
      %v531 = vpack.c.b16 %v445, %v443
      %v532 = vpack.c.b16 %v446, %v444
      %v533 = vpack.c.b16 %v449, %v447
      %v534 = vpack.c.b16 %v450, %v448
      %v535 = vpack.c.b16 %v453, %v451
      %v536 = vpack.c.b16 %v454, %v452
      %v537 = vpack.c.b16 %v457, %v455
      %v538 = vpack.c.b16 %v458, %v456
      %v539 = vpack.c.b16 %v461, %v459
      %v540 = vpack.c.b16 %v462, %v460
      %v541 = vpack.c.b16 %v465, %v463
      %v542 = vpack.c.b16 %v466, %v464
      %v543 = vpack.c.b16 %v469, %v467
      %v544 = vpack.c.b16 %v470, %v468
      %v545 = vpack.c.b16 %v473, %v471
      %v546 = vpack.c.b16 %v474, %v472
      %v547 = vpack.c.b16 %v477, %v475
      %v548 = vpack.c.b16 %v478, %v476
      %v549 = vpack.c.b16 %v481, %v479
      %v550 = vpack.c.b16 %v482, %v480
      %v551 = vpack.c.b16 %v485, %v483
      %v552 = vpack.c.b16 %v486, %v484
      %v553 = vpack.c.b16 %v489, %v487
      %v554 = vpack.c.b16 %v490, %v488
      %v555 = vpack.c.b16 %v493, %v491
      %v556 = vpack.c.b16 %v494, %v492
      %v557 = vpack.c.b16 %v497, %v495
      %v558 = vpack.c.b16 %v498, %v496
      %v559 = vpack.c.b16 %v501, %v499
      %v560 = vpack.c.b16 %v502, %v500
      %v561 = vpack.c.b16 %v505, %v503
      %v562 = vpack.c.b16 %v506, %v504
      %v563 = vpack.c.b16 %v509, %v507
      %v564 = vpack.c.b16 %v510, %v508
      %v565 = vpack.c.b16 %v513, %v511
      %v566 = vpack.c.b16 %v514, %v512
      %v567 = vpack.c.b16 %v517, %v515
      %v568 = vpack.c.b16 %v518, %v516
      %v651 = vunpack.c.l.b16 %v330
      %v652 = vunpack.c.l.b16 %v331
      %v653 = vunpack.c.l.b16 %v332
      %v654 = vunpack.c.l.b16 %v333
      %v655 = vunpack.c.l.b16 %v334
      %v656 = vunpack.c.l.b16 %v335
      %v657 = vunpack.c.l.b16 %v336
      %v658 = vunpack.c.l.b16 %v337
      %v659 = vunpack.c.l.b16 %v338
      %v660 = vunpack.c.l.b16 %v339
      %v661 = vunpack.c.l.b16 %v340
      %v662 = vunpack.c.l.b16 %v341
      %v663 = vunpack.c.l.b16 %v342
      %v664 = vunpack.c.l.b16 %v343
      %v665 = vunpack.c.l.b16 %v344
      %v666 = vunpack.c.l.b16 %v345
      %v667 = vunpack.c.l.b16 %v346
      %v668 = vunpack.c.l.b16 %v347
      %v669 = vunpack.c.l.b16 %v348
      %v670 = vunpack.c.l.b16 %v349
      %v671 = vunpack.c.l.b16 %v350
      %v672 = vunpack.c.l.b16 %v351
      %v673 = vunpack.c.l.b16 %v352
      %v674 = vunpack.c.l.b16 %v353
      %v675 = vunpack.c.l.b16 %v354
      %v676 = vunpack.c.l.b16 %v355
      %v677 = vunpack.c.l.b16 %v356
      %v678 = vunpack.c.l.b16 %v357
      %v679 = vunpack.c.l.b16 %v358
      %v680 = vunpack.c.l.b16 %v359
      %v681 = vunpack.c.l.b16 %v360
      %v682 = vunpack.c.l.b16 %v361
      %v683 = vpack.c.b16 %v652, %v651
      %v684 = vpack.c.b16 %v654, %v653
      %v685 = vpack.c.b16 %v656, %v655
      %v686 = vpack.c.b16 %v658, %v657
      %v687 = vpack.c.b16 %v660, %v659
      %v688 = vpack.c.b16 %v662, %v661
      %v689 = vpack.c.b16 %v664, %v663
      %v690 = vpack.c.b16 %v666, %v665
      %v691 = vpack.c.b16 %v668, %v667
      %v692 = vpack.c.b16 %v670, %v669
      %v693 = vpack.c.b16 %v672, %v671
      %v694 = vpack.c.b16 %v674, %v673
      %v695 = vpack.c.b16 %v676, %v675
      %v696 = vpack.c.b16 %v678, %v677
      %v697 = vpack.c.b16 %v680, %v679
      %v698 = vpack.c.b16 %v682, %v681
      %715 = vmatprep.subr.bf16.mxu0 0
      %716 = vmatpush1.bf16.msra.mxu0 %v690
      %717 = vmatprep.subr.bf16.mxu0 0
      %718 = vmatpush1.bf16.msra.mxu0 %v689
      %719 = vmatprep.subr.bf16.mxu0 0
      %720 = vmatpush1.bf16.msra.mxu0 %v688
      %721 = vmatprep.subr.bf16.mxu0 0
      %722 = vmatpush1.bf16.msra.mxu0 %v687
      %723 = vmatprep.subr.bf16.mxu0 0
      %724 = vmatpush1.bf16.msra.mxu0 %v686
      %725 = vmatprep.subr.bf16.mxu0 0
      %726 = vmatpush1.bf16.msra.mxu0 %v685
      %727 = vmatprep.subr.bf16.mxu0 0
      %728 = vmatpush1.bf16.msra.mxu0 %v684
      %729 = vmatprep.subr.bf16.mxu0 0
      %730 = vmatpush1.bf16.msra.mxu0 %v683
      %731 = vmatprep.subr.bf16.mxu0 0
      %732 = vmatpush2.bf16.msra.mxu0 %v698
      %733 = vmatprep.subr.bf16.mxu0 0
      %734 = vmatpush2.bf16.msra.mxu0 %v697
      %735 = vmatprep.subr.bf16.mxu0 0
      %736 = vmatpush2.bf16.msra.mxu0 %v696
      %737 = vmatprep.subr.bf16.mxu0 0
      %738 = vmatpush2.bf16.msra.mxu0 %v695
      %739 = vmatprep.subr.bf16.mxu0 0
      %740 = vmatpush2.bf16.msra.mxu0 %v694
      %741 = vmatprep.subr.bf16.mxu0 0
      %742 = vmatpush2.bf16.msra.mxu0 %v693
      %743 = vmatprep.subr.bf16.mxu0 0
      %744 = vmatpush2.bf16.msra.mxu0 %v692
      %745 = vmatprep.subr.bf16.mxu0 0
      %746 = vmatpush2.bf16.msra.mxu0 %v691
      %747 = vmatprep.mubr.bf16.mxu0 %v520
      %748 = vmatmul.mubr.bf16.gmra.mxu0 %v519
      %v749 = vpop.f32.mrf.mxu0
      %v750 = vadd.f32 %v367, %v749
      %v751 = vpop.f32.mrf.mxu0
      %v752 = vpop.f32.mrf.mxu0
      %v753 = vadd.f32 %v367, %v752
      %v754 = vpop.f32.mrf.mxu0
      %755 = vmatprep.mubr.bf16.mxu0 %v522
      %756 = vmatmul.mubr.bf16.gmra.mxu0 %v521
      %v757 = vpop.f32.mrf.mxu0
      %v758 = vadd.f32 %v367, %v757
      %v759 = vpop.f32.mrf.mxu0
      %v760 = vpop.f32.mrf.mxu0
      %v761 = vadd.f32 %v367, %v760
      %v762 = vpop.f32.mrf.mxu0
      %763 = vmatprep.mubr.bf16.mxu0 %v524
      %764 = vmatmul.mubr.bf16.gmra.mxu0 %v523
      %v765 = vpop.f32.mrf.mxu0
      %v766 = vadd.f32 %v367, %v765
      %v767 = vpop.f32.mrf.mxu0
      %v768 = vpop.f32.mrf.mxu0
      %v769 = vadd.f32 %v367, %v768
      %v770 = vpop.f32.mrf.mxu0
      %771 = vmatprep.mubr.bf16.mxu0 %v526
      %772 = vmatmul.mubr.bf16.gmra.mxu0 %v525
      %v773 = vpop.f32.mrf.mxu0
      %v774 = vadd.f32 %v367, %v773
      %v775 = vpop.f32.mrf.mxu0
      %v776 = vpop.f32.mrf.mxu0
      %v777 = vadd.f32 %v367, %v776
      %v778 = vpop.f32.mrf.mxu0
      %779 = vmatprep.mubr.bf16.mxu0 %v528
      %780 = vmatmul.mubr.bf16.gmra.mxu0 %v527
      %v781 = vpop.f32.mrf.mxu0
      %v782 = vadd.f32 %v367, %v781
      %v783 = vpop.f32.mrf.mxu0
      %v784 = vpop.f32.mrf.mxu0
      %v785 = vadd.f32 %v367, %v784
      %v786 = vpop.f32.mrf.mxu0
      %787 = vmatprep.mubr.bf16.mxu0 %v530
      %788 = vmatmul.mubr.bf16.gmra.mxu0 %v529
      %v789 = vpop.f32.mrf.mxu0
      %v790 = vadd.f32 %v367, %v789
      %v791 = vpop.f32.mrf.mxu0
      %v792 = vpop.f32.mrf.mxu0
      %v793 = vadd.f32 %v367, %v792
      %v794 = vpop.f32.mrf.mxu0
      %795 = vmatprep.mubr.bf16.mxu0 %v532
      %796 = vmatmul.mubr.bf16.gmra.mxu0 %v531
      %v797 = vpop.f32.mrf.mxu0
      %v798 = vadd.f32 %v367, %v797
      %v799 = vpop.f32.mrf.mxu0
      %v800 = vpop.f32.mrf.mxu0
      %v801 = vadd.f32 %v367, %v800
      %v802 = vpop.f32.mrf.mxu0
      %803 = vmatprep.mubr.bf16.mxu0 %v534
      %804 = vmatmul.mubr.bf16.gmra.mxu0 %v533
      %v805 = vpop.f32.mrf.mxu0
      %v806 = vadd.f32 %v367, %v805
      %v807 = vpop.f32.mrf.mxu0
      %v808 = vpop.f32.mrf.mxu0
      %v809 = vadd.f32 %v367, %v808
      %v810 = vpop.f32.mrf.mxu0
      %811 = vmatprep.mubr.bf16.mxu0 %v536
      %812 = vmatmul.mubr.bf16.gmra.mxu0 %v535
      %v813 = vpop.f32.mrf.mxu0
      %v814 = vadd.f32 %v367, %v813
      %v815 = vpop.f32.mrf.mxu0
      %v816 = vpop.f32.mrf.mxu0
      %v817 = vadd.f32 %v367, %v816
      %v818 = vpop.f32.mrf.mxu0
      %819 = vmatprep.mubr.bf16.mxu0 %v538
      %820 = vmatmul.mubr.bf16.gmra.mxu0 %v537
      %v821 = vpop.f32.mrf.mxu0
      %v822 = vadd.f32 %v367, %v821
      %v823 = vpop.f32.mrf.mxu0
      %v824 = vpop.f32.mrf.mxu0
      %v825 = vadd.f32 %v367, %v824
      %v826 = vpop.f32.mrf.mxu0
      %827 = vmatprep.mubr.bf16.mxu0 %v540
      %828 = vmatmul.mubr.bf16.gmra.mxu0 %v539
      %v829 = vpop.f32.mrf.mxu0
      %v830 = vadd.f32 %v367, %v829
      %v831 = vpop.f32.mrf.mxu0
      %v832 = vpop.f32.mrf.mxu0
      %v833 = vadd.f32 %v367, %v832
      %v834 = vpop.f32.mrf.mxu0
      %835 = vmatprep.mubr.bf16.mxu0 %v542
      %836 = vmatmul.mubr.bf16.gmra.mxu0 %v541
      %v837 = vpop.f32.mrf.mxu0
      %v838 = vadd.f32 %v367, %v837
      %v839 = vpop.f32.mrf.mxu0
      %v840 = vpop.f32.mrf.mxu0
      %v841 = vadd.f32 %v367, %v840
      %v842 = vpop.f32.mrf.mxu0
      %843 = vmatprep.mubr.bf16.mxu0 %v544
      %844 = vmatmul.mubr.bf16.gmra.mxu0 %v543
      %v845 = vpop.f32.mrf.mxu0
      %v846 = vadd.f32 %v367, %v845
      %v847 = vpop.f32.mrf.mxu0
      %v848 = vpop.f32.mrf.mxu0
      %v849 = vadd.f32 %v367, %v848
      %v850 = vpop.f32.mrf.mxu0
      %851 = vmatprep.mubr.bf16.mxu0 %v546
      %852 = vmatmul.mubr.bf16.gmra.mxu0 %v545
      %v853 = vpop.f32.mrf.mxu0
      %v854 = vadd.f32 %v367, %v853
      %v855 = vpop.f32.mrf.mxu0
      %v856 = vpop.f32.mrf.mxu0
      %v857 = vadd.f32 %v367, %v856
      %v858 = vpop.f32.mrf.mxu0
      %859 = vmatprep.mubr.bf16.mxu0 %v548
      %860 = vmatmul.mubr.bf16.gmra.mxu0 %v547
      %v861 = vpop.f32.mrf.mxu0
      %v862 = vadd.f32 %v367, %v861
      %v863 = vpop.f32.mrf.mxu0
      %v864 = vpop.f32.mrf.mxu0
      %v865 = vadd.f32 %v367, %v864
      %v866 = vpop.f32.mrf.mxu0
      %867 = vmatprep.mubr.bf16.mxu0 %v550
      %868 = vmatmul.mubr.bf16.gmra.mxu0 %v549
      %v869 = vpop.f32.mrf.mxu0
      %v870 = vadd.f32 %v367, %v869
      %v871 = vpop.f32.mrf.mxu0
      %v872 = vpop.f32.mrf.mxu0
      %v873 = vadd.f32 %v367, %v872
      %v874 = vpop.f32.mrf.mxu0
      %875 = vmatprep.mubr.bf16.mxu0 %v552
      %876 = vmatmul.mubr.bf16.gmra.mxu0 %v551
      %v877 = vpop.f32.mrf.mxu0
      %v878 = vadd.f32 %v367, %v877
      %v879 = vpop.f32.mrf.mxu0
      %v880 = vpop.f32.mrf.mxu0
      %v881 = vadd.f32 %v367, %v880
      %v882 = vpop.f32.mrf.mxu0
      %883 = vmatprep.mubr.bf16.mxu0 %v554
      %884 = vmatmul.mubr.bf16.gmra.mxu0 %v553
      %v885 = vpop.f32.mrf.mxu0
      %v886 = vadd.f32 %v367, %v885
      %v887 = vpop.f32.mrf.mxu0
      %v888 = vpop.f32.mrf.mxu0
      %v889 = vadd.f32 %v367, %v888
      %v890 = vpop.f32.mrf.mxu0
      %891 = vmatprep.mubr.bf16.mxu0 %v556
      %892 = vmatmul.mubr.bf16.gmra.mxu0 %v555
      %v893 = vpop.f32.mrf.mxu0
      %v894 = vadd.f32 %v367, %v893
      %v895 = vpop.f32.mrf.mxu0
      %v896 = vpop.f32.mrf.mxu0
      %v897 = vadd.f32 %v367, %v896
      %v898 = vpop.f32.mrf.mxu0
      %899 = vmatprep.mubr.bf16.mxu0 %v558
      %900 = vmatmul.mubr.bf16.gmra.mxu0 %v557
      %v901 = vpop.f32.mrf.mxu0
      %v902 = vadd.f32 %v367, %v901
      %v903 = vpop.f32.mrf.mxu0
      %v904 = vpop.f32.mrf.mxu0
      %v905 = vadd.f32 %v367, %v904
      %v906 = vpop.f32.mrf.mxu0
      %907 = vmatprep.mubr.bf16.mxu0 %v560
      %908 = vmatmul.mubr.bf16.gmra.mxu0 %v559
      %v909 = vpop.f32.mrf.mxu0
      %v910 = vadd.f32 %v367, %v909
      %v911 = vpop.f32.mrf.mxu0
      %v912 = vpop.f32.mrf.mxu0
      %v913 = vadd.f32 %v367, %v912
      %v914 = vpop.f32.mrf.mxu0
      %915 = vmatprep.mubr.bf16.mxu0 %v562
      %916 = vmatmul.mubr.bf16.gmra.mxu0 %v561
      %v917 = vpop.f32.mrf.mxu0
      %v918 = vadd.f32 %v367, %v917
      %v919 = vpop.f32.mrf.mxu0
      %v920 = vpop.f32.mrf.mxu0
      %v921 = vadd.f32 %v367, %v920
      %v922 = vpop.f32.mrf.mxu0
      %923 = vmatprep.mubr.bf16.mxu0 %v564
      %924 = vmatmul.mubr.bf16.gmra.mxu0 %v563
      %v925 = vpop.f32.mrf.mxu0
      %v926 = vadd.f32 %v367, %v925
      %v927 = vpop.f32.mrf.mxu0
      %v928 = vpop.f32.mrf.mxu0
      %v929 = vadd.f32 %v367, %v928
      %v930 = vpop.f32.mrf.mxu0
      %931 = vmatprep.mubr.bf16.mxu0 %v566
      %932 = vmatmul.mubr.bf16.gmra.mxu0 %v565
      %v933 = vpop.f32.mrf.mxu0
      %v934 = vadd.f32 %v367, %v933
      %v935 = vpop.f32.mrf.mxu0
      %v936 = vpop.f32.mrf.mxu0
      %v937 = vadd.f32 %v367, %v936
      %v938 = vpop.f32.mrf.mxu0
      %939 = vmatprep.mubr.bf16.mxu0 %v568
      %940 = vmatmul.mubr.bf16.gmra.mxu0 %v567
      %v941 = vpop.f32.mrf.mxu0
      %v942 = vadd.f32 %v367, %v941
      %v943 = vpop.f32.mrf.mxu0
      %v944 = vpop.f32.mrf.mxu0
      %v945 = vadd.f32 %v367, %v944
      %v946 = vpop.f32.mrf.mxu0
      %947 = vdwg.mxu0
      %v948 = vmax.f32 %v750, 0.0
      %v949 = vmax.f32 %v753, 0.0
      %v950 = vmax.f32 %v758, 0.0
      %v951 = vmax.f32 %v761, 0.0
      %v952 = vmax.f32 %v766, 0.0
      %v953 = vmax.f32 %v769, 0.0
      %v954 = vmax.f32 %v774, 0.0
      %v955 = vmax.f32 %v777, 0.0
      %v956 = vmax.f32 %v782, 0.0
      %v957 = vmax.f32 %v785, 0.0
      %v958 = vmax.f32 %v790, 0.0
      %v959 = vmax.f32 %v793, 0.0
      %v960 = vmax.f32 %v798, 0.0
      %v961 = vmax.f32 %v801, 0.0
      %v962 = vmax.f32 %v806, 0.0
      %v963 = vmax.f32 %v809, 0.0
      %v964 = vmax.f32 %v814, 0.0
      %v965 = vmax.f32 %v817, 0.0
      %v966 = vmax.f32 %v822, 0.0
      %v967 = vmax.f32 %v825, 0.0
      %v968 = vmax.f32 %v830, 0.0
      %v969 = vmax.f32 %v833, 0.0
      %v970 = vmax.f32 %v838, 0.0
      %v971 = vmax.f32 %v841, 0.0
      %v972 = vmax.f32 %v846, 0.0
      %v973 = vmax.f32 %v849, 0.0
      %v974 = vmax.f32 %v854, 0.0
      %v975 = vmax.f32 %v857, 0.0
      %v976 = vmax.f32 %v862, 0.0
      %v977 = vmax.f32 %v865, 0.0
      %v978 = vmax.f32 %v870, 0.0
      %v979 = vmax.f32 %v873, 0.0
      %v980 = vmax.f32 %v878, 0.0
      %v981 = vmax.f32 %v881, 0.0
      %v982 = vmax.f32 %v886, 0.0
      %v983 = vmax.f32 %v889, 0.0
      %v984 = vmax.f32 %v894, 0.0
      %v985 = vmax.f32 %v897, 0.0
      %v986 = vmax.f32 %v902, 0.0
      %v987 = vmax.f32 %v905, 0.0
      %v988 = vmax.f32 %v910, 0.0
      %v989 = vmax.f32 %v913, 0.0
      %v990 = vmax.f32 %v918, 0.0
      %v991 = vmax.f32 %v921, 0.0
      %v992 = vmax.f32 %v926, 0.0
      %v993 = vmax.f32 %v929, 0.0
      %v994 = vmax.f32 %v934, 0.0
      %v995 = vmax.f32 %v937, 0.0
      %v996 = vmax.f32 %v942, 0.0
      %v997 = vmax.f32 %v945, 0.0
      %v998 = vpack.c.bf16 %v949, %v948
      %v999 = vpack.c.bf16 %v951, %v950
      %v1000 = vpack.c.bf16 %v953, %v952
      %v1001 = vpack.c.bf16 %v955, %v954
      %v1002 = vpack.c.bf16 %v957, %v956
      %v1003 = vpack.c.bf16 %v959, %v958
      %v1004 = vpack.c.bf16 %v961, %v960
      %v1005 = vpack.c.bf16 %v963, %v962
      %v1006 = vpack.c.bf16 %v965, %v964
      %v1007 = vpack.c.bf16 %v967, %v966
      %v1008 = vpack.c.bf16 %v969, %v968
      %v1009 = vpack.c.bf16 %v971, %v970
      %v1010 = vpack.c.bf16 %v973, %v972
      %v1011 = vpack.c.bf16 %v975, %v974
      %v1012 = vpack.c.bf16 %v977, %v976
      %v1013 = vpack.c.bf16 %v979, %v978
      %v1014 = vpack.c.bf16 %v981, %v980
      %v1015 = vpack.c.bf16 %v983, %v982
      %v1016 = vpack.c.bf16 %v985, %v984
      %v1017 = vpack.c.bf16 %v987, %v986
      %v1018 = vpack.c.bf16 %v989, %v988
      %v1019 = vpack.c.bf16 %v991, %v990
      %v1020 = vpack.c.bf16 %v993, %v992
      %v1021 = vpack.c.bf16 %v995, %v994
      %v1022 = vpack.c.bf16 %v997, %v996
      %vm1035 = vcmask 1042432
      %v1036 = vrot.slane %v998, 5
      %v1037 = vrot.slane %v999, 5
      %v1038 = vsel %vm1035, %v1036, %v1037
      %v1039 = vrot.slane %v1000, 5
      %v1040 = vsel %vm1035, %v1037, %v1039
      %v1041 = vrot.slane %v1001, 5
      %v1042 = vsel %vm1035, %v1039, %v1041
      %v1043 = vrot.slane %v1002, 5
      %v1044 = vsel %vm1035, %v1041, %v1043
      %v1045 = vrot.slane %v1003, 5
      %v1046 = vsel %vm1035, %v1043, %v1045
      %v1047 = vrot.slane %v1004, 5
      %v1048 = vsel %vm1035, %v1045, %v1047
      %v1049 = vrot.slane %v1005, 5
      %v1050 = vsel %vm1035, %v1047, %v1049
      %v1051 = vrot.slane %v1006, 5
      %v1052 = vsel %vm1035, %v1049, %v1051
      %v1053 = vrot.slane %v1007, 5
      %v1054 = vsel %vm1035, %v1051, %v1053
      %v1055 = vrot.slane %v1008, 5
      %v1056 = vsel %vm1035, %v1053, %v1055
      %v1057 = vrot.slane %v1009, 5
      %v1058 = vsel %vm1035, %v1055, %v1057
      %1059 = vrot.lane.b32.xlu0 %v1038, 32
      %v1060 = vpop.permute.xlu0 %1059
      %1061 = vrot.lane.b32.xlu0 %v1040, 32
      %v1062 = vpop.permute.xlu0 %1061
      %1063 = vrot.lane.b32.xlu0 %v1042, 32
      %v1064 = vpop.permute.xlu0 %1063
      %1065 = vrot.lane.b32.xlu0 %v1044, 32
      %v1066 = vpop.permute.xlu0 %1065
      %1067 = vrot.lane.b32.xlu0 %v1046, 32
      %v1068 = vpop.permute.xlu0 %1067
      %1069 = vrot.lane.b32.xlu0 %v1048, 32
      %v1070 = vpop.permute.xlu0 %1069
      %1071 = vrot.lane.b32.xlu0 %v1050, 32
      %v1072 = vpop.permute.xlu0 %1071
      %1073 = vrot.lane.b32.xlu0 %v1052, 32
      %v1074 = vpop.permute.xlu0 %1073
      %1075 = vrot.lane.b32.xlu0 %v1054, 32
      %v1076 = vpop.permute.xlu0 %1075
      %1077 = vrot.lane.b32.xlu0 %v1056, 32
      %v1078 = vpop.permute.xlu0 %1077
      %1079 = vrot.lane.b32.xlu0 %v1058, 32
      %v1080 = vpop.permute.xlu0 %1079
      %vm1081 = vsmask.f32 7424
      %v1083 = vshrl.u32 %v998, 16
      %v1085 = vshll.u32 %v998, 16
      %v1087 = vrot.slane %v1085, 1
      %v1088 = vor.u32 %v1083, %v1087
      %v1090 = vshll.u32 %v999, 16
      %v1092 = vrot.slane %v1090, 1
      %v1093 = vsel %vm1081, %v1088, %v1092
      %v1094 = vshrl.u32 %v999, 16
      %v1096 = vor.u32 %v1094, %v1092
      %v1098 = vshll.u32 %v1000, 16
      %v1100 = vrot.slane %v1098, 1
      %v1101 = vsel %vm1081, %v1096, %v1100
      %v1102 = vshrl.u32 %v1000, 16
      %v1104 = vor.u32 %v1102, %v1100
      %v1106 = vshll.u32 %v1001, 16
      %v1108 = vrot.slane %v1106, 1
      %v1109 = vsel %vm1081, %v1104, %v1108
      %v1110 = vshrl.u32 %v1001, 16
      %v1112 = vor.u32 %v1110, %v1108
      %v1114 = vshll.u32 %v1002, 16
      %v1116 = vrot.slane %v1114, 1
      %v1117 = vsel %vm1081, %v1112, %v1116
      %v1118 = vshrl.u32 %v1002, 16
      %v1120 = vor.u32 %v1118, %v1116
      %v1122 = vshll.u32 %v1003, 16
      %v1124 = vrot.slane %v1122, 1
      %v1125 = vsel %vm1081, %v1120, %v1124
      %v1126 = vshrl.u32 %v1003, 16
      %v1128 = vor.u32 %v1126, %v1124
      %v1130 = vshll.u32 %v1004, 16
      %v1132 = vrot.slane %v1130, 1
      %v1133 = vsel %vm1081, %v1128, %v1132
      %v1134 = vshrl.u32 %v1004, 16
      %v1136 = vor.u32 %v1134, %v1132
      %v1138 = vshll.u32 %v1005, 16
      %v1140 = vrot.slane %v1138, 1
      %v1141 = vsel %vm1081, %v1136, %v1140
      %v1142 = vshrl.u32 %v1005, 16
      %v1144 = vor.u32 %v1142, %v1140
      %v1146 = vshll.u32 %v1006, 16
      %v1148 = vrot.slane %v1146, 1
      %v1149 = vsel %vm1081, %v1144, %v1148
      %v1150 = vshrl.u32 %v1006, 16
      %v1152 = vor.u32 %v1150, %v1148
      %v1154 = vshll.u32 %v1007, 16
      %v1156 = vrot.slane %v1154, 1
      %v1157 = vsel %vm1081, %v1152, %v1156
      %v1158 = vshrl.u32 %v1007, 16
      %v1160 = vor.u32 %v1158, %v1156
      %v1162 = vshll.u32 %v1008, 16
      %v1164 = vrot.slane %v1162, 1
      %v1165 = vsel %vm1081, %v1160, %v1164
      %v1166 = vshrl.u32 %v1008, 16
      %v1168 = vor.u32 %v1166, %v1164
      %1169 = vrot.lane.b32.xlu0 %v1093, 64
      %v1170 = vpop.permute.xlu0 %1169
      %1171 = vrot.lane.b32.xlu0 %v1101, 64
      %v1172 = vpop.permute.xlu0 %1171
      %1173 = vrot.lane.b32.xlu0 %v1109, 64
      %v1174 = vpop.permute.xlu0 %1173
      %1175 = vrot.lane.b32.xlu0 %v1117, 64
      %v1176 = vpop.permute.xlu0 %1175
      %1177 = vrot.lane.b32.xlu0 %v1125, 64
      %v1178 = vpop.permute.xlu0 %1177
      %1179 = vrot.lane.b32.xlu0 %v1133, 64
      %v1180 = vpop.permute.xlu0 %1179
      %1181 = vrot.lane.b32.xlu0 %v1141, 64
      %v1182 = vpop.permute.xlu0 %1181
      %1183 = vrot.lane.b32.xlu0 %v1149, 64
      %v1184 = vpop.permute.xlu0 %1183
      %1185 = vrot.lane.b32.xlu0 %v1157, 64
      %v1186 = vpop.permute.xlu0 %1185
      %1187 = vrot.lane.b32.xlu0 %v1165, 64
      %v1188 = vpop.permute.xlu0 %1187
      %1189 = vrot.lane.b32.xlu0 %v1168, 64
      %v1190 = vpop.permute.xlu0 %1189
      %vm1191 = vsmask.f32 2304
      %v1192 = vrot.slane %v1083, 5
      %v1193 = vrot.slane %v1085, 6
      %v1194 = vor.u32 %v1192, %v1193
      %v1195 = vrot.slane %v1094, 5
      %v1196 = vrot.slane %v1090, 6
      %v1197 = vor.u32 %v1195, %v1196
      %v1198 = vsel %vm1191, %v1194, %v1197
      %v1199 = vrot.slane %v1102, 5
      %v1200 = vrot.slane %v1098, 6
      %v1201 = vor.u32 %v1199, %v1200
      %v1202 = vsel %vm1191, %v1197, %v1201
      %v1203 = vrot.slane %v1110, 5
      %v1204 = vrot.slane %v1106, 6
      %v1205 = vor.u32 %v1203, %v1204
      %v1206 = vsel %vm1191, %v1201, %v1205
      %v1207 = vrot.slane %v1118, 5
      %v1208 = vrot.slane %v1114, 6
      %v1209 = vor.u32 %v1207, %v1208
      %v1210 = vsel %vm1191, %v1205, %v1209
      %v1211 = vrot.slane %v1126, 5
      %v1212 = vrot.slane %v1122, 6
      %v1213 = vor.u32 %v1211, %v1212
      %v1214 = vsel %vm1191, %v1209, %v1213
      %v1215 = vrot.slane %v1134, 5
      %v1216 = vrot.slane %v1130, 6
      %v1217 = vor.u32 %v1215, %v1216
      %v1218 = vsel %vm1191, %v1213, %v1217
      %v1219 = vrot.slane %v1142, 5
      %v1220 = vrot.slane %v1138, 6
      %v1221 = vor.u32 %v1219, %v1220
      %v1222 = vsel %vm1191, %v1217, %v1221
      %v1223 = vrot.slane %v1150, 5
      %v1224 = vrot.slane %v1146, 6
      %v1225 = vor.u32 %v1223, %v1224
      %v1226 = vsel %vm1191, %v1221, %v1225
      %v1227 = vrot.slane %v1158, 5
      %v1228 = vrot.slane %v1154, 6
      %v1229 = vor.u32 %v1227, %v1228
      %v1230 = vsel %vm1191, %v1225, %v1229
      %v1231 = vrot.slane %v1166, 5
      %v1232 = vrot.slane %v1162, 6
      %v1233 = vor.u32 %v1231, %v1232
      %v1234 = vsel %vm1191, %v1229, %v1233
      %v1236 = vshrl.u32 %v1009, 16
      %v1238 = vrot.slane %v1236, 5
      %v1239 = vshll.u32 %v1009, 16
      %v1241 = vrot.slane %v1239, 6
      %v1242 = vor.u32 %v1238, %v1241
      %v1243 = vsel %vm1191, %v1233, %v1242
      %1244 = vrot.lane.b32.xlu0 %v1198, 96
      %v1245 = vpop.permute.xlu0 %1244
      %1246 = vrot.lane.b32.xlu0 %v1202, 96
      %v1247 = vpop.permute.xlu0 %1246
      %1248 = vrot.lane.b32.xlu0 %v1206, 96
      %v1249 = vpop.permute.xlu0 %1248
      %1250 = vrot.lane.b32.xlu0 %v1210, 96
      %v1251 = vpop.permute.xlu0 %1250
      %1252 = vrot.lane.b32.xlu0 %v1214, 96
      %v1253 = vpop.permute.xlu0 %1252
      %1254 = vrot.lane.b32.xlu0 %v1218, 96
      %v1255 = vpop.permute.xlu0 %1254
      %1256 = vrot.lane.b32.xlu0 %v1222, 96
      %v1257 = vpop.permute.xlu0 %1256
      %1258 = vrot.lane.b32.xlu0 %v1226, 96
      %v1259 = vpop.permute.xlu0 %1258
      %1260 = vrot.lane.b32.xlu0 %v1230, 96
      %v1261 = vpop.permute.xlu0 %1260
      %1262 = vrot.lane.b32.xlu0 %v1234, 96
      %v1263 = vpop.permute.xlu0 %1262
      %1264 = vrot.lane.b32.xlu0 %v1243, 96
      %v1265 = vpop.permute.xlu0 %1264
      %vm1266 = vcmask 261120
      %v1268 = vsel %vm1266, %v998, %v1060
      %v1270 = vsel %vm1266, %v999, %v1062
      %v1272 = vsel %vm1266, %v1000, %v1064
      %v1274 = vsel %vm1266, %v1001, %v1066
      %v1276 = vsel %vm1266, %v1002, %v1068
      %v1278 = vsel %vm1266, %v1003, %v1070
      %v1280 = vsel %vm1266, %v1004, %v1072
      %v1282 = vsel %vm1266, %v1005, %v1074
      %v1284 = vsel %vm1266, %v1006, %v1076
      %v1286 = vsel %vm1266, %v1007, %v1078
      %v1288 = vsel %vm1266, %v1008, %v1080
      %vm1289 = vcmask 523264
      %v1291 = vsel %vm1289, %v1268, %v1170
      %v1293 = vsel %vm1289, %v1270, %v1172
      %v1295 = vsel %vm1289, %v1272, %v1174
      %v1297 = vsel %vm1289, %v1274, %v1176
      %v1299 = vsel %vm1289, %v1276, %v1178
      %v1301 = vsel %vm1289, %v1278, %v1180
      %v1303 = vsel %vm1289, %v1280, %v1182
      %v1305 = vsel %vm1289, %v1282, %v1184
      %v1307 = vsel %vm1289, %v1284, %v1186
      %v1309 = vsel %vm1289, %v1286, %v1188
      %v1311 = vsel %vm1289, %v1288, %v1190
      %vm1312 = vcmask 785408
      %v1314 = vsel %vm1312, %v1291, %v1245
      %v1317 = vsel %vm1312, %v1293, %v1247
      %v1320 = vsel %vm1312, %v1295, %v1249
      %v1323 = vsel %vm1312, %v1297, %v1251
      %v1326 = vsel %vm1312, %v1299, %v1253
      %v1329 = vsel %vm1312, %v1301, %v1255
      %v1332 = vsel %vm1312, %v1303, %v1257
      %v1335 = vsel %vm1312, %v1305, %v1259
      %v1338 = vsel %vm1312, %v1307, %v1261
      %v1341 = vsel %vm1312, %v1309, %v1263
      %v1344 = vsel %vm1312, %v1311, %v1265
      %v1346 = vld [vmem:[%s3] sm:$0xf]
      %v1347 = vld [vmem:[%s3 + $0x4] sm:$0xf]
      %v1348 = vld [vmem:[%s3 + $0x8] sm:$0xf]
      %v1349 = vld [vmem:[%s3 + $0xc] sm:$0xf]
      %v1350 = vld [vmem:[%s3 + $0x10] sm:$0xf]
      %v1351 = vld [vmem:[%s3 + $0x14] sm:$0xf]
      %v1352 = vld [vmem:[%s3 + $0x18] sm:$0xf]
      %v1353 = vld [vmem:[%s3 + $0x1c] sm:$0xf]
      %v1354 = vld [vmem:[%s3 + $0x20] sm:$0xf]
      %v1355 = vld [vmem:[%s3 + $0x24] sm:$0xf]
      %v1356 = vld [vmem:[%s3 + $0x28] sm:$0xf]
      %v1357 = vld [vmem:[%s3 + $0x2c] sm:$0xf]
      %v1358 = vld [vmem:[%s3 + $0x30] sm:$0xf]
      %v1359 = vld [vmem:[%s3 + $0x34] sm:$0xf]
      %v1360 = vld [vmem:[%s3 + $0x38] sm:$0xf]
      %v1361 = vld [vmem:[%s3 + $0x3c] sm:$0xf]
      %v1373 = vrot.slane %v1011, 5
      %v1374 = vrot.slane %v1012, 5
      %v1375 = vsel %vm1035, %v1373, %v1374
      %v1376 = vrot.slane %v1013, 5
      %v1377 = vsel %vm1035, %v1374, %v1376
      %v1378 = vrot.slane %v1014, 5
      %v1379 = vsel %vm1035, %v1376, %v1378
      %v1380 = vrot.slane %v1015, 5
      %v1381 = vsel %vm1035, %v1378, %v1380
      %v1382 = vrot.slane %v1016, 5
      %v1383 = vsel %vm1035, %v1380, %v1382
      %v1384 = vrot.slane %v1017, 5
      %v1385 = vsel %vm1035, %v1382, %v1384
      %v1386 = vrot.slane %v1018, 5
      %v1387 = vsel %vm1035, %v1384, %v1386
      %v1388 = vrot.slane %v1019, 5
      %v1389 = vsel %vm1035, %v1386, %v1388
      %v1390 = vrot.slane %v1020, 5
      %v1391 = vsel %vm1035, %v1388, %v1390
      %v1392 = vrot.slane %v1021, 5
      %v1393 = vsel %vm1035, %v1390, %v1392
      %1394 = vrot.lane.b32.xlu0 %v1373, 32
      %v1395 = vpop.permute.xlu0 %1394
      %1396 = vrot.lane.b32.xlu0 %v1375, 32
      %v1397 = vpop.permute.xlu0 %1396
      %1398 = vrot.lane.b32.xlu0 %v1377, 32
      %v1399 = vpop.permute.xlu0 %1398
      %1400 = vrot.lane.b32.xlu0 %v1379, 32
      %v1401 = vpop.permute.xlu0 %1400
      %1402 = vrot.lane.b32.xlu0 %v1381, 32
      %v1403 = vpop.permute.xlu0 %1402
      %1404 = vrot.lane.b32.xlu0 %v1383, 32
      %v1405 = vpop.permute.xlu0 %1404
      %1406 = vrot.lane.b32.xlu0 %v1385, 32
      %v1407 = vpop.permute.xlu0 %1406
      %1408 = vrot.lane.b32.xlu0 %v1387, 32
      %v1409 = vpop.permute.xlu0 %1408
      %1410 = vrot.lane.b32.xlu0 %v1389, 32
      %v1411 = vpop.permute.xlu0 %1410
      %1412 = vrot.lane.b32.xlu0 %v1391, 32
      %v1413 = vpop.permute.xlu0 %1412
      %1414 = vrot.lane.b32.xlu0 %v1393, 32
      %v1415 = vpop.permute.xlu0 %1414
      %1416 = vrot.lane.b32.xlu0 %v1392, 32
      %v1417 = vpop.permute.xlu0 %1416
      %v1419 = vshrl.u32 %v1010, 16
      %v1421 = vshll.u32 %v1010, 16
      %v1423 = vrot.slane %v1421, 1
      %v1424 = vor.u32 %v1419, %v1423
      %v1426 = vshll.u32 %v1011, 16
      %v1428 = vrot.slane %v1426, 1
      %v1429 = vsel %vm1081, %v1424, %v1428
      %v1430 = vshrl.u32 %v1011, 16
      %v1432 = vor.u32 %v1430, %v1428
      %v1434 = vshll.u32 %v1012, 16
      %v1436 = vrot.slane %v1434, 1
      %v1437 = vsel %vm1081, %v1432, %v1436
      %v1438 = vshrl.u32 %v1012, 16
      %v1440 = vor.u32 %v1438, %v1436
      %v1442 = vshll.u32 %v1013, 16
      %v1444 = vrot.slane %v1442, 1
      %v1445 = vsel %vm1081, %v1440, %v1444
      %v1446 = vshrl.u32 %v1013, 16
      %v1448 = vor.u32 %v1446, %v1444
      %v1450 = vshll.u32 %v1014, 16
      %v1452 = vrot.slane %v1450, 1
      %v1453 = vsel %vm1081, %v1448, %v1452
      %v1454 = vshrl.u32 %v1014, 16
      %v1456 = vor.u32 %v1454, %v1452
      %v1458 = vshll.u32 %v1015, 16
      %v1460 = vrot.slane %v1458, 1
      %v1461 = vsel %vm1081, %v1456, %v1460
      %v1462 = vshrl.u32 %v1015, 16
      %v1464 = vor.u32 %v1462, %v1460
      %v1466 = vshll.u32 %v1016, 16
      %v1468 = vrot.slane %v1466, 1
      %v1469 = vsel %vm1081, %v1464, %v1468
      %v1470 = vshrl.u32 %v1016, 16
      %v1472 = vor.u32 %v1470, %v1468
      %v1474 = vshll.u32 %v1017, 16
      %v1476 = vrot.slane %v1474, 1
      %v1477 = vsel %vm1081, %v1472, %v1476
      %v1478 = vshrl.u32 %v1017, 16
      %v1480 = vor.u32 %v1478, %v1476
      %v1482 = vshll.u32 %v1018, 16
      %v1484 = vrot.slane %v1482, 1
      %v1485 = vsel %vm1081, %v1480, %v1484
      %v1486 = vshrl.u32 %v1018, 16
      %v1488 = vor.u32 %v1486, %v1484
      %v1490 = vshll.u32 %v1019, 16
      %v1492 = vrot.slane %v1490, 1
      %v1493 = vsel %vm1081, %v1488, %v1492
      %v1494 = vshrl.u32 %v1019, 16
      %v1496 = vor.u32 %v1494, %v1492
      %v1498 = vshll.u32 %v1020, 16
      %v1500 = vrot.slane %v1498, 1
      %v1501 = vsel %vm1081, %v1496, %v1500
      %v1502 = vshrl.u32 %v1020, 16
      %v1504 = vor.u32 %v1502, %v1500
      %v1506 = vshll.u32 %v1021, 16
      %v1508 = vrot.slane %v1506, 1
      %v1509 = vsel %vm1081, %v1504, %v1508
      %v1510 = vshrl.u32 %v1021, 16
      %1512 = vrot.lane.b32.xlu0 %v1429, 64
      %v1513 = vpop.permute.xlu0 %1512
      %1514 = vrot.lane.b32.xlu0 %v1437, 64
      %v1515 = vpop.permute.xlu0 %1514
      %1516 = vrot.lane.b32.xlu0 %v1445, 64
      %v1517 = vpop.permute.xlu0 %1516
      %1518 = vrot.lane.b32.xlu0 %v1453, 64
      %v1519 = vpop.permute.xlu0 %1518
      %1520 = vrot.lane.b32.xlu0 %v1461, 64
      %v1521 = vpop.permute.xlu0 %1520
      %1522 = vrot.lane.b32.xlu0 %v1469, 64
      %v1523 = vpop.permute.xlu0 %1522
      %1524 = vrot.lane.b32.xlu0 %v1477, 64
      %v1525 = vpop.permute.xlu0 %1524
      %1526 = vrot.lane.b32.xlu0 %v1485, 64
      %v1527 = vpop.permute.xlu0 %1526
      %1528 = vrot.lane.b32.xlu0 %v1493, 64
      %v1529 = vpop.permute.xlu0 %1528
      %1530 = vrot.lane.b32.xlu0 %v1501, 64
      %v1531 = vpop.permute.xlu0 %1530
      %1532 = vrot.lane.b32.xlu0 %v1509, 64
      %v1533 = vpop.permute.xlu0 %1532
      %1534 = vrot.lane.b32.xlu0 %v1510, 64
      %v1535 = vpop.permute.xlu0 %1534
      %v1536 = vrot.slane %v1430, 5
      %v1537 = vrot.slane %v1426, 6
      %v1538 = vor.u32 %v1536, %v1537
      %v1539 = vrot.slane %v1438, 5
      %v1540 = vrot.slane %v1434, 6
      %v1541 = vor.u32 %v1539, %v1540
      %v1542 = vsel %vm1191, %v1538, %v1541
      %v1543 = vrot.slane %v1446, 5
      %v1544 = vrot.slane %v1442, 6
      %v1545 = vor.u32 %v1543, %v1544
      %v1546 = vsel %vm1191, %v1541, %v1545
      %v1547 = vrot.slane %v1454, 5
      %v1548 = vrot.slane %v1450, 6
      %v1549 = vor.u32 %v1547, %v1548
      %v1550 = vsel %vm1191, %v1545, %v1549
      %v1551 = vrot.slane %v1462, 5
      %v1552 = vrot.slane %v1458, 6
      %v1553 = vor.u32 %v1551, %v1552
      %v1554 = vsel %vm1191, %v1549, %v1553
      %v1555 = vrot.slane %v1470, 5
      %v1556 = vrot.slane %v1466, 6
      %v1557 = vor.u32 %v1555, %v1556
      %v1558 = vsel %vm1191, %v1553, %v1557
      %v1559 = vrot.slane %v1478, 5
      %v1560 = vrot.slane %v1474, 6
      %v1561 = vor.u32 %v1559, %v1560
      %v1562 = vsel %vm1191, %v1557, %v1561
      %v1563 = vrot.slane %v1486, 5
      %v1564 = vrot.slane %v1482, 6
      %v1565 = vor.u32 %v1563, %v1564
      %v1566 = vsel %vm1191, %v1561, %v1565
      %v1567 = vrot.slane %v1494, 5
      %v1568 = vrot.slane %v1490, 6
      %v1569 = vor.u32 %v1567, %v1568
      %v1570 = vsel %vm1191, %v1565, %v1569
      %v1571 = vrot.slane %v1502, 5
      %v1572 = vrot.slane %v1498, 6
      %v1573 = vor.u32 %v1571, %v1572
      %v1574 = vsel %vm1191, %v1569, %v1573
      %v1575 = vrot.slane %v1510, 5
      %v1576 = vrot.slane %v1506, 6
      %v1577 = vor.u32 %v1575, %v1576
      %v1578 = vsel %vm1191, %v1573, %v1577
      %1579 = vrot.lane.b32.xlu0 %v1538, 96
      %v1580 = vpop.permute.xlu0 %1579
      %1581 = vrot.lane.b32.xlu0 %v1542, 96
      %v1582 = vpop.permute.xlu0 %1581
      %1583 = vrot.lane.b32.xlu0 %v1546, 96
      %v1584 = vpop.permute.xlu0 %1583
      %1585 = vrot.lane.b32.xlu0 %v1550, 96
      %v1586 = vpop.permute.xlu0 %1585
      %1587 = vrot.lane.b32.xlu0 %v1554, 96
      %v1588 = vpop.permute.xlu0 %1587
      %1589 = vrot.lane.b32.xlu0 %v1558, 96
      %v1590 = vpop.permute.xlu0 %1589
      %1591 = vrot.lane.b32.xlu0 %v1562, 96
      %v1592 = vpop.permute.xlu0 %1591
      %1593 = vrot.lane.b32.xlu0 %v1566, 96
      %v1594 = vpop.permute.xlu0 %1593
      %1595 = vrot.lane.b32.xlu0 %v1570, 96
      %v1596 = vpop.permute.xlu0 %1595
      %1597 = vrot.lane.b32.xlu0 %v1574, 96
      %v1598 = vpop.permute.xlu0 %1597
      %1599 = vrot.lane.b32.xlu0 %v1578, 96
      %v1600 = vpop.permute.xlu0 %1599
      %1601 = vrot.lane.b32.xlu0 %v1575, 96
      %v1602 = vpop.permute.xlu0 %1601
      %v1604 = vsel %vm1266, %v1010, %v1395
      %v1606 = vsel %vm1266, %v1011, %v1397
      %v1608 = vsel %vm1266, %v1012, %v1399
      %v1610 = vsel %vm1266, %v1013, %v1401
      %v1612 = vsel %vm1266, %v1014, %v1403
      %v1614 = vsel %vm1266, %v1015, %v1405
      %v1616 = vsel %vm1266, %v1016, %v1407
      %v1618 = vsel %vm1266, %v1017, %v1409
      %v1620 = vsel %vm1266, %v1018, %v1411
      %v1622 = vsel %vm1266, %v1019, %v1413
      %v1624 = vsel %vm1266, %v1020, %v1415
      %v1626 = vsel %vm1266, %v1021, %v1417
      %v1628 = vsel %vm1289, %v1604, %v1513
      %v1630 = vsel %vm1289, %v1606, %v1515
      %v1632 = vsel %vm1289, %v1608, %v1517
      %v1634 = vsel %vm1289, %v1610, %v1519
      %v1636 = vsel %vm1289, %v1612, %v1521
      %v1638 = vsel %vm1289, %v1614, %v1523
      %v1640 = vsel %vm1289, %v1616, %v1525
      %v1642 = vsel %vm1289, %v1618, %v1527
      %v1644 = vsel %vm1289, %v1620, %v1529
      %v1646 = vsel %vm1289, %v1622, %v1531
      %v1648 = vsel %vm1289, %v1624, %v1533
      %v1650 = vsel %vm1289, %v1626, %v1535
      %v1652 = vsel %vm1312, %v1628, %v1580
      %v1654 = vsel %vm1312, %v1630, %v1582
      %v1656 = vsel %vm1312, %v1632, %v1584
      %v1658 = vsel %vm1312, %v1634, %v1586
      %v1660 = vsel %vm1312, %v1636, %v1588
      %v1662 = vsel %vm1312, %v1638, %v1590
      %v1664 = vsel %vm1312, %v1640, %v1592
      %v1666 = vsel %vm1312, %v1642, %v1594
      %v1668 = vsel %vm1312, %v1644, %v1596
      %v1670 = vsel %vm1312, %v1646, %v1598
      %v1672 = vsel %vm1312, %v1648, %v1600
      %v1674 = vsel %vm1312, %v1650, %v1602
      %v1675 = vld [vmem:[%s3 + $0x40] sm:$0xf]
      %v1676 = vld [vmem:[%s3 + $0x44] sm:$0xf]
      %v1677 = vld [vmem:[%s3 + $0x48] sm:$0xf]
      %v1678 = vld [vmem:[%s3 + $0x4c] sm:$0xf]
      %v1679 = vld [vmem:[%s3 + $0x50] sm:$0xf]
      %v1680 = vld [vmem:[%s3 + $0x54] sm:$0xf]
      %v1681 = vld [vmem:[%s3 + $0x58] sm:$0xf]
      %v1682 = vld [vmem:[%s3 + $0x5c] sm:$0xf]
      %v1683 = vld [vmem:[%s3 + $0x60] sm:$0xf]
      %v1684 = vld [vmem:[%s3 + $0x64] sm:$0xf]
      %v1685 = vld [vmem:[%s3 + $0x68] sm:$0xf]
      %v1686 = vld [vmem:[%s3 + $0x6c] sm:$0xf]
      %v1687 = vld [vmem:[%s3 + $0x70] sm:$0xf]
      %v1688 = vld [vmem:[%s3 + $0x74] sm:$0xf]
      %v1689 = vld [vmem:[%s3 + $0x78] sm:$0xf]
      %v1690 = vld [vmem:[%s3 + $0x7c] sm:$0xf]
      %vm1703 = vcmask 1043456
      %v1704 = vrot.slane %v1652, 4
      %v1705 = vrot.slane %v1654, 4
      %v1706 = vsel %vm1703, %v1704, %v1705
      %v1707 = vrot.slane %v1656, 4
      %v1708 = vsel %vm1703, %v1705, %v1707
      %v1709 = vrot.slane %v1658, 4
      %v1710 = vsel %vm1703, %v1707, %v1709
      %v1711 = vrot.slane %v1660, 4
      %v1712 = vsel %vm1703, %v1709, %v1711
      %v1713 = vrot.slane %v1662, 4
      %v1714 = vsel %vm1703, %v1711, %v1713
      %v1715 = vrot.slane %v1664, 4
      %v1716 = vsel %vm1703, %v1713, %v1715
      %v1717 = vrot.slane %v1666, 4
      %v1718 = vsel %vm1703, %v1715, %v1717
      %v1719 = vrot.slane %v1668, 4
      %v1720 = vsel %vm1703, %v1717, %v1719
      %v1721 = vrot.slane %v1670, 4
      %v1722 = vsel %vm1703, %v1719, %v1721
      %v1723 = vrot.slane %v1672, 4
      %v1724 = vsel %vm1703, %v1721, %v1723
      %v1725 = vrot.slane %v1674, 4
      %v1726 = vsel %vm1703, %v1723, %v1725
      %v1754 = vunpack.c.l.b16 %v1675
      %v1755 = vunpack.c.l.b16 %v1676
      %v1756 = vunpack.c.l.b16 %v1677
      %v1757 = vunpack.c.l.b16 %v1678
      %v1758 = vunpack.c.l.b16 %v1679
      %v1759 = vunpack.c.l.b16 %v1680
      %v1760 = vunpack.c.l.b16 %v1681
      %v1761 = vunpack.c.l.b16 %v1682
      %v1762 = vunpack.c.l.b16 %v1683
      %v1763 = vunpack.c.l.b16 %v1684
      %v1764 = vunpack.c.l.b16 %v1685
      %v1765 = vunpack.c.l.b16 %v1686
      %v1766 = vunpack.c.l.b16 %v1687
      %v1767 = vunpack.c.l.b16 %v1688
      %v1768 = vunpack.c.l.b16 %v1689
      %v1769 = vunpack.c.l.b16 %v1690
      %v1770 = vpack.c.b16 %v1755, %v1754
      %v1771 = vpack.c.b16 %v1757, %v1756
      %v1772 = vpack.c.b16 %v1759, %v1758
      %v1773 = vpack.c.b16 %v1761, %v1760
      %v1774 = vpack.c.b16 %v1763, %v1762
      %v1775 = vpack.c.b16 %v1765, %v1764
      %v1776 = vpack.c.b16 %v1767, %v1766
      %v1777 = vpack.c.b16 %v1769, %v1768
      %1786 = vmatprep.subr.bf16.mxu0 0
      %1787 = vmatpush1.bf16.msra.mxu0 %v1777
      %1788 = vmatprep.subr.bf16.mxu0 0
      %1789 = vmatpush1.bf16.msra.mxu0 %v1776
      %1790 = vmatprep.subr.bf16.mxu0 0
      %1791 = vmatpush1.bf16.msra.mxu0 %v1775
      %1792 = vmatprep.subr.bf16.mxu0 0
      %1793 = vmatpush1.bf16.msra.mxu0 %v1774
      %1794 = vmatprep.subr.bf16.mxu0 0
      %1795 = vmatpush1.bf16.msra.mxu0 %v1773
      %1796 = vmatprep.subr.bf16.mxu0 0
      %1797 = vmatpush1.bf16.msra.mxu0 %v1772
      %1798 = vmatprep.subr.bf16.mxu0 0
      %1799 = vmatpush1.bf16.msra.mxu0 %v1771
      %1800 = vmatprep.subr.bf16.mxu0 0
      %1801 = vmatpush1.bf16.msra.mxu0 %v1770
      %1802 = vmatprep.subr.bf16.mxu0 0
      %1803 = vmatpush2.bf16.msra.mxu0 0
      %1804 = vmatprep.subr.bf16.mxu0 0
      %1805 = vmatpush2.bf16.msra.mxu0 0
      %1806 = vmatprep.subr.bf16.mxu0 0
      %1807 = vmatpush2.bf16.msra.mxu0 0
      %1808 = vmatprep.subr.bf16.mxu0 0
      %1809 = vmatpush2.bf16.msra.mxu0 0
      %1810 = vmatprep.subr.bf16.mxu0 0
      %1811 = vmatpush2.bf16.msra.mxu0 0
      %1812 = vmatprep.subr.bf16.mxu0 0
      %1813 = vmatpush2.bf16.msra.mxu0 0
      %1814 = vmatprep.subr.bf16.mxu0 0
      %1815 = vmatpush2.bf16.msra.mxu0 0
      %1816 = vmatprep.subr.bf16.mxu0 0
      %1817 = vmatpush2.bf16.msra.mxu0 0
      %1818 = vmatprep.mubr.bf16.mxu0 0
      %1819 = vmatmul.mubr.bf16.gmra.mxu0 %v1706
      %v1820 = vpop.f32.mrf.mxu0
      %v1821 = vadd.f32 0.0, %v1820
      %v1822 = vpop.f32.mrf.mxu0
      %v1823 = vpop.f32.mrf.mxu0
      %v1824 = vadd.f32 0.0, %v1823
      %v1825 = vpop.f32.mrf.mxu0
      %1826 = vmatprep.mubr.bf16.mxu0 0
      %1827 = vmatmul.mubr.bf16.gmra.mxu0 %v1708
      %v1828 = vpop.f32.mrf.mxu0
      %v1829 = vadd.f32 0.0, %v1828
      %v1830 = vpop.f32.mrf.mxu0
      %v1831 = vpop.f32.mrf.mxu0
      %v1832 = vadd.f32 0.0, %v1831
      %v1833 = vpop.f32.mrf.mxu0
      %1834 = vmatprep.mubr.bf16.mxu0 0
      %1835 = vmatmul.mubr.bf16.gmra.mxu0 %v1710
      %v1836 = vpop.f32.mrf.mxu0
      %v1837 = vadd.f32 0.0, %v1836
      %v1838 = vpop.f32.mrf.mxu0
      %v1839 = vpop.f32.mrf.mxu0
      %v1840 = vadd.f32 0.0, %v1839
      %v1841 = vpop.f32.mrf.mxu0
      %1842 = vmatprep.mubr.bf16.mxu0 0
      %1843 = vmatmul.mubr.bf16.gmra.mxu0 %v1712
      %v1844 = vpop.f32.mrf.mxu0
      %v1845 = vadd.f32 0.0, %v1844
      %v1846 = vpop.f32.mrf.mxu0
      %v1847 = vpop.f32.mrf.mxu0
      %v1848 = vadd.f32 0.0, %v1847
      %v1849 = vpop.f32.mrf.mxu0
      %1850 = vmatprep.mubr.bf16.mxu0 0
      %1851 = vmatmul.mubr.bf16.gmra.mxu0 %v1714
      %v1852 = vpop.f32.mrf.mxu0
      %v1853 = vadd.f32 0.0, %v1852
      %v1854 = vpop.f32.mrf.mxu0
      %v1855 = vpop.f32.mrf.mxu0
      %v1856 = vadd.f32 0.0, %v1855
      %v1857 = vpop.f32.mrf.mxu0
      %1858 = vmatprep.mubr.bf16.mxu0 0
      %1859 = vmatmul.mubr.bf16.gmra.mxu0 %v1716
      %v1860 = vpop.f32.mrf.mxu0
      %v1861 = vadd.f32 0.0, %v1860
      %v1862 = vpop.f32.mrf.mxu0
      %v1863 = vpop.f32.mrf.mxu0
      %v1864 = vadd.f32 0.0, %v1863
      %v1865 = vpop.f32.mrf.mxu0
      %1866 = vmatprep.mubr.bf16.mxu0 0
      %1867 = vmatmul.mubr.bf16.gmra.mxu0 %v1718
      %v1868 = vpop.f32.mrf.mxu0
      %v1869 = vadd.f32 0.0, %v1868
      %v1870 = vpop.f32.mrf.mxu0
      %v1871 = vpop.f32.mrf.mxu0
      %v1872 = vadd.f32 0.0, %v1871
      %v1873 = vpop.f32.mrf.mxu0
      %1874 = vmatprep.mubr.bf16.mxu0 0
      %1875 = vmatmul.mubr.bf16.gmra.mxu0 %v1720
      %v1876 = vpop.f32.mrf.mxu0
      %v1877 = vadd.f32 0.0, %v1876
      %v1878 = vpop.f32.mrf.mxu0
      %v1879 = vpop.f32.mrf.mxu0
      %v1880 = vadd.f32 0.0, %v1879
      %v1881 = vpop.f32.mrf.mxu0
      %1882 = vmatprep.mubr.bf16.mxu0 0
      %1883 = vmatmul.mubr.bf16.gmra.mxu0 %v1722
      %v1884 = vpop.f32.mrf.mxu0
      %v1885 = vadd.f32 0.0, %v1884
      %v1886 = vpop.f32.mrf.mxu0
      %v1887 = vpop.f32.mrf.mxu0
      %v1888 = vadd.f32 0.0, %v1887
      %v1889 = vpop.f32.mrf.mxu0
      %1890 = vmatprep.mubr.bf16.mxu0 0
      %1891 = vmatmul.mubr.bf16.gmra.mxu0 %v1724
      %v1892 = vpop.f32.mrf.mxu0
      %v1893 = vadd.f32 0.0, %v1892
      %v1894 = vpop.f32.mrf.mxu0
      %v1895 = vpop.f32.mrf.mxu0
      %v1896 = vadd.f32 0.0, %v1895
      %v1897 = vpop.f32.mrf.mxu0
      %1898 = vmatprep.mubr.bf16.mxu0 0
      %1899 = vmatmul.mubr.bf16.gmra.mxu0 %v1726
      %v1900 = vpop.f32.mrf.mxu0
      %v1901 = vadd.f32 0.0, %v1900
      %v1902 = vpop.f32.mrf.mxu0
      %v1903 = vpop.f32.mrf.mxu0
      %v1904 = vadd.f32 0.0, %v1903
      %v1905 = vpop.f32.mrf.mxu0
      %1906 = vdwg.mxu0
      %v1923 = vunpack.c.l.b16 %v1346
      %v1924 = vunpack.c.l.b16 %v1347
      %v1925 = vunpack.c.l.b16 %v1348
      %v1926 = vunpack.c.l.b16 %v1349
      %v1927 = vunpack.c.l.b16 %v1350
      %v1928 = vunpack.c.l.b16 %v1351
      %v1929 = vunpack.c.l.b16 %v1352
      %v1930 = vunpack.c.l.b16 %v1353
      %v1931 = vunpack.c.l.b16 %v1354
      %v1932 = vunpack.c.l.b16 %v1355
      %v1933 = vunpack.c.l.b16 %v1356
      %v1934 = vunpack.c.l.b16 %v1357
      %v1935 = vunpack.c.l.b16 %v1358
      %v1936 = vunpack.c.l.b16 %v1359
      %v1937 = vunpack.c.l.b16 %v1360
      %v1938 = vunpack.c.l.b16 %v1361
      %v1939 = vpack.c.b16 %v1924, %v1923
      %v1940 = vpack.c.b16 %v1926, %v1925
      %v1941 = vpack.c.b16 %v1928, %v1927
      %v1942 = vpack.c.b16 %v1930, %v1929
      %v1943 = vpack.c.b16 %v1932, %v1931
      %v1944 = vpack.c.b16 %v1934, %v1933
      %v1945 = vpack.c.b16 %v1936, %v1935
      %v1946 = vpack.c.b16 %v1938, %v1937
      %1955 = vmatprep.subr.bf16.mxu0 0
      %1956 = vmatpush1.bf16.msra.mxu0 %v1946
      %1957 = vmatprep.subr.bf16.mxu0 0
      %1958 = vmatpush1.bf16.msra.mxu0 %v1945
      %1959 = vmatprep.subr.bf16.mxu0 0
      %1960 = vmatpush1.bf16.msra.mxu0 %v1944
      %1961 = vmatprep.subr.bf16.mxu0 0
      %1962 = vmatpush1.bf16.msra.mxu0 %v1943
      %1963 = vmatprep.subr.bf16.mxu0 0
      %1964 = vmatpush1.bf16.msra.mxu0 %v1942
      %1965 = vmatprep.subr.bf16.mxu0 0
      %1966 = vmatpush1.bf16.msra.mxu0 %v1941
      %1967 = vmatprep.subr.bf16.mxu0 0
      %1968 = vmatpush1.bf16.msra.mxu0 %v1940
      %1969 = vmatprep.subr.bf16.mxu0 0
      %1970 = vmatpush1.bf16.msra.mxu0 %v1939
      %1971 = vmatprep.subr.bf16.mxu0 0
      %1972 = vmatpush2.bf16.msra.mxu0 0
      %1973 = vmatprep.subr.bf16.mxu0 0
      %1974 = vmatpush2.bf16.msra.mxu0 0
      %1975 = vmatprep.subr.bf16.mxu0 0
      %1976 = vmatpush2.bf16.msra.mxu0 0
      %1977 = vmatprep.subr.bf16.mxu0 0
      %1978 = vmatpush2.bf16.msra.mxu0 0
      %1979 = vmatprep.subr.bf16.mxu0 0
      %1980 = vmatpush2.bf16.msra.mxu0 0
      %1981 = vmatprep.subr.bf16.mxu0 0
      %1982 = vmatpush2.bf16.msra.mxu0 0
      %1983 = vmatprep.subr.bf16.mxu0 0
      %1984 = vmatpush2.bf16.msra.mxu0 0
      %1985 = vmatprep.subr.bf16.mxu0 0
      %1986 = vmatpush2.bf16.msra.mxu0 0
      %1987 = vmatprep.mubr.bf16.mxu0 0
      %1988 = vmatmul.mubr.bf16.gmra.mxu0 %v1314
      %v1989 = vpop.f32.mrf.mxu0
      %v1990 = vadd.f32 %v1821, %v1989
      %v1991 = vpop.f32.mrf.mxu0
      %v1992 = vpop.f32.mrf.mxu0
      %v1993 = vadd.f32 %v1824, %v1992
      %v1994 = vpop.f32.mrf.mxu0
      %1995 = vmatprep.mubr.bf16.mxu0 0
      %1996 = vmatmul.mubr.bf16.gmra.mxu0 %v1317
      %v1997 = vpop.f32.mrf.mxu0
      %v1998 = vadd.f32 %v1829, %v1997
      %v1999 = vpop.f32.mrf.mxu0
      %v2000 = vpop.f32.mrf.mxu0
      %v2001 = vadd.f32 %v1832, %v2000
      %v2002 = vpop.f32.mrf.mxu0
      %2003 = vmatprep.mubr.bf16.mxu0 0
      %2004 = vmatmul.mubr.bf16.gmra.mxu0 %v1320
      %v2005 = vpop.f32.mrf.mxu0
      %v2006 = vadd.f32 %v1837, %v2005
      %v2007 = vpop.f32.mrf.mxu0
      %v2008 = vpop.f32.mrf.mxu0
      %v2009 = vadd.f32 %v1840, %v2008
      %v2010 = vpop.f32.mrf.mxu0
      %2011 = vmatprep.mubr.bf16.mxu0 0
      %2012 = vmatmul.mubr.bf16.gmra.mxu0 %v1323
      %v2013 = vpop.f32.mrf.mxu0
      %v2014 = vadd.f32 %v1845, %v2013
      %v2015 = vpop.f32.mrf.mxu0
      %v2016 = vpop.f32.mrf.mxu0
      %v2017 = vadd.f32 %v1848, %v2016
      %v2018 = vpop.f32.mrf.mxu0
      %2019 = vmatprep.mubr.bf16.mxu0 0
      %2020 = vmatmul.mubr.bf16.gmra.mxu0 %v1326
      %v2021 = vpop.f32.mrf.mxu0
      %v2022 = vadd.f32 %v1853, %v2021
      %v2023 = vpop.f32.mrf.mxu0
      %v2024 = vpop.f32.mrf.mxu0
      %v2025 = vadd.f32 %v1856, %v2024
      %v2026 = vpop.f32.mrf.mxu0
      %2027 = vmatprep.mubr.bf16.mxu0 0
      %2028 = vmatmul.mubr.bf16.gmra.mxu0 %v1329
      %v2029 = vpop.f32.mrf.mxu0
      %v2030 = vadd.f32 %v1861, %v2029
      %v2031 = vpop.f32.mrf.mxu0
      %v2032 = vpop.f32.mrf.mxu0
      %v2033 = vadd.f32 %v1864, %v2032
      %v2034 = vpop.f32.mrf.mxu0
      %2035 = vmatprep.mubr.bf16.mxu0 0
      %2036 = vmatmul.mubr.bf16.gmra.mxu0 %v1332
      %v2037 = vpop.f32.mrf.mxu0
      %v2038 = vadd.f32 %v1869, %v2037
      %v2039 = vpop.f32.mrf.mxu0
      %v2040 = vpop.f32.mrf.mxu0
      %v2041 = vadd.f32 %v1872, %v2040
      %v2042 = vpop.f32.mrf.mxu0
      %2043 = vmatprep.mubr.bf16.mxu0 0
      %2044 = vmatmul.mubr.bf16.gmra.mxu0 %v1335
      %v2045 = vpop.f32.mrf.mxu0
      %v2046 = vadd.f32 %v1877, %v2045
      %v2047 = vpop.f32.mrf.mxu0
      %v2048 = vpop.f32.mrf.mxu0
      %v2049 = vadd.f32 %v1880, %v2048
      %v2050 = vpop.f32.mrf.mxu0
      %2051 = vmatprep.mubr.bf16.mxu0 0
      %2052 = vmatmul.mubr.bf16.gmra.mxu0 %v1338
      %v2053 = vpop.f32.mrf.mxu0
      %v2054 = vadd.f32 %v1885, %v2053
      %v2055 = vpop.f32.mrf.mxu0
      %v2056 = vpop.f32.mrf.mxu0
      %v2057 = vadd.f32 %v1888, %v2056
      %v2058 = vpop.f32.mrf.mxu0
      %2059 = vmatprep.mubr.bf16.mxu0 0
      %2060 = vmatmul.mubr.bf16.gmra.mxu0 %v1341
      %v2061 = vpop.f32.mrf.mxu0
      %v2062 = vadd.f32 %v1893, %v2061
      %v2063 = vpop.f32.mrf.mxu0
      %v2064 = vpop.f32.mrf.mxu0
      %v2065 = vadd.f32 %v1896, %v2064
      %v2066 = vpop.f32.mrf.mxu0
      %2067 = vmatprep.mubr.bf16.mxu0 0
      %2068 = vmatmul.mubr.bf16.gmra.mxu0 %v1344
      %v2069 = vpop.f32.mrf.mxu0
      %v2070 = vadd.f32 %v1901, %v2069
      %v2071 = vpop.f32.mrf.mxu0
      %v2072 = vpop.f32.mrf.mxu0
      %v2073 = vadd.f32 %v1904, %v2072
      %v2074 = vpop.f32.mrf.mxu0
      %2075 = vdwg.mxu0
      %v2077 = vrot.slane %v1010, 5
      %v2078 = vsel %vm1035, %v1057, %v2077
      %2079 = vrot.lane.b32.xlu0 %v2078, 32
      %v2080 = vpop.permute.xlu0 %2079
      %v2081 = vrot.slane %v1239, 1
      %v2082 = vsel %vm1081, %v1168, %v2081
      %v2083 = vor.u32 %v1236, %v2081
      %2084 = vrot.lane.b32.xlu0 %v2082, 64
      %v2085 = vpop.permute.xlu0 %2084
      %2086 = vrot.lane.b32.xlu0 %v2083, 64
      %v2087 = vpop.permute.xlu0 %2086
      %v2088 = vsel %vm1191, %v1195, %v1201
      %v2089 = vrot.slane %v1419, 5
      %v2090 = vrot.slane %v1421, 6
      %v2091 = vor.u32 %v2089, %v2090
      %v2092 = vsel %vm1191, %v1242, %v2091
      %2093 = vrot.lane.b32.xlu0 %v2088, 96
      %v2094 = vpop.permute.xlu0 %2093
      %2095 = vrot.lane.b32.xlu0 %v2092, 96
      %v2096 = vpop.permute.xlu0 %2095
      %v2098 = vsel %vm1266, %v1009, %v2080
      %v2100 = vsel %vm1289, %v1288, %v2085
      %v2102 = vsel %vm1289, %v2098, %v2087
      %v2104 = vsel %vm1312, %v1293, %v2094
      %v2105 = vsel %vm1312, %v2100, %v1265
      %v2107 = vsel %vm1312, %v2102, %v2096
      %v2108 = vld [vmem:[%s3 + $0x80] sm:$0xf]
      %v2109 = vld [vmem:[%s3 + $0x84] sm:$0xf]
      %v2110 = vld [vmem:[%s3 + $0x88] sm:$0xf]
      %v2111 = vld [vmem:[%s3 + $0x8c] sm:$0xf]
      %v2112 = vld [vmem:[%s3 + $0x90] sm:$0xf]
      %v2113 = vld [vmem:[%s3 + $0x94] sm:$0xf]
      %v2114 = vld [vmem:[%s3 + $0x98] sm:$0xf]
      %v2115 = vld [vmem:[%s3 + $0x9c] sm:$0xf]
      %v2116 = vld [vmem:[%s3 + $0xa0] sm:$0xf]
      %v2117 = vld [vmem:[%s3 + $0xa4] sm:$0xf]
      %v2118 = vld [vmem:[%s3 + $0xa8] sm:$0xf]
      %v2119 = vld [vmem:[%s3 + $0xac] sm:$0xf]
      %v2120 = vld [vmem:[%s3 + $0xb0] sm:$0xf]
      %v2121 = vld [vmem:[%s3 + $0xb4] sm:$0xf]
      %v2122 = vld [vmem:[%s3 + $0xb8] sm:$0xf]
      %v2123 = vld [vmem:[%s3 + $0xbc] sm:$0xf]
      %vm2135 = vcmask 1045504
      %v2136 = vrot.slane %v2104, 2
      %v2137 = vrot.slane %v1320, 2
      %v2138 = vsel %vm2135, %v2136, %v2137
      %v2139 = vrot.slane %v1323, 2
      %v2140 = vsel %vm2135, %v2137, %v2139
      %v2141 = vrot.slane %v1326, 2
      %v2142 = vsel %vm2135, %v2139, %v2141
      %v2143 = vrot.slane %v1329, 2
      %v2144 = vsel %vm2135, %v2141, %v2143
      %v2145 = vrot.slane %v1332, 2
      %v2146 = vsel %vm2135, %v2143, %v2145
      %v2147 = vrot.slane %v1335, 2
      %v2148 = vsel %vm2135, %v2145, %v2147
      %v2149 = vrot.slane %v1338, 2
      %v2150 = vsel %vm2135, %v2147, %v2149
      %v2151 = vrot.slane %v1341, 2
      %v2152 = vsel %vm2135, %v2149, %v2151
      %v2153 = vrot.slane %v2105, 2
      %v2154 = vsel %vm2135, %v2151, %v2153
      %v2155 = vrot.slane %v2107, 2
      %v2156 = vsel %vm2135, %v2153, %v2155
      %v2184 = vunpack.c.l.b16 %v2108
      %v2185 = vunpack.c.l.b16 %v2109
      %v2186 = vunpack.c.l.b16 %v2110
      %v2187 = vunpack.c.l.b16 %v2111
      %v2188 = vunpack.c.l.b16 %v2112
      %v2189 = vunpack.c.l.b16 %v2113
      %v2190 = vunpack.c.l.b16 %v2114
      %v2191 = vunpack.c.l.b16 %v2115
      %v2192 = vunpack.c.l.b16 %v2116
      %v2193 = vunpack.c.l.b16 %v2117
      %v2194 = vunpack.c.l.b16 %v2118
      %v2195 = vunpack.c.l.b16 %v2119
      %v2196 = vunpack.c.l.b16 %v2120
      %v2197 = vunpack.c.l.b16 %v2121
      %v2198 = vunpack.c.l.b16 %v2122
      %v2199 = vunpack.c.l.b16 %v2123
      %v2200 = vpack.c.b16 %v2185, %v2184
      %v2201 = vpack.c.b16 %v2187, %v2186
      %v2202 = vpack.c.b16 %v2189, %v2188
      %v2203 = vpack.c.b16 %v2191, %v2190
      %v2204 = vpack.c.b16 %v2193, %v2192
      %v2205 = vpack.c.b16 %v2195, %v2194
      %v2206 = vpack.c.b16 %v2197, %v2196
      %v2207 = vpack.c.b16 %v2199, %v2198
      %2216 = vmatprep.subr.bf16.mxu0 0
      %2217 = vmatpush1.bf16.msra.mxu0 %v2207
      %2218 = vmatprep.subr.bf16.mxu0 0
      %2219 = vmatpush1.bf16.msra.mxu0 %v2206
      %2220 = vmatprep.subr.bf16.mxu0 0
      %2221 = vmatpush1.bf16.msra.mxu0 %v2205
      %2222 = vmatprep.subr.bf16.mxu0 0
      %2223 = vmatpush1.bf16.msra.mxu0 %v2204
      %2224 = vmatprep.subr.bf16.mxu0 0
      %2225 = vmatpush1.bf16.msra.mxu0 %v2203
      %2226 = vmatprep.subr.bf16.mxu0 0
      %2227 = vmatpush1.bf16.msra.mxu0 %v2202
      %2228 = vmatprep.subr.bf16.mxu0 0
      %2229 = vmatpush1.bf16.msra.mxu0 %v2201
      %2230 = vmatprep.subr.bf16.mxu0 0
      %2231 = vmatpush1.bf16.msra.mxu0 %v2200
      %2232 = vmatprep.subr.bf16.mxu0 0
      %2233 = vmatpush2.bf16.msra.mxu0 0
      %2234 = vmatprep.subr.bf16.mxu0 0
      %2235 = vmatpush2.bf16.msra.mxu0 0
      %2236 = vmatprep.subr.bf16.mxu0 0
      %2237 = vmatpush2.bf16.msra.mxu0 0
      %2238 = vmatprep.subr.bf16.mxu0 0
      %2239 = vmatpush2.bf16.msra.mxu0 0
      %2240 = vmatprep.subr.bf16.mxu0 0
      %2241 = vmatpush2.bf16.msra.mxu0 0
      %2242 = vmatprep.subr.bf16.mxu0 0
      %2243 = vmatpush2.bf16.msra.mxu0 0
      %2244 = vmatprep.subr.bf16.mxu0 0
      %2245 = vmatpush2.bf16.msra.mxu0 0
      %2246 = vmatprep.subr.bf16.mxu0 0
      %2247 = vmatpush2.bf16.msra.mxu0 0
      %2248 = vmatprep.mubr.bf16.mxu0 0
      %2249 = vmatmul.mubr.bf16.gmra.mxu0 %v2138
      %v2250 = vpop.f32.mrf.mxu0
      %v2251 = vadd.f32 0.0, %v2250
      %v2252 = vpop.f32.mrf.mxu0
      %v2253 = vpop.f32.mrf.mxu0
      %v2254 = vadd.f32 0.0, %v2253
      %v2255 = vpop.f32.mrf.mxu0
      %2256 = vmatprep.mubr.bf16.mxu0 0
      %2257 = vmatmul.mubr.bf16.gmra.mxu0 %v2140
      %v2258 = vpop.f32.mrf.mxu0
      %v2259 = vadd.f32 0.0, %v2258
      %v2260 = vpop.f32.mrf.mxu0
      %v2261 = vpop.f32.mrf.mxu0
      %v2262 = vadd.f32 0.0, %v2261
      %v2263 = vpop.f32.mrf.mxu0
      %2264 = vmatprep.mubr.bf16.mxu0 0
      %2265 = vmatmul.mubr.bf16.gmra.mxu0 %v2142
      %v2266 = vpop.f32.mrf.mxu0
      %v2267 = vadd.f32 0.0, %v2266
      %v2268 = vpop.f32.mrf.mxu0
      %v2269 = vpop.f32.mrf.mxu0
      %v2270 = vadd.f32 0.0, %v2269
      %v2271 = vpop.f32.mrf.mxu0
      %2272 = vmatprep.mubr.bf16.mxu0 0
      %2273 = vmatmul.mubr.bf16.gmra.mxu0 %v2144
      %v2274 = vpop.f32.mrf.mxu0
      %v2275 = vadd.f32 0.0, %v2274
      %v2276 = vpop.f32.mrf.mxu0
      %v2277 = vpop.f32.mrf.mxu0
      %v2278 = vadd.f32 0.0, %v2277
      %v2279 = vpop.f32.mrf.mxu0
      %2280 = vmatprep.mubr.bf16.mxu0 0
      %2281 = vmatmul.mubr.bf16.gmra.mxu0 %v2146
      %v2282 = vpop.f32.mrf.mxu0
      %v2283 = vadd.f32 0.0, %v2282
      %v2284 = vpop.f32.mrf.mxu0
      %v2285 = vpop.f32.mrf.mxu0
      %v2286 = vadd.f32 0.0, %v2285
      %v2287 = vpop.f32.mrf.mxu0
      %2288 = vmatprep.mubr.bf16.mxu0 0
      %2289 = vmatmul.mubr.bf16.gmra.mxu0 %v2148
      %v2290 = vpop.f32.mrf.mxu0
      %v2291 = vadd.f32 0.0, %v2290
      %v2292 = vpop.f32.mrf.mxu0
      %v2293 = vpop.f32.mrf.mxu0
      %v2294 = vadd.f32 0.0, %v2293
      %v2295 = vpop.f32.mrf.mxu0
      %2296 = vmatprep.mubr.bf16.mxu0 0
      %2297 = vmatmul.mubr.bf16.gmra.mxu0 %v2150
      %v2298 = vpop.f32.mrf.mxu0
      %v2299 = vadd.f32 0.0, %v2298
      %v2300 = vpop.f32.mrf.mxu0
      %v2301 = vpop.f32.mrf.mxu0
      %v2302 = vadd.f32 0.0, %v2301
      %v2303 = vpop.f32.mrf.mxu0
      %2304 = vmatprep.mubr.bf16.mxu0 0
      %2305 = vmatmul.mubr.bf16.gmra.mxu0 %v2152
      %v2306 = vpop.f32.mrf.mxu0
      %v2307 = vadd.f32 0.0, %v2306
      %v2308 = vpop.f32.mrf.mxu0
      %v2309 = vpop.f32.mrf.mxu0
      %v2310 = vadd.f32 0.0, %v2309
      %v2311 = vpop.f32.mrf.mxu0
      %2312 = vmatprep.mubr.bf16.mxu0 0
      %2313 = vmatmul.mubr.bf16.gmra.mxu0 %v2154
      %v2314 = vpop.f32.mrf.mxu0
      %v2315 = vadd.f32 0.0, %v2314
      %v2316 = vpop.f32.mrf.mxu0
      %v2317 = vpop.f32.mrf.mxu0
      %v2318 = vadd.f32 0.0, %v2317
      %v2319 = vpop.f32.mrf.mxu0
      %2320 = vmatprep.mubr.bf16.mxu0 0
      %2321 = vmatmul.mubr.bf16.gmra.mxu0 %v2156
      %v2322 = vpop.f32.mrf.mxu0
      %v2323 = vadd.f32 0.0, %v2322
      %v2324 = vpop.f32.mrf.mxu0
      %v2325 = vpop.f32.mrf.mxu0
      %v2326 = vadd.f32 0.0, %v2325
      %v2327 = vpop.f32.mrf.mxu0
      %2328 = vmatprep.mubr.bf16.mxu0 0
      %2329 = vmatmul.mubr.bf16.gmra.mxu0 %v2155
      %v2330 = vpop.f32.mrf.mxu0
      %v2331 = vadd.f32 0.0, %v2330
      %v2332 = vpop.f32.mrf.mxu0
      %v2333 = vpop.f32.mrf.mxu0
      %v2334 = vadd.f32 0.0, %v2333
      %v2335 = vpop.f32.mrf.mxu0
      %2336 = vdwg.mxu0
      %v2337 = vadd.f32 %v1990, %v2251
      %v2338 = vadd.f32 %v1993, %v2254
      %v2339 = vadd.f32 %v1998, %v2259
      %v2340 = vadd.f32 %v2001, %v2262
      %v2341 = vadd.f32 %v2006, %v2267
      %v2342 = vadd.f32 %v2009, %v2270
      %v2343 = vadd.f32 %v2014, %v2275
      %v2344 = vadd.f32 %v2017, %v2278
      %v2345 = vadd.f32 %v2022, %v2283
      %v2346 = vadd.f32 %v2025, %v2286
      %v2347 = vadd.f32 %v2030, %v2291
      %v2348 = vadd.f32 %v2033, %v2294
      %v2349 = vadd.f32 %v2038, %v2299
      %v2350 = vadd.f32 %v2041, %v2302
      %v2351 = vadd.f32 %v2046, %v2307
      %v2352 = vadd.f32 %v2049, %v2310
      %v2353 = vadd.f32 %v2054, %v2315
      %v2354 = vadd.f32 %v2057, %v2318
      %v2355 = vadd.f32 %v2062, %v2323
      %v2356 = vadd.f32 %v2065, %v2326
      %v2357 = vadd.f32 %v2070, %v2331
      %v2358 = vadd.f32 %v2073, %v2334
      %v2360 = vrot.slane %v1022, 5
      %v2361 = vsel %vm1035, %v1392, %v2360
      %2362 = vrot.lane.b32.xlu0 %v1374, 32
      %v2363 = vpop.permute.xlu0 %2362
      %2364 = vrot.lane.b32.xlu0 %v2361, 32
      %v2365 = vpop.permute.xlu0 %2364
      %2366 = vrot.lane.b32.xlu0 %v2360, 32
      %v2367 = vpop.permute.xlu0 %2366
      %v2368 = vor.u32 %v1510, %v1508
      %v2370 = vshll.u32 %v1022, 16
      %v2372 = vrot.slane %v2370, 1
      %v2373 = vsel %vm1081, %v2368, %v2372
      %v2374 = vshrl.u32 %v1022, 16
      %v2376 = vor.u32 %v2374, %v2372
      %2377 = vrot.lane.b32.xlu0 %v2373, 64
      %v2378 = vpop.permute.xlu0 %2377
      %2379 = vrot.lane.b32.xlu0 %v2376, 64
      %v2380 = vpop.permute.xlu0 %2379
      %v2381 = vrot.slane %v2374, 5
      %v2382 = vrot.slane %v2370, 6
      %v2383 = vor.u32 %v2381, %v2382
      %v2384 = vsel %vm1191, %v1577, %v2383
      %2385 = vrot.lane.b32.xlu0 %v1541, 96
      %v2386 = vpop.permute.xlu0 %2385
      %2387 = vrot.lane.b32.xlu0 %v2384, 96
      %v2388 = vpop.permute.xlu0 %2387
      %2389 = vrot.lane.b32.xlu0 %v2383, 96
      %v2390 = vpop.permute.xlu0 %2389
      %v2392 = vsel %vm1266, %v1011, %v2363
      %v2394 = vsel %vm1266, %v1021, %v2365
      %v2396 = vsel %vm1266, %v1022, %v2367
      %v2397 = vsel %vm1289, %v2392, %v1515
      %v2399 = vsel %vm1289, %v2394, %v2378
      %v2401 = vsel %vm1289, %v2396, %v2380
      %v2403 = vsel %vm1312, %v2397, %v2386
      %v2405 = vsel %vm1312, %v2399, %v2388
      %v2407 = vsel %vm1312, %v2401, %v2390
      %v2408 = vld [vmem:[%s3 + $0xc0] sm:$0xf]
      %v2409 = vld [vmem:[%s3 + $0xc4] sm:$0xf]
      %v2410 = vld [vmem:[%s3 + $0xc8] sm:$0xf]
      %v2411 = vld [vmem:[%s3 + $0xcc] sm:$0xf]
      %v2412 = vld [vmem:[%s3 + $0xd0] sm:$0xf]
      %v2413 = vld [vmem:[%s3 + $0xd4] sm:$0xf]
      %v2414 = vld [vmem:[%s3 + $0xd8] sm:$0xf]
      %v2415 = vld [vmem:[%s3 + $0xdc] sm:$0xf]
      %v2416 = vld [vmem:[%s3 + $0xe0] sm:$0xf]
      %v2417 = vld [vmem:[%s3 + $0xe4] sm:$0xf]
      %v2418 = vld [vmem:[%s3 + $0xe8] sm:$0xf]
      %v2419 = vld [vmem:[%s3 + $0xec] sm:$0xf]
      %v2420 = vld [vmem:[%s3 + $0xf0] sm:$0xf]
      %v2421 = vld [vmem:[%s3 + $0xf4] sm:$0xf]
      %v2422 = vld [vmem:[%s3 + $0xf8] sm:$0xf]
      %v2423 = vld [vmem:[%s3 + $0xfc] sm:$0xf]
      %vm2427 = vcmask 1041408
      %v2428 = vrot.slane %v2403, 6
      %v2429 = vrot.slane %v1656, 6
      %v2430 = vsel %vm2427, %v2428, %v2429
      %v2431 = vrot.slane %v1658, 6
      %v2432 = vsel %vm2427, %v2429, %v2431
      %v2433 = vrot.slane %v1660, 6
      %v2434 = vsel %vm2427, %v2431, %v2433
      %v2435 = vrot.slane %v1662, 6
      %v2436 = vsel %vm2427, %v2433, %v2435
      %v2437 = vrot.slane %v1664, 6
      %v2438 = vsel %vm2427, %v2435, %v2437
      %v2439 = vrot.slane %v1666, 6
      %v2440 = vsel %vm2427, %v2437, %v2439
      %v2441 = vrot.slane %v1668, 6
      %v2442 = vsel %vm2427, %v2439, %v2441
      %v2443 = vrot.slane %v1670, 6
      %v2444 = vsel %vm2427, %v2441, %v2443
      %v2445 = vrot.slane %v1672, 6
      %v2446 = vsel %vm2427, %v2443, %v2445
      %v2447 = vrot.slane %v2405, 6
      %v2448 = vsel %vm2427, %v2445, %v2447
      %v2449 = vrot.slane %v2407, 6
      %v2450 = vsel %vm2427, %v2447, %v2449
      %v2478 = vunpack.c.l.b16 %v2408
      %v2479 = vunpack.c.l.b16 %v2409
      %v2480 = vunpack.c.l.b16 %v2410
      %v2481 = vunpack.c.l.b16 %v2411
      %v2482 = vunpack.c.l.b16 %v2412
      %v2483 = vunpack.c.l.b16 %v2413
      %v2484 = vunpack.c.l.b16 %v2414
      %v2485 = vunpack.c.l.b16 %v2415
      %v2486 = vunpack.c.l.b16 %v2416
      %v2487 = vunpack.c.l.b16 %v2417
      %v2488 = vunpack.c.l.b16 %v2418
      %v2489 = vunpack.c.l.b16 %v2419
      %v2490 = vunpack.c.l.b16 %v2420
      %v2491 = vunpack.c.l.b16 %v2421
      %v2492 = vunpack.c.l.b16 %v2422
      %v2493 = vunpack.c.l.b16 %v2423
      %v2494 = vpack.c.b16 %v2479, %v2478
      %v2495 = vpack.c.b16 %v2481, %v2480
      %v2496 = vpack.c.b16 %v2483, %v2482
      %v2497 = vpack.c.b16 %v2485, %v2484
      %v2498 = vpack.c.b16 %v2487, %v2486
      %v2499 = vpack.c.b16 %v2489, %v2488
      %v2500 = vpack.c.b16 %v2491, %v2490
      %v2501 = vpack.c.b16 %v2493, %v2492
      %2510 = vmatprep.subr.bf16.mxu0 0
      %2511 = vmatpush1.bf16.msra.mxu0 %v2501
      %2512 = vmatprep.subr.bf16.mxu0 0
      %2513 = vmatpush1.bf16.msra.mxu0 %v2500
      %2514 = vmatprep.subr.bf16.mxu0 0
      %2515 = vmatpush1.bf16.msra.mxu0 %v2499
      %2516 = vmatprep.subr.bf16.mxu0 0
      %2517 = vmatpush1.bf16.msra.mxu0 %v2498
      %2518 = vmatprep.subr.bf16.mxu0 0
      %2519 = vmatpush1.bf16.msra.mxu0 %v2497
      %2520 = vmatprep.subr.bf16.mxu0 0
      %2521 = vmatpush1.bf16.msra.mxu0 %v2496
      %2522 = vmatprep.subr.bf16.mxu0 0
      %2523 = vmatpush1.bf16.msra.mxu0 %v2495
      %2524 = vmatprep.subr.bf16.mxu0 0
      %2525 = vmatpush1.bf16.msra.mxu0 %v2494
      %2526 = vmatprep.subr.bf16.mxu0 0
      %2527 = vmatpush2.bf16.msra.mxu0 0
      %2528 = vmatprep.subr.bf16.mxu0 0
      %2529 = vmatpush2.bf16.msra.mxu0 0
      %2530 = vmatprep.subr.bf16.mxu0 0
      %2531 = vmatpush2.bf16.msra.mxu0 0
      %2532 = vmatprep.subr.bf16.mxu0 0
      %2533 = vmatpush2.bf16.msra.mxu0 0
      %2534 = vmatprep.subr.bf16.mxu0 0
      %2535 = vmatpush2.bf16.msra.mxu0 0
      %2536 = vmatprep.subr.bf16.mxu0 0
      %2537 = vmatpush2.bf16.msra.mxu0 0
      %2538 = vmatprep.subr.bf16.mxu0 0
      %2539 = vmatpush2.bf16.msra.mxu0 0
      %2540 = vmatprep.subr.bf16.mxu0 0
      %2541 = vmatpush2.bf16.msra.mxu0 0
      %2542 = vmatprep.mubr.bf16.mxu0 0
      %2543 = vmatmul.mubr.bf16.gmra.mxu0 %v2430
      %v2544 = vpop.f32.mrf.mxu0
      %v2545 = vadd.f32 0.0, %v2544
      %v2546 = vpop.f32.mrf.mxu0
      %v2547 = vpop.f32.mrf.mxu0
      %v2548 = vadd.f32 0.0, %v2547
      %v2549 = vpop.f32.mrf.mxu0
      %2550 = vmatprep.mubr.bf16.mxu0 0
      %2551 = vmatmul.mubr.bf16.gmra.mxu0 %v2432
      %v2552 = vpop.f32.mrf.mxu0
      %v2553 = vadd.f32 0.0, %v2552
      %v2554 = vpop.f32.mrf.mxu0
      %v2555 = vpop.f32.mrf.mxu0
      %v2556 = vadd.f32 0.0, %v2555
      %v2557 = vpop.f32.mrf.mxu0
      %2558 = vmatprep.mubr.bf16.mxu0 0
      %2559 = vmatmul.mubr.bf16.gmra.mxu0 %v2434
      %v2560 = vpop.f32.mrf.mxu0
      %v2561 = vadd.f32 0.0, %v2560
      %v2562 = vpop.f32.mrf.mxu0
      %v2563 = vpop.f32.mrf.mxu0
      %v2564 = vadd.f32 0.0, %v2563
      %v2565 = vpop.f32.mrf.mxu0
      %2566 = vmatprep.mubr.bf16.mxu0 0
      %2567 = vmatmul.mubr.bf16.gmra.mxu0 %v2436
      %v2568 = vpop.f32.mrf.mxu0
      %v2569 = vadd.f32 0.0, %v2568
      %v2570 = vpop.f32.mrf.mxu0
      %v2571 = vpop.f32.mrf.mxu0
      %v2572 = vadd.f32 0.0, %v2571
      %v2573 = vpop.f32.mrf.mxu0
      %2574 = vmatprep.mubr.bf16.mxu0 0
      %2575 = vmatmul.mubr.bf16.gmra.mxu0 %v2438
      %v2576 = vpop.f32.mrf.mxu0
      %v2577 = vadd.f32 0.0, %v2576
      %v2578 = vpop.f32.mrf.mxu0
      %v2579 = vpop.f32.mrf.mxu0
      %v2580 = vadd.f32 0.0, %v2579
      %v2581 = vpop.f32.mrf.mxu0
      %2582 = vmatprep.mubr.bf16.mxu0 0
      %2583 = vmatmul.mubr.bf16.gmra.mxu0 %v2440
      %v2584 = vpop.f32.mrf.mxu0
      %v2585 = vadd.f32 0.0, %v2584
      %v2586 = vpop.f32.mrf.mxu0
      %v2587 = vpop.f32.mrf.mxu0
      %v2588 = vadd.f32 0.0, %v2587
      %v2589 = vpop.f32.mrf.mxu0
      %2590 = vmatprep.mubr.bf16.mxu0 0
      %2591 = vmatmul.mubr.bf16.gmra.mxu0 %v2442
      %v2592 = vpop.f32.mrf.mxu0
      %v2593 = vadd.f32 0.0, %v2592
      %v2594 = vpop.f32.mrf.mxu0
      %v2595 = vpop.f32.mrf.mxu0
      %v2596 = vadd.f32 0.0, %v2595
      %v2597 = vpop.f32.mrf.mxu0
      %2598 = vmatprep.mubr.bf16.mxu0 0
      %2599 = vmatmul.mubr.bf16.gmra.mxu0 %v2444
      %v2600 = vpop.f32.mrf.mxu0
      %v2601 = vadd.f32 0.0, %v2600
      %v2602 = vpop.f32.mrf.mxu0
      %v2603 = vpop.f32.mrf.mxu0
      %v2604 = vadd.f32 0.0, %v2603
      %v2605 = vpop.f32.mrf.mxu0
      %2606 = vmatprep.mubr.bf16.mxu0 0
      %2607 = vmatmul.mubr.bf16.gmra.mxu0 %v2446
      %v2608 = vpop.f32.mrf.mxu0
      %v2609 = vadd.f32 0.0, %v2608
      %v2610 = vpop.f32.mrf.mxu0
      %v2611 = vpop.f32.mrf.mxu0
      %v2612 = vadd.f32 0.0, %v2611
      %v2613 = vpop.f32.mrf.mxu0
      %2614 = vmatprep.mubr.bf16.mxu0 0
      %2615 = vmatmul.mubr.bf16.gmra.mxu0 %v2448
      %v2616 = vpop.f32.mrf.mxu0
      %v2617 = vadd.f32 0.0, %v2616
      %v2618 = vpop.f32.mrf.mxu0
      %v2619 = vpop.f32.mrf.mxu0
      %v2620 = vadd.f32 0.0, %v2619
      %v2621 = vpop.f32.mrf.mxu0
      %2622 = vmatprep.mubr.bf16.mxu0 0
      %2623 = vmatmul.mubr.bf16.gmra.mxu0 %v2450
      %v2624 = vpop.f32.mrf.mxu0
      %v2625 = vadd.f32 0.0, %v2624
      %v2626 = vpop.f32.mrf.mxu0
      %v2627 = vpop.f32.mrf.mxu0
      %v2628 = vadd.f32 0.0, %v2627
      %v2629 = vpop.f32.mrf.mxu0
      %2630 = vdwg.mxu0
      %v2631 = vadd.f32 %v2337, %v2545
      %v2632 = vadd.f32 %v2338, %v2548
      %v2633 = vadd.f32 %v2339, %v2553
      %v2634 = vadd.f32 %v2340, %v2556
      %v2635 = vadd.f32 %v2341, %v2561
      %v2636 = vadd.f32 %v2342, %v2564
      %v2637 = vadd.f32 %v2343, %v2569
      %v2638 = vadd.f32 %v2344, %v2572
      %v2639 = vadd.f32 %v2345, %v2577
      %v2640 = vadd.f32 %v2346, %v2580
      %v2641 = vadd.f32 %v2347, %v2585
      %v2642 = vadd.f32 %v2348, %v2588
      %v2643 = vadd.f32 %v2349, %v2593
      %v2644 = vadd.f32 %v2350, %v2596
      %v2645 = vadd.f32 %v2351, %v2601
      %v2646 = vadd.f32 %v2352, %v2604
      %v2647 = vadd.f32 %v2353, %v2609
      %v2648 = vadd.f32 %v2354, %v2612
      %v2649 = vadd.f32 %v2355, %v2617
      %v2650 = vadd.f32 %v2356, %v2620
      %v2651 = vadd.f32 %v2357, %v2625
      %v2652 = vadd.f32 %v2358, %v2628
      %v2653 = vld [vmem:[%s4] sm:$0x1]
      %v2655 = vlaneseq
      %v2656 = vshrl.u32 %v2655, 7
      %v2657 = vsub.s32 0, %v2656
      %v2658 = vrot.slane %v2653, %v2657
      %v2660 = vadd.f32 %v2631, %v2658
      %v2661 = vadd.f32 %v2632, %v2658
      %v2662 = vadd.f32 %v2633, %v2658
      %v2663 = vadd.f32 %v2634, %v2658
      %v2664 = vadd.f32 %v2635, %v2658
      %v2665 = vadd.f32 %v2636, %v2658
      %v2666 = vadd.f32 %v2637, %v2658
      %v2667 = vadd.f32 %v2638, %v2658
      %v2668 = vadd.f32 %v2639, %v2658
      %v2669 = vadd.f32 %v2640, %v2658
      %v2670 = vadd.f32 %v2641, %v2658
      %v2671 = vadd.f32 %v2642, %v2658
      %v2672 = vadd.f32 %v2643, %v2658
      %v2673 = vadd.f32 %v2644, %v2658
      %v2674 = vadd.f32 %v2645, %v2658
      %v2675 = vadd.f32 %v2646, %v2658
      %v2676 = vadd.f32 %v2647, %v2658
      %v2677 = vadd.f32 %v2648, %v2658
      %v2678 = vadd.f32 %v2649, %v2658
      %v2679 = vadd.f32 %v2650, %v2658
      %v2680 = vadd.f32 %v2651, %v2658
      %v2681 = vadd.f32 %v2652, %v2658
      %v2682 = vmax.f32 %v2660, 0.0
      %v2683 = vmax.f32 %v2661, 0.0
      %v2684 = vmax.f32 %v2662, 0.0
      %v2685 = vmax.f32 %v2663, 0.0
      %v2686 = vmax.f32 %v2664, 0.0
      %v2687 = vmax.f32 %v2665, 0.0
      %v2688 = vmax.f32 %v2666, 0.0
      %v2689 = vmax.f32 %v2667, 0.0
      %v2690 = vmax.f32 %v2668, 0.0
      %v2691 = vmax.f32 %v2669, 0.0
      %v2692 = vmax.f32 %v2670, 0.0
      %v2693 = vmax.f32 %v2671, 0.0
      %v2694 = vmax.f32 %v2672, 0.0
      %v2695 = vmax.f32 %v2673, 0.0
      %v2696 = vmax.f32 %v2674, 0.0
      %v2697 = vmax.f32 %v2675, 0.0
      %v2698 = vmax.f32 %v2676, 0.0
      %v2699 = vmax.f32 %v2677, 0.0
      %v2700 = vmax.f32 %v2678, 0.0
      %v2701 = vmax.f32 %v2679, 0.0
      %v2702 = vmax.f32 %v2680, 0.0
      %v2703 = vmax.f32 %v2681, 0.0
      %v2704 = vpack.c.bf16 %v2683, %v2682
      %v2705 = vpack.c.bf16 %v2685, %v2684
      %v2706 = vpack.c.bf16 %v2687, %v2686
      %v2707 = vpack.c.bf16 %v2689, %v2688
      %v2708 = vpack.c.bf16 %v2691, %v2690
      %v2709 = vpack.c.bf16 %v2693, %v2692
      %v2710 = vpack.c.bf16 %v2695, %v2694
      %v2711 = vpack.c.bf16 %v2697, %v2696
      %v2712 = vpack.c.bf16 %v2699, %v2698
      %v2713 = vpack.c.bf16 %v2701, %v2700
      %v2714 = vpack.c.bf16 %v2703, %v2702
      %v2716 = vshrl.u32 %v2704, 16
      %v2718 = vshll.u32 %v2704, 16
      %v2720 = vrot.slane %v2718, 1
      %v2721 = vor.u32 %v2716, %v2720
      %v2723 = vshll.u32 %v2705, 16
      %v2725 = vrot.slane %v2723, 1
      %v2726 = vsel %vm1081, %v2721, %v2725
      %v2727 = vshrl.u32 %v2705, 16
      %v2729 = vor.u32 %v2727, %v2725
      %v2731 = vshll.u32 %v2706, 16
      %v2733 = vrot.slane %v2731, 1
      %v2734 = vsel %vm1081, %v2729, %v2733
      %v2735 = vshrl.u32 %v2706, 16
      %v2737 = vor.u32 %v2735, %v2733
      %v2739 = vshll.u32 %v2707, 16
      %v2741 = vrot.slane %v2739, 1
      %v2742 = vsel %vm1081, %v2737, %v2741
      %v2743 = vshrl.u32 %v2707, 16
      %v2745 = vor.u32 %v2743, %v2741
      %v2747 = vshll.u32 %v2708, 16
      %v2749 = vrot.slane %v2747, 1
      %v2750 = vsel %vm1081, %v2745, %v2749
      %v2751 = vshrl.u32 %v2708, 16
      %v2753 = vor.u32 %v2751, %v2749
      %v2755 = vshll.u32 %v2709, 16
      %v2757 = vrot.slane %v2755, 1
      %v2758 = vsel %vm1081, %v2753, %v2757
      %v2759 = vshrl.u32 %v2709, 16
      %v2761 = vor.u32 %v2759, %v2757
      %v2763 = vshll.u32 %v2710, 16
      %v2765 = vrot.slane %v2763, 1
      %v2766 = vsel %vm1081, %v2761, %v2765
      %v2767 = vshrl.u32 %v2710, 16
      %v2769 = vor.u32 %v2767, %v2765
      %v2771 = vshll.u32 %v2711, 16
      %v2773 = vrot.slane %v2771, 1
      %v2774 = vsel %vm1081, %v2769, %v2773
      %v2775 = vshrl.u32 %v2711, 16
      %v2777 = vor.u32 %v2775, %v2773
      %2778 = vrot.lane.b32.xlu0 %v2726, 64
      %v2779 = vpop.permute.xlu0 %2778
      %2780 = vrot.lane.b32.xlu0 %v2734, 64
      %v2781 = vpop.permute.xlu0 %2780
      %2782 = vrot.lane.b32.xlu0 %v2742, 64
      %v2783 = vpop.permute.xlu0 %2782
      %2784 = vrot.lane.b32.xlu0 %v2750, 64
      %v2785 = vpop.permute.xlu0 %2784
      %2786 = vrot.lane.b32.xlu0 %v2758, 64
      %v2787 = vpop.permute.xlu0 %2786
      %2788 = vrot.lane.b32.xlu0 %v2766, 64
      %v2789 = vpop.permute.xlu0 %2788
      %2790 = vrot.lane.b32.xlu0 %v2774, 64
      %v2791 = vpop.permute.xlu0 %2790
      %2792 = vrot.lane.b32.xlu0 %v2777, 64
      %v2793 = vpop.permute.xlu0 %2792
      %vm2803 = vcmask 1046528
      %v2804 = vrot.slane %v2704, 1
      %v2805 = vrot.slane %v2705, 1
      %v2806 = vsel %vm2803, %v2804, %v2805
      %v2807 = vrot.slane %v2706, 1
      %v2808 = vsel %vm2803, %v2805, %v2807
      %v2809 = vrot.slane %v2707, 1
      %v2810 = vsel %vm2803, %v2807, %v2809
      %v2811 = vrot.slane %v2708, 1
      %v2812 = vsel %vm2803, %v2809, %v2811
      %v2813 = vrot.slane %v2709, 1
      %v2814 = vsel %vm2803, %v2811, %v2813
      %v2815 = vrot.slane %v2710, 1
      %v2816 = vsel %vm2803, %v2813, %v2815
      %v2817 = vrot.slane %v2711, 1
      %v2818 = vsel %vm2803, %v2815, %v2817
      %v2819 = vrot.slane %v2712, 1
      %v2820 = vsel %vm2803, %v2817, %v2819
      %v2822 = vrot.slane %v2705, 2
      %v2823 = vrot.slane %v2706, 2
      %v2824 = vsel %vm2135, %v2822, %v2823
      %v2825 = vrot.slane %v2707, 2
      %v2826 = vsel %vm2135, %v2823, %v2825
      %v2827 = vrot.slane %v2708, 2
      %v2828 = vsel %vm2135, %v2825, %v2827
      %v2829 = vrot.slane %v2709, 2
      %v2830 = vsel %vm2135, %v2827, %v2829
      %v2831 = vrot.slane %v2710, 2
      %v2832 = vsel %vm2135, %v2829, %v2831
      %v2833 = vrot.slane %v2711, 2
      %v2834 = vsel %vm2135, %v2831, %v2833
      %v2835 = vrot.slane %v2712, 2
      %v2836 = vsel %vm2135, %v2833, %v2835
      %v2837 = vrot.slane %v2713, 2
      %v2838 = vsel %vm2135, %v2835, %v2837
      %2839 = vrot.lane.b32.xlu0 %v2824, 64
      %v2840 = vpop.permute.xlu0 %2839
      %2841 = vrot.lane.b32.xlu0 %v2826, 64
      %v2842 = vpop.permute.xlu0 %2841
      %2843 = vrot.lane.b32.xlu0 %v2828, 64
      %v2844 = vpop.permute.xlu0 %2843
      %2845 = vrot.lane.b32.xlu0 %v2830, 64
      %v2846 = vpop.permute.xlu0 %2845
      %2847 = vrot.lane.b32.xlu0 %v2832, 64
      %v2848 = vpop.permute.xlu0 %2847
      %2849 = vrot.lane.b32.xlu0 %v2834, 64
      %v2850 = vpop.permute.xlu0 %2849
      %2851 = vrot.lane.b32.xlu0 %v2836, 64
      %v2852 = vpop.permute.xlu0 %2851
      %2853 = vrot.lane.b32.xlu0 %v2838, 64
      %v2854 = vpop.permute.xlu0 %2853
      %vm2855 = vsmask.f32 5376
      %v2856 = vrot.slane %v2727, 2
      %v2857 = vrot.slane %v2723, 3
      %v2858 = vor.u32 %v2856, %v2857
      %v2859 = vrot.slane %v2735, 2
      %v2860 = vrot.slane %v2731, 3
      %v2861 = vor.u32 %v2859, %v2860
      %v2862 = vsel %vm2855, %v2858, %v2861
      %v2863 = vrot.slane %v2743, 2
      %v2864 = vrot.slane %v2739, 3
      %v2865 = vor.u32 %v2863, %v2864
      %v2866 = vsel %vm2855, %v2861, %v2865
      %v2867 = vrot.slane %v2751, 2
      %v2868 = vrot.slane %v2747, 3
      %v2869 = vor.u32 %v2867, %v2868
      %v2870 = vsel %vm2855, %v2865, %v2869
      %v2871 = vrot.slane %v2759, 2
      %v2872 = vrot.slane %v2755, 3
      %v2873 = vor.u32 %v2871, %v2872
      %v2874 = vsel %vm2855, %v2869, %v2873
      %v2875 = vrot.slane %v2767, 2
      %v2876 = vrot.slane %v2763, 3
      %v2877 = vor.u32 %v2875, %v2876
      %v2878 = vsel %vm2855, %v2873, %v2877
      %v2879 = vrot.slane %v2775, 2
      %v2880 = vrot.slane %v2771, 3
      %v2881 = vor.u32 %v2879, %v2880
      %v2882 = vsel %vm2855, %v2877, %v2881
      %v2884 = vshrl.u32 %v2712, 16
      %v2886 = vrot.slane %v2884, 2
      %v2887 = vshll.u32 %v2712, 16
      %v2889 = vrot.slane %v2887, 3
      %v2890 = vor.u32 %v2886, %v2889
      %v2891 = vsel %vm2855, %v2881, %v2890
      %v2893 = vshrl.u32 %v2713, 16
      %v2895 = vrot.slane %v2893, 2
      %v2896 = vshll.u32 %v2713, 16
      %v2898 = vrot.slane %v2896, 3
      %v2899 = vor.u32 %v2895, %v2898
      %v2900 = vsel %vm2855, %v2890, %v2899
      %vm2901 = vcmask 1044480
      %v2902 = vrot.slane %v2705, 3
      %v2903 = vrot.slane %v2706, 3
      %v2904 = vsel %vm2901, %v2902, %v2903
      %v2905 = vrot.slane %v2707, 3
      %v2906 = vsel %vm2901, %v2903, %v2905
      %v2907 = vrot.slane %v2708, 3
      %v2908 = vsel %vm2901, %v2905, %v2907
      %v2909 = vrot.slane %v2709, 3
      %v2910 = vsel %vm2901, %v2907, %v2909
      %v2911 = vrot.slane %v2710, 3
      %v2912 = vsel %vm2901, %v2909, %v2911
      %v2913 = vrot.slane %v2711, 3
      %v2914 = vsel %vm2901, %v2911, %v2913
      %v2915 = vrot.slane %v2712, 3
      %v2916 = vsel %vm2901, %v2913, %v2915
      %v2917 = vrot.slane %v2713, 3
      %v2918 = vsel %vm2901, %v2915, %v2917
      %2919 = vrot.lane.b32.xlu0 %v2904, 64
      %v2920 = vpop.permute.xlu0 %2919
      %2921 = vrot.lane.b32.xlu0 %v2906, 64
      %v2922 = vpop.permute.xlu0 %2921
      %2923 = vrot.lane.b32.xlu0 %v2908, 64
      %v2924 = vpop.permute.xlu0 %2923
      %2925 = vrot.lane.b32.xlu0 %v2910, 64
      %v2926 = vpop.permute.xlu0 %2925
      %2927 = vrot.lane.b32.xlu0 %v2912, 64
      %v2928 = vpop.permute.xlu0 %2927
      %2929 = vrot.lane.b32.xlu0 %v2914, 64
      %v2930 = vpop.permute.xlu0 %2929
      %2931 = vrot.lane.b32.xlu0 %v2916, 64
      %v2932 = vpop.permute.xlu0 %2931
      %2933 = vrot.lane.b32.xlu0 %v2918, 64
      %v2934 = vpop.permute.xlu0 %2933
      %v2936 = vrot.slane %v2706, 4
      %v2937 = vrot.slane %v2707, 4
      %v2938 = vsel %vm1703, %v2936, %v2937
      %v2939 = vrot.slane %v2708, 4
      %v2940 = vsel %vm1703, %v2937, %v2939
      %v2941 = vrot.slane %v2709, 4
      %v2942 = vsel %vm1703, %v2939, %v2941
      %v2943 = vrot.slane %v2710, 4
      %v2944 = vsel %vm1703, %v2941, %v2943
      %v2945 = vrot.slane %v2711, 4
      %v2946 = vsel %vm1703, %v2943, %v2945
      %v2947 = vrot.slane %v2712, 4
      %v2948 = vsel %vm1703, %v2945, %v2947
      %v2949 = vrot.slane %v2713, 4
      %v2950 = vsel %vm1703, %v2947, %v2949
      %v2951 = vrot.slane %v2714, 4
      %v2952 = vsel %vm1703, %v2949, %v2951
      %vm2953 = vsmask.f32 3328
      %v2954 = vrot.slane %v2735, 4
      %v2955 = vrot.slane %v2731, 5
      %v2956 = vor.u32 %v2954, %v2955
      %v2957 = vrot.slane %v2743, 4
      %v2958 = vrot.slane %v2739, 5
      %v2959 = vor.u32 %v2957, %v2958
      %v2960 = vsel %vm2953, %v2956, %v2959
      %v2961 = vrot.slane %v2751, 4
      %v2962 = vrot.slane %v2747, 5
      %v2963 = vor.u32 %v2961, %v2962
      %v2964 = vsel %vm2953, %v2959, %v2963
      %v2965 = vrot.slane %v2759, 4
      %v2966 = vrot.slane %v2755, 5
      %v2967 = vor.u32 %v2965, %v2966
      %v2968 = vsel %vm2953, %v2963, %v2967
      %v2969 = vrot.slane %v2767, 4
      %v2970 = vrot.slane %v2763, 5
      %v2971 = vor.u32 %v2969, %v2970
      %v2972 = vsel %vm2953, %v2967, %v2971
      %v2973 = vrot.slane %v2775, 4
      %v2974 = vrot.slane %v2771, 5
      %v2975 = vor.u32 %v2973, %v2974
      %v2976 = vsel %vm2953, %v2971, %v2975
      %v2977 = vrot.slane %v2884, 4
      %v2978 = vrot.slane %v2887, 5
      %v2979 = vor.u32 %v2977, %v2978
      %v2980 = vsel %vm2953, %v2975, %v2979
      %v2981 = vrot.slane %v2893, 4
      %v2982 = vrot.slane %v2896, 5
      %v2983 = vor.u32 %v2981, %v2982
      %v2984 = vsel %vm2953, %v2979, %v2983
      %v2986 = vshrl.u32 %v2714, 16
      %v2988 = vrot.slane %v2986, 4
      %v2989 = vshll.u32 %v2714, 16
      %v2991 = vrot.slane %v2989, 5
      %v2992 = vor.u32 %v2988, %v2991
      %v2993 = vsel %vm2953, %v2983, %v2992
      %2994 = vrot.lane.b32.xlu0 %v2960, 64
      %v2995 = vpop.permute.xlu0 %2994
      %2996 = vrot.lane.b32.xlu0 %v2964, 64
      %v2997 = vpop.permute.xlu0 %2996
      %2998 = vrot.lane.b32.xlu0 %v2968, 64
      %v2999 = vpop.permute.xlu0 %2998
      %3000 = vrot.lane.b32.xlu0 %v2972, 64
      %v3001 = vpop.permute.xlu0 %3000
      %3002 = vrot.lane.b32.xlu0 %v2976, 64
      %v3003 = vpop.permute.xlu0 %3002
      %3004 = vrot.lane.b32.xlu0 %v2980, 64
      %v3005 = vpop.permute.xlu0 %3004
      %3006 = vrot.lane.b32.xlu0 %v2984, 64
      %v3007 = vpop.permute.xlu0 %3006
      %3008 = vrot.lane.b32.xlu0 %v2993, 64
      %v3009 = vpop.permute.xlu0 %3008
      %v3010 = vrot.slane %v2706, 5
      %v3011 = vrot.slane %v2707, 5
      %v3012 = vsel %vm1035, %v3010, %v3011
      %v3013 = vrot.slane %v2708, 5
      %v3014 = vsel %vm1035, %v3011, %v3013
      %v3015 = vrot.slane %v2709, 5
      %v3016 = vsel %vm1035, %v3013, %v3015
      %v3017 = vrot.slane %v2710, 5
      %v3018 = vsel %vm1035, %v3015, %v3017
      %v3019 = vrot.slane %v2711, 5
      %v3020 = vsel %vm1035, %v3017, %v3019
      %v3021 = vrot.slane %v2712, 5
      %v3022 = vsel %vm1035, %v3019, %v3021
      %v3023 = vrot.slane %v2713, 5
      %v3024 = vsel %vm1035, %v3021, %v3023
      %v3025 = vrot.slane %v2714, 5
      %v3026 = vsel %vm1035, %v3023, %v3025
      %v3028 = vsel %vm1289, %v2704, %v2779
      %v3031 = vsel %vm1289, %v2705, %v2781
      %v3034 = vsel %vm1289, %v2706, %v2783
      %v3037 = vsel %vm1289, %v2707, %v2785
      %v3040 = vsel %vm1289, %v2708, %v2787
      %v3043 = vsel %vm1289, %v2709, %v2789
      %v3046 = vsel %vm1289, %v2710, %v2791
      %v3049 = vsel %vm1289, %v2711, %v2793
      %v3053 = vsel %vm1289, %v2806, %v2840
      %v3057 = vsel %vm1289, %v2808, %v2842
      %v3061 = vsel %vm1289, %v2810, %v2844
      %v3065 = vsel %vm1289, %v2812, %v2846
      %v3069 = vsel %vm1289, %v2814, %v2848
      %v3073 = vsel %vm1289, %v2816, %v2850
      %v3077 = vsel %vm1289, %v2818, %v2852
      %v3081 = vsel %vm1289, %v2820, %v2854
      %v3085 = vsel %vm1289, %v2862, %v2920
      %v3089 = vsel %vm1289, %v2866, %v2922
      %v3093 = vsel %vm1289, %v2870, %v2924
      %v3097 = vsel %vm1289, %v2874, %v2926
      %v3101 = vsel %vm1289, %v2878, %v2928
      %v3105 = vsel %vm1289, %v2882, %v2930
      %v3109 = vsel %vm1289, %v2891, %v2932
      %v3113 = vsel %vm1289, %v2900, %v2934
      %v3117 = vsel %vm1289, %v2938, %v2995
      %v3121 = vsel %vm1289, %v2940, %v2997
      %v3125 = vsel %vm1289, %v2942, %v2999
      %v3129 = vsel %vm1289, %v2944, %v3001
      %v3133 = vsel %vm1289, %v2946, %v3003
      %v3137 = vsel %vm1289, %v2948, %v3005
      %v3141 = vsel %vm1289, %v2950, %v3007
      %v3145 = vsel %vm1289, %v2952, %v3009
      %v3147 = vld [vmem:[%s5] sm:$0xf]
      %v3148 = vld [vmem:[%s5 + $0x4] sm:$0xf]
      %v3149 = vld [vmem:[%s5 + $0x8] sm:$0xf]
      %v3150 = vld [vmem:[%s5 + $0xc] sm:$0xf]
      %v3151 = vld [vmem:[%s5 + $0x10] sm:$0xf]
      %v3152 = vld [vmem:[%s5 + $0x14] sm:$0xf]
      %v3153 = vld [vmem:[%s5 + $0x18] sm:$0xf]
      %v3154 = vld [vmem:[%s5 + $0x1c] sm:$0xf]
      %v3155 = vld [vmem:[%s5 + $0x20] sm:$0xf]
      %v3156 = vld [vmem:[%s5 + $0x24] sm:$0xf]
      %v3157 = vld [vmem:[%s5 + $0x28] sm:$0xf]
      %v3158 = vld [vmem:[%s5 + $0x2c] sm:$0xf]
      %v3159 = vld [vmem:[%s5 + $0x30] sm:$0xf]
      %v3160 = vld [vmem:[%s5 + $0x34] sm:$0xf]
      %v3161 = vld [vmem:[%s5 + $0x38] sm:$0xf]
      %v3162 = vld [vmem:[%s5 + $0x3c] sm:$0xf]
      %v3163 = vld [vmem:[%s5 + $0x40] sm:$0xf]
      %v3164 = vld [vmem:[%s5 + $0x44] sm:$0xf]
      %v3165 = vld [vmem:[%s5 + $0x48] sm:$0xf]
      %v3166 = vld [vmem:[%s5 + $0x4c] sm:$0xf]
      %v3167 = vld [vmem:[%s5 + $0x50] sm:$0xf]
      %v3168 = vld [vmem:[%s5 + $0x54] sm:$0xf]
      %v3169 = vld [vmem:[%s5 + $0x58] sm:$0xf]
      %v3170 = vld [vmem:[%s5 + $0x5c] sm:$0xf]
      %v3171 = vld [vmem:[%s5 + $0x60] sm:$0xf]
      %v3172 = vld [vmem:[%s5 + $0x64] sm:$0xf]
      %v3173 = vld [vmem:[%s5 + $0x68] sm:$0xf]
      %v3174 = vld [vmem:[%s5 + $0x6c] sm:$0xf]
      %v3175 = vld [vmem:[%s5 + $0x70] sm:$0xf]
      %v3176 = vld [vmem:[%s5 + $0x74] sm:$0xf]
      %v3177 = vld [vmem:[%s5 + $0x78] sm:$0xf]
      %v3178 = vld [vmem:[%s5 + $0x7c] sm:$0xf]
      %v3179 = vld [vmem:[%s5 + $0x80] sm:$0xf]
      %v3180 = vld [vmem:[%s5 + $0x84] sm:$0xf]
      %v3181 = vld [vmem:[%s5 + $0x88] sm:$0xf]
      %v3182 = vld [vmem:[%s5 + $0x8c] sm:$0xf]
      %v3183 = vld [vmem:[%s5 + $0x90] sm:$0xf]
      %v3184 = vld [vmem:[%s5 + $0x94] sm:$0xf]
      %v3185 = vld [vmem:[%s5 + $0x98] sm:$0xf]
      %v3186 = vld [vmem:[%s5 + $0x9c] sm:$0xf]
      %v3187 = vld [vmem:[%s5 + $0xa0] sm:$0xf]
      %v3188 = vld [vmem:[%s5 + $0xa4] sm:$0xf]
      %v3189 = vld [vmem:[%s5 + $0xa8] sm:$0xf]
      %v3190 = vld [vmem:[%s5 + $0xac] sm:$0xf]
      %v3191 = vld [vmem:[%s5 + $0xb0] sm:$0xf]
      %v3192 = vld [vmem:[%s5 + $0xb4] sm:$0xf]
      %v3193 = vld [vmem:[%s5 + $0xb8] sm:$0xf]
      %v3194 = vld [vmem:[%s5 + $0xbc] sm:$0xf]
      %v3195 = vld [vmem:[%s5 + $0xc0] sm:$0xf]
      %v3196 = vld [vmem:[%s5 + $0xc4] sm:$0xf]
      %v3197 = vld [vmem:[%s5 + $0xc8] sm:$0xf]
      %v3198 = vld [vmem:[%s5 + $0xcc] sm:$0xf]
      %v3199 = vld [vmem:[%s5 + $0xd0] sm:$0xf]
      %v3200 = vld [vmem:[%s5 + $0xd4] sm:$0xf]
      %v3201 = vld [vmem:[%s5 + $0xd8] sm:$0xf]
      %v3202 = vld [vmem:[%s5 + $0xdc] sm:$0xf]
      %v3203 = vld [vmem:[%s5 + $0xe0] sm:$0xf]
      %v3204 = vld [vmem:[%s5 + $0xe4] sm:$0xf]
      %v3205 = vld [vmem:[%s5 + $0xe8] sm:$0xf]
      %v3206 = vld [vmem:[%s5 + $0xec] sm:$0xf]
      %v3207 = vld [vmem:[%s5 + $0xf0] sm:$0xf]
      %v3208 = vld [vmem:[%s5 + $0xf4] sm:$0xf]
      %v3209 = vld [vmem:[%s5 + $0xf8] sm:$0xf]
      %v3210 = vld [vmem:[%s5 + $0xfc] sm:$0xf]
      %v3211 = vld [vmem:[%s5 + $0x100] sm:$0xf]
      %v3212 = vld [vmem:[%s5 + $0x104] sm:$0xf]
      %v3213 = vld [vmem:[%s5 + $0x108] sm:$0xf]
      %v3214 = vld [vmem:[%s5 + $0x10c] sm:$0xf]
      %v3215 = vld [vmem:[%s5 + $0x110] sm:$0xf]
      %v3216 = vld [vmem:[%s5 + $0x114] sm:$0xf]
      %v3217 = vld [vmem:[%s5 + $0x118] sm:$0xf]
      %v3218 = vld [vmem:[%s5 + $0x11c] sm:$0xf]
      %v3219 = vld [vmem:[%s6] sm:$0x1]
      %v3221 = vlaneseq
      %v3222 = vshrl.u32 %v3221, 7
      %v3223 = vsub.s32 0, %v3222
      %v3224 = vrot.slane %v3219, %v3223
      %v3298 = vunpack.c.l.b16 %v3147
      %v3299 = vunpack.c.l.b16 %v3148
      %v3300 = vunpack.c.l.b16 %v3149
      %v3301 = vunpack.c.l.b16 %v3150
      %v3302 = vunpack.c.l.b16 %v3151
      %v3303 = vunpack.c.l.b16 %v3152
      %v3304 = vunpack.c.l.b16 %v3153
      %v3305 = vunpack.c.l.b16 %v3154
      %v3306 = vunpack.c.l.b16 %v3155
      %v3307 = vunpack.c.l.b16 %v3156
      %v3308 = vunpack.c.l.b16 %v3157
      %v3309 = vunpack.c.l.b16 %v3158
      %v3310 = vunpack.c.l.b16 %v3159
      %v3311 = vunpack.c.l.b16 %v3160
      %v3312 = vunpack.c.l.b16 %v3161
      %v3313 = vunpack.c.l.b16 %v3162
      %v3314 = vunpack.c.l.b16 %v3163
      %v3315 = vunpack.c.l.b16 %v3164
      %v3316 = vunpack.c.l.b16 %v3165
      %v3317 = vunpack.c.l.b16 %v3166
      %v3318 = vunpack.c.l.b16 %v3167
      %v3319 = vunpack.c.l.b16 %v3168
      %v3320 = vunpack.c.l.b16 %v3169
      %v3321 = vunpack.c.l.b16 %v3170
      %v3322 = vunpack.c.l.b16 %v3171
      %v3323 = vunpack.c.l.b16 %v3172
      %v3324 = vunpack.c.l.b16 %v3173
      %v3325 = vunpack.c.l.b16 %v3174
      %v3326 = vunpack.c.l.b16 %v3175
      %v3327 = vunpack.c.l.b16 %v3176
      %v3328 = vunpack.c.l.b16 %v3177
      %v3329 = vunpack.c.l.b16 %v3178
      %v3330 = vunpack.c.l.b16 %v3179
      %v3331 = vunpack.c.l.b16 %v3180
      %v3332 = vunpack.c.l.b16 %v3181
      %v3333 = vunpack.c.l.b16 %v3182
      %v3334 = vunpack.c.l.b16 %v3183
      %v3335 = vunpack.c.l.b16 %v3184
      %v3336 = vunpack.c.l.b16 %v3185
      %v3337 = vunpack.c.l.b16 %v3186
      %v3338 = vunpack.c.l.b16 %v3187
      %v3339 = vunpack.c.l.b16 %v3188
      %v3340 = vunpack.c.l.b16 %v3189
      %v3341 = vunpack.c.l.b16 %v3190
      %v3342 = vunpack.c.l.b16 %v3191
      %v3343 = vunpack.c.l.b16 %v3192
      %v3344 = vunpack.c.l.b16 %v3193
      %v3345 = vunpack.c.l.b16 %v3194
      %v3346 = vunpack.c.l.b16 %v3195
      %v3347 = vunpack.c.l.b16 %v3196
      %v3348 = vunpack.c.l.b16 %v3197
      %v3349 = vunpack.c.l.b16 %v3198
      %v3350 = vunpack.c.l.b16 %v3199
      %v3351 = vunpack.c.l.b16 %v3200
      %v3352 = vunpack.c.l.b16 %v3201
      %v3353 = vunpack.c.l.b16 %v3202
      %v3354 = vunpack.c.l.b16 %v3203
      %v3355 = vunpack.c.l.b16 %v3204
      %v3356 = vunpack.c.l.b16 %v3205
      %v3357 = vunpack.c.l.b16 %v3206
      %v3358 = vunpack.c.l.b16 %v3207
      %v3359 = vunpack.c.l.b16 %v3208
      %v3360 = vunpack.c.l.b16 %v3209
      %v3361 = vunpack.c.l.b16 %v3210
      %v3362 = vunpack.c.l.b16 %v3211
      %v3363 = vunpack.c.l.b16 %v3212
      %v3364 = vunpack.c.l.b16 %v3213
      %v3365 = vunpack.c.l.b16 %v3214
      %v3366 = vunpack.c.l.b16 %v3215
      %v3367 = vunpack.c.l.b16 %v3216
      %v3368 = vunpack.c.l.b16 %v3217
      %v3369 = vunpack.c.l.b16 %v3218
      %v3370 = vpack.c.b16 %v3299, %v3298
      %v3371 = vpack.c.b16 %v3301, %v3300
      %v3372 = vpack.c.b16 %v3303, %v3302
      %v3373 = vpack.c.b16 %v3305, %v3304
      %v3374 = vpack.c.b16 %v3307, %v3306
      %v3375 = vpack.c.b16 %v3309, %v3308
      %v3376 = vpack.c.b16 %v3311, %v3310
      %v3377 = vpack.c.b16 %v3313, %v3312
      %v3378 = vpack.c.b16 %v3315, %v3314
      %v3379 = vpack.c.b16 %v3317, %v3316
      %v3380 = vpack.c.b16 %v3319, %v3318
      %v3381 = vpack.c.b16 %v3321, %v3320
      %v3382 = vpack.c.b16 %v3323, %v3322
      %v3383 = vpack.c.b16 %v3325, %v3324
      %v3384 = vpack.c.b16 %v3327, %v3326
      %v3385 = vpack.c.b16 %v3329, %v3328
      %v3386 = vpack.c.b16 %v3331, %v3330
      %v3387 = vpack.c.b16 %v3333, %v3332
      %v3388 = vpack.c.b16 %v3335, %v3334
      %v3389 = vpack.c.b16 %v3337, %v3336
      %v3390 = vpack.c.b16 %v3339, %v3338
      %v3391 = vpack.c.b16 %v3341, %v3340
      %v3392 = vpack.c.b16 %v3343, %v3342
      %v3393 = vpack.c.b16 %v3345, %v3344
      %v3394 = vpack.c.b16 %v3347, %v3346
      %v3395 = vpack.c.b16 %v3349, %v3348
      %v3396 = vpack.c.b16 %v3351, %v3350
      %v3397 = vpack.c.b16 %v3353, %v3352
      %v3398 = vpack.c.b16 %v3355, %v3354
      %v3399 = vpack.c.b16 %v3357, %v3356
      %v3400 = vpack.c.b16 %v3359, %v3358
      %v3401 = vpack.c.b16 %v3361, %v3360
      %v3402 = vpack.c.b16 %v3363, %v3362
      %v3403 = vpack.c.b16 %v3365, %v3364
      %v3404 = vpack.c.b16 %v3367, %v3366
      %v3405 = vpack.c.b16 %v3369, %v3368
      %v3443 = vsel %vm1289, %v3012, 0
      %v3446 = vsel %vm1289, %v3014, 0
      %v3449 = vsel %vm1289, %v3016, 0
      %v3452 = vsel %vm1289, %v3018, 0
      %v3455 = vsel %vm1289, %v3020, 0
      %v3458 = vsel %vm1289, %v3022, 0
      %v3461 = vsel %vm1289, %v3024, 0
      %v3464 = vsel %vm1289, %v3026, 0
      %3466 = vmatprep.subr.bf16.mxu0 0
      %3467 = vmatpush1.bf16.msra.mxu0 %v3377
      %3468 = vmatprep.subr.bf16.mxu0 0
      %3469 = vmatpush1.bf16.msra.mxu0 %v3376
      %3470 = vmatprep.subr.bf16.mxu0 0
      %3471 = vmatpush1.bf16.msra.mxu0 %v3375
      %3472 = vmatprep.subr.bf16.mxu0 0
      %3473 = vmatpush1.bf16.msra.mxu0 %v3374
      %3474 = vmatprep.subr.bf16.mxu0 0
      %3475 = vmatpush1.bf16.msra.mxu0 %v3373
      %3476 = vmatprep.subr.bf16.mxu0 0
      %3477 = vmatpush1.bf16.msra.mxu0 %v3372
      %3478 = vmatprep.subr.bf16.mxu0 0
      %3479 = vmatpush1.bf16.msra.mxu0 %v3371
      %3480 = vmatprep.subr.bf16.mxu0 0
      %3481 = vmatpush1.bf16.msra.mxu0 %v3370
      %3482 = vmatprep.subr.bf16.mxu0 0
      %3483 = vmatpush2.bf16.msra.mxu0 %v3385
      %3484 = vmatprep.subr.bf16.mxu0 0
      %3485 = vmatpush2.bf16.msra.mxu0 %v3384
      %3486 = vmatprep.subr.bf16.mxu0 0
      %3487 = vmatpush2.bf16.msra.mxu0 %v3383
      %3488 = vmatprep.subr.bf16.mxu0 0
      %3489 = vmatpush2.bf16.msra.mxu0 %v3382
      %3490 = vmatprep.subr.bf16.mxu0 0
      %3491 = vmatpush2.bf16.msra.mxu0 %v3381
      %3492 = vmatprep.subr.bf16.mxu0 0
      %3493 = vmatpush2.bf16.msra.mxu0 %v3380
      %3494 = vmatprep.subr.bf16.mxu0 0
      %3495 = vmatpush2.bf16.msra.mxu0 %v3379
      %3496 = vmatprep.subr.bf16.mxu0 0
      %3497 = vmatpush2.bf16.msra.mxu0 %v3378
      %3498 = vmatprep.mubr.bf16.mxu0 %v3053
      %3499 = vmatmul.mubr.bf16.gmra.mxu0 %v3028
      %v3500 = vpop.f32.mrf.mxu0
      %v3501 = vadd.f32 %v3224, %v3500
      %v3502 = vpop.f32.mrf.mxu0
      %v3503 = vpop.f32.mrf.mxu0
      %v3504 = vpop.f32.mrf.mxu0
      %3505 = vmatprep.mubr.bf16.mxu0 %v3057
      %3506 = vmatmul.mubr.bf16.gmra.mxu0 %v3031
      %v3507 = vpop.f32.mrf.mxu0
      %v3508 = vadd.f32 %v3224, %v3507
      %v3509 = vpop.f32.mrf.mxu0
      %v3510 = vpop.f32.mrf.mxu0
      %v3511 = vadd.f32 %v3224, %v3510
      %v3512 = vpop.f32.mrf.mxu0
      %3513 = vmatprep.mubr.bf16.mxu0 %v3061
      %3514 = vmatmul.mubr.bf16.gmra.mxu0 %v3034
      %v3515 = vpop.f32.mrf.mxu0
      %v3516 = vpop.f32.mrf.mxu0
      %v3517 = vpop.f32.mrf.mxu0
      %v3518 = vadd.f32 %v3224, %v3517
      %v3519 = vpop.f32.mrf.mxu0
      %3520 = vmatprep.mubr.bf16.mxu0 %v3065
      %3521 = vmatmul.mubr.bf16.gmra.mxu0 %v3037
      %v3522 = vpop.f32.mrf.mxu0
      %v3523 = vpop.f32.mrf.mxu0
      %v3524 = vpop.f32.mrf.mxu0
      %v3525 = vadd.f32 %v3224, %v3524
      %v3526 = vpop.f32.mrf.mxu0
      %3527 = vmatprep.mubr.bf16.mxu0 %v3069
      %3528 = vmatmul.mubr.bf16.gmra.mxu0 %v3040
      %v3529 = vpop.f32.mrf.mxu0
      %v3530 = vadd.f32 %v3224, %v3529
      %v3531 = vpop.f32.mrf.mxu0
      %v3532 = vpop.f32.mrf.mxu0
      %v3533 = vpop.f32.mrf.mxu0
      %3534 = vmatprep.mubr.bf16.mxu0 %v3073
      %3535 = vmatmul.mubr.bf16.gmra.mxu0 %v3043
      %v3536 = vpop.f32.mrf.mxu0
      %v3537 = vadd.f32 %v3224, %v3536
      %v3538 = vpop.f32.mrf.mxu0
      %v3539 = vpop.f32.mrf.mxu0
      %v3540 = vpop.f32.mrf.mxu0
      %3541 = vmatprep.mubr.bf16.mxu0 %v3077
      %3542 = vmatmul.mubr.bf16.gmra.mxu0 %v3046
      %v3543 = vpop.f32.mrf.mxu0
      %v3544 = vadd.f32 %v3224, %v3543
      %v3545 = vpop.f32.mrf.mxu0
      %v3546 = vpop.f32.mrf.mxu0
      %v3547 = vadd.f32 %v3224, %v3546
      %v3548 = vpop.f32.mrf.mxu0
      %3549 = vmatprep.mubr.bf16.mxu0 %v3081
      %3550 = vmatmul.mubr.bf16.gmra.mxu0 %v3049
      %v3551 = vpop.f32.mrf.mxu0
      %v3552 = vpop.f32.mrf.mxu0
      %v3553 = vpop.f32.mrf.mxu0
      %v3554 = vadd.f32 %v3224, %v3553
      %v3555 = vpop.f32.mrf.mxu0
      %3556 = vdwg.mxu0
      %3557 = vmatprep.subr.bf16.mxu0 0
      %3558 = vmatpush1.bf16.msra.mxu0 %v3393
      %3559 = vmatprep.subr.bf16.mxu0 0
      %3560 = vmatpush1.bf16.msra.mxu0 %v3392
      %3561 = vmatprep.subr.bf16.mxu0 0
      %3562 = vmatpush1.bf16.msra.mxu0 %v3391
      %3563 = vmatprep.subr.bf16.mxu0 0
      %3564 = vmatpush1.bf16.msra.mxu0 %v3390
      %3565 = vmatprep.subr.bf16.mxu0 0
      %3566 = vmatpush1.bf16.msra.mxu0 %v3389
      %3567 = vmatprep.subr.bf16.mxu0 0
      %3568 = vmatpush1.bf16.msra.mxu0 %v3388
      %3569 = vmatprep.subr.bf16.mxu0 0
      %3570 = vmatpush1.bf16.msra.mxu0 %v3387
      %3571 = vmatprep.subr.bf16.mxu0 0
      %3572 = vmatpush1.bf16.msra.mxu0 %v3386
      %3573 = vmatprep.subr.bf16.mxu0 0
      %3574 = vmatpush2.bf16.msra.mxu0 %v3401
      %3575 = vmatprep.subr.bf16.mxu0 0
      %3576 = vmatpush2.bf16.msra.mxu0 %v3400
      %3577 = vmatprep.subr.bf16.mxu0 0
      %3578 = vmatpush2.bf16.msra.mxu0 %v3399
      %3579 = vmatprep.subr.bf16.mxu0 0
      %3580 = vmatpush2.bf16.msra.mxu0 %v3398
      %3581 = vmatprep.subr.bf16.mxu0 0
      %3582 = vmatpush2.bf16.msra.mxu0 %v3397
      %3583 = vmatprep.subr.bf16.mxu0 0
      %3584 = vmatpush2.bf16.msra.mxu0 %v3396
      %3585 = vmatprep.subr.bf16.mxu0 0
      %3586 = vmatpush2.bf16.msra.mxu0 %v3395
      %3587 = vmatprep.subr.bf16.mxu0 0
      %3588 = vmatpush2.bf16.msra.mxu0 %v3394
      %3589 = vmatprep.mubr.bf16.mxu0 %v3117
      %3590 = vmatmul.mubr.bf16.gmra.mxu0 %v3085
      %v3591 = vpop.f32.mrf.mxu0
      %v3592 = vadd.f32 %v3501, %v3591
      %v3593 = vpop.f32.mrf.mxu0
      %v3594 = vpop.f32.mrf.mxu0
      %v3595 = vpop.f32.mrf.mxu0
      %3596 = vmatprep.mubr.bf16.mxu0 %v3121
      %3597 = vmatmul.mubr.bf16.gmra.mxu0 %v3089
      %v3598 = vpop.f32.mrf.mxu0
      %v3599 = vadd.f32 %v3508, %v3598
      %v3600 = vpop.f32.mrf.mxu0
      %v3601 = vpop.f32.mrf.mxu0
      %v3602 = vadd.f32 %v3511, %v3601
      %v3603 = vpop.f32.mrf.mxu0
      %3604 = vmatprep.mubr.bf16.mxu0 %v3125
      %3605 = vmatmul.mubr.bf16.gmra.mxu0 %v3093
      %v3606 = vpop.f32.mrf.mxu0
      %v3607 = vpop.f32.mrf.mxu0
      %v3608 = vpop.f32.mrf.mxu0
      %v3609 = vadd.f32 %v3518, %v3608
      %v3610 = vpop.f32.mrf.mxu0
      %3611 = vmatprep.mubr.bf16.mxu0 %v3129
      %3612 = vmatmul.mubr.bf16.gmra.mxu0 %v3097
      %v3613 = vpop.f32.mrf.mxu0
      %v3614 = vpop.f32.mrf.mxu0
      %v3615 = vpop.f32.mrf.mxu0
      %v3616 = vadd.f32 %v3525, %v3615
      %v3617 = vpop.f32.mrf.mxu0
      %3618 = vmatprep.mubr.bf16.mxu0 %v3133
      %3619 = vmatmul.mubr.bf16.gmra.mxu0 %v3101
      %v3620 = vpop.f32.mrf.mxu0
      %v3621 = vadd.f32 %v3530, %v3620
      %v3622 = vpop.f32.mrf.mxu0
      %v3623 = vpop.f32.mrf.mxu0
      %v3624 = vpop.f32.mrf.mxu0
      %3625 = vmatprep.mubr.bf16.mxu0 %v3137
      %3626 = vmatmul.mubr.bf16.gmra.mxu0 %v3105
      %v3627 = vpop.f32.mrf.mxu0
      %v3628 = vadd.f32 %v3537, %v3627
      %v3629 = vpop.f32.mrf.mxu0
      %v3630 = vpop.f32.mrf.mxu0
      %v3631 = vpop.f32.mrf.mxu0
      %3632 = vmatprep.mubr.bf16.mxu0 %v3141
      %3633 = vmatmul.mubr.bf16.gmra.mxu0 %v3109
      %v3634 = vpop.f32.mrf.mxu0
      %v3635 = vadd.f32 %v3544, %v3634
      %v3636 = vpop.f32.mrf.mxu0
      %v3637 = vpop.f32.mrf.mxu0
      %v3638 = vadd.f32 %v3547, %v3637
      %v3639 = vpop.f32.mrf.mxu0
      %3640 = vmatprep.mubr.bf16.mxu0 %v3145
      %3641 = vmatmul.mubr.bf16.gmra.mxu0 %v3113
      %v3642 = vpop.f32.mrf.mxu0
      %v3643 = vpop.f32.mrf.mxu0
      %v3644 = vpop.f32.mrf.mxu0
      %v3645 = vadd.f32 %v3554, %v3644
      %v3646 = vpop.f32.mrf.mxu0
      %3647 = vdwg.mxu0
      %3648 = vmatprep.subr.bf16.mxu0 0
      %3649 = vmatpush1.bf16.msra.mxu0 0
      %3650 = vmatprep.subr.bf16.mxu0 0
      %3651 = vmatpush1.bf16.msra.mxu0 0
      %3652 = vmatprep.subr.bf16.mxu0 0
      %3653 = vmatpush1.bf16.msra.mxu0 0
      %3654 = vmatprep.subr.bf16.mxu0 0
      %3655 = vmatpush1.bf16.msra.mxu0 0
      %3656 = vmatprep.subr.bf16.mxu0 0
      %3657 = vmatpush1.bf16.msra.mxu0 %v3405
      %3658 = vmatprep.subr.bf16.mxu0 0
      %3659 = vmatpush1.bf16.msra.mxu0 %v3404
      %3660 = vmatprep.subr.bf16.mxu0 0
      %3661 = vmatpush1.bf16.msra.mxu0 %v3403
      %3662 = vmatprep.subr.bf16.mxu0 0
      %3663 = vmatpush1.bf16.msra.mxu0 %v3402
      %3664 = vmatprep.subr.bf16.mxu0 0
      %3665 = vmatpush2.bf16.msra.mxu0 0
      %3666 = vmatprep.subr.bf16.mxu0 0
      %3667 = vmatpush2.bf16.msra.mxu0 0
      %3668 = vmatprep.subr.bf16.mxu0 0
      %3669 = vmatpush2.bf16.msra.mxu0 0
      %3670 = vmatprep.subr.bf16.mxu0 0
      %3671 = vmatpush2.bf16.msra.mxu0 0
      %3672 = vmatprep.subr.bf16.mxu0 0
      %3673 = vmatpush2.bf16.msra.mxu0 0
      %3674 = vmatprep.subr.bf16.mxu0 0
      %3675 = vmatpush2.bf16.msra.mxu0 0
      %3676 = vmatprep.subr.bf16.mxu0 0
      %3677 = vmatpush2.bf16.msra.mxu0 0
      %3678 = vmatprep.subr.bf16.mxu0 0
      %3679 = vmatpush2.bf16.msra.mxu0 0
      %3680 = vmatprep.mubr.bf16.mxu0 0
      %3681 = vmatmul.mubr.bf16.gmra.mxu0 %v3443
      %v3682 = vpop.f32.mrf.mxu0
      %v3683 = vadd.f32 %v3592, %v3682
      %v3684 = vpop.f32.mrf.mxu0
      %v3685 = vpop.f32.mrf.mxu0
      %v3686 = vpop.f32.mrf.mxu0
      %3687 = vmatprep.mubr.bf16.mxu0 0
      %3688 = vmatmul.mubr.bf16.gmra.mxu0 %v3446
      %v3689 = vpop.f32.mrf.mxu0
      %v3690 = vadd.f32 %v3599, %v3689
      %v3691 = vpop.f32.mrf.mxu0
      %v3692 = vpop.f32.mrf.mxu0
      %v3693 = vadd.f32 %v3602, %v3692
      %v3694 = vpop.f32.mrf.mxu0
      %3695 = vmatprep.mubr.bf16.mxu0 0
      %3696 = vmatmul.mubr.bf16.gmra.mxu0 %v3449
      %v3697 = vpop.f32.mrf.mxu0
      %v3698 = vpop.f32.mrf.mxu0
      %v3699 = vpop.f32.mrf.mxu0
      %v3700 = vadd.f32 %v3609, %v3699
      %v3701 = vpop.f32.mrf.mxu0
      %3702 = vmatprep.mubr.bf16.mxu0 0
      %3703 = vmatmul.mubr.bf16.gmra.mxu0 %v3452
      %v3704 = vpop.f32.mrf.mxu0
      %v3705 = vpop.f32.mrf.mxu0
      %v3706 = vpop.f32.mrf.mxu0
      %v3707 = vadd.f32 %v3616, %v3706
      %v3708 = vpop.f32.mrf.mxu0
      %3709 = vmatprep.mubr.bf16.mxu0 0
      %3710 = vmatmul.mubr.bf16.gmra.mxu0 %v3455
      %v3711 = vpop.f32.mrf.mxu0
      %v3712 = vadd.f32 %v3621, %v3711
      %v3713 = vpop.f32.mrf.mxu0
      %v3714 = vpop.f32.mrf.mxu0
      %v3715 = vpop.f32.mrf.mxu0
      %3716 = vmatprep.mubr.bf16.mxu0 0
      %3717 = vmatmul.mubr.bf16.gmra.mxu0 %v3458
      %v3718 = vpop.f32.mrf.mxu0
      %v3719 = vadd.f32 %v3628, %v3718
      %v3720 = vpop.f32.mrf.mxu0
      %v3721 = vpop.f32.mrf.mxu0
      %v3722 = vpop.f32.mrf.mxu0
      %3723 = vmatprep.mubr.bf16.mxu0 0
      %3724 = vmatmul.mubr.bf16.gmra.mxu0 %v3461
      %v3725 = vpop.f32.mrf.mxu0
      %v3726 = vadd.f32 %v3635, %v3725
      %v3727 = vpop.f32.mrf.mxu0
      %v3728 = vpop.f32.mrf.mxu0
      %v3729 = vadd.f32 %v3638, %v3728
      %v3730 = vpop.f32.mrf.mxu0
      %3731 = vmatprep.mubr.bf16.mxu0 0
      %3732 = vmatmul.mubr.bf16.gmra.mxu0 %v3464
      %v3733 = vpop.f32.mrf.mxu0
      %v3734 = vpop.f32.mrf.mxu0
      %v3735 = vpop.f32.mrf.mxu0
      %v3736 = vadd.f32 %v3645, %v3735
      %v3737 = vpop.f32.mrf.mxu0
      %3738 = vdwg.mxu0
      %v3739 = vmax.f32 %v3683, 0.0
      %v3740 = vmax.f32 %v3690, 0.0
      %v3741 = vmax.f32 %v3693, 0.0
      %v3742 = vmax.f32 %v3700, 0.0
      %v3743 = vmax.f32 %v3707, 0.0
      %v3744 = vmax.f32 %v3712, 0.0
      %v3745 = vmax.f32 %v3719, 0.0
      %v3746 = vmax.f32 %v3726, 0.0
      %v3747 = vmax.f32 %v3729, 0.0
      %v3748 = vmax.f32 %v3736, 0.0
      %vm3751 = vcmask 1042432
      %v3752 = vrot.slane %v3740, 5
      %v3753 = vrot.slane %v3741, 5
      %v3754 = vsel %vm3751, %v3752, %v3753
      %v3758 = vrot.slane %v3742, 2
      %vm3762 = vcmask 1040384
      %v3763 = vrot.slane %v3743, 7
      %v3764 = vrot.slane %v3744, 7
      %v3765 = vsel %vm3762, %v3763, %v3764
      %v3769 = vrot.slane %v3745, 4
      %vm3773 = vcmask 1046528
      %v3774 = vrot.slane %v3746, 1
      %v3775 = vrot.slane %v3747, 1
      %v3776 = vsel %vm3773, %v3774, %v3775
      %v3780 = vrot.slane %v3748, 6
      %v3782 = vsel %vm3773, %v3739, %v3752
      %vm3783 = vcmask 1045504
      %v3784 = vsel %vm3783, %v3754, %v3758
      %vm3785 = vcmask 1044480
      %v3786 = vsel %vm3785, %v3758, %v3763
      %vm3787 = vcmask 1043456
      %v3788 = vsel %vm3787, %v3765, %v3769
      %v3789 = vsel %vm3751, %v3769, %v3776
      %vm3790 = vcmask 1041408
      %v3791 = vsel %vm3790, %v3775, %v3780
      %v3792 = vpack.c.bf16 %v3784, %v3782
      %v3793 = vpack.c.bf16 %v3788, %v3786
      %v3794 = vpack.c.bf16 %v3791, %v3789
      %v3795 = vpack.c.bf16 %v3780, %v3780
      %v3800 = vunpack.c.l.b16 %v3792
      %v3801 = vunpack.c.h.b16 %v3792
      %v3802 = vunpack.c.l.b16 %v3793
      %v3803 = vunpack.c.h.b16 %v3793
      %v3804 = vunpack.c.l.b16 %v3794
      %v3805 = vunpack.c.h.b16 %v3794
      %v3806 = vunpack.c.l.b16 %v3795
      %v3807 = vpack.c.b16 %v3800, %v3800
      %v3808 = vpack.c.b16 %v3801, %v3801
      %v3809 = vpack.c.b16 %v3802, %v3802
      %v3810 = vpack.c.b16 %v3803, %v3803
      %v3811 = vpack.c.b16 %v3804, %v3804
      %v3812 = vpack.c.b16 %v3805, %v3805
      %v3813 = vpack.c.b16 %v3806, %v3806
      %vm3821 = vcmask 519168
      %3822 = vst.msk [vmem:[%s278] sm:$0xf] %vm3821, %v3807
      %3823 = vst.msk [vmem:[%s278 + $0x4] sm:$0xf] %vm3821, %v3808
      %3824 = vst.msk [vmem:[%s278 + $0x8] sm:$0xf] %vm3821, %v3809
      %3825 = vst.msk [vmem:[%s278 + $0xc] sm:$0xf] %vm3821, %v3810
      %3826 = vst.msk [vmem:[%s278 + $0x10] sm:$0xf] %vm3821, %v3811
      %3827 = vst.msk [vmem:[%s278 + $0x14] sm:$0xf] %vm3821, %v3812
      %vm3828 = vcmask 516096
      %vm3829 = vsmask.f32 256
      %vm3830 = vmand %vm3828, %vm3829
      %v3831 = vld [vmem:[%s278 + $0x18] sm:$0x1]
      %v3832 = vsel %vm3830, %v3813, %v3831
      %3833 = vst [vmem:[%s278 + $0x18] sm:$0x1] %v3832
      %p3834 = scmp.lt.s32.totalorder %s18, 1
      %s3835 = scalar_select %p3834, %s18, 1
      %s3836 = smul.addr %s3835, 7
      %s3837 = smul.addr %s3836, 4
      %s3838 = scalar_lea.vmem %s7, %s3837
      // Predicated region
      $region49: #{dqn_forward.2} parent=47 // pred_check
        %p3839 = pneg %p188
      $region50: #{dqn_forward.2} parent=47 // pred_check_branch
        %3841 = sbr.rel (%p3839) target = $region52
      $region51: #{dqn_forward.2} parent=47 // pred_region
        _
      $region52: #{dqn_forward.2} parent=47 // pred_fallthru
        _
    $region48: #{dqn_forward.2} parent=5 // pred_fallthru
      _
    %p3842 = scmp.le.s32.totalorder 2, %s13
    // Predicated region
    $region53: #{dqn_forward.2} parent=5 // pred_check
      %p3843 = pneg %p3842
    $region54: #{dqn_forward.2} parent=5 // pred_check_branch
      %3845 = sbr.rel (%p3843) target = $region56
    $region55: #{dqn_forward.2} parent=5 // pred_region
      %s3846 = ssub.s32 %s13, 2
      // Predicated region
      $region57: #{dqn_forward.2} parent=55 // pred_check
        %p3847 = pneg %p194
      $region58: #{dqn_forward.2} parent=55 // pred_check_branch
        %3849 = sbr.rel (%p3847) target = $region60
      $region59: #{dqn_forward.2} parent=55 // pred_region
        %p3850 = scmp.lt.s32.totalorder %s19, 1
        %s3851 = scalar_select %p3850, %s19, 1
        %s3852 = smul.addr %s3851, 7
        %s3853 = smul.addr %s3852, 4
        %s3854 = scalar_lea.vmem %s7, %s3853
      $region60: #{dqn_forward.2} parent=55 // pred_fallthru
        _
    $region56: #{dqn_forward.2} parent=5 // pred_fallthru
      _
  $region6: #{dqn_forward.2} parent=0 // loop_footer
    %s17 = sadd.s32 1, %s13
  $region7: #{dqn_forward.2} parent=0 // loop_footer_branch
    %12 = sbr.rel target = $region3
  $region8: #{dqn_forward.2} parent=0 // loop_exit
    _

// kernel: dqn_forward.3
$region0: #{dqn_forward.3}
  #allocation0 [shape = 'u32[]', space=smem, size = 0x4, offset = 0x4, fixed_abs, tag = 'smem constant byte address 0x4 - core index']
  #allocation1 [shape = 'u32[144,128]{1,0:T(1,128)}', space=vmem, size = 0x12000, scoped, tag = 'internal scratch']
  %s0 = inlined_call_operand.vmem [shape: bf16[2,3136], index: 0, kind: input, shape index: {}]
  %s1 = inlined_call_operand.vmem [shape: bf16[3136,512], index: 1, kind: input, shape index: {}]
  %s2 = inlined_call_operand.vmem [shape: f32[1,512], index: 2, kind: input, shape index: {}]
  %s3 = inlined_call_operand.vmem [shape: bf16[512,128], index: 3, kind: input, shape index: {}]
  %s4 = inlined_call_operand.vmem [shape: f32[1,128], index: 4, kind: input, shape index: {}]
  %s5 = inlined_call_operand.hbm [shape: f32[2,128], index: 5, kind: output, shape index: {}]
  %s6 = sld [smem:[#allocation0]]
  $region30: #{dqn_forward.3} parent=0
    _
  %s8 = ssub.s32 1, %s6
  %s9 = scalar_select 0, %s8, %s6
  $region1: #{dqn_forward.3} parent=0
    #allocation2 [shape = 'u8[8192]{0}', space=vmem, size = 0x2000, scoped, tag = 'output window, operand 0, single buffered']
    #allocation3 [shape = 's32[1]{0}', space=sflag, size = 0x4, scoped, tag = 'scoped memory for dqn_forward.3']
    %10 = vsyncpa [#allocation3], 0
    // Predicated region
    $region2: #{dqn_forward.3} parent=1 // pred_check
      _
    $region3: #{dqn_forward.3} parent=1 // pred_check_branch
      %12 = sbr.rel (0) target = $region5
    $region4: #{dqn_forward.3} parent=1 // pred_region
      _
    $region5: #{dqn_forward.3} parent=1 // pred_fallthru
      _
    // Predicated region
    $region6: #{dqn_forward.3} parent=1 // pred_check
      _
    $region7: #{dqn_forward.3} parent=1 // pred_check_branch
      %14 = sbr.rel (0) target = $region9
    $region8: #{dqn_forward.3} parent=1 // pred_region
      _
    $region9: #{dqn_forward.3} parent=1 // pred_fallthru
      _
    // Predicated region
    $region10: #{dqn_forward.3} parent=1 // pred_check
      _
    $region11: #{dqn_forward.3} parent=1 // pred_check_branch
      %16 = sbr.rel (0) target = $region13
    $region12: #{dqn_forward.3} parent=1 // pred_region
      _
    $region13: #{dqn_forward.3} parent=1 // pred_fallthru
      _
    // Predicated region
    $region14: #{dqn_forward.3} parent=1 // pred_check
      _
    $region15: #{dqn_forward.3} parent=1 // pred_check_branch
      %18 = sbr.rel (0) target = $region17
    $region16: #{dqn_forward.3} parent=1 // pred_region
      _
    $region17: #{dqn_forward.3} parent=1 // pred_fallthru
      _
    // Predicated region
    $region18: #{dqn_forward.3} parent=1 // pred_check
      _
    $region19: #{dqn_forward.3} parent=1 // pred_check_branch
      %20 = sbr.rel (0) target = $region21
    $region20: #{dqn_forward.3} parent=1 // pred_region
      _
    $region21: #{dqn_forward.3} parent=1 // pred_fallthru
      _
    %v22 = vld [vmem:[%s0] sm:$0xff]
    %v23 = vld [vmem:[%s0 + $0x8] sm:$0xff]
    %v24 = vld [vmem:[%s0 + $0x10] sm:$0xff]
    %v25 = vld [vmem:[%s0 + $0x18] sm:$0x1]
    %v26 = vld [vmem:[%s0 + $0x19] sm:$0xff]
    %v27 = vld [vmem:[%s0 + $0x21] sm:$0xff]
    %v28 = vld [vmem:[%s0 + $0x29] sm:$0xff]
    %v29 = vld [vmem:[%s0 + $0x31] sm:$0x1]
    %v30 = vld [vmem:[%s0 + $0x32] sm:$0xff]
    %v31 = vld [vmem:[%s0 + $0x3a] sm:$0xff]
    %v32 = vld [vmem:[%s0 + $0x42] sm:$0xff]
    %v33 = vld [vmem:[%s0 + $0x4a] sm:$0x1]
    %v34 = vld [vmem:[%s0 + $0x4b] sm:$0xff]
    %v35 = vld [vmem:[%s0 + $0x53] sm:$0xff]
    %v36 = vld [vmem:[%s0 + $0x5b] sm:$0xff]
    %v37 = vld [vmem:[%s0 + $0x63] sm:$0x1]
    %v38 = vld [vmem:[%s0 + $0x64] sm:$0xff]
    %v39 = vld [vmem:[%s0 + $0x6c] sm:$0xff]
    %v40 = vld [vmem:[%s0 + $0x74] sm:$0xff]
    %v41 = vld [vmem:[%s0 + $0x7c] sm:$0x1]
    %v42 = vld [vmem:[%s0 + $0x7d] sm:$0xff]
    %v43 = vld [vmem:[%s0 + $0x85] sm:$0xff]
    %v44 = vld [vmem:[%s0 + $0x8d] sm:$0xff]
    %v45 = vld [vmem:[%s0 + $0x95] sm:$0x1]
    %v46 = vld [vmem:[%s0 + $0x96] sm:$0xff]
    %v47 = vld [vmem:[%s0 + $0x9e] sm:$0xff]
    %v48 = vld [vmem:[%s0 + $0xa6] sm:$0xff]
    %v49 = vld [vmem:[%s0 + $0xae] sm:$0x1]
    %v50 = vld [vmem:[%s0 + $0xaf] sm:$0xff]
    %v51 = vld [vmem:[%s0 + $0xb7] sm:$0xff]
    %v52 = vld [vmem:[%s0 + $0xbf] sm:$0xff]
    %v53 = vld [vmem:[%s0 + $0xc7] sm:$0x1]
    %v54 = vld [vmem:[%s1] sm:$0xff]
    %v55 = vld [vmem:[%s1 + $0x8] sm:$0xff]
    %v56 = vld [vmem:[%s1 + $0x10] sm:$0xff]
    %v57 = vld [vmem:[%s1 + $0x18] sm:$0xff]
    %v58 = vld [vmem:[%s1 + $0x20] sm:$0xff]
    %v59 = vld [vmem:[%s1 + $0x28] sm:$0xff]
    %v60 = vld [vmem:[%s1 + $0x30] sm:$0xff]
    %v61 = vld [vmem:[%s1 + $0x38] sm:$0xff]
    %v62 = vld [vmem:[%s1 + $0x40] sm:$0xff]
    %v63 = vld [vmem:[%s1 + $0x48] sm:$0xff]
    %v64 = vld [vmem:[%s1 + $0x50] sm:$0xff]
    %v65 = vld [vmem:[%s1 + $0x58] sm:$0xff]
    %v66 = vld [vmem:[%s1 + $0x60] sm:$0xff]
    %v67 = vld [vmem:[%s1 + $0x68] sm:$0xff]
    %v68 = vld [vmem:[%s1 + $0x70] sm:$0xff]
    %v69 = vld [vmem:[%s1 + $0x78] sm:$0xff]
    %v70 = vld [vmem:[%s1 + $0x80] sm:$0xff]
    %v71 = vld [vmem:[%s1 + $0x88] sm:$0xff]
    %v72 = vld [vmem:[%s1 + $0x90] sm:$0xff]
    %v73 = vld [vmem:[%s1 + $0x98] sm:$0xff]
    %v74 = vld [vmem:[%s1 + $0xa0] sm:$0xff]
    %v75 = vld [vmem:[%s1 + $0xa8] sm:$0xff]
    %v76 = vld [vmem:[%s1 + $0xb0] sm:$0xff]
    %v77 = vld [vmem:[%s1 + $0xb8] sm:$0xff]
    %v78 = vld [vmem:[%s1 + $0xc0] sm:$0xff]
    %v79 = vld [vmem:[%s1 + $0xc8] sm:$0xff]
    %v80 = vld [vmem:[%s1 + $0xd0] sm:$0xff]
    %v81 = vld [vmem:[%s1 + $0xd8] sm:$0xff]
    %v82 = vld [vmem:[%s1 + $0xe0] sm:$0xff]
    %v83 = vld [vmem:[%s1 + $0xe8] sm:$0xff]
    %v84 = vld [vmem:[%s1 + $0xf0] sm:$0xff]
    %v85 = vld [vmem:[%s1 + $0xf8] sm:$0xff]
    %v86 = vld [vmem:[%s1 + $0x100] sm:$0xff]
    %v87 = vld [vmem:[%s1 + $0x108] sm:$0xff]
    %v88 = vld [vmem:[%s1 + $0x110] sm:$0xff]
    %v89 = vld [vmem:[%s1 + $0x118] sm:$0xff]
    %v90 = vld [vmem:[%s1 + $0x120] sm:$0xff]
    %v91 = vld [vmem:[%s1 + $0x128] sm:$0xff]
    %v92 = vld [vmem:[%s1 + $0x130] sm:$0xff]
    %v93 = vld [vmem:[%s1 + $0x138] sm:$0xff]
    %v94 = vld [vmem:[%s1 + $0x140] sm:$0xff]
    %v95 = vld [vmem:[%s1 + $0x148] sm:$0xff]
    %v96 = vld [vmem:[%s1 + $0x150] sm:$0xff]
    %v97 = vld [vmem:[%s1 + $0x158] sm:$0xff]
    %v98 = vld [vmem:[%s1 + $0x160] sm:$0xff]
    %v99 = vld [vmem:[%s1 + $0x168] sm:$0xff]
    %v100 = vld [vmem:[%s1 + $0x170] sm:$0xff]
    %v101 = vld [vmem:[%s1 + $0x178] sm:$0xff]
    %v102 = vld [vmem:[%s1 + $0x180] sm:$0xff]
    %v103 = vld [vmem:[%s1 + $0x188] sm:$0xff]
    %v104 = vld [vmem:[%s1 + $0x190] sm:$0xff]
    %v105 = vld [vmem:[%s1 + $0x198] sm:$0xff]
    %v106 = vld [vmem:[%s1 + $0x1a0] sm:$0xff]
    %v107 = vld [vmem:[%s1 + $0x1a8] sm:$0xff]
    %v108 = vld [vmem:[%s1 + $0x1b0] sm:$0xff]
    %v109 = vld [vmem:[%s1 + $0x1b8] sm:$0xff]
    %v110 = vld [vmem:[%s1 + $0x1c0] sm:$0xff]
    %v111 = vld [vmem:[%s1 + $0x1c8] sm:$0xff]
    %v112 = vld [vmem:[%s1 + $0x1d0] sm:$0xff]
    %v113 = vld [vmem:[%s1 + $0x1d8] sm:$0xff]
    %v114 = vld [vmem:[%s1 + $0x1e0] sm:$0xff]
    %v115 = vld [vmem:[%s1 + $0x1e8] sm:$0xff]
    %v116 = vld [vmem:[%s1 + $0x1f0] sm:$0xff]
    %v117 = vld [vmem:[%s1 + $0x1f8] sm:$0xff]
    %v118 = vld [vmem:[%s1 + $0x200] sm:$0xff]
    %v119 = vld [vmem:[%s1 + $0x208] sm:$0xff]
    %v120 = vld [vmem:[%s1 + $0x210] sm:$0xff]
    %v121 = vld [vmem:[%s1 + $0x218] sm:$0xff]
    %v122 = vld [vmem:[%s1 + $0x220] sm:$0xff]
    %v123 = vld [vmem:[%s1 + $0x228] sm:$0xff]
    %v124 = vld [vmem:[%s1 + $0x230] sm:$0xff]
    %v125 = vld [vmem:[%s1 + $0x238] sm:$0xff]
    %v126 = vld [vmem:[%s1 + $0x240] sm:$0xff]
    %v127 = vld [vmem:[%s1 + $0x248] sm:$0xff]
    %v128 = vld [vmem:[%s1 + $0x250] sm:$0xff]
    %v129 = vld [vmem:[%s1 + $0x258] sm:$0xff]
    %v130 = vld [vmem:[%s1 + $0x260] sm:$0xff]
    %v131 = vld [vmem:[%s1 + $0x268] sm:$0xff]
    %v132 = vld [vmem:[%s1 + $0x270] sm:$0xff]
    %v133 = vld [vmem:[%s1 + $0x278] sm:$0xff]
    %v134 = vld [vmem:[%s1 + $0x280] sm:$0xff]
    %v135 = vld [vmem:[%s1 + $0x288] sm:$0xff]
    %v136 = vld [vmem:[%s1 + $0x290] sm:$0xff]
    %v137 = vld [vmem:[%s1 + $0x298] sm:$0xff]
    %v138 = vld [vmem:[%s1 + $0x2a0] sm:$0xff]
    %v139 = vld [vmem:[%s1 + $0x2a8] sm:$0xff]
    %v140 = vld [vmem:[%s1 + $0x2b0] sm:$0xff]
    %v141 = vld [vmem:[%s1 + $0x2b8] sm:$0xff]
    %v142 = vld [vmem:[%s1 + $0x2c0] sm:$0xff]
    %v143 = vld [vmem:[%s1 + $0x2c8] sm:$0xff]
    %v144 = vld [vmem:[%s1 + $0x2d0] sm:$0xff]
    %v145 = vld [vmem:[%s1 + $0x2d8] sm:$0xff]
    %v146 = vld [vmem:[%s1 + $0x2e0] sm:$0xff]
    %v147 = vld [vmem:[%s1 + $0x2e8] sm:$0xff]
    %v148 = vld [vmem:[%s1 + $0x2f0] sm:$0xff]
    %v149 = vld [vmem:[%s1 + $0x2f8] sm:$0xff]
    %v150 = vld [vmem:[%s1 + $0x300] sm:$0xff]
    %v151 = vld [vmem:[%s1 + $0x308] sm:$0xff]
    %v152 = vld [vmem:[%s1 + $0x310] sm:$0xff]
    %v153 = vld [vmem:[%s1 + $0x318] sm:$0xff]
    %v154 = vld [vmem:[%s1 + $0x320] sm:$0xff]
    %v155 = vld [vmem:[%s1 + $0x328] sm:$0xff]
    %v156 = vld [vmem:[%s1 + $0x330] sm:$0xff]
    %v157 = vld [vmem:[%s1 + $0x338] sm:$0xff]
    %v158 = vld [vmem:[%s1 + $0x340] sm:$0xff]
    %v159 = vld [vmem:[%s1 + $0x348] sm:$0xff]
    %v160 = vld [vmem:[%s1 + $0x350] sm:$0xff]
    %v161 = vld [vmem:[%s1 + $0x358] sm:$0xff]
    %v162 = vld [vmem:[%s1 + $0x360] sm:$0xff]
    %v163 = vld [vmem:[%s1 + $0x368] sm:$0xff]
    %v164 = vld [vmem:[%s1 + $0x370] sm:$0xff]
    %v165 = vld [vmem:[%s1 + $0x378] sm:$0xff]
    %v166 = vld [vmem:[%s1 + $0x380] sm:$0xff]
    %v167 = vld [vmem:[%s1 + $0x388] sm:$0xff]
    %v168 = vld [vmem:[%s1 + $0x390] sm:$0xff]
    %v169 = vld [vmem:[%s1 + $0x398] sm:$0xff]
    %v170 = vld [vmem:[%s1 + $0x3a0] sm:$0xff]
    %v171 = vld [vmem:[%s1 + $0x3a8] sm:$0xff]
    %v172 = vld [vmem:[%s1 + $0x3b0] sm:$0xff]
    %v173 = vld [vmem:[%s1 + $0x3b8] sm:$0xff]
    %v174 = vld [vmem:[%s1 + $0x3c0] sm:$0xff]
    %v175 = vld [vmem:[%s1 + $0x3c8] sm:$0xff]
    %v176 = vld [vmem:[%s1 + $0x3d0] sm:$0xff]
    %v177 = vld [vmem:[%s1 + $0x3d8] sm:$0xff]
    %v178 = vld [vmem:[%s1 + $0x3e0] sm:$0xff]
    %v179 = vld [vmem:[%s1 + $0x3e8] sm:$0xff]
    %v180 = vld [vmem:[%s1 + $0x3f0] sm:$0xff]
    %v181 = vld [vmem:[%s1 + $0x3f8] sm:$0xff]
    %v182 = vld [vmem:[%s1 + $0x400] sm:$0xff]
    %v183 = vld [vmem:[%s1 + $0x408] sm:$0xff]
    %v184 = vld [vmem:[%s1 + $0x410] sm:$0xff]
    %v185 = vld [vmem:[%s1 + $0x418] sm:$0xff]
    %v186 = vld [vmem:[%s1 + $0x420] sm:$0xff]
    %v187 = vld [vmem:[%s1 + $0x428] sm:$0xff]
    %v188 = vld [vmem:[%s1 + $0x430] sm:$0xff]
    %v189 = vld [vmem:[%s1 + $0x438] sm:$0xff]
    %v190 = vld [vmem:[%s1 + $0x440] sm:$0xff]
    %v191 = vld [vmem:[%s1 + $0x448] sm:$0xff]
    %v192 = vld [vmem:[%s1 + $0x450] sm:$0xff]
    %v193 = vld [vmem:[%s1 + $0x458] sm:$0xff]
    %v194 = vld [vmem:[%s1 + $0x460] sm:$0xff]
    %v195 = vld [vmem:[%s1 + $0x468] sm:$0xff]
    %v196 = vld [vmem:[%s1 + $0x470] sm:$0xff]
    %v197 = vld [vmem:[%s1 + $0x478] sm:$0xff]
    %v198 = vld [vmem:[%s1 + $0x480] sm:$0xff]
    %v199 = vld [vmem:[%s1 + $0x488] sm:$0xff]
    %v200 = vld [vmem:[%s1 + $0x490] sm:$0xff]
    %v201 = vld [vmem:[%s1 + $0x498] sm:$0xff]
    %v202 = vld [vmem:[%s1 + $0x4a0] sm:$0xff]
    %v203 = vld [vmem:[%s1 + $0x4a8] sm:$0xff]
    %v204 = vld [vmem:[%s1 + $0x4b0] sm:$0xff]
    %v205 = vld [vmem:[%s1 + $0x4b8] sm:$0xff]
    %v206 = vld [vmem:[%s1 + $0x4c0] sm:$0xff]
    %v207 = vld [vmem:[%s1 + $0x4c8] sm:$0xff]
    %v208 = vld [vmem:[%s1 + $0x4d0] sm:$0xff]
    %v209 = vld [vmem:[%s1 + $0x4d8] sm:$0xff]
    %v210 = vld [vmem:[%s1 + $0x4e0] sm:$0xff]
    %v211 = vld [vmem:[%s1 + $0x4e8] sm:$0xff]
    %v212 = vld [vmem:[%s1 + $0x4f0] sm:$0xff]
    %v213 = vld [vmem:[%s1 + $0x4f8] sm:$0xff]
    %v214 = vld [vmem:[%s1 + $0x500] sm:$0xff]
    %v215 = vld [vmem:[%s1 + $0x508] sm:$0xff]
    %v216 = vld [vmem:[%s1 + $0x510] sm:$0xff]
    %v217 = vld [vmem:[%s1 + $0x518] sm:$0xff]
    %v218 = vld [vmem:[%s1 + $0x520] sm:$0xff]
    %v219 = vld [vmem:[%s1 + $0x528] sm:$0xff]
    %v220 = vld [vmem:[%s1 + $0x530] sm:$0xff]
    %v221 = vld [vmem:[%s1 + $0x538] sm:$0xff]
    %v222 = vld [vmem:[%s1 + $0x540] sm:$0xff]
    %v223 = vld [vmem:[%s1 + $0x548] sm:$0xff]
    %v224 = vld [vmem:[%s1 + $0x550] sm:$0xff]
    %v225 = vld [vmem:[%s1 + $0x558] sm:$0xff]
    %v226 = vld [vmem:[%s1 + $0x560] sm:$0xff]
    %v227 = vld [vmem:[%s1 + $0x568] sm:$0xff]
    %v228 = vld [vmem:[%s1 + $0x570] sm:$0xff]
    %v229 = vld [vmem:[%s1 + $0x578] sm:$0xff]
    %v230 = vld [vmem:[%s1 + $0x580] sm:$0xff]
    %v231 = vld [vmem:[%s1 + $0x588] sm:$0xff]
    %v232 = vld [vmem:[%s1 + $0x590] sm:$0xff]
    %v233 = vld [vmem:[%s1 + $0x598] sm:$0xff]
    %v234 = vld [vmem:[%s1 + $0x5a0] sm:$0xff]
    %v235 = vld [vmem:[%s1 + $0x5a8] sm:$0xff]
    %v236 = vld [vmem:[%s1 + $0x5b0] sm:$0xff]
    %v237 = vld [vmem:[%s1 + $0x5b8] sm:$0xff]
    %v238 = vld [vmem:[%s1 + $0x5c0] sm:$0xff]
    %v239 = vld [vmem:[%s1 + $0x5c8] sm:$0xff]
    %v240 = vld [vmem:[%s1 + $0x5d0] sm:$0xff]
    %v241 = vld [vmem:[%s1 + $0x5d8] sm:$0xff]
    %v242 = vld [vmem:[%s1 + $0x5e0] sm:$0xff]
    %v243 = vld [vmem:[%s1 + $0x5e8] sm:$0xff]
    %v244 = vld [vmem:[%s1 + $0x5f0] sm:$0xff]
    %v245 = vld [vmem:[%s1 + $0x5f8] sm:$0xff]
    %v246 = vld [vmem:[%s1 + $0x600] sm:$0xff]
    %v247 = vld [vmem:[%s1 + $0x608] sm:$0xff]
    %v248 = vld [vmem:[%s1 + $0x610] sm:$0xff]
    %v249 = vld [vmem:[%s1 + $0x618] sm:$0xff]
    %v250 = vld [vmem:[%s1 + $0x620] sm:$0xff]
    %v251 = vld [vmem:[%s1 + $0x628] sm:$0xff]
    %v252 = vld [vmem:[%s1 + $0x630] sm:$0xff]
    %v253 = vld [vmem:[%s1 + $0x638] sm:$0xff]
    %v254 = vld [vmem:[%s1 + $0x640] sm:$0xff]
    %v255 = vld [vmem:[%s1 + $0x648] sm:$0xff]
    %v256 = vld [vmem:[%s1 + $0x650] sm:$0xff]
    %v257 = vld [vmem:[%s1 + $0x658] sm:$0xff]
    %v258 = vld [vmem:[%s1 + $0x660] sm:$0xff]
    %v259 = vld [vmem:[%s1 + $0x668] sm:$0xff]
    %v260 = vld [vmem:[%s1 + $0x670] sm:$0xff]
    %v261 = vld [vmem:[%s1 + $0x678] sm:$0xff]
    %v262 = vld [vmem:[%s1 + $0x680] sm:$0xff]
    %v263 = vld [vmem:[%s1 + $0x688] sm:$0xff]
    %v264 = vld [vmem:[%s1 + $0x690] sm:$0xff]
    %v265 = vld [vmem:[%s1 + $0x698] sm:$0xff]
    %v266 = vld [vmem:[%s1 + $0x6a0] sm:$0xff]
    %v267 = vld [vmem:[%s1 + $0x6a8] sm:$0xff]
    %v268 = vld [vmem:[%s1 + $0x6b0] sm:$0xff]
    %v269 = vld [vmem:[%s1 + $0x6b8] sm:$0xff]
    %v270 = vld [vmem:[%s1 + $0x6c0] sm:$0xff]
    %v271 = vld [vmem:[%s1 + $0x6c8] sm:$0xff]
    %v272 = vld [vmem:[%s1 + $0x6d0] sm:$0xff]
    %v273 = vld [vmem:[%s1 + $0x6d8] sm:$0xff]
    %v274 = vld [vmem:[%s1 + $0x6e0] sm:$0xff]
    %v275 = vld [vmem:[%s1 + $0x6e8] sm:$0xff]
    %v276 = vld [vmem:[%s1 + $0x6f0] sm:$0xff]
    %v277 = vld [vmem:[%s1 + $0x6f8] sm:$0xff]
    %v278 = vld [vmem:[%s1 + $0x700] sm:$0xff]
    %v279 = vld [vmem:[%s1 + $0x708] sm:$0xff]
    %v280 = vld [vmem:[%s1 + $0x710] sm:$0xff]
    %v281 = vld [vmem:[%s1 + $0x718] sm:$0xff]
    %v282 = vld [vmem:[%s1 + $0x720] sm:$0xff]
    %v283 = vld [vmem:[%s1 + $0x728] sm:$0xff]
    %v284 = vld [vmem:[%s1 + $0x730] sm:$0xff]
    %v285 = vld [vmem:[%s1 + $0x738] sm:$0xff]
    %v286 = vld [vmem:[%s1 + $0x740] sm:$0xff]
    %v287 = vld [vmem:[%s1 + $0x748] sm:$0xff]
    %v288 = vld [vmem:[%s1 + $0x750] sm:$0xff]
    %v289 = vld [vmem:[%s1 + $0x758] sm:$0xff]
    %v290 = vld [vmem:[%s1 + $0x760] sm:$0xff]
    %v291 = vld [vmem:[%s1 + $0x768] sm:$0xff]
    %v292 = vld [vmem:[%s1 + $0x770] sm:$0xff]
    %v293 = vld [vmem:[%s1 + $0x778] sm:$0xff]
    %v294 = vld [vmem:[%s1 + $0x780] sm:$0xff]
    %v295 = vld [vmem:[%s1 + $0x788] sm:$0xff]
    %v296 = vld [vmem:[%s1 + $0x790] sm:$0xff]
    %v297 = vld [vmem:[%s1 + $0x798] sm:$0xff]
    %v298 = vld [vmem:[%s1 + $0x7a0] sm:$0xff]
    %v299 = vld [vmem:[%s1 + $0x7a8] sm:$0xff]
    %v300 = vld [vmem:[%s1 + $0x7b0] sm:$0xff]
    %v301 = vld [vmem:[%s1 + $0x7b8] sm:$0xff]
    %v302 = vld [vmem:[%s1 + $0x7c0] sm:$0xff]
    %v303 = vld [vmem:[%s1 + $0x7c8] sm:$0xff]
    %v304 = vld [vmem:[%s1 + $0x7d0] sm:$0xff]
    %v305 = vld [vmem:[%s1 + $0x7d8] sm:$0xff]
    %v306 = vld [vmem:[%s1 + $0x7e0] sm:$0xff]
    %v307 = vld [vmem:[%s1 + $0x7e8] sm:$0xff]
    %v308 = vld [vmem:[%s1 + $0x7f0] sm:$0xff]
    %v309 = vld [vmem:[%s1 + $0x7f8] sm:$0xff]
    %v310 = vld [vmem:[%s1 + $0x800] sm:$0xff]
    %v311 = vld [vmem:[%s1 + $0x808] sm:$0xff]
    %v312 = vld [vmem:[%s1 + $0x810] sm:$0xff]
    %v313 = vld [vmem:[%s1 + $0x818] sm:$0xff]
    %v314 = vld [vmem:[%s1 + $0x820] sm:$0xff]
    %v315 = vld [vmem:[%s1 + $0x828] sm:$0xff]
    %v316 = vld [vmem:[%s1 + $0x830] sm:$0xff]
    %v317 = vld [vmem:[%s1 + $0x838] sm:$0xff]
    %v318 = vld [vmem:[%s1 + $0x840] sm:$0xff]
    %v319 = vld [vmem:[%s1 + $0x848] sm:$0xff]
    %v320 = vld [vmem:[%s1 + $0x850] sm:$0xff]
    %v321 = vld [vmem:[%s1 + $0x858] sm:$0xff]
    %v322 = vld [vmem:[%s1 + $0x860] sm:$0xff]
    %v323 = vld [vmem:[%s1 + $0x868] sm:$0xff]
    %v324 = vld [vmem:[%s1 + $0x870] sm:$0xff]
    %v325 = vld [vmem:[%s1 + $0x878] sm:$0xff]
    %v326 = vld [vmem:[%s1 + $0x880] sm:$0xff]
    %v327 = vld [vmem:[%s1 + $0x888] sm:$0xff]
    %v328 = vld [vmem:[%s1 + $0x890] sm:$0xff]
    %v329 = vld [vmem:[%s1 + $0x898] sm:$0xff]
    %v330 = vld [vmem:[%s1 + $0x8a0] sm:$0xff]
    %v331 = vld [vmem:[%s1 + $0x8a8] sm:$0xff]
    %v332 = vld [vmem:[%s1 + $0x8b0] sm:$0xff]
    %v333 = vld [vmem:[%s1 + $0x8b8] sm:$0xff]
    %v334 = vld [vmem:[%s1 + $0x8c0] sm:$0xff]
    %v335 = vld [vmem:[%s1 + $0x8c8] sm:$0xff]
    %v336 = vld [vmem:[%s1 + $0x8d0] sm:$0xff]
    %v337 = vld [vmem:[%s1 + $0x8d8] sm:$0xff]
    %v338 = vld [vmem:[%s1 + $0x8e0] sm:$0xff]
    %v339 = vld [vmem:[%s1 + $0x8e8] sm:$0xff]
    %v340 = vld [vmem:[%s1 + $0x8f0] sm:$0xff]
    %v341 = vld [vmem:[%s1 + $0x8f8] sm:$0xff]
    %v342 = vld [vmem:[%s1 + $0x900] sm:$0xff]
    %v343 = vld [vmem:[%s1 + $0x908] sm:$0xff]
    %v344 = vld [vmem:[%s1 + $0x910] sm:$0xff]
    %v345 = vld [vmem:[%s1 + $0x918] sm:$0xff]
    %v346 = vld [vmem:[%s1 + $0x920] sm:$0xff]
    %v347 = vld [vmem:[%s1 + $0x928] sm:$0xff]
    %v348 = vld [vmem:[%s1 + $0x930] sm:$0xff]
    %v349 = vld [vmem:[%s1 + $0x938] sm:$0xff]
    %v350 = vld [vmem:[%s1 + $0x940] sm:$0xff]
    %v351 = vld [vmem:[%s1 + $0x948] sm:$0xff]
    %v352 = vld [vmem:[%s1 + $0x950] sm:$0xff]
    %v353 = vld [vmem:[%s1 + $0x958] sm:$0xff]
    %v354 = vld [vmem:[%s1 + $0x960] sm:$0xff]
    %v355 = vld [vmem:[%s1 + $0x968] sm:$0xff]
    %v356 = vld [vmem:[%s1 + $0x970] sm:$0xff]
    %v357 = vld [vmem:[%s1 + $0x978] sm:$0xff]
    %v358 = vld [vmem:[%s1 + $0x980] sm:$0xff]
    %v359 = vld [vmem:[%s1 + $0x988] sm:$0xff]
    %v360 = vld [vmem:[%s1 + $0x990] sm:$0xff]
    %v361 = vld [vmem:[%s1 + $0x998] sm:$0xff]
    %v362 = vld [vmem:[%s1 + $0x9a0] sm:$0xff]
    %v363 = vld [vmem:[%s1 + $0x9a8] sm:$0xff]
    %v364 = vld [vmem:[%s1 + $0x9b0] sm:$0xff]
    %v365 = vld [vmem:[%s1 + $0x9b8] sm:$0xff]
    %v366 = vld [vmem:[%s1 + $0x9c0] sm:$0xff]
    %v367 = vld [vmem:[%s1 + $0x9c8] sm:$0xff]
    %v368 = vld [vmem:[%s1 + $0x9d0] sm:$0xff]
    %v369 = vld [vmem:[%s1 + $0x9d8] sm:$0xff]
    %v370 = vld [vmem:[%s1 + $0x9e0] sm:$0xff]
    %v371 = vld [vmem:[%s1 + $0x9e8] sm:$0xff]
    %v372 = vld [vmem:[%s1 + $0x9f0] sm:$0xff]
    %v373 = vld [vmem:[%s1 + $0x9f8] sm:$0xff]
    %v374 = vld [vmem:[%s1 + $0xa00] sm:$0xff]
    %v375 = vld [vmem:[%s1 + $0xa08] sm:$0xff]
    %v376 = vld [vmem:[%s1 + $0xa10] sm:$0xff]
    %v377 = vld [vmem:[%s1 + $0xa18] sm:$0xff]
    %v378 = vld [vmem:[%s1 + $0xa20] sm:$0xff]
    %v379 = vld [vmem:[%s1 + $0xa28] sm:$0xff]
    %v380 = vld [vmem:[%s1 + $0xa30] sm:$0xff]
    %v381 = vld [vmem:[%s1 + $0xa38] sm:$0xff]
    %v382 = vld [vmem:[%s1 + $0xa40] sm:$0xff]
    %v383 = vld [vmem:[%s1 + $0xa48] sm:$0xff]
    %v384 = vld [vmem:[%s1 + $0xa50] sm:$0xff]
    %v385 = vld [vmem:[%s1 + $0xa58] sm:$0xff]
    %v386 = vld [vmem:[%s1 + $0xa60] sm:$0xff]
    %v387 = vld [vmem:[%s1 + $0xa68] sm:$0xff]
    %v388 = vld [vmem:[%s1 + $0xa70] sm:$0xff]
    %v389 = vld [vmem:[%s1 + $0xa78] sm:$0xff]
    %v390 = vld [vmem:[%s1 + $0xa80] sm:$0xff]
    %v391 = vld [vmem:[%s1 + $0xa88] sm:$0xff]
    %v392 = vld [vmem:[%s1 + $0xa90] sm:$0xff]
    %v393 = vld [vmem:[%s1 + $0xa98] sm:$0xff]
    %v394 = vld [vmem:[%s1 + $0xaa0] sm:$0xff]
    %v395 = vld [vmem:[%s1 + $0xaa8] sm:$0xff]
    %v396 = vld [vmem:[%s1 + $0xab0] sm:$0xff]
    %v397 = vld [vmem:[%s1 + $0xab8] sm:$0xff]
    %v398 = vld [vmem:[%s1 + $0xac0] sm:$0xff]
    %v399 = vld [vmem:[%s1 + $0xac8] sm:$0xff]
    %v400 = vld [vmem:[%s1 + $0xad0] sm:$0xff]
    %v401 = vld [vmem:[%s1 + $0xad8] sm:$0xff]
    %v402 = vld [vmem:[%s1 + $0xae0] sm:$0xff]
    %v403 = vld [vmem:[%s1 + $0xae8] sm:$0xff]
    %v404 = vld [vmem:[%s1 + $0xaf0] sm:$0xff]
    %v405 = vld [vmem:[%s1 + $0xaf8] sm:$0xff]
    %v406 = vld [vmem:[%s1 + $0xb00] sm:$0xff]
    %v407 = vld [vmem:[%s1 + $0xb08] sm:$0xff]
    %v408 = vld [vmem:[%s1 + $0xb10] sm:$0xff]
    %v409 = vld [vmem:[%s1 + $0xb18] sm:$0xff]
    %v410 = vld [vmem:[%s1 + $0xb20] sm:$0xff]
    %v411 = vld [vmem:[%s1 + $0xb28] sm:$0xff]
    %v412 = vld [vmem:[%s1 + $0xb30] sm:$0xff]
    %v413 = vld [vmem:[%s1 + $0xb38] sm:$0xff]
    %v414 = vld [vmem:[%s1 + $0xb40] sm:$0xff]
    %v415 = vld [vmem:[%s1 + $0xb48] sm:$0xff]
    %v416 = vld [vmem:[%s1 + $0xb50] sm:$0xff]
    %v417 = vld [vmem:[%s1 + $0xb58] sm:$0xff]
    %v418 = vld [vmem:[%s1 + $0xb60] sm:$0xff]
    %v419 = vld [vmem:[%s1 + $0xb68] sm:$0xff]
    %v420 = vld [vmem:[%s1 + $0xb70] sm:$0xff]
    %v421 = vld [vmem:[%s1 + $0xb78] sm:$0xff]
    %v422 = vld [vmem:[%s1 + $0xb80] sm:$0xff]
    %v423 = vld [vmem:[%s1 + $0xb88] sm:$0xff]
    %v424 = vld [vmem:[%s1 + $0xb90] sm:$0xff]
    %v425 = vld [vmem:[%s1 + $0xb98] sm:$0xff]
    %v426 = vld [vmem:[%s1 + $0xba0] sm:$0xff]
    %v427 = vld [vmem:[%s1 + $0xba8] sm:$0xff]
    %v428 = vld [vmem:[%s1 + $0xbb0] sm:$0xff]
    %v429 = vld [vmem:[%s1 + $0xbb8] sm:$0xff]
    %v430 = vld [vmem:[%s1 + $0xbc0] sm:$0xff]
    %v431 = vld [vmem:[%s1 + $0xbc8] sm:$0xff]
    %v432 = vld [vmem:[%s1 + $0xbd0] sm:$0xff]
    %v433 = vld [vmem:[%s1 + $0xbd8] sm:$0xff]
    %v434 = vld [vmem:[%s1 + $0xbe0] sm:$0xff]
    %v435 = vld [vmem:[%s1 + $0xbe8] sm:$0xff]
    %v436 = vld [vmem:[%s1 + $0xbf0] sm:$0xff]
    %v437 = vld [vmem:[%s1 + $0xbf8] sm:$0xff]
    %v438 = vld [vmem:[%s1 + $0xc00] sm:$0xff]
    %v439 = vld [vmem:[%s1 + $0xc08] sm:$0xff]
    %v440 = vld [vmem:[%s1 + $0xc10] sm:$0xff]
    %v441 = vld [vmem:[%s1 + $0xc18] sm:$0xff]
    %v442 = vld [vmem:[%s1 + $0xc20] sm:$0xff]
    %v443 = vld [vmem:[%s1 + $0xc28] sm:$0xff]
    %v444 = vld [vmem:[%s1 + $0xc30] sm:$0xff]
    %v445 = vld [vmem:[%s1 + $0xc38] sm:$0xff]
    %v446 = vld [vmem:[%s1 + $0xc40] sm:$0xff]
    %v447 = vld [vmem:[%s1 + $0xc48] sm:$0xff]
    %v448 = vld [vmem:[%s1 + $0xc50] sm:$0xff]
    %v449 = vld [vmem:[%s1 + $0xc58] sm:$0xff]
    %v450 = vld [vmem:[%s1 + $0xc60] sm:$0xff]
    %v451 = vld [vmem:[%s1 + $0xc68] sm:$0xff]
    %v452 = vld [vmem:[%s1 + $0xc70] sm:$0xff]
    %v453 = vld [vmem:[%s1 + $0xc78] sm:$0xff]
    %v454 = vld [vmem:[%s1 + $0xc80] sm:$0xff]
    %v455 = vld [vmem:[%s1 + $0xc88] sm:$0xff]
    %v456 = vld [vmem:[%s1 + $0xc90] sm:$0xff]
    %v457 = vld [vmem:[%s1 + $0xc98] sm:$0xff]
    %v458 = vld [vmem:[%s1 + $0xca0] sm:$0xff]
    %v459 = vld [vmem:[%s1 + $0xca8] sm:$0xff]
    %v460 = vld [vmem:[%s1 + $0xcb0] sm:$0xff]
    %v461 = vld [vmem:[%s1 + $0xcb8] sm:$0xff]
    %v462 = vld [vmem:[%s1 + $0xcc0] sm:$0xff]
    %v463 = vld [vmem:[%s1 + $0xcc8] sm:$0xff]
    %v464 = vld [vmem:[%s1 + $0xcd0] sm:$0xff]
    %v465 = vld [vmem:[%s1 + $0xcd8] sm:$0xff]
    %v466 = vld [vmem:[%s1 + $0xce0] sm:$0xff]
    %v467 = vld [vmem:[%s1 + $0xce8] sm:$0xff]
    %v468 = vld [vmem:[%s1 + $0xcf0] sm:$0xff]
    %v469 = vld [vmem:[%s1 + $0xcf8] sm:$0xff]
    %v470 = vld [vmem:[%s1 + $0xd00] sm:$0xff]
    %v471 = vld [vmem:[%s1 + $0xd08] sm:$0xff]
    %v472 = vld [vmem:[%s1 + $0xd10] sm:$0xff]
    %v473 = vld [vmem:[%s1 + $0xd18] sm:$0xff]
    %v474 = vld [vmem:[%s1 + $0xd20] sm:$0xff]
    %v475 = vld [vmem:[%s1 + $0xd28] sm:$0xff]
    %v476 = vld [vmem:[%s1 + $0xd30] sm:$0xff]
    %v477 = vld [vmem:[%s1 + $0xd38] sm:$0xff]
    %v478 = vld [vmem:[%s1 + $0xd40] sm:$0xff]
    %v479 = vld [vmem:[%s1 + $0xd48] sm:$0xff]
    %v480 = vld [vmem:[%s1 + $0xd50] sm:$0xff]
    %v481 = vld [vmem:[%s1 + $0xd58] sm:$0xff]
    %v482 = vld [vmem:[%s1 + $0xd60] sm:$0xff]
    %v483 = vld [vmem:[%s1 + $0xd68] sm:$0xff]
    %v484 = vld [vmem:[%s1 + $0xd70] sm:$0xff]
    %v485 = vld [vmem:[%s1 + $0xd78] sm:$0xff]
    %v486 = vld [vmem:[%s1 + $0xd80] sm:$0xff]
    %v487 = vld [vmem:[%s1 + $0xd88] sm:$0xff]
    %v488 = vld [vmem:[%s1 + $0xd90] sm:$0xff]
    %v489 = vld [vmem:[%s1 + $0xd98] sm:$0xff]
    %v490 = vld [vmem:[%s1 + $0xda0] sm:$0xff]
    %v491 = vld [vmem:[%s1 + $0xda8] sm:$0xff]
    %v492 = vld [vmem:[%s1 + $0xdb0] sm:$0xff]
    %v493 = vld [vmem:[%s1 + $0xdb8] sm:$0xff]
    %v494 = vld [vmem:[%s1 + $0xdc0] sm:$0xff]
    %v495 = vld [vmem:[%s1 + $0xdc8] sm:$0xff]
    %v496 = vld [vmem:[%s1 + $0xdd0] sm:$0xff]
    %v497 = vld [vmem:[%s1 + $0xdd8] sm:$0xff]
    %v498 = vld [vmem:[%s1 + $0xde0] sm:$0xff]
    %v499 = vld [vmem:[%s1 + $0xde8] sm:$0xff]
    %v500 = vld [vmem:[%s1 + $0xdf0] sm:$0xff]
    %v501 = vld [vmem:[%s1 + $0xdf8] sm:$0xff]
    %v502 = vld [vmem:[%s1 + $0xe00] sm:$0xff]
    %v503 = vld [vmem:[%s1 + $0xe08] sm:$0xff]
    %v504 = vld [vmem:[%s1 + $0xe10] sm:$0xff]
    %v505 = vld [vmem:[%s1 + $0xe18] sm:$0xff]
    %v506 = vld [vmem:[%s1 + $0xe20] sm:$0xff]
    %v507 = vld [vmem:[%s1 + $0xe28] sm:$0xff]
    %v508 = vld [vmem:[%s1 + $0xe30] sm:$0xff]
    %v509 = vld [vmem:[%s1 + $0xe38] sm:$0xff]
    %v510 = vld [vmem:[%s1 + $0xe40] sm:$0xff]
    %v511 = vld [vmem:[%s1 + $0xe48] sm:$0xff]
    %v512 = vld [vmem:[%s1 + $0xe50] sm:$0xff]
    %v513 = vld [vmem:[%s1 + $0xe58] sm:$0xff]
    %v514 = vld [vmem:[%s1 + $0xe60] sm:$0xff]
    %v515 = vld [vmem:[%s1 + $0xe68] sm:$0xff]
    %v516 = vld [vmem:[%s1 + $0xe70] sm:$0xff]
    %v517 = vld [vmem:[%s1 + $0xe78] sm:$0xff]
    %v518 = vld [vmem:[%s1 + $0xe80] sm:$0xff]
    %v519 = vld [vmem:[%s1 + $0xe88] sm:$0xff]
    %v520 = vld [vmem:[%s1 + $0xe90] sm:$0xff]
    %v521 = vld [vmem:[%s1 + $0xe98] sm:$0xff]
    %v522 = vld [vmem:[%s1 + $0xea0] sm:$0xff]
    %v523 = vld [vmem:[%s1 + $0xea8] sm:$0xff]
    %v524 = vld [vmem:[%s1 + $0xeb0] sm:$0xff]
    %v525 = vld [vmem:[%s1 + $0xeb8] sm:$0xff]
    %v526 = vld [vmem:[%s1 + $0xec0] sm:$0xff]
    %v527 = vld [vmem:[%s1 + $0xec8] sm:$0xff]
    %v528 = vld [vmem:[%s1 + $0xed0] sm:$0xff]
    %v529 = vld [vmem:[%s1 + $0xed8] sm:$0xff]
    %v530 = vld [vmem:[%s1 + $0xee0] sm:$0xff]
    %v531 = vld [vmem:[%s1 + $0xee8] sm:$0xff]
    %v532 = vld [vmem:[%s1 + $0xef0] sm:$0xff]
    %v533 = vld [vmem:[%s1 + $0xef8] sm:$0xff]
    %v534 = vld [vmem:[%s1 + $0xf00] sm:$0xff]
    %v535 = vld [vmem:[%s1 + $0xf08] sm:$0xff]
    %v536 = vld [vmem:[%s1 + $0xf10] sm:$0xff]
    %v537 = vld [vmem:[%s1 + $0xf18] sm:$0xff]
    %v538 = vld [vmem:[%s1 + $0xf20] sm:$0xff]
    %v539 = vld [vmem:[%s1 + $0xf28] sm:$0xff]
    %v540 = vld [vmem:[%s1 + $0xf30] sm:$0xff]
    %v541 = vld [vmem:[%s1 + $0xf38] sm:$0xff]
    %v542 = vld [vmem:[%s1 + $0xf40] sm:$0xff]
    %v543 = vld [vmem:[%s1 + $0xf48] sm:$0xff]
    %v544 = vld [vmem:[%s1 + $0xf50] sm:$0xff]
    %v545 = vld [vmem:[%s1 + $0xf58] sm:$0xff]
    %v546 = vld [vmem:[%s1 + $0xf60] sm:$0xff]
    %v547 = vld [vmem:[%s1 + $0xf68] sm:$0xff]
    %v548 = vld [vmem:[%s1 + $0xf70] sm:$0xff]
    %v549 = vld [vmem:[%s1 + $0xf78] sm:$0xff]
    %v550 = vld [vmem:[%s1 + $0xf80] sm:$0xff]
    %v551 = vld [vmem:[%s1 + $0xf88] sm:$0xff]
    %v552 = vld [vmem:[%s1 + $0xf90] sm:$0xff]
    %v553 = vld [vmem:[%s1 + $0xf98] sm:$0xff]
    %v554 = vld [vmem:[%s1 + $0xfa0] sm:$0xff]
    %v555 = vld [vmem:[%s1 + $0xfa8] sm:$0xff]
    %v556 = vld [vmem:[%s1 + $0xfb0] sm:$0xff]
    %v557 = vld [vmem:[%s1 + $0xfb8] sm:$0xff]
    %v558 = vld [vmem:[%s1 + $0xfc0] sm:$0xff]
    %v559 = vld [vmem:[%s1 + $0xfc8] sm:$0xff]
    %v560 = vld [vmem:[%s1 + $0xfd0] sm:$0xff]
    %v561 = vld [vmem:[%s1 + $0xfd8] sm:$0xff]
    %v562 = vld [vmem:[%s1 + $0xfe0] sm:$0xff]
    %v563 = vld [vmem:[%s1 + $0xfe8] sm:$0xff]
    %v564 = vld [vmem:[%s1 + $0xff0] sm:$0xff]
    %v565 = vld [vmem:[%s1 + $0xff8] sm:$0xff]
    %v566 = vld [vmem:[%s1 + $0x1000] sm:$0xff]
    %v567 = vld [vmem:[%s1 + $0x1008] sm:$0xff]
    %v568 = vld [vmem:[%s1 + $0x1010] sm:$0xff]
    %v569 = vld [vmem:[%s1 + $0x1018] sm:$0xff]
    %v570 = vld [vmem:[%s1 + $0x1020] sm:$0xff]
    %v571 = vld [vmem:[%s1 + $0x1028] sm:$0xff]
    %v572 = vld [vmem:[%s1 + $0x1030] sm:$0xff]
    %v573 = vld [vmem:[%s1 + $0x1038] sm:$0xff]
    %v574 = vld [vmem:[%s1 + $0x1040] sm:$0xff]
    %v575 = vld [vmem:[%s1 + $0x1048] sm:$0xff]
    %v576 = vld [vmem:[%s1 + $0x1050] sm:$0xff]
    %v577 = vld [vmem:[%s1 + $0x1058] sm:$0xff]
    %v578 = vld [vmem:[%s1 + $0x1060] sm:$0xff]
    %v579 = vld [vmem:[%s1 + $0x1068] sm:$0xff]
    %v580 = vld [vmem:[%s1 + $0x1070] sm:$0xff]
    %v581 = vld [vmem:[%s1 + $0x1078] sm:$0xff]
    %v582 = vld [vmem:[%s1 + $0x1080] sm:$0xff]
    %v583 = vld [vmem:[%s1 + $0x1088] sm:$0xff]
    %v584 = vld [vmem:[%s1 + $0x1090] sm:$0xff]
    %v585 = vld [vmem:[%s1 + $0x1098] sm:$0xff]
    %v586 = vld [vmem:[%s1 + $0x10a0] sm:$0xff]
    %v587 = vld [vmem:[%s1 + $0x10a8] sm:$0xff]
    %v588 = vld [vmem:[%s1 + $0x10b0] sm:$0xff]
    %v589 = vld [vmem:[%s1 + $0x10b8] sm:$0xff]
    %v590 = vld [vmem:[%s1 + $0x10c0] sm:$0xff]
    %v591 = vld [vmem:[%s1 + $0x10c8] sm:$0xff]
    %v592 = vld [vmem:[%s1 + $0x10d0] sm:$0xff]
    %v593 = vld [vmem:[%s1 + $0x10d8] sm:$0xff]
    %v594 = vld [vmem:[%s1 + $0x10e0] sm:$0xff]
    %v595 = vld [vmem:[%s1 + $0x10e8] sm:$0xff]
    %v596 = vld [vmem:[%s1 + $0x10f0] sm:$0xff]
    %v597 = vld [vmem:[%s1 + $0x10f8] sm:$0xff]
    %v598 = vld [vmem:[%s1 + $0x1100] sm:$0xff]
    %v599 = vld [vmem:[%s1 + $0x1108] sm:$0xff]
    %v600 = vld [vmem:[%s1 + $0x1110] sm:$0xff]
    %v601 = vld [vmem:[%s1 + $0x1118] sm:$0xff]
    %v602 = vld [vmem:[%s1 + $0x1120] sm:$0xff]
    %v603 = vld [vmem:[%s1 + $0x1128] sm:$0xff]
    %v604 = vld [vmem:[%s1 + $0x1130] sm:$0xff]
    %v605 = vld [vmem:[%s1 + $0x1138] sm:$0xff]
    %v606 = vld [vmem:[%s1 + $0x1140] sm:$0xff]
    %v607 = vld [vmem:[%s1 + $0x1148] sm:$0xff]
    %v608 = vld [vmem:[%s1 + $0x1150] sm:$0xff]
    %v609 = vld [vmem:[%s1 + $0x1158] sm:$0xff]
    %v610 = vld [vmem:[%s1 + $0x1160] sm:$0xff]
    %v611 = vld [vmem:[%s1 + $0x1168] sm:$0xff]
    %v612 = vld [vmem:[%s1 + $0x1170] sm:$0xff]
    %v613 = vld [vmem:[%s1 + $0x1178] sm:$0xff]
    %v614 = vld [vmem:[%s1 + $0x1180] sm:$0xff]
    %v615 = vld [vmem:[%s1 + $0x1188] sm:$0xff]
    %v616 = vld [vmem:[%s1 + $0x1190] sm:$0xff]
    %v617 = vld [vmem:[%s1 + $0x1198] sm:$0xff]
    %v618 = vld [vmem:[%s1 + $0x11a0] sm:$0xff]
    %v619 = vld [vmem:[%s1 + $0x11a8] sm:$0xff]
    %v620 = vld [vmem:[%s1 + $0x11b0] sm:$0xff]
    %v621 = vld [vmem:[%s1 + $0x11b8] sm:$0xff]
    %v622 = vld [vmem:[%s1 + $0x11c0] sm:$0xff]
    %v623 = vld [vmem:[%s1 + $0x11c8] sm:$0xff]
    %v624 = vld [vmem:[%s1 + $0x11d0] sm:$0xff]
    %v625 = vld [vmem:[%s1 + $0x11d8] sm:$0xff]
    %v626 = vld [vmem:[%s1 + $0x11e0] sm:$0xff]
    %v627 = vld [vmem:[%s1 + $0x11e8] sm:$0xff]
    %v628 = vld [vmem:[%s1 + $0x11f0] sm:$0xff]
    %v629 = vld [vmem:[%s1 + $0x11f8] sm:$0xff]
    %v630 = vld [vmem:[%s1 + $0x1200] sm:$0xff]
    %v631 = vld [vmem:[%s1 + $0x1208] sm:$0xff]
    %v632 = vld [vmem:[%s1 + $0x1210] sm:$0xff]
    %v633 = vld [vmem:[%s1 + $0x1218] sm:$0xff]
    %v634 = vld [vmem:[%s1 + $0x1220] sm:$0xff]
    %v635 = vld [vmem:[%s1 + $0x1228] sm:$0xff]
    %v636 = vld [vmem:[%s1 + $0x1230] sm:$0xff]
    %v637 = vld [vmem:[%s1 + $0x1238] sm:$0xff]
    %v638 = vld [vmem:[%s1 + $0x1240] sm:$0xff]
    %v639 = vld [vmem:[%s1 + $0x1248] sm:$0xff]
    %v640 = vld [vmem:[%s1 + $0x1250] sm:$0xff]
    %v641 = vld [vmem:[%s1 + $0x1258] sm:$0xff]
    %v642 = vld [vmem:[%s1 + $0x1260] sm:$0xff]
    %v643 = vld [vmem:[%s1 + $0x1268] sm:$0xff]
    %v644 = vld [vmem:[%s1 + $0x1270] sm:$0xff]
    %v645 = vld [vmem:[%s1 + $0x1278] sm:$0xff]
    %v646 = vld [vmem:[%s1 + $0x1280] sm:$0xff]
    %v647 = vld [vmem:[%s1 + $0x1288] sm:$0xff]
    %v648 = vld [vmem:[%s1 + $0x1290] sm:$0xff]
    %v649 = vld [vmem:[%s1 + $0x1298] sm:$0xff]
    %v650 = vld [vmem:[%s1 + $0x12a0] sm:$0xff]
    %v651 = vld [vmem:[%s1 + $0x12a8] sm:$0xff]
    %v652 = vld [vmem:[%s1 + $0x12b0] sm:$0xff]
    %v653 = vld [vmem:[%s1 + $0x12b8] sm:$0xff]
    %v654 = vld [vmem:[%s1 + $0x12c0] sm:$0xff]
    %v655 = vld [vmem:[%s1 + $0x12c8] sm:$0xff]
    %v656 = vld [vmem:[%s1 + $0x12d0] sm:$0xff]
    %v657 = vld [vmem:[%s1 + $0x12d8] sm:$0xff]
    %v658 = vld [vmem:[%s1 + $0x12e0] sm:$0xff]
    %v659 = vld [vmem:[%s1 + $0x12e8] sm:$0xff]
    %v660 = vld [vmem:[%s1 + $0x12f0] sm:$0xff]
    %v661 = vld [vmem:[%s1 + $0x12f8] sm:$0xff]
    %v662 = vld [vmem:[%s1 + $0x1300] sm:$0xff]
    %v663 = vld [vmem:[%s1 + $0x1308] sm:$0xff]
    %v664 = vld [vmem:[%s1 + $0x1310] sm:$0xff]
    %v665 = vld [vmem:[%s1 + $0x1318] sm:$0xff]
    %v666 = vld [vmem:[%s1 + $0x1320] sm:$0xff]
    %v667 = vld [vmem:[%s1 + $0x1328] sm:$0xff]
    %v668 = vld [vmem:[%s1 + $0x1330] sm:$0xff]
    %v669 = vld [vmem:[%s1 + $0x1338] sm:$0xff]
    %v670 = vld [vmem:[%s1 + $0x1340] sm:$0xff]
    %v671 = vld [vmem:[%s1 + $0x1348] sm:$0xff]
    %v672 = vld [vmem:[%s1 + $0x1350] sm:$0xff]
    %v673 = vld [vmem:[%s1 + $0x1358] sm:$0xff]
    %v674 = vld [vmem:[%s1 + $0x1360] sm:$0xff]
    %v675 = vld [vmem:[%s1 + $0x1368] sm:$0xff]
    %v676 = vld [vmem:[%s1 + $0x1370] sm:$0xff]
    %v677 = vld [vmem:[%s1 + $0x1378] sm:$0xff]
    %v678 = vld [vmem:[%s1 + $0x1380] sm:$0xff]
    %v679 = vld [vmem:[%s1 + $0x1388] sm:$0xff]
    %v680 = vld [vmem:[%s1 + $0x1390] sm:$0xff]
    %v681 = vld [vmem:[%s1 + $0x1398] sm:$0xff]
    %v682 = vld [vmem:[%s1 + $0x13a0] sm:$0xff]
    %v683 = vld [vmem:[%s1 + $0x13a8] sm:$0xff]
    %v684 = vld [vmem:[%s1 + $0x13b0] sm:$0xff]
    %v685 = vld [vmem:[%s1 + $0x13b8] sm:$0xff]
    %v686 = vld [vmem:[%s1 + $0x13c0] sm:$0xff]
    %v687 = vld [vmem:[%s1 + $0x13c8] sm:$0xff]
    %v688 = vld [vmem:[%s1 + $0x13d0] sm:$0xff]
    %v689 = vld [vmem:[%s1 + $0x13d8] sm:$0xff]
    %v690 = vld [vmem:[%s1 + $0x13e0] sm:$0xff]
    %v691 = vld [vmem:[%s1 + $0x13e8] sm:$0xff]
    %v692 = vld [vmem:[%s1 + $0x13f0] sm:$0xff]
    %v693 = vld [vmem:[%s1 + $0x13f8] sm:$0xff]
    %v694 = vld [vmem:[%s1 + $0x1400] sm:$0xff]
    %v695 = vld [vmem:[%s1 + $0x1408] sm:$0xff]
    %v696 = vld [vmem:[%s1 + $0x1410] sm:$0xff]
    %v697 = vld [vmem:[%s1 + $0x1418] sm:$0xff]
    %v698 = vld [vmem:[%s1 + $0x1420] sm:$0xff]
    %v699 = vld [vmem:[%s1 + $0x1428] sm:$0xff]
    %v700 = vld [vmem:[%s1 + $0x1430] sm:$0xff]
    %v701 = vld [vmem:[%s1 + $0x1438] sm:$0xff]
    %v702 = vld [vmem:[%s1 + $0x1440] sm:$0xff]
    %v703 = vld [vmem:[%s1 + $0x1448] sm:$0xff]
    %v704 = vld [vmem:[%s1 + $0x1450] sm:$0xff]
    %v705 = vld [vmem:[%s1 + $0x1458] sm:$0xff]
    %v706 = vld [vmem:[%s1 + $0x1460] sm:$0xff]
    %v707 = vld [vmem:[%s1 + $0x1468] sm:$0xff]
    %v708 = vld [vmem:[%s1 + $0x1470] sm:$0xff]
    %v709 = vld [vmem:[%s1 + $0x1478] sm:$0xff]
    %v710 = vld [vmem:[%s1 + $0x1480] sm:$0xff]
    %v711 = vld [vmem:[%s1 + $0x1488] sm:$0xff]
    %v712 = vld [vmem:[%s1 + $0x1490] sm:$0xff]
    %v713 = vld [vmem:[%s1 + $0x1498] sm:$0xff]
    %v714 = vld [vmem:[%s1 + $0x14a0] sm:$0xff]
    %v715 = vld [vmem:[%s1 + $0x14a8] sm:$0xff]
    %v716 = vld [vmem:[%s1 + $0x14b0] sm:$0xff]
    %v717 = vld [vmem:[%s1 + $0x14b8] sm:$0xff]
    %v718 = vld [vmem:[%s1 + $0x14c0] sm:$0xff]
    %v719 = vld [vmem:[%s1 + $0x14c8] sm:$0xff]
    %v720 = vld [vmem:[%s1 + $0x14d0] sm:$0xff]
    %v721 = vld [vmem:[%s1 + $0x14d8] sm:$0xff]
    %v722 = vld [vmem:[%s1 + $0x14e0] sm:$0xff]
    %v723 = vld [vmem:[%s1 + $0x14e8] sm:$0xff]
    %v724 = vld [vmem:[%s1 + $0x14f0] sm:$0xff]
    %v725 = vld [vmem:[%s1 + $0x14f8] sm:$0xff]
    %v726 = vld [vmem:[%s1 + $0x1500] sm:$0xff]
    %v727 = vld [vmem:[%s1 + $0x1508] sm:$0xff]
    %v728 = vld [vmem:[%s1 + $0x1510] sm:$0xff]
    %v729 = vld [vmem:[%s1 + $0x1518] sm:$0xff]
    %v730 = vld [vmem:[%s1 + $0x1520] sm:$0xff]
    %v731 = vld [vmem:[%s1 + $0x1528] sm:$0xff]
    %v732 = vld [vmem:[%s1 + $0x1530] sm:$0xff]
    %v733 = vld [vmem:[%s1 + $0x1538] sm:$0xff]
    %v734 = vld [vmem:[%s1 + $0x1540] sm:$0xff]
    %v735 = vld [vmem:[%s1 + $0x1548] sm:$0xff]
    %v736 = vld [vmem:[%s1 + $0x1550] sm:$0xff]
    %v737 = vld [vmem:[%s1 + $0x1558] sm:$0xff]
    %v738 = vld [vmem:[%s1 + $0x1560] sm:$0xff]
    %v739 = vld [vmem:[%s1 + $0x1568] sm:$0xff]
    %v740 = vld [vmem:[%s1 + $0x1570] sm:$0xff]
    %v741 = vld [vmem:[%s1 + $0x1578] sm:$0xff]
    %v742 = vld [vmem:[%s1 + $0x1580] sm:$0xff]
    %v743 = vld [vmem:[%s1 + $0x1588] sm:$0xff]
    %v744 = vld [vmem:[%s1 + $0x1590] sm:$0xff]
    %v745 = vld [vmem:[%s1 + $0x1598] sm:$0xff]
    %v746 = vld [vmem:[%s1 + $0x15a0] sm:$0xff]
    %v747 = vld [vmem:[%s1 + $0x15a8] sm:$0xff]
    %v748 = vld [vmem:[%s1 + $0x15b0] sm:$0xff]
    %v749 = vld [vmem:[%s1 + $0x15b8] sm:$0xff]
    %v750 = vld [vmem:[%s1 + $0x15c0] sm:$0xff]
    %v751 = vld [vmem:[%s1 + $0x15c8] sm:$0xff]
    %v752 = vld [vmem:[%s1 + $0x15d0] sm:$0xff]
    %v753 = vld [vmem:[%s1 + $0x15d8] sm:$0xff]
    %v754 = vld [vmem:[%s1 + $0x15e0] sm:$0xff]
    %v755 = vld [vmem:[%s1 + $0x15e8] sm:$0xff]
    %v756 = vld [vmem:[%s1 + $0x15f0] sm:$0xff]
    %v757 = vld [vmem:[%s1 + $0x15f8] sm:$0xff]
    %v758 = vld [vmem:[%s1 + $0x1600] sm:$0xff]
    %v759 = vld [vmem:[%s1 + $0x1608] sm:$0xff]
    %v760 = vld [vmem:[%s1 + $0x1610] sm:$0xff]
    %v761 = vld [vmem:[%s1 + $0x1618] sm:$0xff]
    %v762 = vld [vmem:[%s1 + $0x1620] sm:$0xff]
    %v763 = vld [vmem:[%s1 + $0x1628] sm:$0xff]
    %v764 = vld [vmem:[%s1 + $0x1630] sm:$0xff]
    %v765 = vld [vmem:[%s1 + $0x1638] sm:$0xff]
    %v766 = vld [vmem:[%s1 + $0x1640] sm:$0xff]
    %v767 = vld [vmem:[%s1 + $0x1648] sm:$0xff]
    %v768 = vld [vmem:[%s1 + $0x1650] sm:$0xff]
    %v769 = vld [vmem:[%s1 + $0x1658] sm:$0xff]
    %v770 = vld [vmem:[%s1 + $0x1660] sm:$0xff]
    %v771 = vld [vmem:[%s1 + $0x1668] sm:$0xff]
    %v772 = vld [vmem:[%s1 + $0x1670] sm:$0xff]
    %v773 = vld [vmem:[%s1 + $0x1678] sm:$0xff]
    %v774 = vld [vmem:[%s1 + $0x1680] sm:$0xff]
    %v775 = vld [vmem:[%s1 + $0x1688] sm:$0xff]
    %v776 = vld [vmem:[%s1 + $0x1690] sm:$0xff]
    %v777 = vld [vmem:[%s1 + $0x1698] sm:$0xff]
    %v778 = vld [vmem:[%s1 + $0x16a0] sm:$0xff]
    %v779 = vld [vmem:[%s1 + $0x16a8] sm:$0xff]
    %v780 = vld [vmem:[%s1 + $0x16b0] sm:$0xff]
    %v781 = vld [vmem:[%s1 + $0x16b8] sm:$0xff]
    %v782 = vld [vmem:[%s1 + $0x16c0] sm:$0xff]
    %v783 = vld [vmem:[%s1 + $0x16c8] sm:$0xff]
    %v784 = vld [vmem:[%s1 + $0x16d0] sm:$0xff]
    %v785 = vld [vmem:[%s1 + $0x16d8] sm:$0xff]
    %v786 = vld [vmem:[%s1 + $0x16e0] sm:$0xff]
    %v787 = vld [vmem:[%s1 + $0x16e8] sm:$0xff]
    %v788 = vld [vmem:[%s1 + $0x16f0] sm:$0xff]
    %v789 = vld [vmem:[%s1 + $0x16f8] sm:$0xff]
    %v790 = vld [vmem:[%s1 + $0x1700] sm:$0xff]
    %v791 = vld [vmem:[%s1 + $0x1708] sm:$0xff]
    %v792 = vld [vmem:[%s1 + $0x1710] sm:$0xff]
    %v793 = vld [vmem:[%s1 + $0x1718] sm:$0xff]
    %v794 = vld [vmem:[%s1 + $0x1720] sm:$0xff]
    %v795 = vld [vmem:[%s1 + $0x1728] sm:$0xff]
    %v796 = vld [vmem:[%s1 + $0x1730] sm:$0xff]
    %v797 = vld [vmem:[%s1 + $0x1738] sm:$0xff]
    %v798 = vld [vmem:[%s1 + $0x1740] sm:$0xff]
    %v799 = vld [vmem:[%s1 + $0x1748] sm:$0xff]
    %v800 = vld [vmem:[%s1 + $0x1750] sm:$0xff]
    %v801 = vld [vmem:[%s1 + $0x1758] sm:$0xff]
    %v802 = vld [vmem:[%s1 + $0x1760] sm:$0xff]
    %v803 = vld [vmem:[%s1 + $0x1768] sm:$0xff]
    %v804 = vld [vmem:[%s1 + $0x1770] sm:$0xff]
    %v805 = vld [vmem:[%s1 + $0x1778] sm:$0xff]
    %v806 = vld [vmem:[%s1 + $0x1780] sm:$0xff]
    %v807 = vld [vmem:[%s1 + $0x1788] sm:$0xff]
    %v808 = vld [vmem:[%s1 + $0x1790] sm:$0xff]
    %v809 = vld [vmem:[%s1 + $0x1798] sm:$0xff]
    %v810 = vld [vmem:[%s1 + $0x17a0] sm:$0xff]
    %v811 = vld [vmem:[%s1 + $0x17a8] sm:$0xff]
    %v812 = vld [vmem:[%s1 + $0x17b0] sm:$0xff]
    %v813 = vld [vmem:[%s1 + $0x17b8] sm:$0xff]
    %v814 = vld [vmem:[%s1 + $0x17c0] sm:$0xff]
    %v815 = vld [vmem:[%s1 + $0x17c8] sm:$0xff]
    %v816 = vld [vmem:[%s1 + $0x17d0] sm:$0xff]
    %v817 = vld [vmem:[%s1 + $0x17d8] sm:$0xff]
    %v818 = vld [vmem:[%s1 + $0x17e0] sm:$0xff]
    %v819 = vld [vmem:[%s1 + $0x17e8] sm:$0xff]
    %v820 = vld [vmem:[%s1 + $0x17f0] sm:$0xff]
    %v821 = vld [vmem:[%s1 + $0x17f8] sm:$0xff]
    %v822 = vld [vmem:[%s1 + $0x1800] sm:$0xff]
    %v823 = vld [vmem:[%s1 + $0x1808] sm:$0xff]
    %v824 = vld [vmem:[%s1 + $0x1810] sm:$0xff]
    %v825 = vld [vmem:[%s1 + $0x1818] sm:$0xff]
    %v826 = vld [vmem:[%s1 + $0x1820] sm:$0xff]
    %v827 = vld [vmem:[%s1 + $0x1828] sm:$0xff]
    %v828 = vld [vmem:[%s1 + $0x1830] sm:$0xff]
    %v829 = vld [vmem:[%s1 + $0x1838] sm:$0xff]
    %v830 = vld [vmem:[%s1 + $0x1840] sm:$0xff]
    %v831 = vld [vmem:[%s1 + $0x1848] sm:$0xff]
    %v832 = vld [vmem:[%s1 + $0x1850] sm:$0xff]
    %v833 = vld [vmem:[%s1 + $0x1858] sm:$0xff]
    %v834 = vld [vmem:[%s1 + $0x1860] sm:$0xff]
    %v835 = vld [vmem:[%s1 + $0x1868] sm:$0xff]
    %v836 = vld [vmem:[%s1 + $0x1870] sm:$0xff]
    %v837 = vld [vmem:[%s1 + $0x1878] sm:$0xff]
    %v838 = vld [vmem:[%s2] sm:$0xf]
    %v840 = vlaneseq
    %v841 = vshrl.u32 %v840, 7
    %v842 = vsub.s32 0, %v841
    %v843 = vrot.slane %v838, %v842
    %v844 = vlaneseq
    %v845 = vshrl.u32 %v844, 7
    %v846 = vsub.s32 1, %v845
    %v847 = vrot.slane %v838, %v846
    %v848 = vlaneseq
    %v849 = vshrl.u32 %v848, 7
    %v850 = vsub.s32 2, %v849
    %v851 = vrot.slane %v838, %v850
    %v852 = vlaneseq
    %v853 = vshrl.u32 %v852, 7
    %v854 = vsub.s32 3, %v853
    %v855 = vrot.slane %v838, %v854
    %v892 = vcombine.low %v22, %v26
    %v893 = vcombine.high %v22, %v26
    %v894 = vcombine.low %v30, %v34
    %v895 = vcombine.high %v30, %v34
    %v896 = vcombine.low %v38, %v42
    %v897 = vcombine.high %v38, %v42
    %v898 = vcombine.low %v46, %v50
    %v899 = vcombine.high %v46, %v50
    %v901 = vunpack.c.l.s4 1966171168
    %v902 = vunpack.c.0.s8 %v901
    %v903 = vlaneseq
    %v904 = vshrl.u32 %v903, 7
    %v905 = vsub.s32 %v902, %v904
    %v906 = vrot.slane %v892, %v905
    %v908 = vunpack.c.l.s4 1966171168
    %v909 = vunpack.c.0.s8 %v908
    %v910 = vlaneseq
    %v911 = vshrl.u32 %v910, 7
    %v912 = vsub.s32 %v909, %v911
    %v913 = vrot.slane %v893, %v912
    %v915 = vunpack.c.l.s4 1966171168
    %v916 = vunpack.c.0.s8 %v915
    %v917 = vlaneseq
    %v918 = vshrl.u32 %v917, 7
    %v919 = vsub.s32 %v916, %v918
    %v920 = vrot.slane %v894, %v919
    %v922 = vunpack.c.l.s4 1966171168
    %v923 = vunpack.c.0.s8 %v922
    %v924 = vlaneseq
    %v925 = vshrl.u32 %v924, 7
    %v926 = vsub.s32 %v923, %v925
    %v927 = vrot.slane %v895, %v926
    %v929 = vunpack.c.l.s4 1966171168
    %v930 = vunpack.c.0.s8 %v929
    %v931 = vlaneseq
    %v932 = vshrl.u32 %v931, 7
    %v933 = vsub.s32 %v930, %v932
    %v934 = vrot.slane %v896, %v933
    %v936 = vunpack.c.l.s4 1966171168
    %v937 = vunpack.c.0.s8 %v936
    %v938 = vlaneseq
    %v939 = vshrl.u32 %v938, 7
    %v940 = vsub.s32 %v937, %v939
    %v941 = vrot.slane %v897, %v940
    %v943 = vunpack.c.l.s4 1966171168
    %v944 = vunpack.c.0.s8 %v943
    %v945 = vlaneseq
    %v946 = vshrl.u32 %v945, 7
    %v947 = vsub.s32 %v944, %v946
    %v948 = vrot.slane %v898, %v947
    %v950 = vunpack.c.l.s4 1966171168
    %v951 = vunpack.c.0.s8 %v950
    %v952 = vlaneseq
    %v953 = vshrl.u32 %v952, 7
    %v954 = vsub.s32 %v951, %v953
    %v955 = vrot.slane %v899, %v954
    %v956 = vcombine.low %v906, %v920
    %v957 = vcombine.high %v906, %v920
    %v958 = vcombine.low %v913, %v927
    %v959 = vcombine.high %v913, %v927
    %v960 = vcombine.low %v934, %v948
    %v961 = vcombine.high %v934, %v948
    %v962 = vcombine.low %v941, %v955
    %v963 = vcombine.high %v941, %v955
    %v965 = vunpack.c.l.s4 1966171168
    %v966 = vunpack.c.0.s8 %v965
    %v967 = vlaneseq
    %v968 = vshrl.u32 %v967, 7
    %v969 = vsub.s32 %v966, %v968
    %v970 = vrot.slane %v956, %v969
    %v972 = vunpack.c.l.s4 1966171168
    %v973 = vunpack.c.0.s8 %v972
    %v974 = vlaneseq
    %v975 = vshrl.u32 %v974, 7
    %v976 = vsub.s32 %v973, %v975
    %v977 = vrot.slane %v958, %v976
    %v979 = vunpack.c.l.s4 1966171168
    %v980 = vunpack.c.0.s8 %v979
    %v981 = vlaneseq
    %v982 = vshrl.u32 %v981, 7
    %v983 = vsub.s32 %v980, %v982
    %v984 = vrot.slane %v957, %v983
    %v986 = vunpack.c.l.s4 1966171168
    %v987 = vunpack.c.0.s8 %v986
    %v988 = vlaneseq
    %v989 = vshrl.u32 %v988, 7
    %v990 = vsub.s32 %v987, %v989
    %v991 = vrot.slane %v959, %v990
    %v993 = vunpack.c.l.s4 1966171168
    %v994 = vunpack.c.0.s8 %v993
    %v995 = vlaneseq
    %v996 = vshrl.u32 %v995, 7
    %v997 = vsub.s32 %v994, %v996
    %v998 = vrot.slane %v960, %v997
    %v1000 = vunpack.c.l.s4 1966171168
    %v1001 = vunpack.c.0.s8 %v1000
    %v1002 = vlaneseq
    %v1003 = vshrl.u32 %v1002, 7
    %v1004 = vsub.s32 %v1001, %v1003
    %v1005 = vrot.slane %v962, %v1004
    %v1007 = vunpack.c.l.s4 1966171168
    %v1008 = vunpack.c.0.s8 %v1007
    %v1009 = vlaneseq
    %v1010 = vshrl.u32 %v1009, 7
    %v1011 = vsub.s32 %v1008, %v1010
    %v1012 = vrot.slane %v961, %v1011
    %v1014 = vunpack.c.l.s4 1966171168
    %v1015 = vunpack.c.0.s8 %v1014
    %v1016 = vlaneseq
    %v1017 = vshrl.u32 %v1016, 7
    %v1018 = vsub.s32 %v1015, %v1017
    %v1019 = vrot.slane %v963, %v1018
    %v1020 = vcombine.low %v970, %v998
    %v1021 = vcombine.high %v970, %v998
    %v1022 = vcombine.low %v977, %v1005
    %v1023 = vcombine.high %v977, %v1005
    %v1024 = vcombine.low %v984, %v1012
    %v1025 = vcombine.high %v984, %v1012
    %v1026 = vcombine.low %v991, %v1019
    %v1027 = vcombine.high %v991, %v1019
    %v1028 = vcombine.low %v23, %v27
    %v1029 = vcombine.high %v23, %v27
    %v1030 = vcombine.low %v31, %v35
    %v1031 = vcombine.high %v31, %v35
    %v1032 = vcombine.low %v39, %v43
    %v1033 = vcombine.high %v39, %v43
    %v1034 = vcombine.low %v47, %v51
    %v1035 = vcombine.high %v47, %v51
    %v1037 = vunpack.c.l.s4 1966171168
    %v1038 = vunpack.c.0.s8 %v1037
    %v1039 = vlaneseq
    %v1040 = vshrl.u32 %v1039, 7
    %v1041 = vsub.s32 %v1038, %v1040
    %v1042 = vrot.slane %v1028, %v1041
    %v1044 = vunpack.c.l.s4 1966171168
    %v1045 = vunpack.c.0.s8 %v1044
    %v1046 = vlaneseq
    %v1047 = vshrl.u32 %v1046, 7
    %v1048 = vsub.s32 %v1045, %v1047
    %v1049 = vrot.slane %v1029, %v1048
    %v1051 = vunpack.c.l.s4 1966171168
    %v1052 = vunpack.c.0.s8 %v1051
    %v1053 = vlaneseq
    %v1054 = vshrl.u32 %v1053, 7
    %v1055 = vsub.s32 %v1052, %v1054
    %v1056 = vrot.slane %v1030, %v1055
    %v1058 = vunpack.c.l.s4 1966171168
    %v1059 = vunpack.c.0.s8 %v1058
    %v1060 = vlaneseq
    %v1061 = vshrl.u32 %v1060, 7
    %v1062 = vsub.s32 %v1059, %v1061
    %v1063 = vrot.slane %v1031, %v1062
    %v1065 = vunpack.c.l.s4 1966171168
    %v1066 = vunpack.c.0.s8 %v1065
    %v1067 = vlaneseq
    %v1068 = vshrl.u32 %v1067, 7
    %v1069 = vsub.s32 %v1066, %v1068
    %v1070 = vrot.slane %v1032, %v1069
    %v1072 = vunpack.c.l.s4 1966171168
    %v1073 = vunpack.c.0.s8 %v1072
    %v1074 = vlaneseq
    %v1075 = vshrl.u32 %v1074, 7
    %v1076 = vsub.s32 %v1073, %v1075
    %v1077 = vrot.slane %v1033, %v1076
    %v1079 = vunpack.c.l.s4 1966171168
    %v1080 = vunpack.c.0.s8 %v1079
    %v1081 = vlaneseq
    %v1082 = vshrl.u32 %v1081, 7
    %v1083 = vsub.s32 %v1080, %v1082
    %v1084 = vrot.slane %v1034, %v1083
    %v1086 = vunpack.c.l.s4 1966171168
    %v1087 = vunpack.c.0.s8 %v1086
    %v1088 = vlaneseq
    %v1089 = vshrl.u32 %v1088, 7
    %v1090 = vsub.s32 %v1087, %v1089
    %v1091 = vrot.slane %v1035, %v1090
    %v1092 = vcombine.low %v1042, %v1056
    %v1093 = vcombine.high %v1042, %v1056
    %v1094 = vcombine.low %v1049, %v1063
    %v1095 = vcombine.high %v1049, %v1063
    %v1096 = vcombine.low %v1070, %v1084
    %v1097 = vcombine.high %v1070, %v1084
    %v1098 = vcombine.low %v1077, %v1091
    %v1099 = vcombine.high %v1077, %v1091
    %v1101 = vunpack.c.l.s4 1966171168
    %v1102 = vunpack.c.0.s8 %v1101
    %v1103 = vlaneseq
    %v1104 = vshrl.u32 %v1103, 7
    %v1105 = vsub.s32 %v1102, %v1104
    %v1106 = vrot.slane %v1092, %v1105
    %v1108 = vunpack.c.l.s4 1966171168
    %v1109 = vunpack.c.0.s8 %v1108
    %v1110 = vlaneseq
    %v1111 = vshrl.u32 %v1110, 7
    %v1112 = vsub.s32 %v1109, %v1111
    %v1113 = vrot.slane %v1094, %v1112
    %v1115 = vunpack.c.l.s4 1966171168
    %v1116 = vunpack.c.0.s8 %v1115
    %v1117 = vlaneseq
    %v1118 = vshrl.u32 %v1117, 7
    %v1119 = vsub.s32 %v1116, %v1118
    %v1120 = vrot.slane %v1093, %v1119
    %v1122 = vunpack.c.l.s4 1966171168
    %v1123 = vunpack.c.0.s8 %v1122
    %v1124 = vlaneseq
    %v1125 = vshrl.u32 %v1124, 7
    %v1126 = vsub.s32 %v1123, %v1125
    %v1127 = vrot.slane %v1095, %v1126
    %v1129 = vunpack.c.l.s4 1966171168
    %v1130 = vunpack.c.0.s8 %v1129
    %v1131 = vlaneseq
    %v1132 = vshrl.u32 %v1131, 7
    %v1133 = vsub.s32 %v1130, %v1132
    %v1134 = vrot.slane %v1096, %v1133
    %v1136 = vunpack.c.l.s4 1966171168
    %v1137 = vunpack.c.0.s8 %v1136
    %v1138 = vlaneseq
    %v1139 = vshrl.u32 %v1138, 7
    %v1140 = vsub.s32 %v1137, %v1139
    %v1141 = vrot.slane %v1098, %v1140
    %v1143 = vunpack.c.l.s4 1966171168
    %v1144 = vunpack.c.0.s8 %v1143
    %v1145 = vlaneseq
    %v1146 = vshrl.u32 %v1145, 7
    %v1147 = vsub.s32 %v1144, %v1146
    %v1148 = vrot.slane %v1097, %v1147
    %v1150 = vunpack.c.l.s4 1966171168
    %v1151 = vunpack.c.0.s8 %v1150
    %v1152 = vlaneseq
    %v1153 = vshrl.u32 %v1152, 7
    %v1154 = vsub.s32 %v1151, %v1153
    %v1155 = vrot.slane %v1099, %v1154
    %v1156 = vcombine.low %v1106, %v1134
    %v1157 = vcombine.high %v1106, %v1134
    %v1158 = vcombine.low %v1113, %v1141
    %v1159 = vcombine.high %v1113, %v1141
    %v1160 = vcombine.low %v1120, %v1148
    %v1161 = vcombine.high %v1120, %v1148
    %v1162 = vcombine.low %v1127, %v1155
    %v1163 = vcombine.high %v1127, %v1155
    %v1164 = vcombine.low %v24, %v28
    %v1165 = vcombine.high %v24, %v28
    %v1166 = vcombine.low %v32, %v36
    %v1167 = vcombine.high %v32, %v36
    %v1168 = vcombine.low %v40, %v44
    %v1169 = vcombine.high %v40, %v44
    %v1170 = vcombine.low %v48, %v52
    %v1171 = vcombine.high %v48, %v52
    %v1173 = vunpack.c.l.s4 1966171168
    %v1174 = vunpack.c.0.s8 %v1173
    %v1175 = vlaneseq
    %v1176 = vshrl.u32 %v1175, 7
    %v1177 = vsub.s32 %v1174, %v1176
    %v1178 = vrot.slane %v1164, %v1177
    %v1180 = vunpack.c.l.s4 1966171168
    %v1181 = vunpack.c.0.s8 %v1180
    %v1182 = vlaneseq
    %v1183 = vshrl.u32 %v1182, 7
    %v1184 = vsub.s32 %v1181, %v1183
    %v1185 = vrot.slane %v1165, %v1184
    %v1187 = vunpack.c.l.s4 1966171168
    %v1188 = vunpack.c.0.s8 %v1187
    %v1189 = vlaneseq
    %v1190 = vshrl.u32 %v1189, 7
    %v1191 = vsub.s32 %v1188, %v1190
    %v1192 = vrot.slane %v1166, %v1191
    %v1194 = vunpack.c.l.s4 1966171168
    %v1195 = vunpack.c.0.s8 %v1194
    %v1196 = vlaneseq
    %v1197 = vshrl.u32 %v1196, 7
    %v1198 = vsub.s32 %v1195, %v1197
    %v1199 = vrot.slane %v1167, %v1198
    %v1201 = vunpack.c.l.s4 1966171168
    %v1202 = vunpack.c.0.s8 %v1201
    %v1203 = vlaneseq
    %v1204 = vshrl.u32 %v1203, 7
    %v1205 = vsub.s32 %v1202, %v1204
    %v1206 = vrot.slane %v1168, %v1205
    %v1208 = vunpack.c.l.s4 1966171168
    %v1209 = vunpack.c.0.s8 %v1208
    %v1210 = vlaneseq
    %v1211 = vshrl.u32 %v1210, 7
    %v1212 = vsub.s32 %v1209, %v1211
    %v1213 = vrot.slane %v1169, %v1212
    %v1215 = vunpack.c.l.s4 1966171168
    %v1216 = vunpack.c.0.s8 %v1215
    %v1217 = vlaneseq
    %v1218 = vshrl.u32 %v1217, 7
    %v1219 = vsub.s32 %v1216, %v1218
    %v1220 = vrot.slane %v1170, %v1219
    %v1222 = vunpack.c.l.s4 1966171168
    %v1223 = vunpack.c.0.s8 %v1222
    %v1224 = vlaneseq
    %v1225 = vshrl.u32 %v1224, 7
    %v1226 = vsub.s32 %v1223, %v1225
    %v1227 = vrot.slane %v1171, %v1226
    %v1228 = vcombine.low %v1178, %v1192
    %v1229 = vcombine.high %v1178, %v1192
    %v1230 = vcombine.low %v1185, %v1199
    %v1231 = vcombine.high %v1185, %v1199
    %v1232 = vcombine.low %v1206, %v1220
    %v1233 = vcombine.high %v1206, %v1220
    %v1234 = vcombine.low %v1213, %v1227
    %v1235 = vcombine.high %v1213, %v1227
    %v1237 = vunpack.c.l.s4 1966171168
    %v1238 = vunpack.c.0.s8 %v1237
    %v1239 = vlaneseq
    %v1240 = vshrl.u32 %v1239, 7
    %v1241 = vsub.s32 %v1238, %v1240
    %v1242 = vrot.slane %v1228, %v1241
    %v1244 = vunpack.c.l.s4 1966171168
    %v1245 = vunpack.c.0.s8 %v1244
    %v1246 = vlaneseq
    %v1247 = vshrl.u32 %v1246, 7
    %v1248 = vsub.s32 %v1245, %v1247
    %v1249 = vrot.slane %v1230, %v1248
    %v1251 = vunpack.c.l.s4 1966171168
    %v1252 = vunpack.c.0.s8 %v1251
    %v1253 = vlaneseq
    %v1254 = vshrl.u32 %v1253, 7
    %v1255 = vsub.s32 %v1252, %v1254
    %v1256 = vrot.slane %v1229, %v1255
    %v1258 = vunpack.c.l.s4 1966171168
    %v1259 = vunpack.c.0.s8 %v1258
    %v1260 = vlaneseq
    %v1261 = vshrl.u32 %v1260, 7
    %v1262 = vsub.s32 %v1259, %v1261
    %v1263 = vrot.slane %v1231, %v1262
    %v1265 = vunpack.c.l.s4 1966171168
    %v1266 = vunpack.c.0.s8 %v1265
    %v1267 = vlaneseq
    %v1268 = vshrl.u32 %v1267, 7
    %v1269 = vsub.s32 %v1266, %v1268
    %v1270 = vrot.slane %v1232, %v1269
    %v1272 = vunpack.c.l.s4 1966171168
    %v1273 = vunpack.c.0.s8 %v1272
    %v1274 = vlaneseq
    %v1275 = vshrl.u32 %v1274, 7
    %v1276 = vsub.s32 %v1273, %v1275
    %v1277 = vrot.slane %v1234, %v1276
    %v1279 = vunpack.c.l.s4 1966171168
    %v1280 = vunpack.c.0.s8 %v1279
    %v1281 = vlaneseq
    %v1282 = vshrl.u32 %v1281, 7
    %v1283 = vsub.s32 %v1280, %v1282
    %v1284 = vrot.slane %v1233, %v1283
    %v1286 = vunpack.c.l.s4 1966171168
    %v1287 = vunpack.c.0.s8 %v1286
    %v1288 = vlaneseq
    %v1289 = vshrl.u32 %v1288, 7
    %v1290 = vsub.s32 %v1287, %v1289
    %v1291 = vrot.slane %v1235, %v1290
    %v1292 = vcombine.low %v1242, %v1270
    %v1293 = vcombine.high %v1242, %v1270
    %v1294 = vcombine.low %v1249, %v1277
    %v1295 = vcombine.high %v1249, %v1277
    %v1296 = vcombine.low %v1256, %v1284
    %v1297 = vcombine.high %v1256, %v1284
    %v1298 = vcombine.low %v1263, %v1291
    %v1299 = vcombine.high %v1263, %v1291
    %v1300 = vcombine.low %v25, %v29
    %v1301 = vcombine.low %v33, %v37
    %v1302 = vcombine.low %v41, %v45
    %v1303 = vcombine.low %v49, %v53
    %v1305 = vunpack.c.l.s4 1966171168
    %v1306 = vunpack.c.0.s8 %v1305
    %v1307 = vlaneseq
    %v1308 = vshrl.u32 %v1307, 7
    %v1309 = vsub.s32 %v1306, %v1308
    %v1310 = vrot.slane %v1300, %v1309
    %v1312 = vunpack.c.l.s4 1966171168
    %v1313 = vunpack.c.0.s8 %v1312
    %v1314 = vlaneseq
    %v1315 = vshrl.u32 %v1314, 7
    %v1316 = vsub.s32 %v1313, %v1315
    %v1317 = vrot.slane %v1301, %v1316
    %v1319 = vunpack.c.l.s4 1966171168
    %v1320 = vunpack.c.0.s8 %v1319
    %v1321 = vlaneseq
    %v1322 = vshrl.u32 %v1321, 7
    %v1323 = vsub.s32 %v1320, %v1322
    %v1324 = vrot.slane %v1302, %v1323
    %v1326 = vunpack.c.l.s4 1966171168
    %v1327 = vunpack.c.0.s8 %v1326
    %v1328 = vlaneseq
    %v1329 = vshrl.u32 %v1328, 7
    %v1330 = vsub.s32 %v1327, %v1329
    %v1331 = vrot.slane %v1303, %v1330
    %v1332 = vcombine.low %v1310, %v1317
    %v1333 = vcombine.low %v1324, %v1331
    %v1335 = vunpack.c.l.s4 1966171168
    %v1336 = vunpack.c.0.s8 %v1335
    %v1337 = vlaneseq
    %v1338 = vshrl.u32 %v1337, 7
    %v1339 = vsub.s32 %v1336, %v1338
    %v1340 = vrot.slane %v1332, %v1339
    %v1342 = vunpack.c.l.s4 1966171168
    %v1343 = vunpack.c.0.s8 %v1342
    %v1344 = vlaneseq
    %v1345 = vshrl.u32 %v1344, 7
    %v1346 = vsub.s32 %v1343, %v1345
    %v1347 = vrot.slane %v1333, %v1346
    %v1348 = vcombine.low %v1340, %v1347
    %v2157 = vunpack.c.l.b16 %v54
    %v2158 = vunpack.c.h.b16 %v54
    %v2159 = vunpack.c.l.b16 %v55
    %v2160 = vunpack.c.h.b16 %v55
    %v2161 = vunpack.c.l.b16 %v56
    %v2162 = vunpack.c.h.b16 %v56
    %v2163 = vunpack.c.l.b16 %v57
    %v2164 = vunpack.c.h.b16 %v57
    %v2165 = vunpack.c.l.b16 %v58
    %v2166 = vunpack.c.h.b16 %v58
    %v2167 = vunpack.c.l.b16 %v59
    %v2168 = vunpack.c.h.b16 %v59
    %v2169 = vunpack.c.l.b16 %v60
    %v2170 = vunpack.c.h.b16 %v60
    %v2171 = vunpack.c.l.b16 %v61
    %v2172 = vunpack.c.h.b16 %v61
    %v2173 = vunpack.c.l.b16 %v62
    %v2174 = vunpack.c.h.b16 %v62
    %v2175 = vunpack.c.l.b16 %v63
    %v2176 = vunpack.c.h.b16 %v63
    %v2177 = vunpack.c.l.b16 %v64
    %v2178 = vunpack.c.h.b16 %v64
    %v2179 = vunpack.c.l.b16 %v65
    %v2180 = vunpack.c.h.b16 %v65
    %v2181 = vunpack.c.l.b16 %v66
    %v2182 = vunpack.c.h.b16 %v66
    %v2183 = vunpack.c.l.b16 %v67
    %v2184 = vunpack.c.h.b16 %v67
    %v2185 = vunpack.c.l.b16 %v68
    %v2186 = vunpack.c.h.b16 %v68
    %v2187 = vunpack.c.l.b16 %v69
    %v2188 = vunpack.c.h.b16 %v69
    %v2189 = vunpack.c.l.b16 %v70
    %v2190 = vunpack.c.h.b16 %v70
    %v2191 = vunpack.c.l.b16 %v71
    %v2192 = vunpack.c.h.b16 %v71
    %v2193 = vunpack.c.l.b16 %v72
    %v2194 = vunpack.c.h.b16 %v72
    %v2195 = vunpack.c.l.b16 %v73
    %v2196 = vunpack.c.h.b16 %v73
    %v2197 = vunpack.c.l.b16 %v74
    %v2198 = vunpack.c.h.b16 %v74
    %v2199 = vunpack.c.l.b16 %v75
    %v2200 = vunpack.c.h.b16 %v75
    %v2201 = vunpack.c.l.b16 %v76
    %v2202 = vunpack.c.h.b16 %v76
    %v2203 = vunpack.c.l.b16 %v77
    %v2204 = vunpack.c.h.b16 %v77
    %v2205 = vunpack.c.l.b16 %v78
    %v2206 = vunpack.c.h.b16 %v78
    %v2207 = vunpack.c.l.b16 %v79
    %v2208 = vunpack.c.h.b16 %v79
    %v2209 = vunpack.c.l.b16 %v80
    %v2210 = vunpack.c.h.b16 %v80
    %v2211 = vunpack.c.l.b16 %v81
    %v2212 = vunpack.c.h.b16 %v81
    %v2213 = vunpack.c.l.b16 %v82
    %v2214 = vunpack.c.h.b16 %v82
    %v2215 = vunpack.c.l.b16 %v83
    %v2216 = vunpack.c.h.b16 %v83
    %v2217 = vunpack.c.l.b16 %v84
    %v2218 = vunpack.c.h.b16 %v84
    %v2219 = vunpack.c.l.b16 %v85
    %v2220 = vunpack.c.h.b16 %v85
    %v2221 = vunpack.c.l.b16 %v86
    %v2222 = vunpack.c.h.b16 %v86
    %v2223 = vunpack.c.l.b16 %v87
    %v2224 = vunpack.c.h.b16 %v87
    %v2225 = vunpack.c.l.b16 %v88
    %v2226 = vunpack.c.h.b16 %v88
    %v2227 = vunpack.c.l.b16 %v89
    %v2228 = vunpack.c.h.b16 %v89
    %v2229 = vunpack.c.l.b16 %v90
    %v2230 = vunpack.c.h.b16 %v90
    %v2231 = vunpack.c.l.b16 %v91
    %v2232 = vunpack.c.h.b16 %v91
    %v2233 = vunpack.c.l.b16 %v92
    %v2234 = vunpack.c.h.b16 %v92
    %v2235 = vunpack.c.l.b16 %v93
    %v2236 = vunpack.c.h.b16 %v93
    %v2237 = vunpack.c.l.b16 %v94
    %v2238 = vunpack.c.h.b16 %v94
    %v2239 = vunpack.c.l.b16 %v95
    %v2240 = vunpack.c.h.b16 %v95
    %v2241 = vunpack.c.l.b16 %v96
    %v2242 = vunpack.c.h.b16 %v96
    %v2243 = vunpack.c.l.b16 %v97
    %v2244 = vunpack.c.h.b16 %v97
    %v2245 = vunpack.c.l.b16 %v98
    %v2246 = vunpack.c.h.b16 %v98
    %v2247 = vunpack.c.l.b16 %v99
    %v2248 = vunpack.c.h.b16 %v99
    %v2249 = vunpack.c.l.b16 %v100
    %v2250 = vunpack.c.h.b16 %v100
    %v2251 = vunpack.c.l.b16 %v101
    %v2252 = vunpack.c.h.b16 %v101
    %v2253 = vunpack.c.l.b16 %v102
    %v2254 = vunpack.c.h.b16 %v102
    %v2255 = vunpack.c.l.b16 %v103
    %v2256 = vunpack.c.h.b16 %v103
    %v2257 = vunpack.c.l.b16 %v104
    %v2258 = vunpack.c.h.b16 %v104
    %v2259 = vunpack.c.l.b16 %v105
    %v2260 = vunpack.c.h.b16 %v105
    %v2261 = vunpack.c.l.b16 %v106
    %v2262 = vunpack.c.h.b16 %v106
    %v2263 = vunpack.c.l.b16 %v107
    %v2264 = vunpack.c.h.b16 %v107
    %v2265 = vunpack.c.l.b16 %v108
    %v2266 = vunpack.c.h.b16 %v108
    %v2267 = vunpack.c.l.b16 %v109
    %v2268 = vunpack.c.h.b16 %v109
    %v2269 = vunpack.c.l.b16 %v110
    %v2270 = vunpack.c.h.b16 %v110
    %v2271 = vunpack.c.l.b16 %v111
    %v2272 = vunpack.c.h.b16 %v111
    %v2273 = vunpack.c.l.b16 %v112
    %v2274 = vunpack.c.h.b16 %v112
    %v2275 = vunpack.c.l.b16 %v113
    %v2276 = vunpack.c.h.b16 %v113
    %v2277 = vunpack.c.l.b16 %v114
    %v2278 = vunpack.c.h.b16 %v114
    %v2279 = vunpack.c.l.b16 %v115
    %v2280 = vunpack.c.h.b16 %v115
    %v2281 = vunpack.c.l.b16 %v116
    %v2282 = vunpack.c.h.b16 %v116
    %v2283 = vunpack.c.l.b16 %v117
    %v2284 = vunpack.c.h.b16 %v117
    %v2285 = vunpack.c.l.b16 %v118
    %v2286 = vunpack.c.h.b16 %v118
    %v2287 = vunpack.c.l.b16 %v119
    %v2288 = vunpack.c.h.b16 %v119
    %v2289 = vunpack.c.l.b16 %v120
    %v2290 = vunpack.c.h.b16 %v120
    %v2291 = vunpack.c.l.b16 %v121
    %v2292 = vunpack.c.h.b16 %v121
    %v2293 = vunpack.c.l.b16 %v122
    %v2294 = vunpack.c.h.b16 %v122
    %v2295 = vunpack.c.l.b16 %v123
    %v2296 = vunpack.c.h.b16 %v123
    %v2297 = vunpack.c.l.b16 %v124
    %v2298 = vunpack.c.h.b16 %v124
    %v2299 = vunpack.c.l.b16 %v125
    %v2300 = vunpack.c.h.b16 %v125
    %v2301 = vunpack.c.l.b16 %v126
    %v2302 = vunpack.c.h.b16 %v126
    %v2303 = vunpack.c.l.b16 %v127
    %v2304 = vunpack.c.h.b16 %v127
    %v2305 = vunpack.c.l.b16 %v128
    %v2306 = vunpack.c.h.b16 %v128
    %v2307 = vunpack.c.l.b16 %v129
    %v2308 = vunpack.c.h.b16 %v129
    %v2309 = vunpack.c.l.b16 %v130
    %v2310 = vunpack.c.h.b16 %v130
    %v2311 = vunpack.c.l.b16 %v131
    %v2312 = vunpack.c.h.b16 %v131
    %v2313 = vunpack.c.l.b16 %v132
    %v2314 = vunpack.c.h.b16 %v132
    %v2315 = vunpack.c.l.b16 %v133
    %v2316 = vunpack.c.h.b16 %v133
    %v2317 = vunpack.c.l.b16 %v134
    %v2318 = vunpack.c.h.b16 %v134
    %v2319 = vunpack.c.l.b16 %v135
    %v2320 = vunpack.c.h.b16 %v135
    %v2321 = vunpack.c.l.b16 %v136
    %v2322 = vunpack.c.h.b16 %v136
    %v2323 = vunpack.c.l.b16 %v137
    %v2324 = vunpack.c.h.b16 %v137
    %v2325 = vunpack.c.l.b16 %v138
    %v2326 = vunpack.c.h.b16 %v138
    %v2327 = vunpack.c.l.b16 %v139
    %v2328 = vunpack.c.h.b16 %v139
    %v2329 = vunpack.c.l.b16 %v140
    %v2330 = vunpack.c.h.b16 %v140
    %v2331 = vunpack.c.l.b16 %v141
    %v2332 = vunpack.c.h.b16 %v141
    %v2333 = vunpack.c.l.b16 %v142
    %v2334 = vunpack.c.h.b16 %v142
    %v2335 = vunpack.c.l.b16 %v143
    %v2336 = vunpack.c.h.b16 %v143
    %v2337 = vunpack.c.l.b16 %v144
    %v2338 = vunpack.c.h.b16 %v144
    %v2339 = vunpack.c.l.b16 %v145
    %v2340 = vunpack.c.h.b16 %v145
    %v2341 = vunpack.c.l.b16 %v146
    %v2342 = vunpack.c.h.b16 %v146
    %v2343 = vunpack.c.l.b16 %v147
    %v2344 = vunpack.c.h.b16 %v147
    %v2345 = vunpack.c.l.b16 %v148
    %v2346 = vunpack.c.h.b16 %v148
    %v2347 = vunpack.c.l.b16 %v149
    %v2348 = vunpack.c.h.b16 %v149
    %v2349 = vunpack.c.l.b16 %v150
    %v2350 = vunpack.c.h.b16 %v150
    %v2351 = vunpack.c.l.b16 %v151
    %v2352 = vunpack.c.h.b16 %v151
    %v2353 = vunpack.c.l.b16 %v152
    %v2354 = vunpack.c.h.b16 %v152
    %v2355 = vunpack.c.l.b16 %v153
    %v2356 = vunpack.c.h.b16 %v153
    %v2357 = vunpack.c.l.b16 %v154
    %v2358 = vunpack.c.h.b16 %v154
    %v2359 = vunpack.c.l.b16 %v155
    %v2360 = vunpack.c.h.b16 %v155
    %v2361 = vunpack.c.l.b16 %v156
    %v2362 = vunpack.c.h.b16 %v156
    %v2363 = vunpack.c.l.b16 %v157
    %v2364 = vunpack.c.h.b16 %v157
    %v2365 = vunpack.c.l.b16 %v158
    %v2366 = vunpack.c.h.b16 %v158
    %v2367 = vunpack.c.l.b16 %v159
    %v2368 = vunpack.c.h.b16 %v159
    %v2369 = vunpack.c.l.b16 %v160
    %v2370 = vunpack.c.h.b16 %v160
    %v2371 = vunpack.c.l.b16 %v161
    %v2372 = vunpack.c.h.b16 %v161
    %v2373 = vunpack.c.l.b16 %v162
    %v2374 = vunpack.c.h.b16 %v162
    %v2375 = vunpack.c.l.b16 %v163
    %v2376 = vunpack.c.h.b16 %v163
    %v2377 = vunpack.c.l.b16 %v164
    %v2378 = vunpack.c.h.b16 %v164
    %v2379 = vunpack.c.l.b16 %v165
    %v2380 = vunpack.c.h.b16 %v165
    %v2381 = vunpack.c.l.b16 %v166
    %v2382 = vunpack.c.h.b16 %v166
    %v2383 = vunpack.c.l.b16 %v167
    %v2384 = vunpack.c.h.b16 %v167
    %v2385 = vunpack.c.l.b16 %v168
    %v2386 = vunpack.c.h.b16 %v168
    %v2387 = vunpack.c.l.b16 %v169
    %v2388 = vunpack.c.h.b16 %v169
    %v2389 = vunpack.c.l.b16 %v170
    %v2390 = vunpack.c.h.b16 %v170
    %v2391 = vunpack.c.l.b16 %v171
    %v2392 = vunpack.c.h.b16 %v171
    %v2393 = vunpack.c.l.b16 %v172
    %v2394 = vunpack.c.h.b16 %v172
    %v2395 = vunpack.c.l.b16 %v173
    %v2396 = vunpack.c.h.b16 %v173
    %v2397 = vunpack.c.l.b16 %v174
    %v2398 = vunpack.c.h.b16 %v174
    %v2399 = vunpack.c.l.b16 %v175
    %v2400 = vunpack.c.h.b16 %v175
    %v2401 = vunpack.c.l.b16 %v176
    %v2402 = vunpack.c.h.b16 %v176
    %v2403 = vunpack.c.l.b16 %v177
    %v2404 = vunpack.c.h.b16 %v177
    %v2405 = vunpack.c.l.b16 %v178
    %v2406 = vunpack.c.h.b16 %v178
    %v2407 = vunpack.c.l.b16 %v179
    %v2408 = vunpack.c.h.b16 %v179
    %v2409 = vunpack.c.l.b16 %v180
    %v2410 = vunpack.c.h.b16 %v180
    %v2411 = vunpack.c.l.b16 %v181
    %v2412 = vunpack.c.h.b16 %v181
    %v2413 = vunpack.c.l.b16 %v182
    %v2414 = vunpack.c.h.b16 %v182
    %v2415 = vunpack.c.l.b16 %v183
    %v2416 = vunpack.c.h.b16 %v183
    %v2417 = vunpack.c.l.b16 %v184
    %v2418 = vunpack.c.h.b16 %v184
    %v2419 = vunpack.c.l.b16 %v185
    %v2420 = vunpack.c.h.b16 %v185
    %v2421 = vunpack.c.l.b16 %v186
    %v2422 = vunpack.c.h.b16 %v186
    %v2423 = vunpack.c.l.b16 %v187
    %v2424 = vunpack.c.h.b16 %v187
    %v2425 = vunpack.c.l.b16 %v188
    %v2426 = vunpack.c.h.b16 %v188
    %v2427 = vunpack.c.l.b16 %v189
    %v2428 = vunpack.c.h.b16 %v189
    %v2429 = vunpack.c.l.b16 %v190
    %v2430 = vunpack.c.h.b16 %v190
    %v2431 = vunpack.c.l.b16 %v191
    %v2432 = vunpack.c.h.b16 %v191
    %v2433 = vunpack.c.l.b16 %v192
    %v2434 = vunpack.c.h.b16 %v192
    %v2435 = vunpack.c.l.b16 %v193
    %v2436 = vunpack.c.h.b16 %v193
    %v2437 = vunpack.c.l.b16 %v194
    %v2438 = vunpack.c.h.b16 %v194
    %v2439 = vunpack.c.l.b16 %v195
    %v2440 = vunpack.c.h.b16 %v195
    %v2441 = vunpack.c.l.b16 %v196
    %v2442 = vunpack.c.h.b16 %v196
    %v2443 = vunpack.c.l.b16 %v197
    %v2444 = vunpack.c.h.b16 %v197
    %v2445 = vunpack.c.l.b16 %v198
    %v2446 = vunpack.c.h.b16 %v198
    %v2447 = vunpack.c.l.b16 %v199
    %v2448 = vunpack.c.h.b16 %v199
    %v2449 = vunpack.c.l.b16 %v200
    %v2450 = vunpack.c.h.b16 %v200
    %v2451 = vunpack.c.l.b16 %v201
    %v2452 = vunpack.c.h.b16 %v201
    %v2453 = vunpack.c.l.b16 %v202
    %v2454 = vunpack.c.h.b16 %v202
    %v2455 = vunpack.c.l.b16 %v203
    %v2456 = vunpack.c.h.b16 %v203
    %v2457 = vunpack.c.l.b16 %v204
    %v2458 = vunpack.c.h.b16 %v204
    %v2459 = vunpack.c.l.b16 %v205
    %v2460 = vunpack.c.h.b16 %v205
    %v2461 = vunpack.c.l.b16 %v206
    %v2462 = vunpack.c.h.b16 %v206
    %v2463 = vunpack.c.l.b16 %v207
    %v2464 = vunpack.c.h.b16 %v207
    %v2465 = vunpack.c.l.b16 %v208
    %v2466 = vunpack.c.h.b16 %v208
    %v2467 = vunpack.c.l.b16 %v209
    %v2468 = vunpack.c.h.b16 %v209
    %v2469 = vunpack.c.l.b16 %v210
    %v2470 = vunpack.c.h.b16 %v210
    %v2471 = vunpack.c.l.b16 %v211
    %v2472 = vunpack.c.h.b16 %v211
    %v2473 = vunpack.c.l.b16 %v212
    %v2474 = vunpack.c.h.b16 %v212
    %v2475 = vunpack.c.l.b16 %v213
    %v2476 = vunpack.c.h.b16 %v213
    %v2477 = vunpack.c.l.b16 %v214
    %v2478 = vunpack.c.h.b16 %v214
    %v2479 = vunpack.c.l.b16 %v215
    %v2480 = vunpack.c.h.b16 %v215
    %v2481 = vunpack.c.l.b16 %v216
    %v2482 = vunpack.c.h.b16 %v216
    %v2483 = vunpack.c.l.b16 %v217
    %v2484 = vunpack.c.h.b16 %v217
    %v2485 = vunpack.c.l.b16 %v218
    %v2486 = vunpack.c.h.b16 %v218
    %v2487 = vunpack.c.l.b16 %v219
    %v2488 = vunpack.c.h.b16 %v219
    %v2489 = vunpack.c.l.b16 %v220
    %v2490 = vunpack.c.h.b16 %v220
    %v2491 = vunpack.c.l.b16 %v221
    %v2492 = vunpack.c.h.b16 %v221
    %v2493 = vunpack.c.l.b16 %v222
    %v2494 = vunpack.c.h.b16 %v222
    %v2495 = vunpack.c.l.b16 %v223
    %v2496 = vunpack.c.h.b16 %v223
    %v2497 = vunpack.c.l.b16 %v224
    %v2498 = vunpack.c.h.b16 %v224
    %v2499 = vunpack.c.l.b16 %v225
    %v2500 = vunpack.c.h.b16 %v225
    %v2501 = vunpack.c.l.b16 %v226
    %v2502 = vunpack.c.h.b16 %v226
    %v2503 = vunpack.c.l.b16 %v227
    %v2504 = vunpack.c.h.b16 %v227
    %v2505 = vunpack.c.l.b16 %v228
    %v2506 = vunpack.c.h.b16 %v228
    %v2507 = vunpack.c.l.b16 %v229
    %v2508 = vunpack.c.h.b16 %v229
    %v2509 = vunpack.c.l.b16 %v230
    %v2510 = vunpack.c.h.b16 %v230
    %v2511 = vunpack.c.l.b16 %v231
    %v2512 = vunpack.c.h.b16 %v231
    %v2513 = vunpack.c.l.b16 %v232
    %v2514 = vunpack.c.h.b16 %v232
    %v2515 = vunpack.c.l.b16 %v233
    %v2516 = vunpack.c.h.b16 %v233
    %v2517 = vunpack.c.l.b16 %v234
    %v2518 = vunpack.c.h.b16 %v234
    %v2519 = vunpack.c.l.b16 %v235
    %v2520 = vunpack.c.h.b16 %v235
    %v2521 = vunpack.c.l.b16 %v236
    %v2522 = vunpack.c.h.b16 %v236
    %v2523 = vunpack.c.l.b16 %v237
    %v2524 = vunpack.c.h.b16 %v237
    %v2525 = vunpack.c.l.b16 %v238
    %v2526 = vunpack.c.h.b16 %v238
    %v2527 = vunpack.c.l.b16 %v239
    %v2528 = vunpack.c.h.b16 %v239
    %v2529 = vunpack.c.l.b16 %v240
    %v2530 = vunpack.c.h.b16 %v240
    %v2531 = vunpack.c.l.b16 %v241
    %v2532 = vunpack.c.h.b16 %v241
    %v2533 = vunpack.c.l.b16 %v242
    %v2534 = vunpack.c.h.b16 %v242
    %v2535 = vunpack.c.l.b16 %v243
    %v2536 = vunpack.c.h.b16 %v243
    %v2537 = vunpack.c.l.b16 %v244
    %v2538 = vunpack.c.h.b16 %v244
    %v2539 = vunpack.c.l.b16 %v245
    %v2540 = vunpack.c.h.b16 %v245
    %v2541 = vunpack.c.l.b16 %v246
    %v2542 = vunpack.c.h.b16 %v246
    %v2543 = vunpack.c.l.b16 %v247
    %v2544 = vunpack.c.h.b16 %v247
    %v2545 = vunpack.c.l.b16 %v248
    %v2546 = vunpack.c.h.b16 %v248
    %v2547 = vunpack.c.l.b16 %v249
    %v2548 = vunpack.c.h.b16 %v249
    %v2549 = vunpack.c.l.b16 %v250
    %v2550 = vunpack.c.h.b16 %v250
    %v2551 = vunpack.c.l.b16 %v251
    %v2552 = vunpack.c.h.b16 %v251
    %v2553 = vunpack.c.l.b16 %v252
    %v2554 = vunpack.c.h.b16 %v252
    %v2555 = vunpack.c.l.b16 %v253
    %v2556 = vunpack.c.h.b16 %v253
    %v2557 = vunpack.c.l.b16 %v254
    %v2558 = vunpack.c.h.b16 %v254
    %v2559 = vunpack.c.l.b16 %v255
    %v2560 = vunpack.c.h.b16 %v255
    %v2561 = vunpack.c.l.b16 %v256
    %v2562 = vunpack.c.h.b16 %v256
    %v2563 = vunpack.c.l.b16 %v257
    %v2564 = vunpack.c.h.b16 %v257
    %v2565 = vunpack.c.l.b16 %v258
    %v2566 = vunpack.c.h.b16 %v258
    %v2567 = vunpack.c.l.b16 %v259
    %v2568 = vunpack.c.h.b16 %v259
    %v2569 = vunpack.c.l.b16 %v260
    %v2570 = vunpack.c.h.b16 %v260
    %v2571 = vunpack.c.l.b16 %v261
    %v2572 = vunpack.c.h.b16 %v261
    %v2573 = vunpack.c.l.b16 %v262
    %v2574 = vunpack.c.h.b16 %v262
    %v2575 = vunpack.c.l.b16 %v263
    %v2576 = vunpack.c.h.b16 %v263
    %v2577 = vunpack.c.l.b16 %v264
    %v2578 = vunpack.c.h.b16 %v264
    %v2579 = vunpack.c.l.b16 %v265
    %v2580 = vunpack.c.h.b16 %v265
    %v2581 = vunpack.c.l.b16 %v266
    %v2582 = vunpack.c.h.b16 %v266
    %v2583 = vunpack.c.l.b16 %v267
    %v2584 = vunpack.c.h.b16 %v267
    %v2585 = vunpack.c.l.b16 %v268
    %v2586 = vunpack.c.h.b16 %v268
    %v2587 = vunpack.c.l.b16 %v269
    %v2588 = vunpack.c.h.b16 %v269
    %v2589 = vunpack.c.l.b16 %v270
    %v2590 = vunpack.c.h.b16 %v270
    %v2591 = vunpack.c.l.b16 %v271
    %v2592 = vunpack.c.h.b16 %v271
    %v2593 = vunpack.c.l.b16 %v272
    %v2594 = vunpack.c.h.b16 %v272
    %v2595 = vunpack.c.l.b16 %v273
    %v2596 = vunpack.c.h.b16 %v273
    %v2597 = vunpack.c.l.b16 %v274
    %v2598 = vunpack.c.h.b16 %v274
    %v2599 = vunpack.c.l.b16 %v275
    %v2600 = vunpack.c.h.b16 %v275
    %v2601 = vunpack.c.l.b16 %v276
    %v2602 = vunpack.c.h.b16 %v276
    %v2603 = vunpack.c.l.b16 %v277
    %v2604 = vunpack.c.h.b16 %v277
    %v2605 = vunpack.c.l.b16 %v278
    %v2606 = vunpack.c.h.b16 %v278
    %v2607 = vunpack.c.l.b16 %v279
    %v2608 = vunpack.c.h.b16 %v279
    %v2609 = vunpack.c.l.b16 %v280
    %v2610 = vunpack.c.h.b16 %v280
    %v2611 = vunpack.c.l.b16 %v281
    %v2612 = vunpack.c.h.b16 %v281
    %v2613 = vunpack.c.l.b16 %v282
    %v2614 = vunpack.c.h.b16 %v282
    %v2615 = vunpack.c.l.b16 %v283
    %v2616 = vunpack.c.h.b16 %v283
    %v2617 = vunpack.c.l.b16 %v284
    %v2618 = vunpack.c.h.b16 %v284
    %v2619 = vunpack.c.l.b16 %v285
    %v2620 = vunpack.c.h.b16 %v285
    %v2621 = vunpack.c.l.b16 %v286
    %v2622 = vunpack.c.h.b16 %v286
    %v2623 = vunpack.c.l.b16 %v287
    %v2624 = vunpack.c.h.b16 %v287
    %v2625 = vunpack.c.l.b16 %v288
    %v2626 = vunpack.c.h.b16 %v288
    %v2627 = vunpack.c.l.b16 %v289
    %v2628 = vunpack.c.h.b16 %v289
    %v2629 = vunpack.c.l.b16 %v290
    %v2630 = vunpack.c.h.b16 %v290
    %v2631 = vunpack.c.l.b16 %v291
    %v2632 = vunpack.c.h.b16 %v291
    %v2633 = vunpack.c.l.b16 %v292
    %v2634 = vunpack.c.h.b16 %v292
    %v2635 = vunpack.c.l.b16 %v293
    %v2636 = vunpack.c.h.b16 %v293
    %v2637 = vunpack.c.l.b16 %v294
    %v2638 = vunpack.c.h.b16 %v294
    %v2639 = vunpack.c.l.b16 %v295
    %v2640 = vunpack.c.h.b16 %v295
    %v2641 = vunpack.c.l.b16 %v296
    %v2642 = vunpack.c.h.b16 %v296
    %v2643 = vunpack.c.l.b16 %v297
    %v2644 = vunpack.c.h.b16 %v297
    %v2645 = vunpack.c.l.b16 %v298
    %v2646 = vunpack.c.h.b16 %v298
    %v2647 = vunpack.c.l.b16 %v299
    %v2648 = vunpack.c.h.b16 %v299
    %v2649 = vunpack.c.l.b16 %v300
    %v2650 = vunpack.c.h.b16 %v300
    %v2651 = vunpack.c.l.b16 %v301
    %v2652 = vunpack.c.h.b16 %v301
    %v2653 = vunpack.c.l.b16 %v302
    %v2654 = vunpack.c.h.b16 %v302
    %v2655 = vunpack.c.l.b16 %v303
    %v2656 = vunpack.c.h.b16 %v303
    %v2657 = vunpack.c.l.b16 %v304
    %v2658 = vunpack.c.h.b16 %v304
    %v2659 = vunpack.c.l.b16 %v305
    %v2660 = vunpack.c.h.b16 %v305
    %v2661 = vunpack.c.l.b16 %v306
    %v2662 = vunpack.c.h.b16 %v306
    %v2663 = vunpack.c.l.b16 %v307
    %v2664 = vunpack.c.h.b16 %v307
    %v2665 = vunpack.c.l.b16 %v308
    %v2666 = vunpack.c.h.b16 %v308
    %v2667 = vunpack.c.l.b16 %v309
    %v2668 = vunpack.c.h.b16 %v309
    %v2669 = vunpack.c.l.b16 %v310
    %v2670 = vunpack.c.h.b16 %v310
    %v2671 = vunpack.c.l.b16 %v311
    %v2672 = vunpack.c.h.b16 %v311
    %v2673 = vunpack.c.l.b16 %v312
    %v2674 = vunpack.c.h.b16 %v312
    %v2675 = vunpack.c.l.b16 %v313
    %v2676 = vunpack.c.h.b16 %v313
    %v2677 = vunpack.c.l.b16 %v314
    %v2678 = vunpack.c.h.b16 %v314
    %v2679 = vunpack.c.l.b16 %v315
    %v2680 = vunpack.c.h.b16 %v315
    %v2681 = vunpack.c.l.b16 %v316
    %v2682 = vunpack.c.h.b16 %v316
    %v2683 = vunpack.c.l.b16 %v317
    %v2684 = vunpack.c.h.b16 %v317
    %v2685 = vunpack.c.l.b16 %v318
    %v2686 = vunpack.c.h.b16 %v318
    %v2687 = vunpack.c.l.b16 %v319
    %v2688 = vunpack.c.h.b16 %v319
    %v2689 = vunpack.c.l.b16 %v320
    %v2690 = vunpack.c.h.b16 %v320
    %v2691 = vunpack.c.l.b16 %v321
    %v2692 = vunpack.c.h.b16 %v321
    %v2693 = vunpack.c.l.b16 %v322
    %v2694 = vunpack.c.h.b16 %v322
    %v2695 = vunpack.c.l.b16 %v323
    %v2696 = vunpack.c.h.b16 %v323
    %v2697 = vunpack.c.l.b16 %v324
    %v2698 = vunpack.c.h.b16 %v324
    %v2699 = vunpack.c.l.b16 %v325
    %v2700 = vunpack.c.h.b16 %v325
    %v2701 = vunpack.c.l.b16 %v326
    %v2702 = vunpack.c.h.b16 %v326
    %v2703 = vunpack.c.l.b16 %v327
    %v2704 = vunpack.c.h.b16 %v327
    %v2705 = vunpack.c.l.b16 %v328
    %v2706 = vunpack.c.h.b16 %v328
    %v2707 = vunpack.c.l.b16 %v329
    %v2708 = vunpack.c.h.b16 %v329
    %v2709 = vunpack.c.l.b16 %v330
    %v2710 = vunpack.c.h.b16 %v330
    %v2711 = vunpack.c.l.b16 %v331
    %v2712 = vunpack.c.h.b16 %v331
    %v2713 = vunpack.c.l.b16 %v332
    %v2714 = vunpack.c.h.b16 %v332
    %v2715 = vunpack.c.l.b16 %v333
    %v2716 = vunpack.c.h.b16 %v333
    %v2717 = vunpack.c.l.b16 %v334
    %v2718 = vunpack.c.h.b16 %v334
    %v2719 = vunpack.c.l.b16 %v335
    %v2720 = vunpack.c.h.b16 %v335
    %v2721 = vunpack.c.l.b16 %v336
    %v2722 = vunpack.c.h.b16 %v336
    %v2723 = vunpack.c.l.b16 %v337
    %v2724 = vunpack.c.h.b16 %v337
    %v2725 = vunpack.c.l.b16 %v338
    %v2726 = vunpack.c.h.b16 %v338
    %v2727 = vunpack.c.l.b16 %v339
    %v2728 = vunpack.c.h.b16 %v339
    %v2729 = vunpack.c.l.b16 %v340
    %v2730 = vunpack.c.h.b16 %v340
    %v2731 = vunpack.c.l.b16 %v341
    %v2732 = vunpack.c.h.b16 %v341
    %v2733 = vunpack.c.l.b16 %v342
    %v2734 = vunpack.c.h.b16 %v342
    %v2735 = vunpack.c.l.b16 %v343
    %v2736 = vunpack.c.h.b16 %v343
    %v2737 = vunpack.c.l.b16 %v344
    %v2738 = vunpack.c.h.b16 %v344
    %v2739 = vunpack.c.l.b16 %v345
    %v2740 = vunpack.c.h.b16 %v345
    %v2741 = vunpack.c.l.b16 %v346
    %v2742 = vunpack.c.h.b16 %v346
    %v2743 = vunpack.c.l.b16 %v347
    %v2744 = vunpack.c.h.b16 %v347
    %v2745 = vunpack.c.l.b16 %v348
    %v2746 = vunpack.c.h.b16 %v348
    %v2747 = vunpack.c.l.b16 %v349
    %v2748 = vunpack.c.h.b16 %v349
    %v2749 = vunpack.c.l.b16 %v350
    %v2750 = vunpack.c.h.b16 %v350
    %v2751 = vunpack.c.l.b16 %v351
    %v2752 = vunpack.c.h.b16 %v351
    %v2753 = vunpack.c.l.b16 %v352
    %v2754 = vunpack.c.h.b16 %v352
    %v2755 = vunpack.c.l.b16 %v353
    %v2756 = vunpack.c.h.b16 %v353
    %v2757 = vunpack.c.l.b16 %v354
    %v2758 = vunpack.c.h.b16 %v354
    %v2759 = vunpack.c.l.b16 %v355
    %v2760 = vunpack.c.h.b16 %v355
    %v2761 = vunpack.c.l.b16 %v356
    %v2762 = vunpack.c.h.b16 %v356
    %v2763 = vunpack.c.l.b16 %v357
    %v2764 = vunpack.c.h.b16 %v357
    %v2765 = vunpack.c.l.b16 %v358
    %v2766 = vunpack.c.h.b16 %v358
    %v2767 = vunpack.c.l.b16 %v359
    %v2768 = vunpack.c.h.b16 %v359
    %v2769 = vunpack.c.l.b16 %v360
    %v2770 = vunpack.c.h.b16 %v360
    %v2771 = vunpack.c.l.b16 %v361
    %v2772 = vunpack.c.h.b16 %v361
    %v2773 = vunpack.c.l.b16 %v362
    %v2774 = vunpack.c.h.b16 %v362
    %v2775 = vunpack.c.l.b16 %v363
    %v2776 = vunpack.c.h.b16 %v363
    %v2777 = vunpack.c.l.b16 %v364
    %v2778 = vunpack.c.h.b16 %v364
    %v2779 = vunpack.c.l.b16 %v365
    %v2780 = vunpack.c.h.b16 %v365
    %v2781 = vunpack.c.l.b16 %v366
    %v2782 = vunpack.c.h.b16 %v366
    %v2783 = vunpack.c.l.b16 %v367
    %v2784 = vunpack.c.h.b16 %v367
    %v2785 = vunpack.c.l.b16 %v368
    %v2786 = vunpack.c.h.b16 %v368
    %v2787 = vunpack.c.l.b16 %v369
    %v2788 = vunpack.c.h.b16 %v369
    %v2789 = vunpack.c.l.b16 %v370
    %v2790 = vunpack.c.h.b16 %v370
    %v2791 = vunpack.c.l.b16 %v371
    %v2792 = vunpack.c.h.b16 %v371
    %v2793 = vunpack.c.l.b16 %v372
    %v2794 = vunpack.c.h.b16 %v372
    %v2795 = vunpack.c.l.b16 %v373
    %v2796 = vunpack.c.h.b16 %v373
    %v2797 = vunpack.c.l.b16 %v374
    %v2798 = vunpack.c.h.b16 %v374
    %v2799 = vunpack.c.l.b16 %v375
    %v2800 = vunpack.c.h.b16 %v375
    %v2801 = vunpack.c.l.b16 %v376
    %v2802 = vunpack.c.h.b16 %v376
    %v2803 = vunpack.c.l.b16 %v377
    %v2804 = vunpack.c.h.b16 %v377
    %v2805 = vunpack.c.l.b16 %v378
    %v2806 = vunpack.c.h.b16 %v378
    %v2807 = vunpack.c.l.b16 %v379
    %v2808 = vunpack.c.h.b16 %v379
    %v2809 = vunpack.c.l.b16 %v380
    %v2810 = vunpack.c.h.b16 %v380
    %v2811 = vunpack.c.l.b16 %v381
    %v2812 = vunpack.c.h.b16 %v381
    %v2813 = vunpack.c.l.b16 %v382
    %v2814 = vunpack.c.h.b16 %v382
    %v2815 = vunpack.c.l.b16 %v383
    %v2816 = vunpack.c.h.b16 %v383
    %v2817 = vunpack.c.l.b16 %v384
    %v2818 = vunpack.c.h.b16 %v384
    %v2819 = vunpack.c.l.b16 %v385
    %v2820 = vunpack.c.h.b16 %v385
    %v2821 = vunpack.c.l.b16 %v386
    %v2822 = vunpack.c.h.b16 %v386
    %v2823 = vunpack.c.l.b16 %v387
    %v2824 = vunpack.c.h.b16 %v387
    %v2825 = vunpack.c.l.b16 %v388
    %v2826 = vunpack.c.h.b16 %v388
    %v2827 = vunpack.c.l.b16 %v389
    %v2828 = vunpack.c.h.b16 %v389
    %v2829 = vunpack.c.l.b16 %v390
    %v2830 = vunpack.c.h.b16 %v390
    %v2831 = vunpack.c.l.b16 %v391
    %v2832 = vunpack.c.h.b16 %v391
    %v2833 = vunpack.c.l.b16 %v392
    %v2834 = vunpack.c.h.b16 %v392
    %v2835 = vunpack.c.l.b16 %v393
    %v2836 = vunpack.c.h.b16 %v393
    %v2837 = vunpack.c.l.b16 %v394
    %v2838 = vunpack.c.h.b16 %v394
    %v2839 = vunpack.c.l.b16 %v395
    %v2840 = vunpack.c.h.b16 %v395
    %v2841 = vunpack.c.l.b16 %v396
    %v2842 = vunpack.c.h.b16 %v396
    %v2843 = vunpack.c.l.b16 %v397
    %v2844 = vunpack.c.h.b16 %v397
    %v2845 = vunpack.c.l.b16 %v398
    %v2846 = vunpack.c.h.b16 %v398
    %v2847 = vunpack.c.l.b16 %v399
    %v2848 = vunpack.c.h.b16 %v399
    %v2849 = vunpack.c.l.b16 %v400
    %v2850 = vunpack.c.h.b16 %v400
    %v2851 = vunpack.c.l.b16 %v401
    %v2852 = vunpack.c.h.b16 %v401
    %v2853 = vunpack.c.l.b16 %v402
    %v2854 = vunpack.c.h.b16 %v402
    %v2855 = vunpack.c.l.b16 %v403
    %v2856 = vunpack.c.h.b16 %v403
    %v2857 = vunpack.c.l.b16 %v404
    %v2858 = vunpack.c.h.b16 %v404
    %v2859 = vunpack.c.l.b16 %v405
    %v2860 = vunpack.c.h.b16 %v405
    %v2861 = vunpack.c.l.b16 %v406
    %v2862 = vunpack.c.h.b16 %v406
    %v2863 = vunpack.c.l.b16 %v407
    %v2864 = vunpack.c.h.b16 %v407
    %v2865 = vunpack.c.l.b16 %v408
    %v2866 = vunpack.c.h.b16 %v408
    %v2867 = vunpack.c.l.b16 %v409
    %v2868 = vunpack.c.h.b16 %v409
    %v2869 = vunpack.c.l.b16 %v410
    %v2870 = vunpack.c.h.b16 %v410
    %v2871 = vunpack.c.l.b16 %v411
    %v2872 = vunpack.c.h.b16 %v411
    %v2873 = vunpack.c.l.b16 %v412
    %v2874 = vunpack.c.h.b16 %v412
    %v2875 = vunpack.c.l.b16 %v413
    %v2876 = vunpack.c.h.b16 %v413
    %v2877 = vunpack.c.l.b16 %v414
    %v2878 = vunpack.c.h.b16 %v414
    %v2879 = vunpack.c.l.b16 %v415
    %v2880 = vunpack.c.h.b16 %v415
    %v2881 = vunpack.c.l.b16 %v416
    %v2882 = vunpack.c.h.b16 %v416
    %v2883 = vunpack.c.l.b16 %v417
    %v2884 = vunpack.c.h.b16 %v417
    %v2885 = vunpack.c.l.b16 %v418
    %v2886 = vunpack.c.h.b16 %v418
    %v2887 = vunpack.c.l.b16 %v419
    %v2888 = vunpack.c.h.b16 %v419
    %v2889 = vunpack.c.l.b16 %v420
    %v2890 = vunpack.c.h.b16 %v420
    %v2891 = vunpack.c.l.b16 %v421
    %v2892 = vunpack.c.h.b16 %v421
    %v2893 = vunpack.c.l.b16 %v422
    %v2894 = vunpack.c.h.b16 %v422
    %v2895 = vunpack.c.l.b16 %v423
    %v2896 = vunpack.c.h.b16 %v423
    %v2897 = vunpack.c.l.b16 %v424
    %v2898 = vunpack.c.h.b16 %v424
    %v2899 = vunpack.c.l.b16 %v425
    %v2900 = vunpack.c.h.b16 %v425
    %v2901 = vunpack.c.l.b16 %v426
    %v2902 = vunpack.c.h.b16 %v426
    %v2903 = vunpack.c.l.b16 %v427
    %v2904 = vunpack.c.h.b16 %v427
    %v2905 = vunpack.c.l.b16 %v428
    %v2906 = vunpack.c.h.b16 %v428
    %v2907 = vunpack.c.l.b16 %v429
    %v2908 = vunpack.c.h.b16 %v429
    %v2909 = vunpack.c.l.b16 %v430
    %v2910 = vunpack.c.h.b16 %v430
    %v2911 = vunpack.c.l.b16 %v431
    %v2912 = vunpack.c.h.b16 %v431
    %v2913 = vunpack.c.l.b16 %v432
    %v2914 = vunpack.c.h.b16 %v432
    %v2915 = vunpack.c.l.b16 %v433
    %v2916 = vunpack.c.h.b16 %v433
    %v2917 = vunpack.c.l.b16 %v434
    %v2918 = vunpack.c.h.b16 %v434
    %v2919 = vunpack.c.l.b16 %v435
    %v2920 = vunpack.c.h.b16 %v435
    %v2921 = vunpack.c.l.b16 %v436
    %v2922 = vunpack.c.h.b16 %v436
    %v2923 = vunpack.c.l.b16 %v437
    %v2924 = vunpack.c.h.b16 %v437
    %v2925 = vunpack.c.l.b16 %v438
    %v2926 = vunpack.c.h.b16 %v438
    %v2927 = vunpack.c.l.b16 %v439
    %v2928 = vunpack.c.h.b16 %v439
    %v2929 = vunpack.c.l.b16 %v440
    %v2930 = vunpack.c.h.b16 %v440
    %v2931 = vunpack.c.l.b16 %v441
    %v2932 = vunpack.c.h.b16 %v441
    %v2933 = vunpack.c.l.b16 %v442
    %v2934 = vunpack.c.h.b16 %v442
    %v2935 = vunpack.c.l.b16 %v443
    %v2936 = vunpack.c.h.b16 %v443
    %v2937 = vunpack.c.l.b16 %v444
    %v2938 = vunpack.c.h.b16 %v444
    %v2939 = vunpack.c.l.b16 %v445
    %v2940 = vunpack.c.h.b16 %v445
    %v2941 = vunpack.c.l.b16 %v446
    %v2942 = vunpack.c.h.b16 %v446
    %v2943 = vunpack.c.l.b16 %v447
    %v2944 = vunpack.c.h.b16 %v447
    %v2945 = vunpack.c.l.b16 %v448
    %v2946 = vunpack.c.h.b16 %v448
    %v2947 = vunpack.c.l.b16 %v449
    %v2948 = vunpack.c.h.b16 %v449
    %v2949 = vunpack.c.l.b16 %v450
    %v2950 = vunpack.c.h.b16 %v450
    %v2951 = vunpack.c.l.b16 %v451
    %v2952 = vunpack.c.h.b16 %v451
    %v2953 = vunpack.c.l.b16 %v452
    %v2954 = vunpack.c.h.b16 %v452
    %v2955 = vunpack.c.l.b16 %v453
    %v2956 = vunpack.c.h.b16 %v453
    %v2957 = vunpack.c.l.b16 %v454
    %v2958 = vunpack.c.h.b16 %v454
    %v2959 = vunpack.c.l.b16 %v455
    %v2960 = vunpack.c.h.b16 %v455
    %v2961 = vunpack.c.l.b16 %v456
    %v2962 = vunpack.c.h.b16 %v456
    %v2963 = vunpack.c.l.b16 %v457
    %v2964 = vunpack.c.h.b16 %v457
    %v2965 = vunpack.c.l.b16 %v458
    %v2966 = vunpack.c.h.b16 %v458
    %v2967 = vunpack.c.l.b16 %v459
    %v2968 = vunpack.c.h.b16 %v459
    %v2969 = vunpack.c.l.b16 %v460
    %v2970 = vunpack.c.h.b16 %v460
    %v2971 = vunpack.c.l.b16 %v461
    %v2972 = vunpack.c.h.b16 %v461
    %v2973 = vunpack.c.l.b16 %v462
    %v2974 = vunpack.c.h.b16 %v462
    %v2975 = vunpack.c.l.b16 %v463
    %v2976 = vunpack.c.h.b16 %v463
    %v2977 = vunpack.c.l.b16 %v464
    %v2978 = vunpack.c.h.b16 %v464
    %v2979 = vunpack.c.l.b16 %v465
    %v2980 = vunpack.c.h.b16 %v465
    %v2981 = vunpack.c.l.b16 %v466
    %v2982 = vunpack.c.h.b16 %v466
    %v2983 = vunpack.c.l.b16 %v467
    %v2984 = vunpack.c.h.b16 %v467
    %v2985 = vunpack.c.l.b16 %v468
    %v2986 = vunpack.c.h.b16 %v468
    %v2987 = vunpack.c.l.b16 %v469
    %v2988 = vunpack.c.h.b16 %v469
    %v2989 = vunpack.c.l.b16 %v470
    %v2990 = vunpack.c.h.b16 %v470
    %v2991 = vunpack.c.l.b16 %v471
    %v2992 = vunpack.c.h.b16 %v471
    %v2993 = vunpack.c.l.b16 %v472
    %v2994 = vunpack.c.h.b16 %v472
    %v2995 = vunpack.c.l.b16 %v473
    %v2996 = vunpack.c.h.b16 %v473
    %v2997 = vunpack.c.l.b16 %v474
    %v2998 = vunpack.c.h.b16 %v474
    %v2999 = vunpack.c.l.b16 %v475
    %v3000 = vunpack.c.h.b16 %v475
    %v3001 = vunpack.c.l.b16 %v476
    %v3002 = vunpack.c.h.b16 %v476
    %v3003 = vunpack.c.l.b16 %v477
    %v3004 = vunpack.c.h.b16 %v477
    %v3005 = vunpack.c.l.b16 %v478
    %v3006 = vunpack.c.h.b16 %v478
    %v3007 = vunpack.c.l.b16 %v479
    %v3008 = vunpack.c.h.b16 %v479
    %v3009 = vunpack.c.l.b16 %v480
    %v3010 = vunpack.c.h.b16 %v480
    %v3011 = vunpack.c.l.b16 %v481
    %v3012 = vunpack.c.h.b16 %v481
    %v3013 = vunpack.c.l.b16 %v482
    %v3014 = vunpack.c.h.b16 %v482
    %v3015 = vunpack.c.l.b16 %v483
    %v3016 = vunpack.c.h.b16 %v483
    %v3017 = vunpack.c.l.b16 %v484
    %v3018 = vunpack.c.h.b16 %v484
    %v3019 = vunpack.c.l.b16 %v485
    %v3020 = vunpack.c.h.b16 %v485
    %v3021 = vunpack.c.l.b16 %v486
    %v3022 = vunpack.c.h.b16 %v486
    %v3023 = vunpack.c.l.b16 %v487
    %v3024 = vunpack.c.h.b16 %v487
    %v3025 = vunpack.c.l.b16 %v488
    %v3026 = vunpack.c.h.b16 %v488
    %v3027 = vunpack.c.l.b16 %v489
    %v3028 = vunpack.c.h.b16 %v489
    %v3029 = vunpack.c.l.b16 %v490
    %v3030 = vunpack.c.h.b16 %v490
    %v3031 = vunpack.c.l.b16 %v491
    %v3032 = vunpack.c.h.b16 %v491
    %v3033 = vunpack.c.l.b16 %v492
    %v3034 = vunpack.c.h.b16 %v492
    %v3035 = vunpack.c.l.b16 %v493
    %v3036 = vunpack.c.h.b16 %v493
    %v3037 = vunpack.c.l.b16 %v494
    %v3038 = vunpack.c.h.b16 %v494
    %v3039 = vunpack.c.l.b16 %v495
    %v3040 = vunpack.c.h.b16 %v495
    %v3041 = vunpack.c.l.b16 %v496
    %v3042 = vunpack.c.h.b16 %v496
    %v3043 = vunpack.c.l.b16 %v497
    %v3044 = vunpack.c.h.b16 %v497
    %v3045 = vunpack.c.l.b16 %v498
    %v3046 = vunpack.c.h.b16 %v498
    %v3047 = vunpack.c.l.b16 %v499
    %v3048 = vunpack.c.h.b16 %v499
    %v3049 = vunpack.c.l.b16 %v500
    %v3050 = vunpack.c.h.b16 %v500
    %v3051 = vunpack.c.l.b16 %v501
    %v3052 = vunpack.c.h.b16 %v501
    %v3053 = vunpack.c.l.b16 %v502
    %v3054 = vunpack.c.h.b16 %v502
    %v3055 = vunpack.c.l.b16 %v503
    %v3056 = vunpack.c.h.b16 %v503
    %v3057 = vunpack.c.l.b16 %v504
    %v3058 = vunpack.c.h.b16 %v504
    %v3059 = vunpack.c.l.b16 %v505
    %v3060 = vunpack.c.h.b16 %v505
    %v3061 = vunpack.c.l.b16 %v506
    %v3062 = vunpack.c.h.b16 %v506
    %v3063 = vunpack.c.l.b16 %v507
    %v3064 = vunpack.c.h.b16 %v507
    %v3065 = vunpack.c.l.b16 %v508
    %v3066 = vunpack.c.h.b16 %v508
    %v3067 = vunpack.c.l.b16 %v509
    %v3068 = vunpack.c.h.b16 %v509
    %v3069 = vunpack.c.l.b16 %v510
    %v3070 = vunpack.c.h.b16 %v510
    %v3071 = vunpack.c.l.b16 %v511
    %v3072 = vunpack.c.h.b16 %v511
    %v3073 = vunpack.c.l.b16 %v512
    %v3074 = vunpack.c.h.b16 %v512
    %v3075 = vunpack.c.l.b16 %v513
    %v3076 = vunpack.c.h.b16 %v513
    %v3077 = vunpack.c.l.b16 %v514
    %v3078 = vunpack.c.h.b16 %v514
    %v3079 = vunpack.c.l.b16 %v515
    %v3080 = vunpack.c.h.b16 %v515
    %v3081 = vunpack.c.l.b16 %v516
    %v3082 = vunpack.c.h.b16 %v516
    %v3083 = vunpack.c.l.b16 %v517
    %v3084 = vunpack.c.h.b16 %v517
    %v3085 = vunpack.c.l.b16 %v518
    %v3086 = vunpack.c.h.b16 %v518
    %v3087 = vunpack.c.l.b16 %v519
    %v3088 = vunpack.c.h.b16 %v519
    %v3089 = vunpack.c.l.b16 %v520
    %v3090 = vunpack.c.h.b16 %v520
    %v3091 = vunpack.c.l.b16 %v521
    %v3092 = vunpack.c.h.b16 %v521
    %v3093 = vunpack.c.l.b16 %v522
    %v3094 = vunpack.c.h.b16 %v522
    %v3095 = vunpack.c.l.b16 %v523
    %v3096 = vunpack.c.h.b16 %v523
    %v3097 = vunpack.c.l.b16 %v524
    %v3098 = vunpack.c.h.b16 %v524
    %v3099 = vunpack.c.l.b16 %v525
    %v3100 = vunpack.c.h.b16 %v525
    %v3101 = vunpack.c.l.b16 %v526
    %v3102 = vunpack.c.h.b16 %v526
    %v3103 = vunpack.c.l.b16 %v527
    %v3104 = vunpack.c.h.b16 %v527
    %v3105 = vunpack.c.l.b16 %v528
    %v3106 = vunpack.c.h.b16 %v528
    %v3107 = vunpack.c.l.b16 %v529
    %v3108 = vunpack.c.h.b16 %v529
    %v3109 = vunpack.c.l.b16 %v530
    %v3110 = vunpack.c.h.b16 %v530
    %v3111 = vunpack.c.l.b16 %v531
    %v3112 = vunpack.c.h.b16 %v531
    %v3113 = vunpack.c.l.b16 %v532
    %v3114 = vunpack.c.h.b16 %v532
    %v3115 = vunpack.c.l.b16 %v533
    %v3116 = vunpack.c.h.b16 %v533
    %v3117 = vunpack.c.l.b16 %v534
    %v3118 = vunpack.c.h.b16 %v534
    %v3119 = vunpack.c.l.b16 %v535
    %v3120 = vunpack.c.h.b16 %v535
    %v3121 = vunpack.c.l.b16 %v536
    %v3122 = vunpack.c.h.b16 %v536
    %v3123 = vunpack.c.l.b16 %v537
    %v3124 = vunpack.c.h.b16 %v537
    %v3125 = vunpack.c.l.b16 %v538
    %v3126 = vunpack.c.h.b16 %v538
    %v3127 = vunpack.c.l.b16 %v539
    %v3128 = vunpack.c.h.b16 %v539
    %v3129 = vunpack.c.l.b16 %v540
    %v3130 = vunpack.c.h.b16 %v540
    %v3131 = vunpack.c.l.b16 %v541
    %v3132 = vunpack.c.h.b16 %v541
    %v3133 = vunpack.c.l.b16 %v542
    %v3134 = vunpack.c.h.b16 %v542
    %v3135 = vunpack.c.l.b16 %v543
    %v3136 = vunpack.c.h.b16 %v543
    %v3137 = vunpack.c.l.b16 %v544
    %v3138 = vunpack.c.h.b16 %v544
    %v3139 = vunpack.c.l.b16 %v545
    %v3140 = vunpack.c.h.b16 %v545
    %v3141 = vunpack.c.l.b16 %v546
    %v3142 = vunpack.c.h.b16 %v546
    %v3143 = vunpack.c.l.b16 %v547
    %v3144 = vunpack.c.h.b16 %v547
    %v3145 = vunpack.c.l.b16 %v548
    %v3146 = vunpack.c.h.b16 %v548
    %v3147 = vunpack.c.l.b16 %v549
    %v3148 = vunpack.c.h.b16 %v549
    %v3149 = vunpack.c.l.b16 %v550
    %v3150 = vunpack.c.h.b16 %v550
    %v3151 = vunpack.c.l.b16 %v551
    %v3152 = vunpack.c.h.b16 %v551
    %v3153 = vunpack.c.l.b16 %v552
    %v3154 = vunpack.c.h.b16 %v552
    %v3155 = vunpack.c.l.b16 %v553
    %v3156 = vunpack.c.h.b16 %v553
    %v3157 = vunpack.c.l.b16 %v554
    %v3158 = vunpack.c.h.b16 %v554
    %v3159 = vunpack.c.l.b16 %v555
    %v3160 = vunpack.c.h.b16 %v555
    %v3161 = vunpack.c.l.b16 %v556
    %v3162 = vunpack.c.h.b16 %v556
    %v3163 = vunpack.c.l.b16 %v557
    %v3164 = vunpack.c.h.b16 %v557
    %v3165 = vunpack.c.l.b16 %v558
    %v3166 = vunpack.c.h.b16 %v558
    %v3167 = vunpack.c.l.b16 %v559
    %v3168 = vunpack.c.h.b16 %v559
    %v3169 = vunpack.c.l.b16 %v560
    %v3170 = vunpack.c.h.b16 %v560
    %v3171 = vunpack.c.l.b16 %v561
    %v3172 = vunpack.c.h.b16 %v561
    %v3173 = vunpack.c.l.b16 %v562
    %v3174 = vunpack.c.h.b16 %v562
    %v3175 = vunpack.c.l.b16 %v563
    %v3176 = vunpack.c.h.b16 %v563
    %v3177 = vunpack.c.l.b16 %v564
    %v3178 = vunpack.c.h.b16 %v564
    %v3179 = vunpack.c.l.b16 %v565
    %v3180 = vunpack.c.h.b16 %v565
    %v3181 = vunpack.c.l.b16 %v566
    %v3182 = vunpack.c.h.b16 %v566
    %v3183 = vunpack.c.l.b16 %v567
    %v3184 = vunpack.c.h.b16 %v567
    %v3185 = vunpack.c.l.b16 %v568
    %v3186 = vunpack.c.h.b16 %v568
    %v3187 = vunpack.c.l.b16 %v569
    %v3188 = vunpack.c.h.b16 %v569
    %v3189 = vunpack.c.l.b16 %v570
    %v3190 = vunpack.c.h.b16 %v570
    %v3191 = vunpack.c.l.b16 %v571
    %v3192 = vunpack.c.h.b16 %v571
    %v3193 = vunpack.c.l.b16 %v572
    %v3194 = vunpack.c.h.b16 %v572
    %v3195 = vunpack.c.l.b16 %v573
    %v3196 = vunpack.c.h.b16 %v573
    %v3197 = vunpack.c.l.b16 %v574
    %v3198 = vunpack.c.h.b16 %v574
    %v3199 = vunpack.c.l.b16 %v575
    %v3200 = vunpack.c.h.b16 %v575
    %v3201 = vunpack.c.l.b16 %v576
    %v3202 = vunpack.c.h.b16 %v576
    %v3203 = vunpack.c.l.b16 %v577
    %v3204 = vunpack.c.h.b16 %v577
    %v3205 = vunpack.c.l.b16 %v578
    %v3206 = vunpack.c.h.b16 %v578
    %v3207 = vunpack.c.l.b16 %v579
    %v3208 = vunpack.c.h.b16 %v579
    %v3209 = vunpack.c.l.b16 %v580
    %v3210 = vunpack.c.h.b16 %v580
    %v3211 = vunpack.c.l.b16 %v581
    %v3212 = vunpack.c.h.b16 %v581
    %v3213 = vunpack.c.l.b16 %v582
    %v3214 = vunpack.c.h.b16 %v582
    %v3215 = vunpack.c.l.b16 %v583
    %v3216 = vunpack.c.h.b16 %v583
    %v3217 = vunpack.c.l.b16 %v584
    %v3218 = vunpack.c.h.b16 %v584
    %v3219 = vunpack.c.l.b16 %v585
    %v3220 = vunpack.c.h.b16 %v585
    %v3221 = vunpack.c.l.b16 %v586
    %v3222 = vunpack.c.h.b16 %v586
    %v3223 = vunpack.c.l.b16 %v587
    %v3224 = vunpack.c.h.b16 %v587
    %v3225 = vunpack.c.l.b16 %v588
    %v3226 = vunpack.c.h.b16 %v588
    %v3227 = vunpack.c.l.b16 %v589
    %v3228 = vunpack.c.h.b16 %v589
    %v3229 = vunpack.c.l.b16 %v590
    %v3230 = vunpack.c.h.b16 %v590
    %v3231 = vunpack.c.l.b16 %v591
    %v3232 = vunpack.c.h.b16 %v591
    %v3233 = vunpack.c.l.b16 %v592
    %v3234 = vunpack.c.h.b16 %v592
    %v3235 = vunpack.c.l.b16 %v593
    %v3236 = vunpack.c.h.b16 %v593
    %v3237 = vunpack.c.l.b16 %v594
    %v3238 = vunpack.c.h.b16 %v594
    %v3239 = vunpack.c.l.b16 %v595
    %v3240 = vunpack.c.h.b16 %v595
    %v3241 = vunpack.c.l.b16 %v596
    %v3242 = vunpack.c.h.b16 %v596
    %v3243 = vunpack.c.l.b16 %v597
    %v3244 = vunpack.c.h.b16 %v597
    %v3245 = vunpack.c.l.b16 %v598
    %v3246 = vunpack.c.h.b16 %v598
    %v3247 = vunpack.c.l.b16 %v599
    %v3248 = vunpack.c.h.b16 %v599
    %v3249 = vunpack.c.l.b16 %v600
    %v3250 = vunpack.c.h.b16 %v600
    %v3251 = vunpack.c.l.b16 %v601
    %v3252 = vunpack.c.h.b16 %v601
    %v3253 = vunpack.c.l.b16 %v602
    %v3254 = vunpack.c.h.b16 %v602
    %v3255 = vunpack.c.l.b16 %v603
    %v3256 = vunpack.c.h.b16 %v603
    %v3257 = vunpack.c.l.b16 %v604
    %v3258 = vunpack.c.h.b16 %v604
    %v3259 = vunpack.c.l.b16 %v605
    %v3260 = vunpack.c.h.b16 %v605
    %v3261 = vunpack.c.l.b16 %v606
    %v3262 = vunpack.c.h.b16 %v606
    %v3263 = vunpack.c.l.b16 %v607
    %v3264 = vunpack.c.h.b16 %v607
    %v3265 = vunpack.c.l.b16 %v608
    %v3266 = vunpack.c.h.b16 %v608
    %v3267 = vunpack.c.l.b16 %v609
    %v3268 = vunpack.c.h.b16 %v609
    %v3269 = vunpack.c.l.b16 %v610
    %v3270 = vunpack.c.h.b16 %v610
    %v3271 = vunpack.c.l.b16 %v611
    %v3272 = vunpack.c.h.b16 %v611
    %v3273 = vunpack.c.l.b16 %v612
    %v3274 = vunpack.c.h.b16 %v612
    %v3275 = vunpack.c.l.b16 %v613
    %v3276 = vunpack.c.h.b16 %v613
    %v3277 = vunpack.c.l.b16 %v614
    %v3278 = vunpack.c.h.b16 %v614
    %v3279 = vunpack.c.l.b16 %v615
    %v3280 = vunpack.c.h.b16 %v615
    %v3281 = vunpack.c.l.b16 %v616
    %v3282 = vunpack.c.h.b16 %v616
    %v3283 = vunpack.c.l.b16 %v617
    %v3284 = vunpack.c.h.b16 %v617
    %v3285 = vunpack.c.l.b16 %v618
    %v3286 = vunpack.c.h.b16 %v618
    %v3287 = vunpack.c.l.b16 %v619
    %v3288 = vunpack.c.h.b16 %v619
    %v3289 = vunpack.c.l.b16 %v620
    %v3290 = vunpack.c.h.b16 %v620
    %v3291 = vunpack.c.l.b16 %v621
    %v3292 = vunpack.c.h.b16 %v621
    %v3293 = vunpack.c.l.b16 %v622
    %v3294 = vunpack.c.h.b16 %v622
    %v3295 = vunpack.c.l.b16 %v623
    %v3296 = vunpack.c.h.b16 %v623
    %v3297 = vunpack.c.l.b16 %v624
    %v3298 = vunpack.c.h.b16 %v624
    %v3299 = vunpack.c.l.b16 %v625
    %v3300 = vunpack.c.h.b16 %v625
    %v3301 = vunpack.c.l.b16 %v626
    %v3302 = vunpack.c.h.b16 %v626
    %v3303 = vunpack.c.l.b16 %v627
    %v3304 = vunpack.c.h.b16 %v627
    %v3305 = vunpack.c.l.b16 %v628
    %v3306 = vunpack.c.h.b16 %v628
    %v3307 = vunpack.c.l.b16 %v629
    %v3308 = vunpack.c.h.b16 %v629
    %v3309 = vunpack.c.l.b16 %v630
    %v3310 = vunpack.c.h.b16 %v630
    %v3311 = vunpack.c.l.b16 %v631
    %v3312 = vunpack.c.h.b16 %v631
    %v3313 = vunpack.c.l.b16 %v632
    %v3314 = vunpack.c.h.b16 %v632
    %v3315 = vunpack.c.l.b16 %v633
    %v3316 = vunpack.c.h.b16 %v633
    %v3317 = vunpack.c.l.b16 %v634
    %v3318 = vunpack.c.h.b16 %v634
    %v3319 = vunpack.c.l.b16 %v635
    %v3320 = vunpack.c.h.b16 %v635
    %v3321 = vunpack.c.l.b16 %v636
    %v3322 = vunpack.c.h.b16 %v636
    %v3323 = vunpack.c.l.b16 %v637
    %v3324 = vunpack.c.h.b16 %v637
    %v3325 = vunpack.c.l.b16 %v638
    %v3326 = vunpack.c.h.b16 %v638
    %v3327 = vunpack.c.l.b16 %v639
    %v3328 = vunpack.c.h.b16 %v639
    %v3329 = vunpack.c.l.b16 %v640
    %v3330 = vunpack.c.h.b16 %v640
    %v3331 = vunpack.c.l.b16 %v641
    %v3332 = vunpack.c.h.b16 %v641
    %v3333 = vunpack.c.l.b16 %v642
    %v3334 = vunpack.c.h.b16 %v642
    %v3335 = vunpack.c.l.b16 %v643
    %v3336 = vunpack.c.h.b16 %v643
    %v3337 = vunpack.c.l.b16 %v644
    %v3338 = vunpack.c.h.b16 %v644
    %v3339 = vunpack.c.l.b16 %v645
    %v3340 = vunpack.c.h.b16 %v645
    %v3341 = vunpack.c.l.b16 %v646
    %v3342 = vunpack.c.h.b16 %v646
    %v3343 = vunpack.c.l.b16 %v647
    %v3344 = vunpack.c.h.b16 %v647
    %v3345 = vunpack.c.l.b16 %v648
    %v3346 = vunpack.c.h.b16 %v648
    %v3347 = vunpack.c.l.b16 %v649
    %v3348 = vunpack.c.h.b16 %v649
    %v3349 = vunpack.c.l.b16 %v650
    %v3350 = vunpack.c.h.b16 %v650
    %v3351 = vunpack.c.l.b16 %v651
    %v3352 = vunpack.c.h.b16 %v651
    %v3353 = vunpack.c.l.b16 %v652
    %v3354 = vunpack.c.h.b16 %v652
    %v3355 = vunpack.c.l.b16 %v653
    %v3356 = vunpack.c.h.b16 %v653
    %v3357 = vunpack.c.l.b16 %v654
    %v3358 = vunpack.c.h.b16 %v654
    %v3359 = vunpack.c.l.b16 %v655
    %v3360 = vunpack.c.h.b16 %v655
    %v3361 = vunpack.c.l.b16 %v656
    %v3362 = vunpack.c.h.b16 %v656
    %v3363 = vunpack.c.l.b16 %v657
    %v3364 = vunpack.c.h.b16 %v657
    %v3365 = vunpack.c.l.b16 %v658
    %v3366 = vunpack.c.h.b16 %v658
    %v3367 = vunpack.c.l.b16 %v659
    %v3368 = vunpack.c.h.b16 %v659
    %v3369 = vunpack.c.l.b16 %v660
    %v3370 = vunpack.c.h.b16 %v660
    %v3371 = vunpack.c.l.b16 %v661
    %v3372 = vunpack.c.h.b16 %v661
    %v3373 = vunpack.c.l.b16 %v662
    %v3374 = vunpack.c.h.b16 %v662
    %v3375 = vunpack.c.l.b16 %v663
    %v3376 = vunpack.c.h.b16 %v663
    %v3377 = vunpack.c.l.b16 %v664
    %v3378 = vunpack.c.h.b16 %v664
    %v3379 = vunpack.c.l.b16 %v665
    %v3380 = vunpack.c.h.b16 %v665
    %v3381 = vunpack.c.l.b16 %v666
    %v3382 = vunpack.c.h.b16 %v666
    %v3383 = vunpack.c.l.b16 %v667
    %v3384 = vunpack.c.h.b16 %v667
    %v3385 = vunpack.c.l.b16 %v668
    %v3386 = vunpack.c.h.b16 %v668
    %v3387 = vunpack.c.l.b16 %v669
    %v3388 = vunpack.c.h.b16 %v669
    %v3389 = vunpack.c.l.b16 %v670
    %v3390 = vunpack.c.h.b16 %v670
    %v3391 = vunpack.c.l.b16 %v671
    %v3392 = vunpack.c.h.b16 %v671
    %v3393 = vunpack.c.l.b16 %v672
    %v3394 = vunpack.c.h.b16 %v672
    %v3395 = vunpack.c.l.b16 %v673
    %v3396 = vunpack.c.h.b16 %v673
    %v3397 = vunpack.c.l.b16 %v674
    %v3398 = vunpack.c.h.b16 %v674
    %v3399 = vunpack.c.l.b16 %v675
    %v3400 = vunpack.c.h.b16 %v675
    %v3401 = vunpack.c.l.b16 %v676
    %v3402 = vunpack.c.h.b16 %v676
    %v3403 = vunpack.c.l.b16 %v677
    %v3404 = vunpack.c.h.b16 %v677
    %v3405 = vunpack.c.l.b16 %v678
    %v3406 = vunpack.c.h.b16 %v678
    %v3407 = vunpack.c.l.b16 %v679
    %v3408 = vunpack.c.h.b16 %v679
    %v3409 = vunpack.c.l.b16 %v680
    %v3410 = vunpack.c.h.b16 %v680
    %v3411 = vunpack.c.l.b16 %v681
    %v3412 = vunpack.c.h.b16 %v681
    %v3413 = vunpack.c.l.b16 %v682
    %v3414 = vunpack.c.h.b16 %v682
    %v3415 = vunpack.c.l.b16 %v683
    %v3416 = vunpack.c.h.b16 %v683
    %v3417 = vunpack.c.l.b16 %v684
    %v3418 = vunpack.c.h.b16 %v684
    %v3419 = vunpack.c.l.b16 %v685
    %v3420 = vunpack.c.h.b16 %v685
    %v3421 = vunpack.c.l.b16 %v686
    %v3422 = vunpack.c.h.b16 %v686
    %v3423 = vunpack.c.l.b16 %v687
    %v3424 = vunpack.c.h.b16 %v687
    %v3425 = vunpack.c.l.b16 %v688
    %v3426 = vunpack.c.h.b16 %v688
    %v3427 = vunpack.c.l.b16 %v689
    %v3428 = vunpack.c.h.b16 %v689
    %v3429 = vunpack.c.l.b16 %v690
    %v3430 = vunpack.c.h.b16 %v690
    %v3431 = vunpack.c.l.b16 %v691
    %v3432 = vunpack.c.h.b16 %v691
    %v3433 = vunpack.c.l.b16 %v692
    %v3434 = vunpack.c.h.b16 %v692
    %v3435 = vunpack.c.l.b16 %v693
    %v3436 = vunpack.c.h.b16 %v693
    %v3437 = vunpack.c.l.b16 %v694
    %v3438 = vunpack.c.h.b16 %v694
    %v3439 = vunpack.c.l.b16 %v695
    %v3440 = vunpack.c.h.b16 %v695
    %v3441 = vunpack.c.l.b16 %v696
    %v3442 = vunpack.c.h.b16 %v696
    %v3443 = vunpack.c.l.b16 %v697
    %v3444 = vunpack.c.h.b16 %v697
    %v3445 = vunpack.c.l.b16 %v698
    %v3446 = vunpack.c.h.b16 %v698
    %v3447 = vunpack.c.l.b16 %v699
    %v3448 = vunpack.c.h.b16 %v699
    %v3449 = vunpack.c.l.b16 %v700
    %v3450 = vunpack.c.h.b16 %v700
    %v3451 = vunpack.c.l.b16 %v701
    %v3452 = vunpack.c.h.b16 %v701
    %v3453 = vunpack.c.l.b16 %v702
    %v3454 = vunpack.c.h.b16 %v702
    %v3455 = vunpack.c.l.b16 %v703
    %v3456 = vunpack.c.h.b16 %v703
    %v3457 = vunpack.c.l.b16 %v704
    %v3458 = vunpack.c.h.b16 %v704
    %v3459 = vunpack.c.l.b16 %v705
    %v3460 = vunpack.c.h.b16 %v705
    %v3461 = vunpack.c.l.b16 %v706
    %v3462 = vunpack.c.h.b16 %v706
    %v3463 = vunpack.c.l.b16 %v707
    %v3464 = vunpack.c.h.b16 %v707
    %v3465 = vunpack.c.l.b16 %v708
    %v3466 = vunpack.c.h.b16 %v708
    %v3467 = vunpack.c.l.b16 %v709
    %v3468 = vunpack.c.h.b16 %v709
    %v3469 = vunpack.c.l.b16 %v710
    %v3470 = vunpack.c.h.b16 %v710
    %v3471 = vunpack.c.l.b16 %v711
    %v3472 = vunpack.c.h.b16 %v711
    %v3473 = vunpack.c.l.b16 %v712
    %v3474 = vunpack.c.h.b16 %v712
    %v3475 = vunpack.c.l.b16 %v713
    %v3476 = vunpack.c.h.b16 %v713
    %v3477 = vunpack.c.l.b16 %v714
    %v3478 = vunpack.c.h.b16 %v714
    %v3479 = vunpack.c.l.b16 %v715
    %v3480 = vunpack.c.h.b16 %v715
    %v3481 = vunpack.c.l.b16 %v716
    %v3482 = vunpack.c.h.b16 %v716
    %v3483 = vunpack.c.l.b16 %v717
    %v3484 = vunpack.c.h.b16 %v717
    %v3485 = vunpack.c.l.b16 %v718
    %v3486 = vunpack.c.h.b16 %v718
    %v3487 = vunpack.c.l.b16 %v719
    %v3488 = vunpack.c.h.b16 %v719
    %v3489 = vunpack.c.l.b16 %v720
    %v3490 = vunpack.c.h.b16 %v720
    %v3491 = vunpack.c.l.b16 %v721
    %v3492 = vunpack.c.h.b16 %v721
    %v3493 = vunpack.c.l.b16 %v722
    %v3494 = vunpack.c.h.b16 %v722
    %v3495 = vunpack.c.l.b16 %v723
    %v3496 = vunpack.c.h.b16 %v723
    %v3497 = vunpack.c.l.b16 %v724
    %v3498 = vunpack.c.h.b16 %v724
    %v3499 = vunpack.c.l.b16 %v725
    %v3500 = vunpack.c.h.b16 %v725
    %v3501 = vunpack.c.l.b16 %v726
    %v3502 = vunpack.c.h.b16 %v726
    %v3503 = vunpack.c.l.b16 %v727
    %v3504 = vunpack.c.h.b16 %v727
    %v3505 = vunpack.c.l.b16 %v728
    %v3506 = vunpack.c.h.b16 %v728
    %v3507 = vunpack.c.l.b16 %v729
    %v3508 = vunpack.c.h.b16 %v729
    %v3509 = vunpack.c.l.b16 %v730
    %v3510 = vunpack.c.h.b16 %v730
    %v3511 = vunpack.c.l.b16 %v731
    %v3512 = vunpack.c.h.b16 %v731
    %v3513 = vunpack.c.l.b16 %v732
    %v3514 = vunpack.c.h.b16 %v732
    %v3515 = vunpack.c.l.b16 %v733
    %v3516 = vunpack.c.h.b16 %v733
    %v3517 = vunpack.c.l.b16 %v734
    %v3518 = vunpack.c.h.b16 %v734
    %v3519 = vunpack.c.l.b16 %v735
    %v3520 = vunpack.c.h.b16 %v735
    %v3521 = vunpack.c.l.b16 %v736
    %v3522 = vunpack.c.h.b16 %v736
    %v3523 = vunpack.c.l.b16 %v737
    %v3524 = vunpack.c.h.b16 %v737
    %v3525 = vunpack.c.l.b16 %v738
    %v3526 = vunpack.c.h.b16 %v738
    %v3527 = vunpack.c.l.b16 %v739
    %v3528 = vunpack.c.h.b16 %v739
    %v3529 = vunpack.c.l.b16 %v740
    %v3530 = vunpack.c.h.b16 %v740
    %v3531 = vunpack.c.l.b16 %v741
    %v3532 = vunpack.c.h.b16 %v741
    %v3533 = vunpack.c.l.b16 %v742
    %v3534 = vunpack.c.h.b16 %v742
    %v3535 = vunpack.c.l.b16 %v743
    %v3536 = vunpack.c.h.b16 %v743
    %v3537 = vunpack.c.l.b16 %v744
    %v3538 = vunpack.c.h.b16 %v744
    %v3539 = vunpack.c.l.b16 %v745
    %v3540 = vunpack.c.h.b16 %v745
    %v3541 = vunpack.c.l.b16 %v746
    %v3542 = vunpack.c.h.b16 %v746
    %v3543 = vunpack.c.l.b16 %v747
    %v3544 = vunpack.c.h.b16 %v747
    %v3545 = vunpack.c.l.b16 %v748
    %v3546 = vunpack.c.h.b16 %v748
    %v3547 = vunpack.c.l.b16 %v749
    %v3548 = vunpack.c.h.b16 %v749
    %v3549 = vunpack.c.l.b16 %v750
    %v3550 = vunpack.c.h.b16 %v750
    %v3551 = vunpack.c.l.b16 %v751
    %v3552 = vunpack.c.h.b16 %v751
    %v3553 = vunpack.c.l.b16 %v752
    %v3554 = vunpack.c.h.b16 %v752
    %v3555 = vunpack.c.l.b16 %v753
    %v3556 = vunpack.c.h.b16 %v753
    %v3557 = vunpack.c.l.b16 %v754
    %v3558 = vunpack.c.h.b16 %v754
    %v3559 = vunpack.c.l.b16 %v755
    %v3560 = vunpack.c.h.b16 %v755
    %v3561 = vunpack.c.l.b16 %v756
    %v3562 = vunpack.c.h.b16 %v756
    %v3563 = vunpack.c.l.b16 %v757
    %v3564 = vunpack.c.h.b16 %v757
    %v3565 = vunpack.c.l.b16 %v758
    %v3566 = vunpack.c.h.b16 %v758
    %v3567 = vunpack.c.l.b16 %v759
    %v3568 = vunpack.c.h.b16 %v759
    %v3569 = vunpack.c.l.b16 %v760
    %v3570 = vunpack.c.h.b16 %v760
    %v3571 = vunpack.c.l.b16 %v761
    %v3572 = vunpack.c.h.b16 %v761
    %v3573 = vunpack.c.l.b16 %v762
    %v3574 = vunpack.c.h.b16 %v762
    %v3575 = vunpack.c.l.b16 %v763
    %v3576 = vunpack.c.h.b16 %v763
    %v3577 = vunpack.c.l.b16 %v764
    %v3578 = vunpack.c.h.b16 %v764
    %v3579 = vunpack.c.l.b16 %v765
    %v3580 = vunpack.c.h.b16 %v765
    %v3581 = vunpack.c.l.b16 %v766
    %v3582 = vunpack.c.h.b16 %v766
    %v3583 = vunpack.c.l.b16 %v767
    %v3584 = vunpack.c.h.b16 %v767
    %v3585 = vunpack.c.l.b16 %v768
    %v3586 = vunpack.c.h.b16 %v768
    %v3587 = vunpack.c.l.b16 %v769
    %v3588 = vunpack.c.h.b16 %v769
    %v3589 = vunpack.c.l.b16 %v770
    %v3590 = vunpack.c.h.b16 %v770
    %v3591 = vunpack.c.l.b16 %v771
    %v3592 = vunpack.c.h.b16 %v771
    %v3593 = vunpack.c.l.b16 %v772
    %v3594 = vunpack.c.h.b16 %v772
    %v3595 = vunpack.c.l.b16 %v773
    %v3596 = vunpack.c.h.b16 %v773
    %v3597 = vunpack.c.l.b16 %v774
    %v3598 = vunpack.c.h.b16 %v774
    %v3599 = vunpack.c.l.b16 %v775
    %v3600 = vunpack.c.h.b16 %v775
    %v3601 = vunpack.c.l.b16 %v776
    %v3602 = vunpack.c.h.b16 %v776
    %v3603 = vunpack.c.l.b16 %v777
    %v3604 = vunpack.c.h.b16 %v777
    %v3605 = vunpack.c.l.b16 %v778
    %v3606 = vunpack.c.h.b16 %v778
    %v3607 = vunpack.c.l.b16 %v779
    %v3608 = vunpack.c.h.b16 %v779
    %v3609 = vunpack.c.l.b16 %v780
    %v3610 = vunpack.c.h.b16 %v780
    %v3611 = vunpack.c.l.b16 %v781
    %v3612 = vunpack.c.h.b16 %v781
    %v3613 = vunpack.c.l.b16 %v782
    %v3614 = vunpack.c.h.b16 %v782
    %v3615 = vunpack.c.l.b16 %v783
    %v3616 = vunpack.c.h.b16 %v783
    %v3617 = vunpack.c.l.b16 %v784
    %v3618 = vunpack.c.h.b16 %v784
    %v3619 = vunpack.c.l.b16 %v785
    %v3620 = vunpack.c.h.b16 %v785
    %v3621 = vunpack.c.l.b16 %v786
    %v3622 = vunpack.c.h.b16 %v786
    %v3623 = vunpack.c.l.b16 %v787
    %v3624 = vunpack.c.h.b16 %v787
    %v3625 = vunpack.c.l.b16 %v788
    %v3626 = vunpack.c.h.b16 %v788
    %v3627 = vunpack.c.l.b16 %v789
    %v3628 = vunpack.c.h.b16 %v789
    %v3629 = vunpack.c.l.b16 %v790
    %v3630 = vunpack.c.h.b16 %v790
    %v3631 = vunpack.c.l.b16 %v791
    %v3632 = vunpack.c.h.b16 %v791
    %v3633 = vunpack.c.l.b16 %v792
    %v3634 = vunpack.c.h.b16 %v792
    %v3635 = vunpack.c.l.b16 %v793
    %v3636 = vunpack.c.h.b16 %v793
    %v3637 = vunpack.c.l.b16 %v794
    %v3638 = vunpack.c.h.b16 %v794
    %v3639 = vunpack.c.l.b16 %v795
    %v3640 = vunpack.c.h.b16 %v795
    %v3641 = vunpack.c.l.b16 %v796
    %v3642 = vunpack.c.h.b16 %v796
    %v3643 = vunpack.c.l.b16 %v797
    %v3644 = vunpack.c.h.b16 %v797
    %v3645 = vunpack.c.l.b16 %v798
    %v3646 = vunpack.c.h.b16 %v798
    %v3647 = vunpack.c.l.b16 %v799
    %v3648 = vunpack.c.h.b16 %v799
    %v3649 = vunpack.c.l.b16 %v800
    %v3650 = vunpack.c.h.b16 %v800
    %v3651 = vunpack.c.l.b16 %v801
    %v3652 = vunpack.c.h.b16 %v801
    %v3653 = vunpack.c.l.b16 %v802
    %v3654 = vunpack.c.h.b16 %v802
    %v3655 = vunpack.c.l.b16 %v803
    %v3656 = vunpack.c.h.b16 %v803
    %v3657 = vunpack.c.l.b16 %v804
    %v3658 = vunpack.c.h.b16 %v804
    %v3659 = vunpack.c.l.b16 %v805
    %v3660 = vunpack.c.h.b16 %v805
    %v3661 = vunpack.c.l.b16 %v806
    %v3662 = vunpack.c.h.b16 %v806
    %v3663 = vunpack.c.l.b16 %v807
    %v3664 = vunpack.c.h.b16 %v807
    %v3665 = vunpack.c.l.b16 %v808
    %v3666 = vunpack.c.h.b16 %v808
    %v3667 = vunpack.c.l.b16 %v809
    %v3668 = vunpack.c.h.b16 %v809
    %v3669 = vunpack.c.l.b16 %v810
    %v3670 = vunpack.c.h.b16 %v810
    %v3671 = vunpack.c.l.b16 %v811
    %v3672 = vunpack.c.h.b16 %v811
    %v3673 = vunpack.c.l.b16 %v812
    %v3674 = vunpack.c.h.b16 %v812
    %v3675 = vunpack.c.l.b16 %v813
    %v3676 = vunpack.c.h.b16 %v813
    %v3677 = vunpack.c.l.b16 %v814
    %v3678 = vunpack.c.h.b16 %v814
    %v3679 = vunpack.c.l.b16 %v815
    %v3680 = vunpack.c.h.b16 %v815
    %v3681 = vunpack.c.l.b16 %v816
    %v3682 = vunpack.c.h.b16 %v816
    %v3683 = vunpack.c.l.b16 %v817
    %v3684 = vunpack.c.h.b16 %v817
    %v3685 = vunpack.c.l.b16 %v818
    %v3686 = vunpack.c.h.b16 %v818
    %v3687 = vunpack.c.l.b16 %v819
    %v3688 = vunpack.c.h.b16 %v819
    %v3689 = vunpack.c.l.b16 %v820
    %v3690 = vunpack.c.h.b16 %v820
    %v3691 = vunpack.c.l.b16 %v821
    %v3692 = vunpack.c.h.b16 %v821
    %v3693 = vunpack.c.l.b16 %v822
    %v3694 = vunpack.c.h.b16 %v822
    %v3695 = vunpack.c.l.b16 %v823
    %v3696 = vunpack.c.h.b16 %v823
    %v3697 = vunpack.c.l.b16 %v824
    %v3698 = vunpack.c.h.b16 %v824
    %v3699 = vunpack.c.l.b16 %v825
    %v3700 = vunpack.c.h.b16 %v825
    %v3701 = vunpack.c.l.b16 %v826
    %v3702 = vunpack.c.h.b16 %v826
    %v3703 = vunpack.c.l.b16 %v827
    %v3704 = vunpack.c.h.b16 %v827
    %v3705 = vunpack.c.l.b16 %v828
    %v3706 = vunpack.c.h.b16 %v828
    %v3707 = vunpack.c.l.b16 %v829
    %v3708 = vunpack.c.h.b16 %v829
    %v3709 = vunpack.c.l.b16 %v830
    %v3710 = vunpack.c.h.b16 %v830
    %v3711 = vunpack.c.l.b16 %v831
    %v3712 = vunpack.c.h.b16 %v831
    %v3713 = vunpack.c.l.b16 %v832
    %v3714 = vunpack.c.h.b16 %v832
    %v3715 = vunpack.c.l.b16 %v833
    %v3716 = vunpack.c.h.b16 %v833
    %v3717 = vunpack.c.l.b16 %v834
    %v3718 = vunpack.c.h.b16 %v834
    %v3719 = vunpack.c.l.b16 %v835
    %v3720 = vunpack.c.h.b16 %v835
    %v3721 = vunpack.c.l.b16 %v836
    %v3722 = vunpack.c.h.b16 %v836
    %v3723 = vunpack.c.l.b16 %v837
    %v3724 = vunpack.c.h.b16 %v837
    %v3725 = vpack.c.b16 %v2161, %v2157
    %v3726 = vpack.c.b16 %v2162, %v2158
    %v3727 = vpack.c.b16 %v2163, %v2159
    %v3728 = vpack.c.b16 %v2164, %v2160
    %v3729 = vpack.c.b16 %v2169, %v2165
    %v3730 = vpack.c.b16 %v2170, %v2166
    %v3731 = vpack.c.b16 %v2171, %v2167
    %v3732 = vpack.c.b16 %v2172, %v2168
    %v3733 = vpack.c.b16 %v2177, %v2173
    %v3734 = vpack.c.b16 %v2178, %v2174
    %v3735 = vpack.c.b16 %v2179, %v2175
    %v3736 = vpack.c.b16 %v2180, %v2176
    %v3737 = vpack.c.b16 %v2185, %v2181
    %v3738 = vpack.c.b16 %v2186, %v2182
    %v3739 = vpack.c.b16 %v2187, %v2183
    %v3740 = vpack.c.b16 %v2188, %v2184
    %v3741 = vpack.c.b16 %v2193, %v2189
    %v3742 = vpack.c.b16 %v2194, %v2190
    %v3743 = vpack.c.b16 %v2195, %v2191
    %v3744 = vpack.c.b16 %v2196, %v2192
    %v3745 = vpack.c.b16 %v2201, %v2197
    %v3746 = vpack.c.b16 %v2202, %v2198
    %v3747 = vpack.c.b16 %v2203, %v2199
    %v3748 = vpack.c.b16 %v2204, %v2200
    %v3749 = vpack.c.b16 %v2209, %v2205
    %v3750 = vpack.c.b16 %v2210, %v2206
    %v3751 = vpack.c.b16 %v2211, %v2207
    %v3752 = vpack.c.b16 %v2212, %v2208
    %v3753 = vpack.c.b16 %v2217, %v2213
    %v3754 = vpack.c.b16 %v2218, %v2214
    %v3755 = vpack.c.b16 %v2219, %v2215
    %v3756 = vpack.c.b16 %v2220, %v2216
    %v3757 = vpack.c.b16 %v2225, %v2221
    %v3758 = vpack.c.b16 %v2226, %v2222
    %v3759 = vpack.c.b16 %v2227, %v2223
    %v3760 = vpack.c.b16 %v2228, %v2224
    %v3761 = vpack.c.b16 %v2233, %v2229
    %v3762 = vpack.c.b16 %v2234, %v2230
    %v3763 = vpack.c.b16 %v2235, %v2231
    %v3764 = vpack.c.b16 %v2236, %v2232
    %v3765 = vpack.c.b16 %v2241, %v2237
    %v3766 = vpack.c.b16 %v2242, %v2238
    %v3767 = vpack.c.b16 %v2243, %v2239
    %v3768 = vpack.c.b16 %v2244, %v2240
    %v3769 = vpack.c.b16 %v2249, %v2245
    %v3770 = vpack.c.b16 %v2250, %v2246
    %v3771 = vpack.c.b16 %v2251, %v2247
    %v3772 = vpack.c.b16 %v2252, %v2248
    %v3773 = vpack.c.b16 %v2257, %v2253
    %v3774 = vpack.c.b16 %v2258, %v2254
    %v3775 = vpack.c.b16 %v2259, %v2255
    %v3776 = vpack.c.b16 %v2260, %v2256
    %v3777 = vpack.c.b16 %v2265, %v2261
    %v3778 = vpack.c.b16 %v2266, %v2262
    %v3779 = vpack.c.b16 %v2267, %v2263
    %v3780 = vpack.c.b16 %v2268, %v2264
    %v3781 = vpack.c.b16 %v2273, %v2269
    %v3782 = vpack.c.b16 %v2274, %v2270
    %v3783 = vpack.c.b16 %v2275, %v2271
    %v3784 = vpack.c.b16 %v2276, %v2272
    %v3785 = vpack.c.b16 %v2281, %v2277
    %v3786 = vpack.c.b16 %v2282, %v2278
    %v3787 = vpack.c.b16 %v2283, %v2279
    %v3788 = vpack.c.b16 %v2284, %v2280
    %v3789 = vpack.c.b16 %v2289, %v2285
    %v3790 = vpack.c.b16 %v2290, %v2286
    %v3791 = vpack.c.b16 %v2291, %v2287
    %v3792 = vpack.c.b16 %v2292, %v2288
    %v3793 = vpack.c.b16 %v2297, %v2293
    %v3794 = vpack.c.b16 %v2298, %v2294
    %v3795 = vpack.c.b16 %v2299, %v2295
    %v3796 = vpack.c.b16 %v2300, %v2296
    %v3797 = vpack.c.b16 %v2305, %v2301
    %v3798 = vpack.c.b16 %v2306, %v2302
    %v3799 = vpack.c.b16 %v2307, %v2303
    %v3800 = vpack.c.b16 %v2308, %v2304
    %v3801 = vpack.c.b16 %v2313, %v2309
    %v3802 = vpack.c.b16 %v2314, %v2310
    %v3803 = vpack.c.b16 %v2315, %v2311
    %v3804 = vpack.c.b16 %v2316, %v2312
    %v3805 = vpack.c.b16 %v2321, %v2317
    %v3806 = vpack.c.b16 %v2322, %v2318
    %v3807 = vpack.c.b16 %v2323, %v2319
    %v3808 = vpack.c.b16 %v2324, %v2320
    %v3809 = vpack.c.b16 %v2329, %v2325
    %v3810 = vpack.c.b16 %v2330, %v2326
    %v3811 = vpack.c.b16 %v2331, %v2327
    %v3812 = vpack.c.b16 %v2332, %v2328
    %v3813 = vpack.c.b16 %v2337, %v2333
    %v3814 = vpack.c.b16 %v2338, %v2334
    %v3815 = vpack.c.b16 %v2339, %v2335
    %v3816 = vpack.c.b16 %v2340, %v2336
    %v3817 = vpack.c.b16 %v2345, %v2341
    %v3818 = vpack.c.b16 %v2346, %v2342
    %v3819 = vpack.c.b16 %v2347, %v2343
    %v3820 = vpack.c.b16 %v2348, %v2344
    %v3821 = vpack.c.b16 %v2353, %v2349
    %v3822 = vpack.c.b16 %v2354, %v2350
    %v3823 = vpack.c.b16 %v2355, %v2351
    %v3824 = vpack.c.b16 %v2356, %v2352
    %v3825 = vpack.c.b16 %v2361, %v2357
    %v3826 = vpack.c.b16 %v2362, %v2358
    %v3827 = vpack.c.b16 %v2363, %v2359
    %v3828 = vpack.c.b16 %v2364, %v2360
    %v3829 = vpack.c.b16 %v2369, %v2365
    %v3830 = vpack.c.b16 %v2370, %v2366
    %v3831 = vpack.c.b16 %v2371, %v2367
    %v3832 = vpack.c.b16 %v2372, %v2368
    %v3833 = vpack.c.b16 %v2377, %v2373
    %v3834 = vpack.c.b16 %v2378, %v2374
    %v3835 = vpack.c.b16 %v2379, %v2375
    %v3836 = vpack.c.b16 %v2380, %v2376
    %v3837 = vpack.c.b16 %v2385, %v2381
    %v3838 = vpack.c.b16 %v2386, %v2382
    %v3839 = vpack.c.b16 %v2387, %v2383
    %v3840 = vpack.c.b16 %v2388, %v2384
    %v3841 = vpack.c.b16 %v2393, %v2389
    %v3842 = vpack.c.b16 %v2394, %v2390
    %v3843 = vpack.c.b16 %v2395, %v2391
    %v3844 = vpack.c.b16 %v2396, %v2392
    %v3845 = vpack.c.b16 %v2401, %v2397
    %v3846 = vpack.c.b16 %v2402, %v2398
    %v3847 = vpack.c.b16 %v2403, %v2399
    %v3848 = vpack.c.b16 %v2404, %v2400
    %v3849 = vpack.c.b16 %v2409, %v2405
    %v3850 = vpack.c.b16 %v2410, %v2406
    %v3851 = vpack.c.b16 %v2411, %v2407
    %v3852 = vpack.c.b16 %v2412, %v2408
    %v3853 = vpack.c.b16 %v2417, %v2413
    %v3854 = vpack.c.b16 %v2418, %v2414
    %v3855 = vpack.c.b16 %v2419, %v2415
    %v3856 = vpack.c.b16 %v2420, %v2416
    %v3857 = vpack.c.b16 %v2425, %v2421
    %v3858 = vpack.c.b16 %v2426, %v2422
    %v3859 = vpack.c.b16 %v2427, %v2423
    %v3860 = vpack.c.b16 %v2428, %v2424
    %v3861 = vpack.c.b16 %v2433, %v2429
    %v3862 = vpack.c.b16 %v2434, %v2430
    %v3863 = vpack.c.b16 %v2435, %v2431
    %v3864 = vpack.c.b16 %v2436, %v2432
    %v3865 = vpack.c.b16 %v2441, %v2437
    %v3866 = vpack.c.b16 %v2442, %v2438
    %v3867 = vpack.c.b16 %v2443, %v2439
    %v3868 = vpack.c.b16 %v2444, %v2440
    %v3869 = vpack.c.b16 %v2449, %v2445
    %v3870 = vpack.c.b16 %v2450, %v2446
    %v3871 = vpack.c.b16 %v2451, %v2447
    %v3872 = vpack.c.b16 %v2452, %v2448
    %v3873 = vpack.c.b16 %v2457, %v2453
    %v3874 = vpack.c.b16 %v2458, %v2454
    %v3875 = vpack.c.b16 %v2459, %v2455
    %v3876 = vpack.c.b16 %v2460, %v2456
    %v3877 = vpack.c.b16 %v2465, %v2461
    %v3878 = vpack.c.b16 %v2466, %v2462
    %v3879 = vpack.c.b16 %v2467, %v2463
    %v3880 = vpack.c.b16 %v2468, %v2464
    %v3881 = vpack.c.b16 %v2473, %v2469
    %v3882 = vpack.c.b16 %v2474, %v2470
    %v3883 = vpack.c.b16 %v2475, %v2471
    %v3884 = vpack.c.b16 %v2476, %v2472
    %v3885 = vpack.c.b16 %v2481, %v2477
    %v3886 = vpack.c.b16 %v2482, %v2478
    %v3887 = vpack.c.b16 %v2483, %v2479
    %v3888 = vpack.c.b16 %v2484, %v2480
    %v3889 = vpack.c.b16 %v2489, %v2485
    %v3890 = vpack.c.b16 %v2490, %v2486
    %v3891 = vpack.c.b16 %v2491, %v2487
    %v3892 = vpack.c.b16 %v2492, %v2488
    %v3893 = vpack.c.b16 %v2497, %v2493
    %v3894 = vpack.c.b16 %v2498, %v2494
    %v3895 = vpack.c.b16 %v2499, %v2495
    %v3896 = vpack.c.b16 %v2500, %v2496
    %v3897 = vpack.c.b16 %v2505, %v2501
    %v3898 = vpack.c.b16 %v2506, %v2502
    %v3899 = vpack.c.b16 %v2507, %v2503
    %v3900 = vpack.c.b16 %v2508, %v2504
    %v3901 = vpack.c.b16 %v2513, %v2509
    %v3902 = vpack.c.b16 %v2514, %v2510
    %v3903 = vpack.c.b16 %v2515, %v2511
    %v3904 = vpack.c.b16 %v2516, %v2512
    %v3905 = vpack.c.b16 %v2521, %v2517
    %v3906 = vpack.c.b16 %v2522, %v2518
    %v3907 = vpack.c.b16 %v2523, %v2519
    %v3908 = vpack.c.b16 %v2524, %v2520
    %v3909 = vpack.c.b16 %v2529, %v2525
    %v3910 = vpack.c.b16 %v2530, %v2526
    %v3911 = vpack.c.b16 %v2531, %v2527
    %v3912 = vpack.c.b16 %v2532, %v2528
    %v3913 = vpack.c.b16 %v2537, %v2533
    %v3914 = vpack.c.b16 %v2538, %v2534
    %v3915 = vpack.c.b16 %v2539, %v2535
    %v3916 = vpack.c.b16 %v2540, %v2536
    %v3917 = vpack.c.b16 %v2545, %v2541
    %v3918 = vpack.c.b16 %v2546, %v2542
    %v3919 = vpack.c.b16 %v2547, %v2543
    %v3920 = vpack.c.b16 %v2548, %v2544
    %v3921 = vpack.c.b16 %v2553, %v2549
    %v3922 = vpack.c.b16 %v2554, %v2550
    %v3923 = vpack.c.b16 %v2555, %v2551
    %v3924 = vpack.c.b16 %v2556, %v2552
    %v3925 = vpack.c.b16 %v2561, %v2557
    %v3926 = vpack.c.b16 %v2562, %v2558
    %v3927 = vpack.c.b16 %v2563, %v2559
    %v3928 = vpack.c.b16 %v2564, %v2560
    %v3929 = vpack.c.b16 %v2569, %v2565
    %v3930 = vpack.c.b16 %v2570, %v2566
    %v3931 = vpack.c.b16 %v2571, %v2567
    %v3932 = vpack.c.b16 %v2572, %v2568
    %v3933 = vpack.c.b16 %v2577, %v2573
    %v3934 = vpack.c.b16 %v2578, %v2574
    %v3935 = vpack.c.b16 %v2579, %v2575
    %v3936 = vpack.c.b16 %v2580, %v2576
    %v3937 = vpack.c.b16 %v2585, %v2581
    %v3938 = vpack.c.b16 %v2586, %v2582
    %v3939 = vpack.c.b16 %v2587, %v2583
    %v3940 = vpack.c.b16 %v2588, %v2584
    %v3941 = vpack.c.b16 %v2593, %v2589
    %v3942 = vpack.c.b16 %v2594, %v2590
    %v3943 = vpack.c.b16 %v2595, %v2591
    %v3944 = vpack.c.b16 %v2596, %v2592
    %v3945 = vpack.c.b16 %v2601, %v2597
    %v3946 = vpack.c.b16 %v2602, %v2598
    %v3947 = vpack.c.b16 %v2603, %v2599
    %v3948 = vpack.c.b16 %v2604, %v2600
    %v3949 = vpack.c.b16 %v2609, %v2605
    %v3950 = vpack.c.b16 %v2610, %v2606
    %v3951 = vpack.c.b16 %v2611, %v2607
    %v3952 = vpack.c.b16 %v2612, %v2608
    %v3953 = vpack.c.b16 %v2617, %v2613
    %v3954 = vpack.c.b16 %v2618, %v2614
    %v3955 = vpack.c.b16 %v2619, %v2615
    %v3956 = vpack.c.b16 %v2620, %v2616
    %v3957 = vpack.c.b16 %v2625, %v2621
    %v3958 = vpack.c.b16 %v2626, %v2622
    %v3959 = vpack.c.b16 %v2627, %v2623
    %v3960 = vpack.c.b16 %v2628, %v2624
    %v3961 = vpack.c.b16 %v2633, %v2629
    %v3962 = vpack.c.b16 %v2634, %v2630
    %v3963 = vpack.c.b16 %v2635, %v2631
    %v3964 = vpack.c.b16 %v2636, %v2632
    %v3965 = vpack.c.b16 %v2641, %v2637
    %v3966 = vpack.c.b16 %v2642, %v2638
    %v3967 = vpack.c.b16 %v2643, %v2639
    %v3968 = vpack.c.b16 %v2644, %v2640
    %v3969 = vpack.c.b16 %v2649, %v2645
    %v3970 = vpack.c.b16 %v2650, %v2646
    %v3971 = vpack.c.b16 %v2651, %v2647
    %v3972 = vpack.c.b16 %v2652, %v2648
    %v3973 = vpack.c.b16 %v2657, %v2653
    %v3974 = vpack.c.b16 %v2658, %v2654
    %v3975 = vpack.c.b16 %v2659, %v2655
    %v3976 = vpack.c.b16 %v2660, %v2656
    %v3977 = vpack.c.b16 %v2665, %v2661
    %v3978 = vpack.c.b16 %v2666, %v2662
    %v3979 = vpack.c.b16 %v2667, %v2663
    %v3980 = vpack.c.b16 %v2668, %v2664
    %v3981 = vpack.c.b16 %v2673, %v2669
    %v3982 = vpack.c.b16 %v2674, %v2670
    %v3983 = vpack.c.b16 %v2675, %v2671
    %v3984 = vpack.c.b16 %v2676, %v2672
    %v3985 = vpack.c.b16 %v2681, %v2677
    %v3986 = vpack.c.b16 %v2682, %v2678
    %v3987 = vpack.c.b16 %v2683, %v2679
    %v3988 = vpack.c.b16 %v2684, %v2680
    %v3989 = vpack.c.b16 %v2689, %v2685
    %v3990 = vpack.c.b16 %v2690, %v2686
    %v3991 = vpack.c.b16 %v2691, %v2687
    %v3992 = vpack.c.b16 %v2692, %v2688
    %v3993 = vpack.c.b16 %v2697, %v2693
    %v3994 = vpack.c.b16 %v2698, %v2694
    %v3995 = vpack.c.b16 %v2699, %v2695
    %v3996 = vpack.c.b16 %v2700, %v2696
    %v3997 = vpack.c.b16 %v2705, %v2701
    %v3998 = vpack.c.b16 %v2706, %v2702
    %v3999 = vpack.c.b16 %v2707, %v2703
    %v4000 = vpack.c.b16 %v2708, %v2704
    %v4001 = vpack.c.b16 %v2713, %v2709
    %v4002 = vpack.c.b16 %v2714, %v2710
    %v4003 = vpack.c.b16 %v2715, %v2711
    %v4004 = vpack.c.b16 %v2716, %v2712
    %v4005 = vpack.c.b16 %v2721, %v2717
    %v4006 = vpack.c.b16 %v2722, %v2718
    %v4007 = vpack.c.b16 %v2723, %v2719
    %v4008 = vpack.c.b16 %v2724, %v2720
    %v4009 = vpack.c.b16 %v2729, %v2725
    %v4010 = vpack.c.b16 %v2730, %v2726
    %v4011 = vpack.c.b16 %v2731, %v2727
    %v4012 = vpack.c.b16 %v2732, %v2728
    %v4013 = vpack.c.b16 %v2737, %v2733
    %v4014 = vpack.c.b16 %v2738, %v2734
    %v4015 = vpack.c.b16 %v2739, %v2735
    %v4016 = vpack.c.b16 %v2740, %v2736
    %v4017 = vpack.c.b16 %v2745, %v2741
    %v4018 = vpack.c.b16 %v2746, %v2742
    %v4019 = vpack.c.b16 %v2747, %v2743
    %v4020 = vpack.c.b16 %v2748, %v2744
    %v4021 = vpack.c.b16 %v2753, %v2749
    %v4022 = vpack.c.b16 %v2754, %v2750
    %v4023 = vpack.c.b16 %v2755, %v2751
    %v4024 = vpack.c.b16 %v2756, %v2752
    %v4025 = vpack.c.b16 %v2761, %v2757
    %v4026 = vpack.c.b16 %v2762, %v2758
    %v4027 = vpack.c.b16 %v2763, %v2759
    %v4028 = vpack.c.b16 %v2764, %v2760
    %v4029 = vpack.c.b16 %v2769, %v2765
    %v4030 = vpack.c.b16 %v2770, %v2766
    %v4031 = vpack.c.b16 %v2771, %v2767
    %v4032 = vpack.c.b16 %v2772, %v2768
    %v4033 = vpack.c.b16 %v2777, %v2773
    %v4034 = vpack.c.b16 %v2778, %v2774
    %v4035 = vpack.c.b16 %v2779, %v2775
    %v4036 = vpack.c.b16 %v2780, %v2776
    %v4037 = vpack.c.b16 %v2785, %v2781
    %v4038 = vpack.c.b16 %v2786, %v2782
    %v4039 = vpack.c.b16 %v2787, %v2783
    %v4040 = vpack.c.b16 %v2788, %v2784
    %v4041 = vpack.c.b16 %v2793, %v2789
    %v4042 = vpack.c.b16 %v2794, %v2790
    %v4043 = vpack.c.b16 %v2795, %v2791
    %v4044 = vpack.c.b16 %v2796, %v2792
    %v4045 = vpack.c.b16 %v2801, %v2797
    %v4046 = vpack.c.b16 %v2802, %v2798
    %v4047 = vpack.c.b16 %v2803, %v2799
    %v4048 = vpack.c.b16 %v2804, %v2800
    %v4049 = vpack.c.b16 %v2809, %v2805
    %v4050 = vpack.c.b16 %v2810, %v2806
    %v4051 = vpack.c.b16 %v2811, %v2807
    %v4052 = vpack.c.b16 %v2812, %v2808
    %v4053 = vpack.c.b16 %v2817, %v2813
    %v4054 = vpack.c.b16 %v2818, %v2814
    %v4055 = vpack.c.b16 %v2819, %v2815
    %v4056 = vpack.c.b16 %v2820, %v2816
    %v4057 = vpack.c.b16 %v2825, %v2821
    %v4058 = vpack.c.b16 %v2826, %v2822
    %v4059 = vpack.c.b16 %v2827, %v2823
    %v4060 = vpack.c.b16 %v2828, %v2824
    %v4061 = vpack.c.b16 %v2833, %v2829
    %v4062 = vpack.c.b16 %v2834, %v2830
    %v4063 = vpack.c.b16 %v2835, %v2831
    %v4064 = vpack.c.b16 %v2836, %v2832
    %v4065 = vpack.c.b16 %v2841, %v2837
    %v4066 = vpack.c.b16 %v2842, %v2838
    %v4067 = vpack.c.b16 %v2843, %v2839
    %v4068 = vpack.c.b16 %v2844, %v2840
    %v4069 = vpack.c.b16 %v2849, %v2845
    %v4070 = vpack.c.b16 %v2850, %v2846
    %v4071 = vpack.c.b16 %v2851, %v2847
    %v4072 = vpack.c.b16 %v2852, %v2848
    %v4073 = vpack.c.b16 %v2857, %v2853
    %v4074 = vpack.c.b16 %v2858, %v2854
    %v4075 = vpack.c.b16 %v2859, %v2855
    %v4076 = vpack.c.b16 %v2860, %v2856
    %v4077 = vpack.c.b16 %v2865, %v2861
    %v4078 = vpack.c.b16 %v2866, %v2862
    %v4079 = vpack.c.b16 %v2867, %v2863
    %v4080 = vpack.c.b16 %v2868, %v2864
    %v4081 = vpack.c.b16 %v2873, %v2869
    %v4082 = vpack.c.b16 %v2874, %v2870
    %v4083 = vpack.c.b16 %v2875, %v2871
    %v4084 = vpack.c.b16 %v2876, %v2872
    %v4085 = vpack.c.b16 %v2881, %v2877
    %v4086 = vpack.c.b16 %v2882, %v2878
    %v4087 = vpack.c.b16 %v2883, %v2879
    %v4088 = vpack.c.b16 %v2884, %v2880
    %v4089 = vpack.c.b16 %v2889, %v2885
    %v4090 = vpack.c.b16 %v2890, %v2886
    %v4091 = vpack.c.b16 %v2891, %v2887
    %v4092 = vpack.c.b16 %v2892, %v2888
    %v4093 = vpack.c.b16 %v2897, %v2893
    %v4094 = vpack.c.b16 %v2898, %v2894
    %v4095 = vpack.c.b16 %v2899, %v2895
    %v4096 = vpack.c.b16 %v2900, %v2896
    %v4097 = vpack.c.b16 %v2905, %v2901
    %v4098 = vpack.c.b16 %v2906, %v2902
    %v4099 = vpack.c.b16 %v2907, %v2903
    %v4100 = vpack.c.b16 %v2908, %v2904
    %v4101 = vpack.c.b16 %v2913, %v2909
    %v4102 = vpack.c.b16 %v2914, %v2910
    %v4103 = vpack.c.b16 %v2915, %v2911
    %v4104 = vpack.c.b16 %v2916, %v2912
    %v4105 = vpack.c.b16 %v2921, %v2917
    %v4106 = vpack.c.b16 %v2922, %v2918
    %v4107 = vpack.c.b16 %v2923, %v2919
    %v4108 = vpack.c.b16 %v2924, %v2920
    %v4109 = vpack.c.b16 %v2929, %v2925
    %v4110 = vpack.c.b16 %v2930, %v2926
    %v4111 = vpack.c.b16 %v2931, %v2927
    %v4112 = vpack.c.b16 %v2932, %v2928
    %v4113 = vpack.c.b16 %v2937, %v2933
    %v4114 = vpack.c.b16 %v2938, %v2934
    %v4115 = vpack.c.b16 %v2939, %v2935
    %v4116 = vpack.c.b16 %v2940, %v2936
    %v4117 = vpack.c.b16 %v2945, %v2941
    %v4118 = vpack.c.b16 %v2946, %v2942
    %v4119 = vpack.c.b16 %v2947, %v2943
    %v4120 = vpack.c.b16 %v2948, %v2944
    %v4121 = vpack.c.b16 %v2953, %v2949
    %v4122 = vpack.c.b16 %v2954, %v2950
    %v4123 = vpack.c.b16 %v2955, %v2951
    %v4124 = vpack.c.b16 %v2956, %v2952
    %v4125 = vpack.c.b16 %v2961, %v2957
    %v4126 = vpack.c.b16 %v2962, %v2958
    %v4127 = vpack.c.b16 %v2963, %v2959
    %v4128 = vpack.c.b16 %v2964, %v2960
    %v4129 = vpack.c.b16 %v2969, %v2965
    %v4130 = vpack.c.b16 %v2970, %v2966
    %v4131 = vpack.c.b16 %v2971, %v2967
    %v4132 = vpack.c.b16 %v2972, %v2968
    %v4133 = vpack.c.b16 %v2977, %v2973
    %v4134 = vpack.c.b16 %v2978, %v2974
    %v4135 = vpack.c.b16 %v2979, %v2975
    %v4136 = vpack.c.b16 %v2980, %v2976
    %v4137 = vpack.c.b16 %v2985, %v2981
    %v4138 = vpack.c.b16 %v2986, %v2982
    %v4139 = vpack.c.b16 %v2987, %v2983
    %v4140 = vpack.c.b16 %v2988, %v2984
    %v4141 = vpack.c.b16 %v2993, %v2989
    %v4142 = vpack.c.b16 %v2994, %v2990
    %v4143 = vpack.c.b16 %v2995, %v2991
    %v4144 = vpack.c.b16 %v2996, %v2992
    %v4145 = vpack.c.b16 %v3001, %v2997
    %v4146 = vpack.c.b16 %v3002, %v2998
    %v4147 = vpack.c.b16 %v3003, %v2999
    %v4148 = vpack.c.b16 %v3004, %v3000
    %v4149 = vpack.c.b16 %v3009, %v3005
    %v4150 = vpack.c.b16 %v3010, %v3006
    %v4151 = vpack.c.b16 %v3011, %v3007
    %v4152 = vpack.c.b16 %v3012, %v3008
    %v4153 = vpack.c.b16 %v3017, %v3013
    %v4154 = vpack.c.b16 %v3018, %v3014
    %v4155 = vpack.c.b16 %v3019, %v3015
    %v4156 = vpack.c.b16 %v3020, %v3016
    %v4157 = vpack.c.b16 %v3025, %v3021
    %v4158 = vpack.c.b16 %v3026, %v3022
    %v4159 = vpack.c.b16 %v3027, %v3023
    %v4160 = vpack.c.b16 %v3028, %v3024
    %v4161 = vpack.c.b16 %v3033, %v3029
    %v4162 = vpack.c.b16 %v3034, %v3030
    %v4163 = vpack.c.b16 %v3035, %v3031
    %v4164 = vpack.c.b16 %v3036, %v3032
    %v4165 = vpack.c.b16 %v3041, %v3037
    %v4166 = vpack.c.b16 %v3042, %v3038
    %v4167 = vpack.c.b16 %v3043, %v3039
    %v4168 = vpack.c.b16 %v3044, %v3040
    %v4169 = vpack.c.b16 %v3049, %v3045
    %v4170 = vpack.c.b16 %v3050, %v3046
    %v4171 = vpack.c.b16 %v3051, %v3047
    %v4172 = vpack.c.b16 %v3052, %v3048
    %v4173 = vpack.c.b16 %v3057, %v3053
    %v4174 = vpack.c.b16 %v3058, %v3054
    %v4175 = vpack.c.b16 %v3059, %v3055
    %v4176 = vpack.c.b16 %v3060, %v3056
    %v4177 = vpack.c.b16 %v3065, %v3061
    %v4178 = vpack.c.b16 %v3066, %v3062
    %v4179 = vpack.c.b16 %v3067, %v3063
    %v4180 = vpack.c.b16 %v3068, %v3064
    %v4181 = vpack.c.b16 %v3073, %v3069
    %v4182 = vpack.c.b16 %v3074, %v3070
    %v4183 = vpack.c.b16 %v3075, %v3071
    %v4184 = vpack.c.b16 %v3076, %v3072
    %v4185 = vpack.c.b16 %v3081, %v3077
    %v4186 = vpack.c.b16 %v3082, %v3078
    %v4187 = vpack.c.b16 %v3083, %v3079
    %v4188 = vpack.c.b16 %v3084, %v3080
    %v4189 = vpack.c.b16 %v3089, %v3085
    %v4190 = vpack.c.b16 %v3090, %v3086
    %v4191 = vpack.c.b16 %v3091, %v3087
    %v4192 = vpack.c.b16 %v3092, %v3088
    %v4193 = vpack.c.b16 %v3097, %v3093
    %v4194 = vpack.c.b16 %v3098, %v3094
    %v4195 = vpack.c.b16 %v3099, %v3095
    %v4196 = vpack.c.b16 %v3100, %v3096
    %v4197 = vpack.c.b16 %v3105, %v3101
    %v4198 = vpack.c.b16 %v3106, %v3102
    %v4199 = vpack.c.b16 %v3107, %v3103
    %v4200 = vpack.c.b16 %v3108, %v3104
    %v4201 = vpack.c.b16 %v3113, %v3109
    %v4202 = vpack.c.b16 %v3114, %v3110
    %v4203 = vpack.c.b16 %v3115, %v3111
    %v4204 = vpack.c.b16 %v3116, %v3112
    %v4205 = vpack.c.b16 %v3121, %v3117
    %v4206 = vpack.c.b16 %v3122, %v3118
    %v4207 = vpack.c.b16 %v3123, %v3119
    %v4208 = vpack.c.b16 %v3124, %v3120
    %v4209 = vpack.c.b16 %v3129, %v3125
    %v4210 = vpack.c.b16 %v3130, %v3126
    %v4211 = vpack.c.b16 %v3131, %v3127
    %v4212 = vpack.c.b16 %v3132, %v3128
    %v4213 = vpack.c.b16 %v3137, %v3133
    %v4214 = vpack.c.b16 %v3138, %v3134
    %v4215 = vpack.c.b16 %v3139, %v3135
    %v4216 = vpack.c.b16 %v3140, %v3136
    %v4217 = vpack.c.b16 %v3145, %v3141
    %v4218 = vpack.c.b16 %v3146, %v3142
    %v4219 = vpack.c.b16 %v3147, %v3143
    %v4220 = vpack.c.b16 %v3148, %v3144
    %v4221 = vpack.c.b16 %v3153, %v3149
    %v4222 = vpack.c.b16 %v3154, %v3150
    %v4223 = vpack.c.b16 %v3155, %v3151
    %v4224 = vpack.c.b16 %v3156, %v3152
    %v4225 = vpack.c.b16 %v3161, %v3157
    %v4226 = vpack.c.b16 %v3162, %v3158
    %v4227 = vpack.c.b16 %v3163, %v3159
    %v4228 = vpack.c.b16 %v3164, %v3160
    %v4229 = vpack.c.b16 %v3169, %v3165
    %v4230 = vpack.c.b16 %v3170, %v3166
    %v4231 = vpack.c.b16 %v3171, %v3167
    %v4232 = vpack.c.b16 %v3172, %v3168
    %v4233 = vpack.c.b16 %v3177, %v3173
    %v4234 = vpack.c.b16 %v3178, %v3174
    %v4235 = vpack.c.b16 %v3179, %v3175
    %v4236 = vpack.c.b16 %v3180, %v3176
    %v4237 = vpack.c.b16 %v3185, %v3181
    %v4238 = vpack.c.b16 %v3186, %v3182
    %v4239 = vpack.c.b16 %v3187, %v3183
    %v4240 = vpack.c.b16 %v3188, %v3184
    %v4241 = vpack.c.b16 %v3193, %v3189
    %v4242 = vpack.c.b16 %v3194, %v3190
    %v4243 = vpack.c.b16 %v3195, %v3191
    %v4244 = vpack.c.b16 %v3196, %v3192
    %v4245 = vpack.c.b16 %v3201, %v3197
    %v4246 = vpack.c.b16 %v3202, %v3198
    %v4247 = vpack.c.b16 %v3203, %v3199
    %v4248 = vpack.c.b16 %v3204, %v3200
    %v4249 = vpack.c.b16 %v3209, %v3205
    %v4250 = vpack.c.b16 %v3210, %v3206
    %v4251 = vpack.c.b16 %v3211, %v3207
    %v4252 = vpack.c.b16 %v3212, %v3208
    %v4253 = vpack.c.b16 %v3217, %v3213
    %v4254 = vpack.c.b16 %v3218, %v3214
    %v4255 = vpack.c.b16 %v3219, %v3215
    %v4256 = vpack.c.b16 %v3220, %v3216
    %v4257 = vpack.c.b16 %v3225, %v3221
    %v4258 = vpack.c.b16 %v3226, %v3222
    %v4259 = vpack.c.b16 %v3227, %v3223
    %v4260 = vpack.c.b16 %v3228, %v3224
    %v4261 = vpack.c.b16 %v3233, %v3229
    %v4262 = vpack.c.b16 %v3234, %v3230
    %v4263 = vpack.c.b16 %v3235, %v3231
    %v4264 = vpack.c.b16 %v3236, %v3232
    %v4265 = vpack.c.b16 %v3241, %v3237
    %v4266 = vpack.c.b16 %v3242, %v3238
    %v4267 = vpack.c.b16 %v3243, %v3239
    %v4268 = vpack.c.b16 %v3244, %v3240
    %v4269 = vpack.c.b16 %v3249, %v3245
    %v4270 = vpack.c.b16 %v3250, %v3246
    %v4271 = vpack.c.b16 %v3251, %v3247
    %v4272 = vpack.c.b16 %v3252, %v3248
    %v4273 = vpack.c.b16 %v3257, %v3253
    %v4274 = vpack.c.b16 %v3258, %v3254
    %v4275 = vpack.c.b16 %v3259, %v3255
    %v4276 = vpack.c.b16 %v3260, %v3256
    %v4277 = vpack.c.b16 %v3265, %v3261
    %v4278 = vpack.c.b16 %v3266, %v3262
    %v4279 = vpack.c.b16 %v3267, %v3263
    %v4280 = vpack.c.b16 %v3268, %v3264
    %v4281 = vpack.c.b16 %v3273, %v3269
    %v4282 = vpack.c.b16 %v3274, %v3270
    %v4283 = vpack.c.b16 %v3275, %v3271
    %v4284 = vpack.c.b16 %v3276, %v3272
    %v4285 = vpack.c.b16 %v3281, %v3277
    %v4286 = vpack.c.b16 %v3282, %v3278
    %v4287 = vpack.c.b16 %v3283, %v3279
    %v4288 = vpack.c.b16 %v3284, %v3280
    %v4289 = vpack.c.b16 %v3289, %v3285
    %v4290 = vpack.c.b16 %v3290, %v3286
    %v4291 = vpack.c.b16 %v3291, %v3287
    %v4292 = vpack.c.b16 %v3292, %v3288
    %v4293 = vpack.c.b16 %v3297, %v3293
    %v4294 = vpack.c.b16 %v3298, %v3294
    %v4295 = vpack.c.b16 %v3299, %v3295
    %v4296 = vpack.c.b16 %v3300, %v3296
    %v4297 = vpack.c.b16 %v3305, %v3301
    %v4298 = vpack.c.b16 %v3306, %v3302
    %v4299 = vpack.c.b16 %v3307, %v3303
    %v4300 = vpack.c.b16 %v3308, %v3304
    %v4301 = vpack.c.b16 %v3313, %v3309
    %v4302 = vpack.c.b16 %v3314, %v3310
    %v4303 = vpack.c.b16 %v3315, %v3311
    %v4304 = vpack.c.b16 %v3316, %v3312
    %v4305 = vpack.c.b16 %v3321, %v3317
    %v4306 = vpack.c.b16 %v3322, %v3318
    %v4307 = vpack.c.b16 %v3323, %v3319
    %v4308 = vpack.c.b16 %v3324, %v3320
    %v4309 = vpack.c.b16 %v3329, %v3325
    %v4310 = vpack.c.b16 %v3330, %v3326
    %v4311 = vpack.c.b16 %v3331, %v3327
    %v4312 = vpack.c.b16 %v3332, %v3328
    %v4313 = vpack.c.b16 %v3337, %v3333
    %v4314 = vpack.c.b16 %v3338, %v3334
    %v4315 = vpack.c.b16 %v3339, %v3335
    %v4316 = vpack.c.b16 %v3340, %v3336
    %v4317 = vpack.c.b16 %v3345, %v3341
    %v4318 = vpack.c.b16 %v3346, %v3342
    %v4319 = vpack.c.b16 %v3347, %v3343
    %v4320 = vpack.c.b16 %v3348, %v3344
    %v4321 = vpack.c.b16 %v3353, %v3349
    %v4322 = vpack.c.b16 %v3354, %v3350
    %v4323 = vpack.c.b16 %v3355, %v3351
    %v4324 = vpack.c.b16 %v3356, %v3352
    %v4325 = vpack.c.b16 %v3361, %v3357
    %v4326 = vpack.c.b16 %v3362, %v3358
    %v4327 = vpack.c.b16 %v3363, %v3359
    %v4328 = vpack.c.b16 %v3364, %v3360
    %v4329 = vpack.c.b16 %v3369, %v3365
    %v4330 = vpack.c.b16 %v3370, %v3366
    %v4331 = vpack.c.b16 %v3371, %v3367
    %v4332 = vpack.c.b16 %v3372, %v3368
    %v4333 = vpack.c.b16 %v3377, %v3373
    %v4334 = vpack.c.b16 %v3378, %v3374
    %v4335 = vpack.c.b16 %v3379, %v3375
    %v4336 = vpack.c.b16 %v3380, %v3376
    %v4337 = vpack.c.b16 %v3385, %v3381
    %v4338 = vpack.c.b16 %v3386, %v3382
    %v4339 = vpack.c.b16 %v3387, %v3383
    %v4340 = vpack.c.b16 %v3388, %v3384
    %v4341 = vpack.c.b16 %v3393, %v3389
    %v4342 = vpack.c.b16 %v3394, %v3390
    %v4343 = vpack.c.b16 %v3395, %v3391
    %v4344 = vpack.c.b16 %v3396, %v3392
    %v4345 = vpack.c.b16 %v3401, %v3397
    %v4346 = vpack.c.b16 %v3402, %v3398
    %v4347 = vpack.c.b16 %v3403, %v3399
    %v4348 = vpack.c.b16 %v3404, %v3400
    %v4349 = vpack.c.b16 %v3409, %v3405
    %v4350 = vpack.c.b16 %v3410, %v3406
    %v4351 = vpack.c.b16 %v3411, %v3407
    %v4352 = vpack.c.b16 %v3412, %v3408
    %v4353 = vpack.c.b16 %v3417, %v3413
    %v4354 = vpack.c.b16 %v3418, %v3414
    %v4355 = vpack.c.b16 %v3419, %v3415
    %v4356 = vpack.c.b16 %v3420, %v3416
    %v4357 = vpack.c.b16 %v3425, %v3421
    %v4358 = vpack.c.b16 %v3426, %v3422
    %v4359 = vpack.c.b16 %v3427, %v3423
    %v4360 = vpack.c.b16 %v3428, %v3424
    %v4361 = vpack.c.b16 %v3433, %v3429
    %v4362 = vpack.c.b16 %v3434, %v3430
    %v4363 = vpack.c.b16 %v3435, %v3431
    %v4364 = vpack.c.b16 %v3436, %v3432
    %v4365 = vpack.c.b16 %v3441, %v3437
    %v4366 = vpack.c.b16 %v3442, %v3438
    %v4367 = vpack.c.b16 %v3443, %v3439
    %v4368 = vpack.c.b16 %v3444, %v3440
    %v4369 = vpack.c.b16 %v3449, %v3445
    %v4370 = vpack.c.b16 %v3450, %v3446
    %v4371 = vpack.c.b16 %v3451, %v3447
    %v4372 = vpack.c.b16 %v3452, %v3448
    %v4373 = vpack.c.b16 %v3457, %v3453
    %v4374 = vpack.c.b16 %v3458, %v3454
    %v4375 = vpack.c.b16 %v3459, %v3455
    %v4376 = vpack.c.b16 %v3460, %v3456
    %v4377 = vpack.c.b16 %v3465, %v3461
    %v4378 = vpack.c.b16 %v3466, %v3462
    %v4379 = vpack.c.b16 %v3467, %v3463
    %v4380 = vpack.c.b16 %v3468, %v3464
    %v4381 = vpack.c.b16 %v3473, %v3469
    %v4382 = vpack.c.b16 %v3474, %v3470
    %v4383 = vpack.c.b16 %v3475, %v3471
    %v4384 = vpack.c.b16 %v3476, %v3472
    %v4385 = vpack.c.b16 %v3481, %v3477
    %v4386 = vpack.c.b16 %v3482, %v3478
    %v4387 = vpack.c.b16 %v3483, %v3479
    %v4388 = vpack.c.b16 %v3484, %v3480
    %v4389 = vpack.c.b16 %v3489, %v3485
    %v4390 = vpack.c.b16 %v3490, %v3486
    %v4391 = vpack.c.b16 %v3491, %v3487
    %v4392 = vpack.c.b16 %v3492, %v3488
    %v4393 = vpack.c.b16 %v3497, %v3493
    %v4394 = vpack.c.b16 %v3498, %v3494
    %v4395 = vpack.c.b16 %v3499, %v3495
    %v4396 = vpack.c.b16 %v3500, %v3496
    %v4397 = vpack.c.b16 %v3505, %v3501
    %v4398 = vpack.c.b16 %v3506, %v3502
    %v4399 = vpack.c.b16 %v3507, %v3503
    %v4400 = vpack.c.b16 %v3508, %v3504
    %v4401 = vpack.c.b16 %v3513, %v3509
    %v4402 = vpack.c.b16 %v3514, %v3510
    %v4403 = vpack.c.b16 %v3515, %v3511
    %v4404 = vpack.c.b16 %v3516, %v3512
    %v4405 = vpack.c.b16 %v3521, %v3517
    %v4406 = vpack.c.b16 %v3522, %v3518
    %v4407 = vpack.c.b16 %v3523, %v3519
    %v4408 = vpack.c.b16 %v3524, %v3520
    %v4409 = vpack.c.b16 %v3529, %v3525
    %v4410 = vpack.c.b16 %v3530, %v3526
    %v4411 = vpack.c.b16 %v3531, %v3527
    %v4412 = vpack.c.b16 %v3532, %v3528
    %v4413 = vpack.c.b16 %v3537, %v3533
    %v4414 = vpack.c.b16 %v3538, %v3534
    %v4415 = vpack.c.b16 %v3539, %v3535
    %v4416 = vpack.c.b16 %v3540, %v3536
    %v4417 = vpack.c.b16 %v3545, %v3541
    %v4418 = vpack.c.b16 %v3546, %v3542
    %v4419 = vpack.c.b16 %v3547, %v3543
    %v4420 = vpack.c.b16 %v3548, %v3544
    %v4421 = vpack.c.b16 %v3553, %v3549
    %v4422 = vpack.c.b16 %v3554, %v3550
    %v4423 = vpack.c.b16 %v3555, %v3551
    %v4424 = vpack.c.b16 %v3556, %v3552
    %v4425 = vpack.c.b16 %v3561, %v3557
    %v4426 = vpack.c.b16 %v3562, %v3558
    %v4427 = vpack.c.b16 %v3563, %v3559
    %v4428 = vpack.c.b16 %v3564, %v3560
    %v4429 = vpack.c.b16 %v3569, %v3565
    %v4430 = vpack.c.b16 %v3570, %v3566
    %v4431 = vpack.c.b16 %v3571, %v3567
    %v4432 = vpack.c.b16 %v3572, %v3568
    %v4433 = vpack.c.b16 %v3577, %v3573
    %v4434 = vpack.c.b16 %v3578, %v3574
    %v4435 = vpack.c.b16 %v3579, %v3575
    %v4436 = vpack.c.b16 %v3580, %v3576
    %v4437 = vpack.c.b16 %v3585, %v3581
    %v4438 = vpack.c.b16 %v3586, %v3582
    %v4439 = vpack.c.b16 %v3587, %v3583
    %v4440 = vpack.c.b16 %v3588, %v3584
    %v4441 = vpack.c.b16 %v3593, %v3589
    %v4442 = vpack.c.b16 %v3594, %v3590
    %v4443 = vpack.c.b16 %v3595, %v3591
    %v4444 = vpack.c.b16 %v3596, %v3592
    %v4445 = vpack.c.b16 %v3601, %v3597
    %v4446 = vpack.c.b16 %v3602, %v3598
    %v4447 = vpack.c.b16 %v3603, %v3599
    %v4448 = vpack.c.b16 %v3604, %v3600
    %v4449 = vpack.c.b16 %v3609, %v3605
    %v4450 = vpack.c.b16 %v3610, %v3606
    %v4451 = vpack.c.b16 %v3611, %v3607
    %v4452 = vpack.c.b16 %v3612, %v3608
    %v4453 = vpack.c.b16 %v3617, %v3613
    %v4454 = vpack.c.b16 %v3618, %v3614
    %v4455 = vpack.c.b16 %v3619, %v3615
    %v4456 = vpack.c.b16 %v3620, %v3616
    %v4457 = vpack.c.b16 %v3625, %v3621
    %v4458 = vpack.c.b16 %v3626, %v3622
    %v4459 = vpack.c.b16 %v3627, %v3623
    %v4460 = vpack.c.b16 %v3628, %v3624
    %v4461 = vpack.c.b16 %v3633, %v3629
    %v4462 = vpack.c.b16 %v3634, %v3630
    %v4463 = vpack.c.b16 %v3635, %v3631
    %v4464 = vpack.c.b16 %v3636, %v3632
    %v4465 = vpack.c.b16 %v3641, %v3637
    %v4466 = vpack.c.b16 %v3642, %v3638
    %v4467 = vpack.c.b16 %v3643, %v3639
    %v4468 = vpack.c.b16 %v3644, %v3640
    %v4469 = vpack.c.b16 %v3649, %v3645
    %v4470 = vpack.c.b16 %v3650, %v3646
    %v4471 = vpack.c.b16 %v3651, %v3647
    %v4472 = vpack.c.b16 %v3652, %v3648
    %v4473 = vpack.c.b16 %v3657, %v3653
    %v4474 = vpack.c.b16 %v3658, %v3654
    %v4475 = vpack.c.b16 %v3659, %v3655
    %v4476 = vpack.c.b16 %v3660, %v3656
    %v4477 = vpack.c.b16 %v3665, %v3661
    %v4478 = vpack.c.b16 %v3666, %v3662
    %v4479 = vpack.c.b16 %v3667, %v3663
    %v4480 = vpack.c.b16 %v3668, %v3664
    %v4481 = vpack.c.b16 %v3673, %v3669
    %v4482 = vpack.c.b16 %v3674, %v3670
    %v4483 = vpack.c.b16 %v3675, %v3671
    %v4484 = vpack.c.b16 %v3676, %v3672
    %v4485 = vpack.c.b16 %v3681, %v3677
    %v4486 = vpack.c.b16 %v3682, %v3678
    %v4487 = vpack.c.b16 %v3683, %v3679
    %v4488 = vpack.c.b16 %v3684, %v3680
    %v4489 = vpack.c.b16 %v3689, %v3685
    %v4490 = vpack.c.b16 %v3690, %v3686
    %v4491 = vpack.c.b16 %v3691, %v3687
    %v4492 = vpack.c.b16 %v3692, %v3688
    %v4493 = vpack.c.b16 %v3697, %v3693
    %v4494 = vpack.c.b16 %v3698, %v3694
    %v4495 = vpack.c.b16 %v3699, %v3695
    %v4496 = vpack.c.b16 %v3700, %v3696
    %v4497 = vpack.c.b16 %v3705, %v3701
    %v4498 = vpack.c.b16 %v3706, %v3702
    %v4499 = vpack.c.b16 %v3707, %v3703
    %v4500 = vpack.c.b16 %v3708, %v3704
    %v4501 = vpack.c.b16 %v3713, %v3709
    %v4502 = vpack.c.b16 %v3714, %v3710
    %v4503 = vpack.c.b16 %v3715, %v3711
    %v4504 = vpack.c.b16 %v3716, %v3712
    %v4505 = vpack.c.b16 %v3721, %v3717
    %v4506 = vpack.c.b16 %v3722, %v3718
    %v4507 = vpack.c.b16 %v3723, %v3719
    %v4508 = vpack.c.b16 %v3724, %v3720
    %vm5293 = vcmask 523264
    %v5295 = vsel %vm5293, %v1348, 0
    %5297 = vmatprep.subr.bf16.mxu0 %v3754
    %5298 = vmatpush1.bf16.msra.mxu0 %v3753
    %5299 = vmatprep.subr.bf16.mxu0 %v3750
    %5300 = vmatpush1.bf16.msra.mxu0 %v3749
    %5301 = vmatprep.subr.bf16.mxu0 %v3746
    %5302 = vmatpush1.bf16.msra.mxu0 %v3745
    %5303 = vmatprep.subr.bf16.mxu0 %v3742
    %5304 = vmatpush1.bf16.msra.mxu0 %v3741
    %5305 = vmatprep.subr.bf16.mxu0 %v3738
    %5306 = vmatpush1.bf16.msra.mxu0 %v3737
    %5307 = vmatprep.subr.bf16.mxu0 %v3734
    %5308 = vmatpush1.bf16.msra.mxu0 %v3733
    %5309 = vmatprep.subr.bf16.mxu0 %v3730
    %5310 = vmatpush1.bf16.msra.mxu0 %v3729
    %5311 = vmatprep.subr.bf16.mxu0 %v3726
    %5312 = vmatpush1.bf16.msra.mxu0 %v3725
    %5313 = vmatprep.subr.bf16.mxu0 %v3786
    %5314 = vmatpush2.bf16.msra.mxu0 %v3785
    %5315 = vmatprep.subr.bf16.mxu0 %v3782
    %5316 = vmatpush2.bf16.msra.mxu0 %v3781
    %5317 = vmatprep.subr.bf16.mxu0 %v3778
    %5318 = vmatpush2.bf16.msra.mxu0 %v3777
    %5319 = vmatprep.subr.bf16.mxu0 %v3774
    %5320 = vmatpush2.bf16.msra.mxu0 %v3773
    %5321 = vmatprep.subr.bf16.mxu0 %v3770
    %5322 = vmatpush2.bf16.msra.mxu0 %v3769
    %5323 = vmatprep.subr.bf16.mxu0 %v3766
    %5324 = vmatpush2.bf16.msra.mxu0 %v3765
    %5325 = vmatprep.subr.bf16.mxu0 %v3762
    %5326 = vmatpush2.bf16.msra.mxu0 %v3761
    %5327 = vmatprep.subr.bf16.mxu0 %v3758
    %5328 = vmatpush2.bf16.msra.mxu0 %v3757
    %5329 = vmatprep.mubr.bf16.mxu0 %v1024
    %5330 = vmatmul.mubr.bf16.gmra.mxu0 %v1020
    %v5331 = vpop.f32.mrf.mxu0
    %v5332 = vadd.f32 %v843, %v5331
    %v5333 = vpop.f32.mrf.mxu0
    %v5334 = vadd.f32 %v847, %v5333
    %v5335 = vpop.f32.mrf.mxu0
    %v5336 = vadd.f32 %v843, %v5335
    %v5337 = vpop.f32.mrf.mxu0
    %v5338 = vadd.f32 %v847, %v5337
    %5339 = vdwg.mxu0
    %5340 = vmatprep.subr.bf16.mxu0 %v3818
    %5341 = vmatpush1.bf16.msra.mxu0 %v3817
    %5342 = vmatprep.subr.bf16.mxu0 %v3814
    %5343 = vmatpush1.bf16.msra.mxu0 %v3813
    %5344 = vmatprep.subr.bf16.mxu0 %v3810
    %5345 = vmatpush1.bf16.msra.mxu0 %v3809
    %5346 = vmatprep.subr.bf16.mxu0 %v3806
    %5347 = vmatpush1.bf16.msra.mxu0 %v3805
    %5348 = vmatprep.subr.bf16.mxu0 %v3802
    %5349 = vmatpush1.bf16.msra.mxu0 %v3801
    %5350 = vmatprep.subr.bf16.mxu0 %v3798
    %5351 = vmatpush1.bf16.msra.mxu0 %v3797
    %5352 = vmatprep.subr.bf16.mxu0 %v3794
    %5353 = vmatpush1.bf16.msra.mxu0 %v3793
    %5354 = vmatprep.subr.bf16.mxu0 %v3790
    %5355 = vmatpush1.bf16.msra.mxu0 %v3789
    %5356 = vmatprep.subr.bf16.mxu0 %v3850
    %5357 = vmatpush2.bf16.msra.mxu0 %v3849
    %5358 = vmatprep.subr.bf16.mxu0 %v3846
    %5359 = vmatpush2.bf16.msra.mxu0 %v3845
    %5360 = vmatprep.subr.bf16.mxu0 %v3842
    %5361 = vmatpush2.bf16.msra.mxu0 %v3841
    %5362 = vmatprep.subr.bf16.mxu0 %v3838
    %5363 = vmatpush2.bf16.msra.mxu0 %v3837
    %5364 = vmatprep.subr.bf16.mxu0 %v3834
    %5365 = vmatpush2.bf16.msra.mxu0 %v3833
    %5366 = vmatprep.subr.bf16.mxu0 %v3830
    %5367 = vmatpush2.bf16.msra.mxu0 %v3829
    %5368 = vmatprep.subr.bf16.mxu0 %v3826
    %5369 = vmatpush2.bf16.msra.mxu0 %v3825
    %5370 = vmatprep.subr.bf16.mxu0 %v3822
    %5371 = vmatpush2.bf16.msra.mxu0 %v3821
    %5372 = vmatprep.mubr.bf16.mxu0 %v1025
    %5373 = vmatmul.mubr.bf16.gmra.mxu0 %v1021
    %v5374 = vpop.f32.mrf.mxu0
    %v5375 = vadd.f32 %v5332, %v5374
    %v5376 = vpop.f32.mrf.mxu0
    %v5377 = vadd.f32 %v5334, %v5376
    %v5378 = vpop.f32.mrf.mxu0
    %v5379 = vadd.f32 %v5336, %v5378
    %v5380 = vpop.f32.mrf.mxu0
    %v5381 = vadd.f32 %v5338, %v5380
    %5382 = vdwg.mxu0
    %5383 = vmatprep.subr.bf16.mxu0 %v3882
    %5384 = vmatpush1.bf16.msra.mxu0 %v3881
    %5385 = vmatprep.subr.bf16.mxu0 %v3878
    %5386 = vmatpush1.bf16.msra.mxu0 %v3877
    %5387 = vmatprep.subr.bf16.mxu0 %v3874
    %5388 = vmatpush1.bf16.msra.mxu0 %v3873
    %5389 = vmatprep.subr.bf16.mxu0 %v3870
    %5390 = vmatpush1.bf16.msra.mxu0 %v3869
    %5391 = vmatprep.subr.bf16.mxu0 %v3866
    %5392 = vmatpush1.bf16.msra.mxu0 %v3865
    %5393 = vmatprep.subr.bf16.mxu0 %v3862
    %5394 = vmatpush1.bf16.msra.mxu0 %v3861
    %5395 = vmatprep.subr.bf16.mxu0 %v3858
    %5396 = vmatpush1.bf16.msra.mxu0 %v3857
    %5397 = vmatprep.subr.bf16.mxu0 %v3854
    %5398 = vmatpush1.bf16.msra.mxu0 %v3853
    %5399 = vmatprep.subr.bf16.mxu0 %v3914
    %5400 = vmatpush2.bf16.msra.mxu0 %v3913
    %5401 = vmatprep.subr.bf16.mxu0 %v3910
    %5402 = vmatpush2.bf16.msra.mxu0 %v3909
    %5403 = vmatprep.subr.bf16.mxu0 %v3906
    %5404 = vmatpush2.bf16.msra.mxu0 %v3905
    %5405 = vmatprep.subr.bf16.mxu0 %v3902
    %5406 = vmatpush2.bf16.msra.mxu0 %v3901
    %5407 = vmatprep.subr.bf16.mxu0 %v3898
    %5408 = vmatpush2.bf16.msra.mxu0 %v3897
    %5409 = vmatprep.subr.bf16.mxu0 %v3894
    %5410 = vmatpush2.bf16.msra.mxu0 %v3893
    %5411 = vmatprep.subr.bf16.mxu0 %v3890
    %5412 = vmatpush2.bf16.msra.mxu0 %v3889
    %5413 = vmatprep.subr.bf16.mxu0 %v3886
    %5414 = vmatpush2.bf16.msra.mxu0 %v3885
    %5415 = vmatprep.mubr.bf16.mxu0 %v1026
    %5416 = vmatmul.mubr.bf16.gmra.mxu0 %v1022
    %v5417 = vpop.f32.mrf.mxu0
    %v5418 = vadd.f32 %v5375, %v5417
    %v5419 = vpop.f32.mrf.mxu0
    %v5420 = vadd.f32 %v5377, %v5419
    %v5421 = vpop.f32.mrf.mxu0
    %v5422 = vadd.f32 %v5379, %v5421
    %v5423 = vpop.f32.mrf.mxu0
    %v5424 = vadd.f32 %v5381, %v5423
    %5425 = vdwg.mxu0
    %5426 = vmatprep.subr.bf16.mxu0 %v3946
    %5427 = vmatpush1.bf16.msra.mxu0 %v3945
    %5428 = vmatprep.subr.bf16.mxu0 %v3942
    %5429 = vmatpush1.bf16.msra.mxu0 %v3941
    %5430 = vmatprep.subr.bf16.mxu0 %v3938
    %5431 = vmatpush1.bf16.msra.mxu0 %v3937
    %5432 = vmatprep.subr.bf16.mxu0 %v3934
    %5433 = vmatpush1.bf16.msra.mxu0 %v3933
    %5434 = vmatprep.subr.bf16.mxu0 %v3930
    %5435 = vmatpush1.bf16.msra.mxu0 %v3929
    %5436 = vmatprep.subr.bf16.mxu0 %v3926
    %5437 = vmatpush1.bf16.msra.mxu0 %v3925
    %5438 = vmatprep.subr.bf16.mxu0 %v3922
    %5439 = vmatpush1.bf16.msra.mxu0 %v3921
    %5440 = vmatprep.subr.bf16.mxu0 %v3918
    %5441 = vmatpush1.bf16.msra.mxu0 %v3917
    %5442 = vmatprep.subr.bf16.mxu0 %v3978
    %5443 = vmatpush2.bf16.msra.mxu0 %v3977
    %5444 = vmatprep.subr.bf16.mxu0 %v3974
    %5445 = vmatpush2.bf16.msra.mxu0 %v3973
    %5446 = vmatprep.subr.bf16.mxu0 %v3970
    %5447 = vmatpush2.bf16.msra.mxu0 %v3969
    %5448 = vmatprep.subr.bf16.mxu0 %v3966
    %5449 = vmatpush2.bf16.msra.mxu0 %v3965
    %5450 = vmatprep.subr.bf16.mxu0 %v3962
    %5451 = vmatpush2.bf16.msra.mxu0 %v3961
    %5452 = vmatprep.subr.bf16.mxu0 %v3958
    %5453 = vmatpush2.bf16.msra.mxu0 %v3957
    %5454 = vmatprep.subr.bf16.mxu0 %v3954
    %5455 = vmatpush2.bf16.msra.mxu0 %v3953
    %5456 = vmatprep.subr.bf16.mxu0 %v3950
    %5457 = vmatpush2.bf16.msra.mxu0 %v3949
    %5458 = vmatprep.mubr.bf16.mxu0 %v1027
    %5459 = vmatmul.mubr.bf16.gmra.mxu0 %v1023
    %v5460 = vpop.f32.mrf.mxu0
    %v5461 = vadd.f32 %v5418, %v5460
    %v5462 = vpop.f32.mrf.mxu0
    %v5463 = vadd.f32 %v5420, %v5462
    %v5464 = vpop.f32.mrf.mxu0
    %v5465 = vadd.f32 %v5422, %v5464
    %v5466 = vpop.f32.mrf.mxu0
    %v5467 = vadd.f32 %v5424, %v5466
    %5468 = vdwg.mxu0
    %5469 = vmatprep.subr.bf16.mxu0 %v4010
    %5470 = vmatpush1.bf16.msra.mxu0 %v4009
    %5471 = vmatprep.subr.bf16.mxu0 %v4006
    %5472 = vmatpush1.bf16.msra.mxu0 %v4005
    %5473 = vmatprep.subr.bf16.mxu0 %v4002
    %5474 = vmatpush1.bf16.msra.mxu0 %v4001
    %5475 = vmatprep.subr.bf16.mxu0 %v3998
    %5476 = vmatpush1.bf16.msra.mxu0 %v3997
    %5477 = vmatprep.subr.bf16.mxu0 %v3994
    %5478 = vmatpush1.bf16.msra.mxu0 %v3993
    %5479 = vmatprep.subr.bf16.mxu0 %v3990
    %5480 = vmatpush1.bf16.msra.mxu0 %v3989
    %5481 = vmatprep.subr.bf16.mxu0 %v3986
    %5482 = vmatpush1.bf16.msra.mxu0 %v3985
    %5483 = vmatprep.subr.bf16.mxu0 %v3982
    %5484 = vmatpush1.bf16.msra.mxu0 %v3981
    %5485 = vmatprep.subr.bf16.mxu0 %v4042
    %5486 = vmatpush2.bf16.msra.mxu0 %v4041
    %5487 = vmatprep.subr.bf16.mxu0 %v4038
    %5488 = vmatpush2.bf16.msra.mxu0 %v4037
    %5489 = vmatprep.subr.bf16.mxu0 %v4034
    %5490 = vmatpush2.bf16.msra.mxu0 %v4033
    %5491 = vmatprep.subr.bf16.mxu0 %v4030
    %5492 = vmatpush2.bf16.msra.mxu0 %v4029
    %5493 = vmatprep.subr.bf16.mxu0 %v4026
    %5494 = vmatpush2.bf16.msra.mxu0 %v4025
    %5495 = vmatprep.subr.bf16.mxu0 %v4022
    %5496 = vmatpush2.bf16.msra.mxu0 %v4021
    %5497 = vmatprep.subr.bf16.mxu0 %v4018
    %5498 = vmatpush2.bf16.msra.mxu0 %v4017
    %5499 = vmatprep.subr.bf16.mxu0 %v4014
    %5500 = vmatpush2.bf16.msra.mxu0 %v4013
    %5501 = vmatprep.mubr.bf16.mxu0 %v1160
    %5502 = vmatmul.mubr.bf16.gmra.mxu0 %v1156
    %v5503 = vpop.f32.mrf.mxu0
    %v5504 = vadd.f32 %v5461, %v5503
    %v5505 = vpop.f32.mrf.mxu0
    %v5506 = vadd.f32 %v5463, %v5505
    %v5507 = vpop.f32.mrf.mxu0
    %v5508 = vadd.f32 %v5465, %v5507
    %v5509 = vpop.f32.mrf.mxu0
    %v5510 = vadd.f32 %v5467, %v5509
    %5511 = vdwg.mxu0
    %5512 = vmatprep.subr.bf16.mxu0 %v4074
    %5513 = vmatpush1.bf16.msra.mxu0 %v4073
    %5514 = vmatprep.subr.bf16.mxu0 %v4070
    %5515 = vmatpush1.bf16.msra.mxu0 %v4069
    %5516 = vmatprep.subr.bf16.mxu0 %v4066
    %5517 = vmatpush1.bf16.msra.mxu0 %v4065
    %5518 = vmatprep.subr.bf16.mxu0 %v4062
    %5519 = vmatpush1.bf16.msra.mxu0 %v4061
    %5520 = vmatprep.subr.bf16.mxu0 %v4058
    %5521 = vmatpush1.bf16.msra.mxu0 %v4057
    %5522 = vmatprep.subr.bf16.mxu0 %v4054
    %5523 = vmatpush1.bf16.msra.mxu0 %v4053
    %5524 = vmatprep.subr.bf16.mxu0 %v4050
    %5525 = vmatpush1.bf16.msra.mxu0 %v4049
    %5526 = vmatprep.subr.bf16.mxu0 %v4046
    %5527 = vmatpush1.bf16.msra.mxu0 %v4045
    %5528 = vmatprep.subr.bf16.mxu0 %v4106
    %5529 = vmatpush2.bf16.msra.mxu0 %v4105
    %5530 = vmatprep.subr.bf16.mxu0 %v4102
    %5531 = vmatpush2.bf16.msra.mxu0 %v4101
    %5532 = vmatprep.subr.bf16.mxu0 %v4098
    %5533 = vmatpush2.bf16.msra.mxu0 %v4097
    %5534 = vmatprep.subr.bf16.mxu0 %v4094
    %5535 = vmatpush2.bf16.msra.mxu0 %v4093
    %5536 = vmatprep.subr.bf16.mxu0 %v4090
    %5537 = vmatpush2.bf16.msra.mxu0 %v4089
    %5538 = vmatprep.subr.bf16.mxu0 %v4086
    %5539 = vmatpush2.bf16.msra.mxu0 %v4085
    %5540 = vmatprep.subr.bf16.mxu0 %v4082
    %5541 = vmatpush2.bf16.msra.mxu0 %v4081
    %5542 = vmatprep.subr.bf16.mxu0 %v4078
    %5543 = vmatpush2.bf16.msra.mxu0 %v4077
    %5544 = vmatprep.mubr.bf16.mxu0 %v1161
    %5545 = vmatmul.mubr.bf16.gmra.mxu0 %v1157
    %v5546 = vpop.f32.mrf.mxu0
    %v5547 = vadd.f32 %v5504, %v5546
    %v5548 = vpop.f32.mrf.mxu0
    %v5549 = vadd.f32 %v5506, %v5548
    %v5550 = vpop.f32.mrf.mxu0
    %v5551 = vadd.f32 %v5508, %v5550
    %v5552 = vpop.f32.mrf.mxu0
    %v5553 = vadd.f32 %v5510, %v5552
    %5554 = vdwg.mxu0
    %5555 = vmatprep.subr.bf16.mxu0 %v4138
    %5556 = vmatpush1.bf16.msra.mxu0 %v4137
    %5557 = vmatprep.subr.bf16.mxu0 %v4134
    %5558 = vmatpush1.bf16.msra.mxu0 %v4133
    %5559 = vmatprep.subr.bf16.mxu0 %v4130
    %5560 = vmatpush1.bf16.msra.mxu0 %v4129
    %5561 = vmatprep.subr.bf16.mxu0 %v4126
    %5562 = vmatpush1.bf16.msra.mxu0 %v4125
    %5563 = vmatprep.subr.bf16.mxu0 %v4122
    %5564 = vmatpush1.bf16.msra.mxu0 %v4121
    %5565 = vmatprep.subr.bf16.mxu0 %v4118
    %5566 = vmatpush1.bf16.msra.mxu0 %v4117
    %5567 = vmatprep.subr.bf16.mxu0 %v4114
    %5568 = vmatpush1.bf16.msra.mxu0 %v4113
    %5569 = vmatprep.subr.bf16.mxu0 %v4110
    %5570 = vmatpush1.bf16.msra.mxu0 %v4109
    %5571 = vmatprep.subr.bf16.mxu0 %v4170
    %5572 = vmatpush2.bf16.msra.mxu0 %v4169
    %5573 = vmatprep.subr.bf16.mxu0 %v4166
    %5574 = vmatpush2.bf16.msra.mxu0 %v4165
    %5575 = vmatprep.subr.bf16.mxu0 %v4162
    %5576 = vmatpush2.bf16.msra.mxu0 %v4161
    %5577 = vmatprep.subr.bf16.mxu0 %v4158
    %5578 = vmatpush2.bf16.msra.mxu0 %v4157
    %5579 = vmatprep.subr.bf16.mxu0 %v4154
    %5580 = vmatpush2.bf16.msra.mxu0 %v4153
    %5581 = vmatprep.subr.bf16.mxu0 %v4150
    %5582 = vmatpush2.bf16.msra.mxu0 %v4149
    %5583 = vmatprep.subr.bf16.mxu0 %v4146
    %5584 = vmatpush2.bf16.msra.mxu0 %v4145
    %5585 = vmatprep.subr.bf16.mxu0 %v4142
    %5586 = vmatpush2.bf16.msra.mxu0 %v4141
    %5587 = vmatprep.mubr.bf16.mxu0 %v1162
    %5588 = vmatmul.mubr.bf16.gmra.mxu0 %v1158
    %v5589 = vpop.f32.mrf.mxu0
    %v5590 = vadd.f32 %v5547, %v5589
    %v5591 = vpop.f32.mrf.mxu0
    %v5592 = vadd.f32 %v5549, %v5591
    %v5593 = vpop.f32.mrf.mxu0
    %v5594 = vadd.f32 %v5551, %v5593
    %v5595 = vpop.f32.mrf.mxu0
    %v5596 = vadd.f32 %v5553, %v5595
    %5597 = vdwg.mxu0
    %5598 = vmatprep.subr.bf16.mxu0 %v4202
    %5599 = vmatpush1.bf16.msra.mxu0 %v4201
    %5600 = vmatprep.subr.bf16.mxu0 %v4198
    %5601 = vmatpush1.bf16.msra.mxu0 %v4197
    %5602 = vmatprep.subr.bf16.mxu0 %v4194
    %5603 = vmatpush1.bf16.msra.mxu0 %v4193
    %5604 = vmatprep.subr.bf16.mxu0 %v4190
    %5605 = vmatpush1.bf16.msra.mxu0 %v4189
    %5606 = vmatprep.subr.bf16.mxu0 %v4186
    %5607 = vmatpush1.bf16.msra.mxu0 %v4185
    %5608 = vmatprep.subr.bf16.mxu0 %v4182
    %5609 = vmatpush1.bf16.msra.mxu0 %v4181
    %5610 = vmatprep.subr.bf16.mxu0 %v4178
    %5611 = vmatpush1.bf16.msra.mxu0 %v4177
    %5612 = vmatprep.subr.bf16.mxu0 %v4174
    %5613 = vmatpush1.bf16.msra.mxu0 %v4173
    %5614 = vmatprep.subr.bf16.mxu0 %v4234
    %5615 = vmatpush2.bf16.msra.mxu0 %v4233
    %5616 = vmatprep.subr.bf16.mxu0 %v4230
    %5617 = vmatpush2.bf16.msra.mxu0 %v4229
    %5618 = vmatprep.subr.bf16.mxu0 %v4226
    %5619 = vmatpush2.bf16.msra.mxu0 %v4225
    %5620 = vmatprep.subr.bf16.mxu0 %v4222
    %5621 = vmatpush2.bf16.msra.mxu0 %v4221
    %5622 = vmatprep.subr.bf16.mxu0 %v4218
    %5623 = vmatpush2.bf16.msra.mxu0 %v4217
    %5624 = vmatprep.subr.bf16.mxu0 %v4214
    %5625 = vmatpush2.bf16.msra.mxu0 %v4213
    %5626 = vmatprep.subr.bf16.mxu0 %v4210
    %5627 = vmatpush2.bf16.msra.mxu0 %v4209
    %5628 = vmatprep.subr.bf16.mxu0 %v4206
    %5629 = vmatpush2.bf16.msra.mxu0 %v4205
    %5630 = vmatprep.mubr.bf16.mxu0 %v1163
    %5631 = vmatmul.mubr.bf16.gmra.mxu0 %v1159
    %v5632 = vpop.f32.mrf.mxu0
    %v5633 = vadd.f32 %v5590, %v5632
    %v5634 = vpop.f32.mrf.mxu0
    %v5635 = vadd.f32 %v5592, %v5634
    %v5636 = vpop.f32.mrf.mxu0
    %v5637 = vadd.f32 %v5594, %v5636
    %v5638 = vpop.f32.mrf.mxu0
    %v5639 = vadd.f32 %v5596, %v5638
    %5640 = vdwg.mxu0
    %5641 = vmatprep.subr.bf16.mxu0 %v4266
    %5642 = vmatpush1.bf16.msra.mxu0 %v4265
    %5643 = vmatprep.subr.bf16.mxu0 %v4262
    %5644 = vmatpush1.bf16.msra.mxu0 %v4261
    %5645 = vmatprep.subr.bf16.mxu0 %v4258
    %5646 = vmatpush1.bf16.msra.mxu0 %v4257
    %5647 = vmatprep.subr.bf16.mxu0 %v4254
    %5648 = vmatpush1.bf16.msra.mxu0 %v4253
    %5649 = vmatprep.subr.bf16.mxu0 %v4250
    %5650 = vmatpush1.bf16.msra.mxu0 %v4249
    %5651 = vmatprep.subr.bf16.mxu0 %v4246
    %5652 = vmatpush1.bf16.msra.mxu0 %v4245
    %5653 = vmatprep.subr.bf16.mxu0 %v4242
    %5654 = vmatpush1.bf16.msra.mxu0 %v4241
    %5655 = vmatprep.subr.bf16.mxu0 %v4238
    %5656 = vmatpush1.bf16.msra.mxu0 %v4237
    %5657 = vmatprep.subr.bf16.mxu0 %v4298
    %5658 = vmatpush2.bf16.msra.mxu0 %v4297
    %5659 = vmatprep.subr.bf16.mxu0 %v4294
    %5660 = vmatpush2.bf16.msra.mxu0 %v4293
    %5661 = vmatprep.subr.bf16.mxu0 %v4290
    %5662 = vmatpush2.bf16.msra.mxu0 %v4289
    %5663 = vmatprep.subr.bf16.mxu0 %v4286
    %5664 = vmatpush2.bf16.msra.mxu0 %v4285
    %5665 = vmatprep.subr.bf16.mxu0 %v4282
    %5666 = vmatpush2.bf16.msra.mxu0 %v4281
    %5667 = vmatprep.subr.bf16.mxu0 %v4278
    %5668 = vmatpush2.bf16.msra.mxu0 %v4277
    %5669 = vmatprep.subr.bf16.mxu0 %v4274
    %5670 = vmatpush2.bf16.msra.mxu0 %v4273
    %5671 = vmatprep.subr.bf16.mxu0 %v4270
    %5672 = vmatpush2.bf16.msra.mxu0 %v4269
    %5673 = vmatprep.mubr.bf16.mxu0 %v1296
    %5674 = vmatmul.mubr.bf16.gmra.mxu0 %v1292
    %v5675 = vpop.f32.mrf.mxu0
    %v5676 = vadd.f32 %v5633, %v5675
    %v5677 = vpop.f32.mrf.mxu0
    %v5678 = vadd.f32 %v5635, %v5677
    %v5679 = vpop.f32.mrf.mxu0
    %v5680 = vadd.f32 %v5637, %v5679
    %v5681 = vpop.f32.mrf.mxu0
    %v5682 = vadd.f32 %v5639, %v5681
    %5683 = vdwg.mxu0
    %5684 = vmatprep.subr.bf16.mxu0 %v4330
    %5685 = vmatpush1.bf16.msra.mxu0 %v4329
    %5686 = vmatprep.subr.bf16.mxu0 %v4326
    %5687 = vmatpush1.bf16.msra.mxu0 %v4325
    %5688 = vmatprep.subr.bf16.mxu0 %v4322
    %5689 = vmatpush1.bf16.msra.mxu0 %v4321
    %5690 = vmatprep.subr.bf16.mxu0 %v4318
    %5691 = vmatpush1.bf16.msra.mxu0 %v4317
    %5692 = vmatprep.subr.bf16.mxu0 %v4314
    %5693 = vmatpush1.bf16.msra.mxu0 %v4313
    %5694 = vmatprep.subr.bf16.mxu0 %v4310
    %5695 = vmatpush1.bf16.msra.mxu0 %v4309
    %5696 = vmatprep.subr.bf16.mxu0 %v4306
    %5697 = vmatpush1.bf16.msra.mxu0 %v4305
    %5698 = vmatprep.subr.bf16.mxu0 %v4302
    %5699 = vmatpush1.bf16.msra.mxu0 %v4301
    %5700 = vmatprep.subr.bf16.mxu0 %v4362
    %5701 = vmatpush2.bf16.msra.mxu0 %v4361
    %5702 = vmatprep.subr.bf16.mxu0 %v4358
    %5703 = vmatpush2.bf16.msra.mxu0 %v4357
    %5704 = vmatprep.subr.bf16.mxu0 %v4354
    %5705 = vmatpush2.bf16.msra.mxu0 %v4353
    %5706 = vmatprep.subr.bf16.mxu0 %v4350
    %5707 = vmatpush2.bf16.msra.mxu0 %v4349
    %5708 = vmatprep.subr.bf16.mxu0 %v4346
    %5709 = vmatpush2.bf16.msra.mxu0 %v4345
    %5710 = vmatprep.subr.bf16.mxu0 %v4342
    %5711 = vmatpush2.bf16.msra.mxu0 %v4341
    %5712 = vmatprep.subr.bf16.mxu0 %v4338
    %5713 = vmatpush2.bf16.msra.mxu0 %v4337
    %5714 = vmatprep.subr.bf16.mxu0 %v4334
    %5715 = vmatpush2.bf16.msra.mxu0 %v4333
    %5716 = vmatprep.mubr.bf16.mxu0 %v1297
    %5717 = vmatmul.mubr.bf16.gmra.mxu0 %v1293
    %v5718 = vpop.f32.mrf.mxu0
    %v5719 = vadd.f32 %v5676, %v5718
    %v5720 = vpop.f32.mrf.mxu0
    %v5721 = vadd.f32 %v5678, %v5720
    %v5722 = vpop.f32.mrf.mxu0
    %v5723 = vadd.f32 %v5680, %v5722
    %v5724 = vpop.f32.mrf.mxu0
    %v5725 = vadd.f32 %v5682, %v5724
    %5726 = vdwg.mxu0
    %5727 = vmatprep.subr.bf16.mxu0 %v4394
    %5728 = vmatpush1.bf16.msra.mxu0 %v4393
    %5729 = vmatprep.subr.bf16.mxu0 %v4390
    %5730 = vmatpush1.bf16.msra.mxu0 %v4389
    %5731 = vmatprep.subr.bf16.mxu0 %v4386
    %5732 = vmatpush1.bf16.msra.mxu0 %v4385
    %5733 = vmatprep.subr.bf16.mxu0 %v4382
    %5734 = vmatpush1.bf16.msra.mxu0 %v4381
    %5735 = vmatprep.subr.bf16.mxu0 %v4378
    %5736 = vmatpush1.bf16.msra.mxu0 %v4377
    %5737 = vmatprep.subr.bf16.mxu0 %v4374
    %5738 = vmatpush1.bf16.msra.mxu0 %v4373
    %5739 = vmatprep.subr.bf16.mxu0 %v4370
    %5740 = vmatpush1.bf16.msra.mxu0 %v4369
    %5741 = vmatprep.subr.bf16.mxu0 %v4366
    %5742 = vmatpush1.bf16.msra.mxu0 %v4365
    %5743 = vmatprep.subr.bf16.mxu0 %v4426
    %5744 = vmatpush2.bf16.msra.mxu0 %v4425
    %5745 = vmatprep.subr.bf16.mxu0 %v4422
    %5746 = vmatpush2.bf16.msra.mxu0 %v4421
    %5747 = vmatprep.subr.bf16.mxu0 %v4418
    %5748 = vmatpush2.bf16.msra.mxu0 %v4417
    %5749 = vmatprep.subr.bf16.mxu0 %v4414
    %5750 = vmatpush2.bf16.msra.mxu0 %v4413
    %5751 = vmatprep.subr.bf16.mxu0 %v4410
    %5752 = vmatpush2.bf16.msra.mxu0 %v4409
    %5753 = vmatprep.subr.bf16.mxu0 %v4406
    %5754 = vmatpush2.bf16.msra.mxu0 %v4405
    %5755 = vmatprep.subr.bf16.mxu0 %v4402
    %5756 = vmatpush2.bf16.msra.mxu0 %v4401
    %5757 = vmatprep.subr.bf16.mxu0 %v4398
    %5758 = vmatpush2.bf16.msra.mxu0 %v4397
    %5759 = vmatprep.mubr.bf16.mxu0 %v1298
    %5760 = vmatmul.mubr.bf16.gmra.mxu0 %v1294
    %v5761 = vpop.f32.mrf.mxu0
    %v5762 = vadd.f32 %v5719, %v5761
    %v5763 = vpop.f32.mrf.mxu0
    %v5764 = vadd.f32 %v5721, %v5763
    %v5765 = vpop.f32.mrf.mxu0
    %v5766 = vadd.f32 %v5723, %v5765
    %v5767 = vpop.f32.mrf.mxu0
    %v5768 = vadd.f32 %v5725, %v5767
    %5769 = vdwg.mxu0
    %5770 = vmatprep.subr.bf16.mxu0 %v4458
    %5771 = vmatpush1.bf16.msra.mxu0 %v4457
    %5772 = vmatprep.subr.bf16.mxu0 %v4454
    %5773 = vmatpush1.bf16.msra.mxu0 %v4453
    %5774 = vmatprep.subr.bf16.mxu0 %v4450
    %5775 = vmatpush1.bf16.msra.mxu0 %v4449
    %5776 = vmatprep.subr.bf16.mxu0 %v4446
    %5777 = vmatpush1.bf16.msra.mxu0 %v4445
    %5778 = vmatprep.subr.bf16.mxu0 %v4442
    %5779 = vmatpush1.bf16.msra.mxu0 %v4441
    %5780 = vmatprep.subr.bf16.mxu0 %v4438
    %5781 = vmatpush1.bf16.msra.mxu0 %v4437
    %5782 = vmatprep.subr.bf16.mxu0 %v4434
    %5783 = vmatpush1.bf16.msra.mxu0 %v4433
    %5784 = vmatprep.subr.bf16.mxu0 %v4430
    %5785 = vmatpush1.bf16.msra.mxu0 %v4429
    %5786 = vmatprep.subr.bf16.mxu0 %v4490
    %5787 = vmatpush2.bf16.msra.mxu0 %v4489
    %5788 = vmatprep.subr.bf16.mxu0 %v4486
    %5789 = vmatpush2.bf16.msra.mxu0 %v4485
    %5790 = vmatprep.subr.bf16.mxu0 %v4482
    %5791 = vmatpush2.bf16.msra.mxu0 %v4481
    %5792 = vmatprep.subr.bf16.mxu0 %v4478
    %5793 = vmatpush2.bf16.msra.mxu0 %v4477
    %5794 = vmatprep.subr.bf16.mxu0 %v4474
    %5795 = vmatpush2.bf16.msra.mxu0 %v4473
    %5796 = vmatprep.subr.bf16.mxu0 %v4470
    %5797 = vmatpush2.bf16.msra.mxu0 %v4469
    %5798 = vmatprep.subr.bf16.mxu0 %v4466
    %5799 = vmatpush2.bf16.msra.mxu0 %v4465
    %5800 = vmatprep.subr.bf16.mxu0 %v4462
    %5801 = vmatpush2.bf16.msra.mxu0 %v4461
    %5802 = vmatprep.mubr.bf16.mxu0 %v1299
    %5803 = vmatmul.mubr.bf16.gmra.mxu0 %v1295
    %v5804 = vpop.f32.mrf.mxu0
    %v5805 = vadd.f32 %v5762, %v5804
    %v5806 = vpop.f32.mrf.mxu0
    %v5807 = vadd.f32 %v5764, %v5806
    %v5808 = vpop.f32.mrf.mxu0
    %v5809 = vadd.f32 %v5766, %v5808
    %v5810 = vpop.f32.mrf.mxu0
    %v5811 = vadd.f32 %v5768, %v5810
    %5812 = vdwg.mxu0
    %5813 = vmatprep.subr.bf16.mxu0 0
    %5814 = vmatpush1.bf16.msra.mxu0 0
    %5815 = vmatprep.subr.bf16.mxu0 0
    %5816 = vmatpush1.bf16.msra.mxu0 0
    %5817 = vmatprep.subr.bf16.mxu0 0
    %5818 = vmatpush1.bf16.msra.mxu0 0
    %5819 = vmatprep.subr.bf16.mxu0 0
    %5820 = vmatpush1.bf16.msra.mxu0 0
    %5821 = vmatprep.subr.bf16.mxu0 %v4506
    %5822 = vmatpush1.bf16.msra.mxu0 %v4505
    %5823 = vmatprep.subr.bf16.mxu0 %v4502
    %5824 = vmatpush1.bf16.msra.mxu0 %v4501
    %5825 = vmatprep.subr.bf16.mxu0 %v4498
    %5826 = vmatpush1.bf16.msra.mxu0 %v4497
    %5827 = vmatprep.subr.bf16.mxu0 %v4494
    %5828 = vmatpush1.bf16.msra.mxu0 %v4493
    %5829 = vmatprep.subr.bf16.mxu0 0
    %5830 = vmatpush2.bf16.msra.mxu0 0
    %5831 = vmatprep.subr.bf16.mxu0 0
    %5832 = vmatpush2.bf16.msra.mxu0 0
    %5833 = vmatprep.subr.bf16.mxu0 0
    %5834 = vmatpush2.bf16.msra.mxu0 0
    %5835 = vmatprep.subr.bf16.mxu0 0
    %5836 = vmatpush2.bf16.msra.mxu0 0
    %5837 = vmatprep.subr.bf16.mxu0 0
    %5838 = vmatpush2.bf16.msra.mxu0 0
    %5839 = vmatprep.subr.bf16.mxu0 0
    %5840 = vmatpush2.bf16.msra.mxu0 0
    %5841 = vmatprep.subr.bf16.mxu0 0
    %5842 = vmatpush2.bf16.msra.mxu0 0
    %5843 = vmatprep.subr.bf16.mxu0 0
    %5844 = vmatpush2.bf16.msra.mxu0 0
    %5845 = vmatprep.mubr.bf16.mxu0 0
    %5846 = vmatmul.mubr.bf16.gmra.mxu0 %v5295
    %v5847 = vpop.f32.mrf.mxu0
    %v5848 = vadd.f32 %v5805, %v5847
    %v5849 = vpop.f32.mrf.mxu0
    %v5850 = vadd.f32 %v5807, %v5849
    %v5851 = vpop.f32.mrf.mxu0
    %v5852 = vadd.f32 %v5809, %v5851
    %v5853 = vpop.f32.mrf.mxu0
    %v5854 = vadd.f32 %v5811, %v5853
    %5855 = vdwg.mxu0
    %5856 = vmatprep.subr.bf16.mxu0 %v3756
    %5857 = vmatpush1.bf16.msra.mxu0 %v3755
    %5858 = vmatprep.subr.bf16.mxu0 %v3752
    %5859 = vmatpush1.bf16.msra.mxu0 %v3751
    %5860 = vmatprep.subr.bf16.mxu0 %v3748
    %5861 = vmatpush1.bf16.msra.mxu0 %v3747
    %5862 = vmatprep.subr.bf16.mxu0 %v3744
    %5863 = vmatpush1.bf16.msra.mxu0 %v3743
    %5864 = vmatprep.subr.bf16.mxu0 %v3740
    %5865 = vmatpush1.bf16.msra.mxu0 %v3739
    %5866 = vmatprep.subr.bf16.mxu0 %v3736
    %5867 = vmatpush1.bf16.msra.mxu0 %v3735
    %5868 = vmatprep.subr.bf16.mxu0 %v3732
    %5869 = vmatpush1.bf16.msra.mxu0 %v3731
    %5870 = vmatprep.subr.bf16.mxu0 %v3728
    %5871 = vmatpush1.bf16.msra.mxu0 %v3727
    %5872 = vmatprep.subr.bf16.mxu0 %v3788
    %5873 = vmatpush2.bf16.msra.mxu0 %v3787
    %5874 = vmatprep.subr.bf16.mxu0 %v3784
    %5875 = vmatpush2.bf16.msra.mxu0 %v3783
    %5876 = vmatprep.subr.bf16.mxu0 %v3780
    %5877 = vmatpush2.bf16.msra.mxu0 %v3779
    %5878 = vmatprep.subr.bf16.mxu0 %v3776
    %5879 = vmatpush2.bf16.msra.mxu0 %v3775
    %5880 = vmatprep.subr.bf16.mxu0 %v3772
    %5881 = vmatpush2.bf16.msra.mxu0 %v3771
    %5882 = vmatprep.subr.bf16.mxu0 %v3768
    %5883 = vmatpush2.bf16.msra.mxu0 %v3767
    %5884 = vmatprep.subr.bf16.mxu0 %v3764
    %5885 = vmatpush2.bf16.msra.mxu0 %v3763
    %5886 = vmatprep.subr.bf16.mxu0 %v3760
    %5887 = vmatpush2.bf16.msra.mxu0 %v3759
    %5888 = vmatprep.mubr.bf16.mxu0 %v1024
    %5889 = vmatmul.mubr.bf16.gmra.mxu0 %v1020
    %v5890 = vpop.f32.mrf.mxu0
    %v5891 = vadd.f32 %v851, %v5890
    %v5892 = vpop.f32.mrf.mxu0
    %v5893 = vadd.f32 %v855, %v5892
    %v5894 = vpop.f32.mrf.mxu0
    %v5895 = vadd.f32 %v851, %v5894
    %v5896 = vpop.f32.mrf.mxu0
    %v5897 = vadd.f32 %v855, %v5896
    %5898 = vdwg.mxu0
    %5899 = vmatprep.subr.bf16.mxu0 %v3820
    %5900 = vmatpush1.bf16.msra.mxu0 %v3819
    %5901 = vmatprep.subr.bf16.mxu0 %v3816
    %5902 = vmatpush1.bf16.msra.mxu0 %v3815
    %5903 = vmatprep.subr.bf16.mxu0 %v3812
    %5904 = vmatpush1.bf16.msra.mxu0 %v3811
    %5905 = vmatprep.subr.bf16.mxu0 %v3808
    %5906 = vmatpush1.bf16.msra.mxu0 %v3807
    %5907 = vmatprep.subr.bf16.mxu0 %v3804
    %5908 = vmatpush1.bf16.msra.mxu0 %v3803
    %5909 = vmatprep.subr.bf16.mxu0 %v3800
    %5910 = vmatpush1.bf16.msra.mxu0 %v3799
    %5911 = vmatprep.subr.bf16.mxu0 %v3796
    %5912 = vmatpush1.bf16.msra.mxu0 %v3795
    %5913 = vmatprep.subr.bf16.mxu0 %v3792
    %5914 = vmatpush1.bf16.msra.mxu0 %v3791
    %5915 = vmatprep.subr.bf16.mxu0 %v3852
    %5916 = vmatpush2.bf16.msra.mxu0 %v3851
    %5917 = vmatprep.subr.bf16.mxu0 %v3848
    %5918 = vmatpush2.bf16.msra.mxu0 %v3847
    %5919 = vmatprep.subr.bf16.mxu0 %v3844
    %5920 = vmatpush2.bf16.msra.mxu0 %v3843
    %5921 = vmatprep.subr.bf16.mxu0 %v3840
    %5922 = vmatpush2.bf16.msra.mxu0 %v3839
    %5923 = vmatprep.subr.bf16.mxu0 %v3836
    %5924 = vmatpush2.bf16.msra.mxu0 %v3835
    %5925 = vmatprep.subr.bf16.mxu0 %v3832
    %5926 = vmatpush2.bf16.msra.mxu0 %v3831
    %5927 = vmatprep.subr.bf16.mxu0 %v3828
    %5928 = vmatpush2.bf16.msra.mxu0 %v3827
    %5929 = vmatprep.subr.bf16.mxu0 %v3824
    %5930 = vmatpush2.bf16.msra.mxu0 %v3823
    %5931 = vmatprep.mubr.bf16.mxu0 %v1025
    %5932 = vmatmul.mubr.bf16.gmra.mxu0 %v1021
    %v5933 = vpop.f32.mrf.mxu0
    %v5934 = vadd.f32 %v5891, %v5933
    %v5935 = vpop.f32.mrf.mxu0
    %v5936 = vadd.f32 %v5893, %v5935
    %v5937 = vpop.f32.mrf.mxu0
    %v5938 = vadd.f32 %v5895, %v5937
    %v5939 = vpop.f32.mrf.mxu0
    %v5940 = vadd.f32 %v5897, %v5939
    %5941 = vdwg.mxu0
    %5942 = vmatprep.subr.bf16.mxu0 %v3884
    %5943 = vmatpush1.bf16.msra.mxu0 %v3883
    %5944 = vmatprep.subr.bf16.mxu0 %v3880
    %5945 = vmatpush1.bf16.msra.mxu0 %v3879
    %5946 = vmatprep.subr.bf16.mxu0 %v3876
    %5947 = vmatpush1.bf16.msra.mxu0 %v3875
    %5948 = vmatprep.subr.bf16.mxu0 %v3872
    %5949 = vmatpush1.bf16.msra.mxu0 %v3871
    %5950 = vmatprep.subr.bf16.mxu0 %v3868
    %5951 = vmatpush1.bf16.msra.mxu0 %v3867
    %5952 = vmatprep.subr.bf16.mxu0 %v3864
    %5953 = vmatpush1.bf16.msra.mxu0 %v3863
    %5954 = vmatprep.subr.bf16.mxu0 %v3860
    %5955 = vmatpush1.bf16.msra.mxu0 %v3859
    %5956 = vmatprep.subr.bf16.mxu0 %v3856
    %5957 = vmatpush1.bf16.msra.mxu0 %v3855
    %5958 = vmatprep.subr.bf16.mxu0 %v3916
    %5959 = vmatpush2.bf16.msra.mxu0 %v3915
    %5960 = vmatprep.subr.bf16.mxu0 %v3912
    %5961 = vmatpush2.bf16.msra.mxu0 %v3911
    %5962 = vmatprep.subr.bf16.mxu0 %v3908
    %5963 = vmatpush2.bf16.msra.mxu0 %v3907
    %5964 = vmatprep.subr.bf16.mxu0 %v3904
    %5965 = vmatpush2.bf16.msra.mxu0 %v3903
    %5966 = vmatprep.subr.bf16.mxu0 %v3900
    %5967 = vmatpush2.bf16.msra.mxu0 %v3899
    %5968 = vmatprep.subr.bf16.mxu0 %v3896
    %5969 = vmatpush2.bf16.msra.mxu0 %v3895
    %5970 = vmatprep.subr.bf16.mxu0 %v3892
    %5971 = vmatpush2.bf16.msra.mxu0 %v3891
    %5972 = vmatprep.subr.bf16.mxu0 %v3888
    %5973 = vmatpush2.bf16.msra.mxu0 %v3887
    %5974 = vmatprep.mubr.bf16.mxu0 %v1026
    %5975 = vmatmul.mubr.bf16.gmra.mxu0 %v1022
    %v5976 = vpop.f32.mrf.mxu0
    %v5977 = vadd.f32 %v5934, %v5976
    %v5978 = vpop.f32.mrf.mxu0
    %v5979 = vadd.f32 %v5936, %v5978
    %v5980 = vpop.f32.mrf.mxu0
    %v5981 = vadd.f32 %v5938, %v5980
    %v5982 = vpop.f32.mrf.mxu0
    %v5983 = vadd.f32 %v5940, %v5982
    %5984 = vdwg.mxu0
    %5985 = vmatprep.subr.bf16.mxu0 %v3948
    %5986 = vmatpush1.bf16.msra.mxu0 %v3947
    %5987 = vmatprep.subr.bf16.mxu0 %v3944
    %5988 = vmatpush1.bf16.msra.mxu0 %v3943
    %5989 = vmatprep.subr.bf16.mxu0 %v3940
    %5990 = vmatpush1.bf16.msra.mxu0 %v3939
    %5991 = vmatprep.subr.bf16.mxu0 %v3936
    %5992 = vmatpush1.bf16.msra.mxu0 %v3935
    %5993 = vmatprep.subr.bf16.mxu0 %v3932
    %5994 = vmatpush1.bf16.msra.mxu0 %v3931
    %5995 = vmatprep.subr.bf16.mxu0 %v3928
    %5996 = vmatpush1.bf16.msra.mxu0 %v3927
    %5997 = vmatprep.subr.bf16.mxu0 %v3924
    %5998 = vmatpush1.bf16.msra.mxu0 %v3923
    %5999 = vmatprep.subr.bf16.mxu0 %v3920
    %6000 = vmatpush1.bf16.msra.mxu0 %v3919
    %6001 = vmatprep.subr.bf16.mxu0 %v3980
    %6002 = vmatpush2.bf16.msra.mxu0 %v3979
    %6003 = vmatprep.subr.bf16.mxu0 %v3976
    %6004 = vmatpush2.bf16.msra.mxu0 %v3975
    %6005 = vmatprep.subr.bf16.mxu0 %v3972
    %6006 = vmatpush2.bf16.msra.mxu0 %v3971
    %6007 = vmatprep.subr.bf16.mxu0 %v3968
    %6008 = vmatpush2.bf16.msra.mxu0 %v3967
    %6009 = vmatprep.subr.bf16.mxu0 %v3964
    %6010 = vmatpush2.bf16.msra.mxu0 %v3963
    %6011 = vmatprep.subr.bf16.mxu0 %v3960
    %6012 = vmatpush2.bf16.msra.mxu0 %v3959
    %6013 = vmatprep.subr.bf16.mxu0 %v3956
    %6014 = vmatpush2.bf16.msra.mxu0 %v3955
    %6015 = vmatprep.subr.bf16.mxu0 %v3952
    %6016 = vmatpush2.bf16.msra.mxu0 %v3951
    %6017 = vmatprep.mubr.bf16.mxu0 %v1027
    %6018 = vmatmul.mubr.bf16.gmra.mxu0 %v1023
    %v6019 = vpop.f32.mrf.mxu0
    %v6020 = vadd.f32 %v5977, %v6019
    %v6021 = vpop.f32.mrf.mxu0
    %v6022 = vadd.f32 %v5979, %v6021
    %v6023 = vpop.f32.mrf.mxu0
    %v6024 = vadd.f32 %v5981, %v6023
    %v6025 = vpop.f32.mrf.mxu0
    %v6026 = vadd.f32 %v5983, %v6025
    %6027 = vdwg.mxu0
    %6028 = vmatprep.subr.bf16.mxu0 %v4012
    %6029 = vmatpush1.bf16.msra.mxu0 %v4011
    %6030 = vmatprep.subr.bf16.mxu0 %v4008
    %6031 = vmatpush1.bf16.msra.mxu0 %v4007
    %6032 = vmatprep.subr.bf16.mxu0 %v4004
    %6033 = vmatpush1.bf16.msra.mxu0 %v4003
    %6034 = vmatprep.subr.bf16.mxu0 %v4000
    %6035 = vmatpush1.bf16.msra.mxu0 %v3999
    %6036 = vmatprep.subr.bf16.mxu0 %v3996
    %6037 = vmatpush1.bf16.msra.mxu0 %v3995
    %6038 = vmatprep.subr.bf16.mxu0 %v3992
    %6039 = vmatpush1.bf16.msra.mxu0 %v3991
    %6040 = vmatprep.subr.bf16.mxu0 %v3988
    %6041 = vmatpush1.bf16.msra.mxu0 %v3987
    %6042 = vmatprep.subr.bf16.mxu0 %v3984
    %6043 = vmatpush1.bf16.msra.mxu0 %v3983
    %6044 = vmatprep.subr.bf16.mxu0 %v4044
    %6045 = vmatpush2.bf16.msra.mxu0 %v4043
    %6046 = vmatprep.subr.bf16.mxu0 %v4040
    %6047 = vmatpush2.bf16.msra.mxu0 %v4039
    %6048 = vmatprep.subr.bf16.mxu0 %v4036
    %6049 = vmatpush2.bf16.msra.mxu0 %v4035
    %6050 = vmatprep.subr.bf16.mxu0 %v4032
    %6051 = vmatpush2.bf16.msra.mxu0 %v4031
    %6052 = vmatprep.subr.bf16.mxu0 %v4028
    %6053 = vmatpush2.bf16.msra.mxu0 %v4027
    %6054 = vmatprep.subr.bf16.mxu0 %v4024
    %6055 = vmatpush2.bf16.msra.mxu0 %v4023
    %6056 = vmatprep.subr.bf16.mxu0 %v4020
    %6057 = vmatpush2.bf16.msra.mxu0 %v4019
    %6058 = vmatprep.subr.bf16.mxu0 %v4016
    %6059 = vmatpush2.bf16.msra.mxu0 %v4015
    %6060 = vmatprep.mubr.bf16.mxu0 %v1160
    %6061 = vmatmul.mubr.bf16.gmra.mxu0 %v1156
    %v6062 = vpop.f32.mrf.mxu0
    %v6063 = vadd.f32 %v6020, %v6062
    %v6064 = vpop.f32.mrf.mxu0
    %v6065 = vadd.f32 %v6022, %v6064
    %v6066 = vpop.f32.mrf.mxu0
    %v6067 = vadd.f32 %v6024, %v6066
    %v6068 = vpop.f32.mrf.mxu0
    %v6069 = vadd.f32 %v6026, %v6068
    %6070 = vdwg.mxu0
    %6071 = vmatprep.subr.bf16.mxu0 %v4076
    %6072 = vmatpush1.bf16.msra.mxu0 %v4075
    %6073 = vmatprep.subr.bf16.mxu0 %v4072
    %6074 = vmatpush1.bf16.msra.mxu0 %v4071
    %6075 = vmatprep.subr.bf16.mxu0 %v4068
    %6076 = vmatpush1.bf16.msra.mxu0 %v4067
    %6077 = vmatprep.subr.bf16.mxu0 %v4064
    %6078 = vmatpush1.bf16.msra.mxu0 %v4063
    %6079 = vmatprep.subr.bf16.mxu0 %v4060
    %6080 = vmatpush1.bf16.msra.mxu0 %v4059
    %6081 = vmatprep.subr.bf16.mxu0 %v4056
    %6082 = vmatpush1.bf16.msra.mxu0 %v4055
    %6083 = vmatprep.subr.bf16.mxu0 %v4052
    %6084 = vmatpush1.bf16.msra.mxu0 %v4051
    %6085 = vmatprep.subr.bf16.mxu0 %v4048
    %6086 = vmatpush1.bf16.msra.mxu0 %v4047
    %6087 = vmatprep.subr.bf16.mxu0 %v4108
    %6088 = vmatpush2.bf16.msra.mxu0 %v4107
    %6089 = vmatprep.subr.bf16.mxu0 %v4104
    %6090 = vmatpush2.bf16.msra.mxu0 %v4103
    %6091 = vmatprep.subr.bf16.mxu0 %v4100
    %6092 = vmatpush2.bf16.msra.mxu0 %v4099
    %6093 = vmatprep.subr.bf16.mxu0 %v4096
    %6094 = vmatpush2.bf16.msra.mxu0 %v4095
    %6095 = vmatprep.subr.bf16.mxu0 %v4092
    %6096 = vmatpush2.bf16.msra.mxu0 %v4091
    %6097 = vmatprep.subr.bf16.mxu0 %v4088
    %6098 = vmatpush2.bf16.msra.mxu0 %v4087
    %6099 = vmatprep.subr.bf16.mxu0 %v4084
    %6100 = vmatpush2.bf16.msra.mxu0 %v4083
    %6101 = vmatprep.subr.bf16.mxu0 %v4080
    %6102 = vmatpush2.bf16.msra.mxu0 %v4079
    %6103 = vmatprep.mubr.bf16.mxu0 %v1161
    %6104 = vmatmul.mubr.bf16.gmra.mxu0 %v1157
    %v6105 = vpop.f32.mrf.mxu0
    %v6106 = vadd.f32 %v6063, %v6105
    %v6107 = vpop.f32.mrf.mxu0
    %v6108 = vadd.f32 %v6065, %v6107
    %v6109 = vpop.f32.mrf.mxu0
    %v6110 = vadd.f32 %v6067, %v6109
    %v6111 = vpop.f32.mrf.mxu0
    %v6112 = vadd.f32 %v6069, %v6111
    %6113 = vdwg.mxu0
    %6114 = vmatprep.subr.bf16.mxu0 %v4140
    %6115 = vmatpush1.bf16.msra.mxu0 %v4139
    %6116 = vmatprep.subr.bf16.mxu0 %v4136
    %6117 = vmatpush1.bf16.msra.mxu0 %v4135
    %6118 = vmatprep.subr.bf16.mxu0 %v4132
    %6119 = vmatpush1.bf16.msra.mxu0 %v4131
    %6120 = vmatprep.subr.bf16.mxu0 %v4128
    %6121 = vmatpush1.bf16.msra.mxu0 %v4127
    %6122 = vmatprep.subr.bf16.mxu0 %v4124
    %6123 = vmatpush1.bf16.msra.mxu0 %v4123
    %6124 = vmatprep.subr.bf16.mxu0 %v4120
    %6125 = vmatpush1.bf16.msra.mxu0 %v4119
    %6126 = vmatprep.subr.bf16.mxu0 %v4116
    %6127 = vmatpush1.bf16.msra.mxu0 %v4115
    %6128 = vmatprep.subr.bf16.mxu0 %v4112
    %6129 = vmatpush1.bf16.msra.mxu0 %v4111
    %6130 = vmatprep.subr.bf16.mxu0 %v4172
    %6131 = vmatpush2.bf16.msra.mxu0 %v4171
    %6132 = vmatprep.subr.bf16.mxu0 %v4168
    %6133 = vmatpush2.bf16.msra.mxu0 %v4167
    %6134 = vmatprep.subr.bf16.mxu0 %v4164
    %6135 = vmatpush2.bf16.msra.mxu0 %v4163
    %6136 = vmatprep.subr.bf16.mxu0 %v4160
    %6137 = vmatpush2.bf16.msra.mxu0 %v4159
    %6138 = vmatprep.subr.bf16.mxu0 %v4156
    %6139 = vmatpush2.bf16.msra.mxu0 %v4155
    %6140 = vmatprep.subr.bf16.mxu0 %v4152
    %6141 = vmatpush2.bf16.msra.mxu0 %v4151
    %6142 = vmatprep.subr.bf16.mxu0 %v4148
    %6143 = vmatpush2.bf16.msra.mxu0 %v4147
    %6144 = vmatprep.subr.bf16.mxu0 %v4144
    %6145 = vmatpush2.bf16.msra.mxu0 %v4143
    %6146 = vmatprep.mubr.bf16.mxu0 %v1162
    %6147 = vmatmul.mubr.bf16.gmra.mxu0 %v1158
    %v6148 = vpop.f32.mrf.mxu0
    %v6149 = vadd.f32 %v6106, %v6148
    %v6150 = vpop.f32.mrf.mxu0
    %v6151 = vadd.f32 %v6108, %v6150
    %v6152 = vpop.f32.mrf.mxu0
    %v6153 = vadd.f32 %v6110, %v6152
    %v6154 = vpop.f32.mrf.mxu0
    %v6155 = vadd.f32 %v6112, %v6154
    %6156 = vdwg.mxu0
    %6157 = vmatprep.subr.bf16.mxu0 %v4204
    %6158 = vmatpush1.bf16.msra.mxu0 %v4203
    %6159 = vmatprep.subr.bf16.mxu0 %v4200
    %6160 = vmatpush1.bf16.msra.mxu0 %v4199
    %6161 = vmatprep.subr.bf16.mxu0 %v4196
    %6162 = vmatpush1.bf16.msra.mxu0 %v4195
    %6163 = vmatprep.subr.bf16.mxu0 %v4192
    %6164 = vmatpush1.bf16.msra.mxu0 %v4191
    %6165 = vmatprep.subr.bf16.mxu0 %v4188
    %6166 = vmatpush1.bf16.msra.mxu0 %v4187
    %6167 = vmatprep.subr.bf16.mxu0 %v4184
    %6168 = vmatpush1.bf16.msra.mxu0 %v4183
    %6169 = vmatprep.subr.bf16.mxu0 %v4180
    %6170 = vmatpush1.bf16.msra.mxu0 %v4179
    %6171 = vmatprep.subr.bf16.mxu0 %v4176
    %6172 = vmatpush1.bf16.msra.mxu0 %v4175
    %6173 = vmatprep.subr.bf16.mxu0 %v4236
    %6174 = vmatpush2.bf16.msra.mxu0 %v4235
    %6175 = vmatprep.subr.bf16.mxu0 %v4232
    %6176 = vmatpush2.bf16.msra.mxu0 %v4231
    %6177 = vmatprep.subr.bf16.mxu0 %v4228
    %6178 = vmatpush2.bf16.msra.mxu0 %v4227
    %6179 = vmatprep.subr.bf16.mxu0 %v4224
    %6180 = vmatpush2.bf16.msra.mxu0 %v4223
    %6181 = vmatprep.subr.bf16.mxu0 %v4220
    %6182 = vmatpush2.bf16.msra.mxu0 %v4219
    %6183 = vmatprep.subr.bf16.mxu0 %v4216
    %6184 = vmatpush2.bf16.msra.mxu0 %v4215
    %6185 = vmatprep.subr.bf16.mxu0 %v4212
    %6186 = vmatpush2.bf16.msra.mxu0 %v4211
    %6187 = vmatprep.subr.bf16.mxu0 %v4208
    %6188 = vmatpush2.bf16.msra.mxu0 %v4207
    %6189 = vmatprep.mubr.bf16.mxu0 %v1163
    %6190 = vmatmul.mubr.bf16.gmra.mxu0 %v1159
    %v6191 = vpop.f32.mrf.mxu0
    %v6192 = vadd.f32 %v6149, %v6191
    %v6193 = vpop.f32.mrf.mxu0
    %v6194 = vadd.f32 %v6151, %v6193
    %v6195 = vpop.f32.mrf.mxu0
    %v6196 = vadd.f32 %v6153, %v6195
    %v6197 = vpop.f32.mrf.mxu0
    %v6198 = vadd.f32 %v6155, %v6197
    %6199 = vdwg.mxu0
    %6200 = vmatprep.subr.bf16.mxu0 %v4268
    %6201 = vmatpush1.bf16.msra.mxu0 %v4267
    %6202 = vmatprep.subr.bf16.mxu0 %v4264
    %6203 = vmatpush1.bf16.msra.mxu0 %v4263
    %6204 = vmatprep.subr.bf16.mxu0 %v4260
    %6205 = vmatpush1.bf16.msra.mxu0 %v4259
    %6206 = vmatprep.subr.bf16.mxu0 %v4256
    %6207 = vmatpush1.bf16.msra.mxu0 %v4255
    %6208 = vmatprep.subr.bf16.mxu0 %v4252
    %6209 = vmatpush1.bf16.msra.mxu0 %v4251
    %6210 = vmatprep.subr.bf16.mxu0 %v4248
    %6211 = vmatpush1.bf16.msra.mxu0 %v4247
    %6212 = vmatprep.subr.bf16.mxu0 %v4244
    %6213 = vmatpush1.bf16.msra.mxu0 %v4243
    %6214 = vmatprep.subr.bf16.mxu0 %v4240
    %6215 = vmatpush1.bf16.msra.mxu0 %v4239
    %6216 = vmatprep.subr.bf16.mxu0 %v4300
    %6217 = vmatpush2.bf16.msra.mxu0 %v4299
    %6218 = vmatprep.subr.bf16.mxu0 %v4296
    %6219 = vmatpush2.bf16.msra.mxu0 %v4295
    %6220 = vmatprep.subr.bf16.mxu0 %v4292
    %6221 = vmatpush2.bf16.msra.mxu0 %v4291
    %6222 = vmatprep.subr.bf16.mxu0 %v4288
    %6223 = vmatpush2.bf16.msra.mxu0 %v4287
    %6224 = vmatprep.subr.bf16.mxu0 %v4284
    %6225 = vmatpush2.bf16.msra.mxu0 %v4283
    %6226 = vmatprep.subr.bf16.mxu0 %v4280
    %6227 = vmatpush2.bf16.msra.mxu0 %v4279
    %6228 = vmatprep.subr.bf16.mxu0 %v4276
    %6229 = vmatpush2.bf16.msra.mxu0 %v4275
    %6230 = vmatprep.subr.bf16.mxu0 %v4272
    %6231 = vmatpush2.bf16.msra.mxu0 %v4271
    %6232 = vmatprep.mubr.bf16.mxu0 %v1296
    %6233 = vmatmul.mubr.bf16.gmra.mxu0 %v1292
    %v6234 = vpop.f32.mrf.mxu0
    %v6235 = vadd.f32 %v6192, %v6234
    %v6236 = vpop.f32.mrf.mxu0
    %v6237 = vadd.f32 %v6194, %v6236
    %v6238 = vpop.f32.mrf.mxu0
    %v6239 = vadd.f32 %v6196, %v6238
    %v6240 = vpop.f32.mrf.mxu0
    %v6241 = vadd.f32 %v6198, %v6240
    %6242 = vdwg.mxu0
    %6243 = vmatprep.subr.bf16.mxu0 %v4332
    %6244 = vmatpush1.bf16.msra.mxu0 %v4331
    %6245 = vmatprep.subr.bf16.mxu0 %v4328
    %6246 = vmatpush1.bf16.msra.mxu0 %v4327
    %6247 = vmatprep.subr.bf16.mxu0 %v4324
    %6248 = vmatpush1.bf16.msra.mxu0 %v4323
    %6249 = vmatprep.subr.bf16.mxu0 %v4320
    %6250 = vmatpush1.bf16.msra.mxu0 %v4319
    %6251 = vmatprep.subr.bf16.mxu0 %v4316
    %6252 = vmatpush1.bf16.msra.mxu0 %v4315
    %6253 = vmatprep.subr.bf16.mxu0 %v4312
    %6254 = vmatpush1.bf16.msra.mxu0 %v4311
    %6255 = vmatprep.subr.bf16.mxu0 %v4308
    %6256 = vmatpush1.bf16.msra.mxu0 %v4307
    %6257 = vmatprep.subr.bf16.mxu0 %v4304
    %6258 = vmatpush1.bf16.msra.mxu0 %v4303
    %6259 = vmatprep.subr.bf16.mxu0 %v4364
    %6260 = vmatpush2.bf16.msra.mxu0 %v4363
    %6261 = vmatprep.subr.bf16.mxu0 %v4360
    %6262 = vmatpush2.bf16.msra.mxu0 %v4359
    %6263 = vmatprep.subr.bf16.mxu0 %v4356
    %6264 = vmatpush2.bf16.msra.mxu0 %v4355
    %6265 = vmatprep.subr.bf16.mxu0 %v4352
    %6266 = vmatpush2.bf16.msra.mxu0 %v4351
    %6267 = vmatprep.subr.bf16.mxu0 %v4348
    %6268 = vmatpush2.bf16.msra.mxu0 %v4347
    %6269 = vmatprep.subr.bf16.mxu0 %v4344
    %6270 = vmatpush2.bf16.msra.mxu0 %v4343
    %6271 = vmatprep.subr.bf16.mxu0 %v4340
    %6272 = vmatpush2.bf16.msra.mxu0 %v4339
    %6273 = vmatprep.subr.bf16.mxu0 %v4336
    %6274 = vmatpush2.bf16.msra.mxu0 %v4335
    %6275 = vmatprep.mubr.bf16.mxu0 %v1297
    %6276 = vmatmul.mubr.bf16.gmra.mxu0 %v1293
    %v6277 = vpop.f32.mrf.mxu0
    %v6278 = vadd.f32 %v6235, %v6277
    %v6279 = vpop.f32.mrf.mxu0
    %v6280 = vadd.f32 %v6237, %v6279
    %v6281 = vpop.f32.mrf.mxu0
    %v6282 = vadd.f32 %v6239, %v6281
    %v6283 = vpop.f32.mrf.mxu0
    %v6284 = vadd.f32 %v6241, %v6283
    %6285 = vdwg.mxu0
    %6286 = vmatprep.subr.bf16.mxu0 %v4396
    %6287 = vmatpush1.bf16.msra.mxu0 %v4395
    %6288 = vmatprep.subr.bf16.mxu0 %v4392
    %6289 = vmatpush1.bf16.msra.mxu0 %v4391
    %6290 = vmatprep.subr.bf16.mxu0 %v4388
    %6291 = vmatpush1.bf16.msra.mxu0 %v4387
    %6292 = vmatprep.subr.bf16.mxu0 %v4384
    %6293 = vmatpush1.bf16.msra.mxu0 %v4383
    %6294 = vmatprep.subr.bf16.mxu0 %v4380
    %6295 = vmatpush1.bf16.msra.mxu0 %v4379
    %6296 = vmatprep.subr.bf16.mxu0 %v4376
    %6297 = vmatpush1.bf16.msra.mxu0 %v4375
    %6298 = vmatprep.subr.bf16.mxu0 %v4372
    %6299 = vmatpush1.bf16.msra.mxu0 %v4371
    %6300 = vmatprep.subr.bf16.mxu0 %v4368
    %6301 = vmatpush1.bf16.msra.mxu0 %v4367
    %6302 = vmatprep.subr.bf16.mxu0 %v4428
    %6303 = vmatpush2.bf16.msra.mxu0 %v4427
    %6304 = vmatprep.subr.bf16.mxu0 %v4424
    %6305 = vmatpush2.bf16.msra.mxu0 %v4423
    %6306 = vmatprep.subr.bf16.mxu0 %v4420
    %6307 = vmatpush2.bf16.msra.mxu0 %v4419
    %6308 = vmatprep.subr.bf16.mxu0 %v4416
    %6309 = vmatpush2.bf16.msra.mxu0 %v4415
    %6310 = vmatprep.subr.bf16.mxu0 %v4412
    %6311 = vmatpush2.bf16.msra.mxu0 %v4411
    %6312 = vmatprep.subr.bf16.mxu0 %v4408
    %6313 = vmatpush2.bf16.msra.mxu0 %v4407
    %6314 = vmatprep.subr.bf16.mxu0 %v4404
    %6315 = vmatpush2.bf16.msra.mxu0 %v4403
    %6316 = vmatprep.subr.bf16.mxu0 %v4400
    %6317 = vmatpush2.bf16.msra.mxu0 %v4399
    %6318 = vmatprep.mubr.bf16.mxu0 %v1298
    %6319 = vmatmul.mubr.bf16.gmra.mxu0 %v1294
    %v6320 = vpop.f32.mrf.mxu0
    %v6321 = vadd.f32 %v6278, %v6320
    %v6322 = vpop.f32.mrf.mxu0
    %v6323 = vadd.f32 %v6280, %v6322
    %v6324 = vpop.f32.mrf.mxu0
    %v6325 = vadd.f32 %v6282, %v6324
    %v6326 = vpop.f32.mrf.mxu0
    %v6327 = vadd.f32 %v6284, %v6326
    %6328 = vdwg.mxu0
    %6329 = vmatprep.subr.bf16.mxu0 %v4460
    %6330 = vmatpush1.bf16.msra.mxu0 %v4459
    %6331 = vmatprep.subr.bf16.mxu0 %v4456
    %6332 = vmatpush1.bf16.msra.mxu0 %v4455
    %6333 = vmatprep.subr.bf16.mxu0 %v4452
    %6334 = vmatpush1.bf16.msra.mxu0 %v4451
    %6335 = vmatprep.subr.bf16.mxu0 %v4448
    %6336 = vmatpush1.bf16.msra.mxu0 %v4447
    %6337 = vmatprep.subr.bf16.mxu0 %v4444
    %6338 = vmatpush1.bf16.msra.mxu0 %v4443
    %6339 = vmatprep.subr.bf16.mxu0 %v4440
    %6340 = vmatpush1.bf16.msra.mxu0 %v4439
    %6341 = vmatprep.subr.bf16.mxu0 %v4436
    %6342 = vmatpush1.bf16.msra.mxu0 %v4435
    %6343 = vmatprep.subr.bf16.mxu0 %v4432
    %6344 = vmatpush1.bf16.msra.mxu0 %v4431
    %6345 = vmatprep.subr.bf16.mxu0 %v4492
    %6346 = vmatpush2.bf16.msra.mxu0 %v4491
    %6347 = vmatprep.subr.bf16.mxu0 %v4488
    %6348 = vmatpush2.bf16.msra.mxu0 %v4487
    %6349 = vmatprep.subr.bf16.mxu0 %v4484
    %6350 = vmatpush2.bf16.msra.mxu0 %v4483
    %6351 = vmatprep.subr.bf16.mxu0 %v4480
    %6352 = vmatpush2.bf16.msra.mxu0 %v4479
    %6353 = vmatprep.subr.bf16.mxu0 %v4476
    %6354 = vmatpush2.bf16.msra.mxu0 %v4475
    %6355 = vmatprep.subr.bf16.mxu0 %v4472
    %6356 = vmatpush2.bf16.msra.mxu0 %v4471
    %6357 = vmatprep.subr.bf16.mxu0 %v4468
    %6358 = vmatpush2.bf16.msra.mxu0 %v4467
    %6359 = vmatprep.subr.bf16.mxu0 %v4464
    %6360 = vmatpush2.bf16.msra.mxu0 %v4463
    %6361 = vmatprep.mubr.bf16.mxu0 %v1299
    %6362 = vmatmul.mubr.bf16.gmra.mxu0 %v1295
    %v6363 = vpop.f32.mrf.mxu0
    %v6364 = vadd.f32 %v6321, %v6363
    %v6365 = vpop.f32.mrf.mxu0
    %v6366 = vadd.f32 %v6323, %v6365
    %v6367 = vpop.f32.mrf.mxu0
    %v6368 = vadd.f32 %v6325, %v6367
    %v6369 = vpop.f32.mrf.mxu0
    %v6370 = vadd.f32 %v6327, %v6369
    %6371 = vdwg.mxu0
    %6372 = vmatprep.subr.bf16.mxu0 0
    %6373 = vmatpush1.bf16.msra.mxu0 0
    %6374 = vmatprep.subr.bf16.mxu0 0
    %6375 = vmatpush1.bf16.msra.mxu0 0
    %6376 = vmatprep.subr.bf16.mxu0 0
    %6377 = vmatpush1.bf16.msra.mxu0 0
    %6378 = vmatprep.subr.bf16.mxu0 0
    %6379 = vmatpush1.bf16.msra.mxu0 0
    %6380 = vmatprep.subr.bf16.mxu0 %v4508
    %6381 = vmatpush1.bf16.msra.mxu0 %v4507
    %6382 = vmatprep.subr.bf16.mxu0 %v4504
    %6383 = vmatpush1.bf16.msra.mxu0 %v4503
    %6384 = vmatprep.subr.bf16.mxu0 %v4500
    %6385 = vmatpush1.bf16.msra.mxu0 %v4499
    %6386 = vmatprep.subr.bf16.mxu0 %v4496
    %6387 = vmatpush1.bf16.msra.mxu0 %v4495
    %6388 = vmatprep.subr.bf16.mxu0 0
    %6389 = vmatpush2.bf16.msra.mxu0 0
    %6390 = vmatprep.subr.bf16.mxu0 0
    %6391 = vmatpush2.bf16.msra.mxu0 0
    %6392 = vmatprep.subr.bf16.mxu0 0
    %6393 = vmatpush2.bf16.msra.mxu0 0
    %6394 = vmatprep.subr.bf16.mxu0 0
    %6395 = vmatpush2.bf16.msra.mxu0 0
    %6396 = vmatprep.subr.bf16.mxu0 0
    %6397 = vmatpush2.bf16.msra.mxu0 0
    %6398 = vmatprep.subr.bf16.mxu0 0
    %6399 = vmatpush2.bf16.msra.mxu0 0
    %6400 = vmatprep.subr.bf16.mxu0 0
    %6401 = vmatpush2.bf16.msra.mxu0 0
    %6402 = vmatprep.subr.bf16.mxu0 0
    %6403 = vmatpush2.bf16.msra.mxu0 0
    %6404 = vmatprep.mubr.bf16.mxu0 0
    %6405 = vmatmul.mubr.bf16.gmra.mxu0 %v5295
    %v6406 = vpop.f32.mrf.mxu0
    %v6407 = vadd.f32 %v6364, %v6406
    %v6408 = vpop.f32.mrf.mxu0
    %v6409 = vadd.f32 %v6366, %v6408
    %v6410 = vpop.f32.mrf.mxu0
    %v6411 = vadd.f32 %v6368, %v6410
    %v6412 = vpop.f32.mrf.mxu0
    %v6413 = vadd.f32 %v6370, %v6412
    %6414 = vdwg.mxu0
    %v6415 = vmax.f32 %v5848, 0.0
    %v6416 = vmax.f32 %v5850, 0.0
    %v6417 = vmax.f32 %v6407, 0.0
    %v6418 = vmax.f32 %v6409, 0.0
    %v6419 = vmax.f32 %v5852, 0.0
    %v6420 = vmax.f32 %v5854, 0.0
    %v6421 = vmax.f32 %v6411, 0.0
    %v6422 = vmax.f32 %v6413, 0.0
    %v6423 = vpack.c.bf16 %v6419, %v6415
    %v6424 = vpack.c.bf16 %v6420, %v6416
    %v6425 = vpack.c.bf16 %v6421, %v6417
    %v6426 = vpack.c.bf16 %v6422, %v6418
    %v6427 = vld [vmem:[%s3] sm:$0xf]
    %v6428 = vld [vmem:[%s3 + $0x4] sm:$0xf]
    %v6429 = vld [vmem:[%s3 + $0x8] sm:$0xf]
    %v6430 = vld [vmem:[%s3 + $0xc] sm:$0xf]
    %v6431 = vld [vmem:[%s3 + $0x10] sm:$0xf]
    %v6432 = vld [vmem:[%s3 + $0x14] sm:$0xf]
    %v6433 = vld [vmem:[%s3 + $0x18] sm:$0xf]
    %v6434 = vld [vmem:[%s3 + $0x1c] sm:$0xf]
    %v6435 = vld [vmem:[%s3 + $0x20] sm:$0xf]
    %v6436 = vld [vmem:[%s3 + $0x24] sm:$0xf]
    %v6437 = vld [vmem:[%s3 + $0x28] sm:$0xf]
    %v6438 = vld [vmem:[%s3 + $0x2c] sm:$0xf]
    %v6439 = vld [vmem:[%s3 + $0x30] sm:$0xf]
    %v6440 = vld [vmem:[%s3 + $0x34] sm:$0xf]
    %v6441 = vld [vmem:[%s3 + $0x38] sm:$0xf]
    %v6442 = vld [vmem:[%s3 + $0x3c] sm:$0xf]
    %v6443 = vld [vmem:[%s3 + $0x40] sm:$0xf]
    %v6444 = vld [vmem:[%s3 + $0x44] sm:$0xf]
    %v6445 = vld [vmem:[%s3 + $0x48] sm:$0xf]
    %v6446 = vld [vmem:[%s3 + $0x4c] sm:$0xf]
    %v6447 = vld [vmem:[%s3 + $0x50] sm:$0xf]
    %v6448 = vld [vmem:[%s3 + $0x54] sm:$0xf]
    %v6449 = vld [vmem:[%s3 + $0x58] sm:$0xf]
    %v6450 = vld [vmem:[%s3 + $0x5c] sm:$0xf]
    %v6451 = vld [vmem:[%s3 + $0x60] sm:$0xf]
    %v6452 = vld [vmem:[%s3 + $0x64] sm:$0xf]
    %v6453 = vld [vmem:[%s3 + $0x68] sm:$0xf]
    %v6454 = vld [vmem:[%s3 + $0x6c] sm:$0xf]
    %v6455 = vld [vmem:[%s3 + $0x70] sm:$0xf]
    %v6456 = vld [vmem:[%s3 + $0x74] sm:$0xf]
    %v6457 = vld [vmem:[%s3 + $0x78] sm:$0xf]
    %v6458 = vld [vmem:[%s3 + $0x7c] sm:$0xf]
    %v6459 = vld [vmem:[%s3 + $0x80] sm:$0xf]
    %v6460 = vld [vmem:[%s3 + $0x84] sm:$0xf]
    %v6461 = vld [vmem:[%s3 + $0x88] sm:$0xf]
    %v6462 = vld [vmem:[%s3 + $0x8c] sm:$0xf]
    %v6463 = vld [vmem:[%s3 + $0x90] sm:$0xf]
    %v6464 = vld [vmem:[%s3 + $0x94] sm:$0xf]
    %v6465 = vld [vmem:[%s3 + $0x98] sm:$0xf]
    %v6466 = vld [vmem:[%s3 + $0x9c] sm:$0xf]
    %v6467 = vld [vmem:[%s3 + $0xa0] sm:$0xf]
    %v6468 = vld [vmem:[%s3 + $0xa4] sm:$0xf]
    %v6469 = vld [vmem:[%s3 + $0xa8] sm:$0xf]
    %v6470 = vld [vmem:[%s3 + $0xac] sm:$0xf]
    %v6471 = vld [vmem:[%s3 + $0xb0] sm:$0xf]
    %v6472 = vld [vmem:[%s3 + $0xb4] sm:$0xf]
    %v6473 = vld [vmem:[%s3 + $0xb8] sm:$0xf]
    %v6474 = vld [vmem:[%s3 + $0xbc] sm:$0xf]
    %v6475 = vld [vmem:[%s3 + $0xc0] sm:$0xf]
    %v6476 = vld [vmem:[%s3 + $0xc4] sm:$0xf]
    %v6477 = vld [vmem:[%s3 + $0xc8] sm:$0xf]
    %v6478 = vld [vmem:[%s3 + $0xcc] sm:$0xf]
    %v6479 = vld [vmem:[%s3 + $0xd0] sm:$0xf]
    %v6480 = vld [vmem:[%s3 + $0xd4] sm:$0xf]
    %v6481 = vld [vmem:[%s3 + $0xd8] sm:$0xf]
    %v6482 = vld [vmem:[%s3 + $0xdc] sm:$0xf]
    %v6483 = vld [vmem:[%s3 + $0xe0] sm:$0xf]
    %v6484 = vld [vmem:[%s3 + $0xe4] sm:$0xf]
    %v6485 = vld [vmem:[%s3 + $0xe8] sm:$0xf]
    %v6486 = vld [vmem:[%s3 + $0xec] sm:$0xf]
    %v6487 = vld [vmem:[%s3 + $0xf0] sm:$0xf]
    %v6488 = vld [vmem:[%s3 + $0xf4] sm:$0xf]
    %v6489 = vld [vmem:[%s3 + $0xf8] sm:$0xf]
    %v6490 = vld [vmem:[%s3 + $0xfc] sm:$0xf]
    %v6491 = vld [vmem:[%s4] sm:$0x1]
    %v6493 = vlaneseq
    %v6494 = vshrl.u32 %v6493, 7
    %v6495 = vsub.s32 0, %v6494
    %v6496 = vrot.slane %v6491, %v6495
    %v6562 = vunpack.c.l.b16 %v6427
    %v6563 = vunpack.c.l.b16 %v6428
    %v6564 = vunpack.c.l.b16 %v6429
    %v6565 = vunpack.c.l.b16 %v6430
    %v6566 = vunpack.c.l.b16 %v6431
    %v6567 = vunpack.c.l.b16 %v6432
    %v6568 = vunpack.c.l.b16 %v6433
    %v6569 = vunpack.c.l.b16 %v6434
    %v6570 = vunpack.c.l.b16 %v6435
    %v6571 = vunpack.c.l.b16 %v6436
    %v6572 = vunpack.c.l.b16 %v6437
    %v6573 = vunpack.c.l.b16 %v6438
    %v6574 = vunpack.c.l.b16 %v6439
    %v6575 = vunpack.c.l.b16 %v6440
    %v6576 = vunpack.c.l.b16 %v6441
    %v6577 = vunpack.c.l.b16 %v6442
    %v6578 = vunpack.c.l.b16 %v6443
    %v6579 = vunpack.c.l.b16 %v6444
    %v6580 = vunpack.c.l.b16 %v6445
    %v6581 = vunpack.c.l.b16 %v6446
    %v6582 = vunpack.c.l.b16 %v6447
    %v6583 = vunpack.c.l.b16 %v6448
    %v6584 = vunpack.c.l.b16 %v6449
    %v6585 = vunpack.c.l.b16 %v6450
    %v6586 = vunpack.c.l.b16 %v6451
    %v6587 = vunpack.c.l.b16 %v6452
    %v6588 = vunpack.c.l.b16 %v6453
    %v6589 = vunpack.c.l.b16 %v6454
    %v6590 = vunpack.c.l.b16 %v6455
    %v6591 = vunpack.c.l.b16 %v6456
    %v6592 = vunpack.c.l.b16 %v6457
    %v6593 = vunpack.c.l.b16 %v6458
    %v6594 = vunpack.c.l.b16 %v6459
    %v6595 = vunpack.c.l.b16 %v6460
    %v6596 = vunpack.c.l.b16 %v6461
    %v6597 = vunpack.c.l.b16 %v6462
    %v6598 = vunpack.c.l.b16 %v6463
    %v6599 = vunpack.c.l.b16 %v6464
    %v6600 = vunpack.c.l.b16 %v6465
    %v6601 = vunpack.c.l.b16 %v6466
    %v6602 = vunpack.c.l.b16 %v6467
    %v6603 = vunpack.c.l.b16 %v6468
    %v6604 = vunpack.c.l.b16 %v6469
    %v6605 = vunpack.c.l.b16 %v6470
    %v6606 = vunpack.c.l.b16 %v6471
    %v6607 = vunpack.c.l.b16 %v6472
    %v6608 = vunpack.c.l.b16 %v6473
    %v6609 = vunpack.c.l.b16 %v6474
    %v6610 = vunpack.c.l.b16 %v6475
    %v6611 = vunpack.c.l.b16 %v6476
    %v6612 = vunpack.c.l.b16 %v6477
    %v6613 = vunpack.c.l.b16 %v6478
    %v6614 = vunpack.c.l.b16 %v6479
    %v6615 = vunpack.c.l.b16 %v6480
    %v6616 = vunpack.c.l.b16 %v6481
    %v6617 = vunpack.c.l.b16 %v6482
    %v6618 = vunpack.c.l.b16 %v6483
    %v6619 = vunpack.c.l.b16 %v6484
    %v6620 = vunpack.c.l.b16 %v6485
    %v6621 = vunpack.c.l.b16 %v6486
    %v6622 = vunpack.c.l.b16 %v6487
    %v6623 = vunpack.c.l.b16 %v6488
    %v6624 = vunpack.c.l.b16 %v6489
    %v6625 = vunpack.c.l.b16 %v6490
    %v6626 = vpack.c.b16 %v6563, %v6562
    %v6627 = vpack.c.b16 %v6565, %v6564
    %v6628 = vpack.c.b16 %v6567, %v6566
    %v6629 = vpack.c.b16 %v6569, %v6568
    %v6630 = vpack.c.b16 %v6571, %v6570
    %v6631 = vpack.c.b16 %v6573, %v6572
    %v6632 = vpack.c.b16 %v6575, %v6574
    %v6633 = vpack.c.b16 %v6577, %v6576
    %v6634 = vpack.c.b16 %v6579, %v6578
    %v6635 = vpack.c.b16 %v6581, %v6580
    %v6636 = vpack.c.b16 %v6583, %v6582
    %v6637 = vpack.c.b16 %v6585, %v6584
    %v6638 = vpack.c.b16 %v6587, %v6586
    %v6639 = vpack.c.b16 %v6589, %v6588
    %v6640 = vpack.c.b16 %v6591, %v6590
    %v6641 = vpack.c.b16 %v6593, %v6592
    %v6642 = vpack.c.b16 %v6595, %v6594
    %v6643 = vpack.c.b16 %v6597, %v6596
    %v6644 = vpack.c.b16 %v6599, %v6598
    %v6645 = vpack.c.b16 %v6601, %v6600
    %v6646 = vpack.c.b16 %v6603, %v6602
    %v6647 = vpack.c.b16 %v6605, %v6604
    %v6648 = vpack.c.b16 %v6607, %v6606
    %v6649 = vpack.c.b16 %v6609, %v6608
    %v6650 = vpack.c.b16 %v6611, %v6610
    %v6651 = vpack.c.b16 %v6613, %v6612
    %v6652 = vpack.c.b16 %v6615, %v6614
    %v6653 = vpack.c.b16 %v6617, %v6616
    %v6654 = vpack.c.b16 %v6619, %v6618
    %v6655 = vpack.c.b16 %v6621, %v6620
    %v6656 = vpack.c.b16 %v6623, %v6622
    %v6657 = vpack.c.b16 %v6625, %v6624
    %6690 = vmatprep.subr.bf16.mxu0 0
    %6691 = vmatpush1.bf16.msra.mxu0 %v6633
    %6692 = vmatprep.subr.bf16.mxu0 0
    %6693 = vmatpush1.bf16.msra.mxu0 %v6632
    %6694 = vmatprep.subr.bf16.mxu0 0
    %6695 = vmatpush1.bf16.msra.mxu0 %v6631
    %6696 = vmatprep.subr.bf16.mxu0 0
    %6697 = vmatpush1.bf16.msra.mxu0 %v6630
    %6698 = vmatprep.subr.bf16.mxu0 0
    %6699 = vmatpush1.bf16.msra.mxu0 %v6629
    %6700 = vmatprep.subr.bf16.mxu0 0
    %6701 = vmatpush1.bf16.msra.mxu0 %v6628
    %6702 = vmatprep.subr.bf16.mxu0 0
    %6703 = vmatpush1.bf16.msra.mxu0 %v6627
    %6704 = vmatprep.subr.bf16.mxu0 0
    %6705 = vmatpush1.bf16.msra.mxu0 %v6626
    %6706 = vmatprep.subr.bf16.mxu0 0
    %6707 = vmatpush2.bf16.msra.mxu0 %v6641
    %6708 = vmatprep.subr.bf16.mxu0 0
    %6709 = vmatpush2.bf16.msra.mxu0 %v6640
    %6710 = vmatprep.subr.bf16.mxu0 0
    %6711 = vmatpush2.bf16.msra.mxu0 %v6639
    %6712 = vmatprep.subr.bf16.mxu0 0
    %6713 = vmatpush2.bf16.msra.mxu0 %v6638
    %6714 = vmatprep.subr.bf16.mxu0 0
    %6715 = vmatpush2.bf16.msra.mxu0 %v6637
    %6716 = vmatprep.subr.bf16.mxu0 0
    %6717 = vmatpush2.bf16.msra.mxu0 %v6636
    %6718 = vmatprep.subr.bf16.mxu0 0
    %6719 = vmatpush2.bf16.msra.mxu0 %v6635
    %6720 = vmatprep.subr.bf16.mxu0 0
    %6721 = vmatpush2.bf16.msra.mxu0 %v6634
    %6722 = vmatprep.mubr.bf16.mxu0 %v6424
    %6723 = vmatmul.mubr.bf16.gmra.mxu0 %v6423
    %v6724 = vpop.f32.mrf.mxu0
    %v6725 = vadd.f32 %v6496, %v6724
    %v6726 = vpop.f32.mrf.mxu0
    %v6727 = vpop.f32.mrf.mxu0
    %v6728 = vadd.f32 %v6496, %v6727
    %v6729 = vpop.f32.mrf.mxu0
    %6730 = vdwg.mxu0
    %6731 = vmatprep.subr.bf16.mxu0 0
    %6732 = vmatpush1.bf16.msra.mxu0 %v6649
    %6733 = vmatprep.subr.bf16.mxu0 0
    %6734 = vmatpush1.bf16.msra.mxu0 %v6648
    %6735 = vmatprep.subr.bf16.mxu0 0
    %6736 = vmatpush1.bf16.msra.mxu0 %v6647
    %6737 = vmatprep.subr.bf16.mxu0 0
    %6738 = vmatpush1.bf16.msra.mxu0 %v6646
    %6739 = vmatprep.subr.bf16.mxu0 0
    %6740 = vmatpush1.bf16.msra.mxu0 %v6645
    %6741 = vmatprep.subr.bf16.mxu0 0
    %6742 = vmatpush1.bf16.msra.mxu0 %v6644
    %6743 = vmatprep.subr.bf16.mxu0 0
    %6744 = vmatpush1.bf16.msra.mxu0 %v6643
    %6745 = vmatprep.subr.bf16.mxu0 0
    %6746 = vmatpush1.bf16.msra.mxu0 %v6642
    %6747 = vmatprep.subr.bf16.mxu0 0
    %6748 = vmatpush2.bf16.msra.mxu0 %v6657
    %6749 = vmatprep.subr.bf16.mxu0 0
    %6750 = vmatpush2.bf16.msra.mxu0 %v6656
    %6751 = vmatprep.subr.bf16.mxu0 0
    %6752 = vmatpush2.bf16.msra.mxu0 %v6655
    %6753 = vmatprep.subr.bf16.mxu0 0
    %6754 = vmatpush2.bf16.msra.mxu0 %v6654
    %6755 = vmatprep.subr.bf16.mxu0 0
    %6756 = vmatpush2.bf16.msra.mxu0 %v6653
    %6757 = vmatprep.subr.bf16.mxu0 0
    %6758 = vmatpush2.bf16.msra.mxu0 %v6652
    %6759 = vmatprep.subr.bf16.mxu0 0
    %6760 = vmatpush2.bf16.msra.mxu0 %v6651
    %6761 = vmatprep.subr.bf16.mxu0 0
    %6762 = vmatpush2.bf16.msra.mxu0 %v6650
    %6763 = vmatprep.mubr.bf16.mxu0 %v6426
    %6764 = vmatmul.mubr.bf16.gmra.mxu0 %v6425
    %v6765 = vpop.f32.mrf.mxu0
    %v6766 = vadd.f32 %v6725, %v6765
    %v6767 = vpop.f32.mrf.mxu0
    %v6768 = vpop.f32.mrf.mxu0
    %v6769 = vadd.f32 %v6728, %v6768
    %v6770 = vpop.f32.mrf.mxu0
    %6771 = vdwg.mxu0
    %6772 = vst [vmem:[#allocation2] sm:$0xff] %v6766
    %6773 = vst [vmem:[#allocation2 + $0x8] sm:$0xff] %v6769
    // Predicated region
    $region22: #{dqn_forward.3} parent=1 // pred_check
      _
    $region23: #{dqn_forward.3} parent=1 // pred_check_branch
      %6775 = sbr.rel (0) target = $region25
    $region24: #{dqn_forward.3} parent=1 // pred_region
      %s6777 = ssub.s32 256, 32
      %6778 = vsyncadd [#allocation3], %s6777
      %s6779 = sshll.u32 [#allocation2], 4
      %s6780 = int_to_ptr.vmem [resolvable:$true] %s6779
      %6785 = dma.vmem_to_hbm [thread:$0]  %s6780, 32, %s5, [#allocation3], 32, 32, 2
    $region25: #{dqn_forward.3} parent=1 // pred_fallthru
      _
    // Predicated region
    $region26: #{dqn_forward.3} parent=1 // pred_check
      _
    $region27: #{dqn_forward.3} parent=1 // pred_check_branch
      %6787 = sbr.rel (0) target = $region29
    $region28: #{dqn_forward.3} parent=1 // pred_region
      %6788 = dma.done [#allocation3], 256
    $region29: #{dqn_forward.3} parent=1 // pred_fallthru
      _
    %6789 = vsyncpa [#allocation3], 1

</llo_original>
